<compile_context>
chip_gen: v6e
topology: v6e:2x2x1
jax: 0.10.0
libtpu: 0.0.40
codegen_flags: <defaults>
</compile_context>

<pallas_src>
import numpy as np
import jax
import jax.numpy as jnp
from jax.experimental import pallas as pl
from jax.experimental.pallas import tpu as pltpu

# ------------------------- module hyper-parameters -------------------------
STATE_SPACE = 2
ACTION_SPACE = 2
N_BASIS = 3                                   # N
T_STEPS = 5                                   # T
L_SUB = 1                                     # l (y[:, :, ::l] hardcoded for l=1)
TAU = 1.0
DOF = 2                                       # len(state_index)
HIDDEN = 64
B_INIT = 0.1
DT = 1.0 / (T_STEPS * L_SUB)                  # 0.2
TIME_STEPS = int(round(TAU / DT)) + 1         # 6
OUTPUT_SIZE = N_BASIS * DOF + DOF             # 8
A_X = 1.0
DY0 = 0.01

# DMPParameters basis: c = exp(-a_x*linspace(0,1,N)), sigma2 = N^1.5 / c / a_x
_C_NP = np.exp(-A_X * np.linspace(0.0, 1.0, N_BASIS))
_S2_NP = np.ones(N_BASIS) * (N_BASIS ** 1.5) / _C_NP / A_X

# Padded layout of the pooled 12x12 conv1 grid inside the kernel:
# column index (per sample) = i*ROW_STRIDE + j, plus a zero tail so the 25
# conv2 tap shifts (offset ki*ROW_STRIDE + kj <= 68) stay inside the sample.
ROW_STRIDE = 16
PLANE = 12 * ROW_STRIDE                       # 192 columns per sample
TAIL_PAD = 80
BLK = PLANE + TAIL_PAD                        # 272 columns per sample


def _build_psi_mat():
    """Fold the constant RBF basis, phase variable and 1/sum(psi) of every DMP
    time step into a ((TIME_STEPS-1)*DOF, DOF*N) matrix so the forcing terms of
    all steps reduce to one matmul inside the kernel."""
    mat = np.zeros((DOF * (TIME_STEPS - 1), DOF * N_BASIS), np.float64)
    x = 1.0
    for t in range(TIME_STEPS - 1):
        x = x + (-A_X * x) * TAU * DT
        psi = np.exp(-0.5 * (x - _C_NP) ** 2 / _S2_NP)
        coeff = psi * x / psi.sum()
        for d in range(DOF):
            mat[t * DOF + d, d * N_BASIS:(d + 1) * N_BASIS] = coeff
    return mat.astype(np.float32)


# ------------------------------ Pallas kernel -------------------------------
def _cnn_ndp_kernel(p1q_ref, state_ref, w1_ref, b1_ref, w2_ref, b2_ref,
                    fc1_ws_ref, fc1_wf_ref, fc1_b_ref, hw_ref, hb_ref, psi_ref,
                    a_ref, sig_ref, val_ref):
    B = state_ref.shape[1]
    state = state_ref[...]                             # (3, B)

    # ---- conv1 + ReLU + 2x2 maxpool (batched, lane-dense) ------------------
    # p1q_ref[d] is the im2col matrix of pool phase d: (25, B*BLK).
    w1 = w1_ref[...]                                   # (10, 25)
    y1 = None
    for d in range(4):
        yd = jnp.dot(w1, p1q_ref[d], preferred_element_type=jnp.float32)
        y1 = yd if y1 is None else jnp.maximum(y1, yd)
    y1 = jnp.maximum(y1 + b1_ref[...], 0.0)            # (10, B*BLK); col=b*BLK+i*16+j

    # ---- conv2 as 25 shifted-tap matmuls (no im2col, no HBM round trip) ----
    W = y1.shape[1] - TAIL_PAD                         # output columns (all samples)
    acc = None
    for ki in range(5):
        for kj in range(5):
            off = ki * ROW_STRIDE + kj
            term = jnp.dot(w2_ref[ki * 5 + kj], y1[:, off:off + W],
                           preferred_element_type=jnp.float32)
            acc = term if acc is None else acc + term
    y2 = jnp.maximum(acc + b2_ref[...], 0.0)           # (10, W); valid col=b*BLK+i2*16+j2

    # ---- 2x2 maxpool + NCHW flatten + fc1 feature contribution -------------
    # fc1 feature weights were permuted on the host to the kernel's natural
    # (spatial position, channel) order, so no in-kernel transpose is needed.
    fc1_wf = fc1_wf_ref[...]                           # (64, 160)
    hcols = []
    for b in range(B):
        base = b * BLK
        qs = []
        for ii in range(4):
            for jj in range(4):
                r = base + (2 * ii) * ROW_STRIDE + 2 * jj
                q = jnp.maximum(
                    jnp.maximum(y2[:, r:r + 1], y2[:, r + 1:r + 2]),
                    jnp.maximum(y2[:, r + ROW_STRIDE:r + ROW_STRIDE + 1],
                                y2[:, r + ROW_STRIDE + 1:r + ROW_STRIDE + 2]))
                qs.append(q)                           # (10, 1)
        feat = jnp.concatenate(qs, axis=0)             # (160, 1); row = (ii*4+jj)*10+c
        hcols.append(jnp.dot(fc1_wf, feat, preferred_element_type=jnp.float32))
    h = jnp.concatenate(hcols, axis=1)                 # (64, B)
    h = h + jnp.dot(fc1_ws_ref[...], state, preferred_element_type=jnp.float32)
    h = jnp.tanh(h + fc1_b_ref[...]) * 0.1             # (64, B)

    # ---- fused heads: rows [fc2_mean(8) | sigma(2) | fc2_value(2)] ---------
    h2 = jnp.dot(hw_ref[...], h, preferred_element_type=jnp.float32) + hb_ref[...]

    sig_ref[...] = 1.0 / (1.0 + jnp.exp(
        -h2[OUTPUT_SIZE:OUTPUT_SIZE + ACTION_SPACE, :])) * 1.0 + 0.001

    v = h2[OUTPUT_SIZE + ACTION_SPACE:, :]             # (2, B)
    val_ref[...] = jnp.concatenate(
        [jnp.broadcast_to(v[0:1, :], (T_STEPS, B)),
         jnp.broadcast_to(v[1:2, :], (T_STEPS, B))], axis=0)

    # ---- DMP rollout (az=True), consecutive-position diffs -----------------
    # TODO(synk): DMPParameters/DMPIntegrator source is external to the module;
    # this reproduces the canonical NDP gaussian-RBF rollout (same math as the
    # previously validated kernel, with phase/basis constants pre-folded).
    goal = h2[0:DOF, :]                                # (2, B)
    ndp_w = h2[DOF:DOF * (N_BASIS + 1), :]             # (6, B)
    a_z = jnp.clip(h2[OUTPUT_SIZE - 1:OUTPUT_SIZE, :], 0.5, 30.0)   # (1, B)
    b_z = a_z * 0.25
    y0 = state[0:DOF, :]                               # (2, B)
    fx_all = jnp.dot(psi_ref[...], ndp_w, preferred_element_type=jnp.float32)

    y = y0
    z = jnp.zeros_like(y0) + (DY0 * TAU)
    diffs = []
    for t in range(TIME_STEPS - 1):
        fx = fx_all[DOF * t:DOF * (t + 1), :] * (goal - y0)
        dz = (a_z * (b_z * (goal - y) - z) + fx) * TAU
        dy = z * TAU
        y_new = y + dy * DT
        z = z + dz * DT
        diffs.append(y_new - y)
        y = y_new
    # single store of all diffs, row order d*T + t
    a_ref[...] = jnp.concatenate(
        [diffs[t][d:d + 1, :] for d in range(DOF) for t in range(TIME_STEPS - 1)],
        axis=0)


# --------------------------------- JAX glue ---------------------------------
def _conv1_quadrant_patches(img):
    """img:(B,28,28) -> (4, 25, B*BLK): per pool-phase im2col matrices of
    conv1, transposed (taps on rows, batch*spatial on lanes), spatial column
    index inside a sample = i*ROW_STRIDE + j over the pooled 12x12 grid."""
    B = img.shape[0]
    cols = [img[:, ki:ki + 24, kj:kj + 24] for ki in range(5) for kj in range(5)]
    patches = jnp.stack(cols, axis=1)                  # (B, 25, 24, 24)
    quads = []
    for di in range(2):
        for dj in range(2):
            q = patches[:, :, di::2, dj::2]            # (B, 25, 12, 12)
            q = jnp.pad(q, ((0, 0), (0, 0), (0, 0), (0, ROW_STRIDE - 12)))
            q = q.reshape(B, 25, PLANE)
            q = jnp.pad(q, ((0, 0), (0, 0), (0, BLK - PLANE)))
            q = jnp.transpose(q, (1, 0, 2)).reshape(25, B * BLK)
            quads.append(q)
    return jnp.stack(quads, axis=0)                    # (4, 25, B*BLK)


def make_params(key):
    """Deterministic synthetic parameters (shapes follow CNNndprl.__init__),
    pre-laid-out for the fused channel-major kernel."""
    keys = jax.random.split(key, 6)

    def rnd(k, shape, scale):
        return scale * jax.random.normal(k, shape, jnp.float32)

    conv1_w = rnd(keys[0], (10, 1, 5, 5), 0.1)             # PyTorch OIHW
    conv2_w = rnd(keys[1], (10, 10, 5, 5), 0.05)
    fc1_w = rnd(keys[2], (HIDDEN, STATE_SPACE + 1 + 160), 1.0 / np.sqrt(163.0))
    fc2m_w = rnd(keys[3], (OUTPUT_SIZE, HIDDEN), 1.0 / np.sqrt(HIDDEN))
    sig_w = rnd(keys[4], (ACTION_SPACE, HIDDEN), 1.0 / np.sqrt(HIDDEN))
    fc2v_w = rnd(keys[5], (ACTION_SPACE, HIDDEN), 1.0 / np.sqrt(HIDDEN))

    # fc1 feature columns permuted from PyTorch's NCHW flatten order
    # (3 + c*16 + s) to the kernel's natural (s, c) order, s = ii*4 + jj.
    fc1_wf = jnp.transpose(fc1_w[:, 3:].reshape(HIDDEN, 10, 16),
                           (0, 2, 1)).reshape(HIDDEN, 160)

    return {
        "w1": conv1_w.reshape(10, 25),                           # (co, ki*5+kj)
        "b1": jnp.full((10, 1), 0.01, jnp.float32),
        "w2": jnp.transpose(conv2_w, (2, 3, 0, 1)).reshape(25, 10, 10),  # (tap, co, ci)
        "b2": jnp.full((10, 1), 0.01, jnp.float32),
        "fc1_ws": fc1_w[:, :3],                                  # (64, 3) state part
        "fc1_wf": fc1_wf,                                        # (64, 160) feature part
        "fc1_b": jnp.full((HIDDEN, 1), B_INIT, jnp.float32),
        "heads_w": jnp.concatenate([fc2m_w, sig_w, fc2v_w], axis=0),     # (12, 64)
        "heads_b": jnp.concatenate(
            [jnp.full((OUTPUT_SIZE, 1), B_INIT, jnp.float32),
             jnp.zeros((ACTION_SPACE, 1), jnp.float32),
             jnp.zeros((ACTION_SPACE, 1), jnp.float32)], axis=0),        # (12, 1)
        "psi_mat": jnp.asarray(_build_psi_mat()),                # (10, 6)
    }


def forward(params, state, image):
    """Mirrors CNNndprl.forward(state, image) -> (a, sigma, value)."""
    B = state.shape[0]
    state_t = state.reshape(-1, 3).astype(jnp.float32).T         # (3, B)
    img = image.reshape(-1, 28, 28).astype(jnp.float32)
    p1q = _conv1_quadrant_patches(img)                           # (4, 25, B*BLK)

    vm = pl.BlockSpec(memory_space=pltpu.MemorySpace.VMEM)
    # TODO(synk): for large batch sizes, add a grid over batch tiles with
    # dimension_semantics=("parallel",) to use both v7x TensorCores; at B=2 a
    # single gridless block is optimal (launch-overhead bound).
    a_t, sig_t, val_t = pl.pallas_call(
        _cnn_ndp_kernel,
        out_shape=(jax.ShapeDtypeStruct((DOF * (TIME_STEPS - 1), B), jnp.float32),
                   jax.ShapeDtypeStruct((ACTION_SPACE, B), jnp.float32),
                   jax.ShapeDtypeStruct((DOF * T_STEPS, B), jnp.float32)),
        in_specs=[vm] * 12,
        out_specs=(vm, vm, vm),
    )(p1q, state_t, params["w1"], params["b1"], params["w2"], params["b2"],
      params["fc1_ws"], params["fc1_wf"], params["fc1_b"],
      params["heads_w"], params["heads_b"], params["psi_mat"])

    a = a_t.T.reshape(B, DOF, TIME_STEPS - 1)
    sigma = sig_t.T.reshape(B, DOF, 1)
    value = val_t.T.reshape(B, DOF, T_STEPS)
    return a, sigma, value


if __name__ == "__main__":
    key = jax.random.PRNGKey(0)
    kp, ks, ki = jax.random.split(key, 3)
    params = make_params(kp)

    B = 2
    state = jax.random.normal(ks, (B, 3), jnp.float32)
    image = jax.random.normal(ki, (B, 1, 28, 28), jnp.float32)

    fwd = jax.jit(forward)
    a, sigma, value = fwd(params, state, image)
    jax.block_until_ready((a, sigma, value))

    assert a.shape == (B, DOF, T_STEPS)
    assert sigma.shape == (B, DOF, 1)
    assert value.shape == (B, DOF, T_STEPS)
    assert bool(jnp.all(jnp.isfinite(a)))
    assert bool(jnp.all(jnp.isfinite(sigma)))
    assert bool(jnp.all(jnp.isfinite(value)))
    print("KERNEL_OK")
</pallas_src>

<mosaic_0001>
module attributes {stable_mosaic.version = 11 : i64} {
  func.func @_cnn_ndp_kernel(%arg0: memref<4x25x544xf32, #tpu.memory_space<vmem>>, %arg1: memref<3x2xf32, #tpu.memory_space<vmem>>, %arg2: memref<10x25xf32, #tpu.memory_space<vmem>>, %arg3: memref<10x1xf32, #tpu.memory_space<vmem>>, %arg4: memref<25x10x10xf32, #tpu.memory_space<vmem>>, %arg5: memref<10x1xf32, #tpu.memory_space<vmem>>, %arg6: memref<64x3xf32, #tpu.memory_space<vmem>>, %arg7: memref<64x160xf32, #tpu.memory_space<vmem>>, %arg8: memref<64x1xf32, #tpu.memory_space<vmem>>, %arg9: memref<12x64xf32, #tpu.memory_space<vmem>>, %arg10: memref<12x1xf32, #tpu.memory_space<vmem>>, %arg11: memref<10x6xf32, #tpu.memory_space<vmem>>, %arg12: memref<10x2xf32, #tpu.memory_space<vmem>>, %arg13: memref<2x2xf32, #tpu.memory_space<vmem>>, %arg14: memref<10x2xf32, #tpu.memory_space<vmem>>) attributes {dimension_semantics = [], scalar_prefetch = 0 : i64, scratch_operands = 0 : i64, tpu.core_type = #tpu.core_type<tc>} {
    %c0 = arith.constant 0 : index
    %c0_0 = arith.constant 0 : index
    %0 = vector.load %arg1[%c0, %c0_0] : memref<3x2xf32, #tpu.memory_space<vmem>>, vector<3x2xf32>
    %c0_1 = arith.constant 0 : index
    %c0_2 = arith.constant 0 : index
    %1 = vector.load %arg2[%c0_1, %c0_2] : memref<10x25xf32, #tpu.memory_space<vmem>>, vector<10x25xf32>
    %c0_3 = arith.constant 0 : index
    %c0_4 = arith.constant 0 : index
    %c0_5 = arith.constant 0 : index
    %2 = vector.load %arg0[%c0_3, %c0_4, %c0_5] : memref<4x25x544xf32, #tpu.memory_space<vmem>>, vector<1x25x544xf32>
    %3 = vector.shape_cast %2 : vector<1x25x544xf32> to vector<25x544xf32>
    %cst = arith.constant dense<0.000000e+00> : vector<10x544xf32>
    %4 = tpu.matmul %1, %3, %cst {dimension_numbers = #tpu.dot_dimension_numbers<[1], [0], [0], [1], [0, 0, 1, 1], [], []>} : vector<10x25xf32>, vector<25x544xf32>, vector<10x544xf32> -> vector<10x544xf32>
    %c1 = arith.constant 1 : index
    %c0_6 = arith.constant 0 : index
    %c0_7 = arith.constant 0 : index
    %5 = vector.load %arg0[%c1, %c0_6, %c0_7] : memref<4x25x544xf32, #tpu.memory_space<vmem>>, vector<1x25x544xf32>
    %6 = vector.shape_cast %5 : vector<1x25x544xf32> to vector<25x544xf32>
    %cst_8 = arith.constant dense<0.000000e+00> : vector<10x544xf32>
    %7 = tpu.matmul %1, %6, %cst_8 {dimension_numbers = #tpu.dot_dimension_numbers<[1], [0], [0], [1], [0, 0, 1, 1], [], []>} : vector<10x25xf32>, vector<25x544xf32>, vector<10x544xf32> -> vector<10x544xf32>
    %8 = arith.maximumf %4, %7 : vector<10x544xf32>
    %c2 = arith.constant 2 : index
    %c0_9 = arith.constant 0 : index
    %c0_10 = arith.constant 0 : index
    %9 = vector.load %arg0[%c2, %c0_9, %c0_10] : memref<4x25x544xf32, #tpu.memory_space<vmem>>, vector<1x25x544xf32>
    %10 = vector.shape_cast %9 : vector<1x25x544xf32> to vector<25x544xf32>
    %cst_11 = arith.constant dense<0.000000e+00> : vector<10x544xf32>
    %11 = tpu.matmul %1, %10, %cst_11 {dimension_numbers = #tpu.dot_dimension_numbers<[1], [0], [0], [1], [0, 0, 1, 1], [], []>} : vector<10x25xf32>, vector<25x544xf32>, vector<10x544xf32> -> vector<10x544xf32>
    %12 = arith.maximumf %8, %11 : vector<10x544xf32>
    %c3 = arith.constant 3 : index
    %c0_12 = arith.constant 0 : index
    %c0_13 = arith.constant 0 : index
    %13 = vector.load %arg0[%c3, %c0_12, %c0_13] : memref<4x25x544xf32, #tpu.memory_space<vmem>>, vector<1x25x544xf32>
    %14 = vector.shape_cast %13 : vector<1x25x544xf32> to vector<25x544xf32>
    %cst_14 = arith.constant dense<0.000000e+00> : vector<10x544xf32>
    %15 = tpu.matmul %1, %14, %cst_14 {dimension_numbers = #tpu.dot_dimension_numbers<[1], [0], [0], [1], [0, 0, 1, 1], [], []>} : vector<10x25xf32>, vector<25x544xf32>, vector<10x544xf32> -> vector<10x544xf32>
    %16 = arith.maximumf %12, %15 : vector<10x544xf32>
    %c0_15 = arith.constant 0 : index
    %c0_16 = arith.constant 0 : index
    %17 = vector.load %arg3[%c0_15, %c0_16] : memref<10x1xf32, #tpu.memory_space<vmem>>, vector<10x1xf32>
    %18 = vector.broadcast %17 : vector<10x1xf32> to vector<10x544xf32>
    %19 = arith.addf %16, %18 : vector<10x544xf32>
    %cst_17 = arith.constant 0.000000e+00 : f32
    %20 = vector.broadcast %cst_17 : f32 to vector<10x544xf32>
    %21 = arith.maximumf %19, %20 : vector<10x544xf32>
    %c0_18 = arith.constant 0 : index
    %c0_19 = arith.constant 0 : index
    %c0_20 = arith.constant 0 : index
    %22 = vector.load %arg4[%c0_18, %c0_19, %c0_20] : memref<25x10x10xf32, #tpu.memory_space<vmem>>, vector<1x10x10xf32>
    %23 = vector.shape_cast %22 : vector<1x10x10xf32> to vector<10x10xf32>
    %24 = vector.extract_strided_slice %21 {offsets = [0, 0], sizes = [10, 464], strides = [1, 1]} : vector<10x544xf32> to vector<10x464xf32>
    %cst_21 = arith.constant dense<0.000000e+00> : vector<10x464xf32>
    %25 = tpu.matmul %23, %24, %cst_21 {dimension_numbers = #tpu.dot_dimension_numbers<[1], [0], [0], [1], [0, 0, 1, 1], [], []>} : vector<10x10xf32>, vector<10x464xf32>, vector<10x464xf32> -> vector<10x464xf32>
    %c1_22 = arith.constant 1 : index
    %c0_23 = arith.constant 0 : index
    %c0_24 = arith.constant 0 : index
    %26 = vector.load %arg4[%c1_22, %c0_23, %c0_24] : memref<25x10x10xf32, #tpu.memory_space<vmem>>, vector<1x10x10xf32>
    %27 = vector.shape_cast %26 : vector<1x10x10xf32> to vector<10x10xf32>
    %28 = vector.extract_strided_slice %21 {offsets = [0, 1], sizes = [10, 464], strides = [1, 1]} : vector<10x544xf32> to vector<10x464xf32>
    %cst_25 = arith.constant dense<0.000000e+00> : vector<10x464xf32>
    %29 = tpu.matmul %27, %28, %cst_25 {dimension_numbers = #tpu.dot_dimension_numbers<[1], [0], [0], [1], [0, 0, 1, 1], [], []>} : vector<10x10xf32>, vector<10x464xf32>, vector<10x464xf32> -> vector<10x464xf32>
    %30 = arith.addf %25, %29 : vector<10x464xf32>
    %c2_26 = arith.constant 2 : index
    %c0_27 = arith.constant 0 : index
    %c0_28 = arith.constant 0 : index
    %31 = vector.load %arg4[%c2_26, %c0_27, %c0_28] : memref<25x10x10xf32, #tpu.memory_space<vmem>>, vector<1x10x10xf32>
    %32 = vector.shape_cast %31 : vector<1x10x10xf32> to vector<10x10xf32>
    %33 = vector.extract_strided_slice %21 {offsets = [0, 2], sizes = [10, 464], strides = [1, 1]} : vector<10x544xf32> to vector<10x464xf32>
    %cst_29 = arith.constant dense<0.000000e+00> : vector<10x464xf32>
    %34 = tpu.matmul %32, %33, %cst_29 {dimension_numbers = #tpu.dot_dimension_numbers<[1], [0], [0], [1], [0, 0, 1, 1], [], []>} : vector<10x10xf32>, vector<10x464xf32>, vector<10x464xf32> -> vector<10x464xf32>
    %35 = arith.addf %30, %34 : vector<10x464xf32>
    %c3_30 = arith.constant 3 : index
    %c0_31 = arith.constant 0 : index
    %c0_32 = arith.constant 0 : index
    %36 = vector.load %arg4[%c3_30, %c0_31, %c0_32] : memref<25x10x10xf32, #tpu.memory_space<vmem>>, vector<1x10x10xf32>
    %37 = vector.shape_cast %36 : vector<1x10x10xf32> to vector<10x10xf32>
    %38 = vector.extract_strided_slice %21 {offsets = [0, 3], sizes = [10, 464], strides = [1, 1]} : vector<10x544xf32> to vector<10x464xf32>
    %cst_33 = arith.constant dense<0.000000e+00> : vector<10x464xf32>
    %39 = tpu.matmul %37, %38, %cst_33 {dimension_numbers = #tpu.dot_dimension_numbers<[1], [0], [0], [1], [0, 0, 1, 1], [], []>} : vector<10x10xf32>, vector<10x464xf32>, vector<10x464xf32> -> vector<10x464xf32>
    %40 = arith.addf %35, %39 : vector<10x464xf32>
    %c4 = arith.constant 4 : index
    %c0_34 = arith.constant 0 : index
    %c0_35 = arith.constant 0 : index
    %41 = vector.load %arg4[%c4, %c0_34, %c0_35] : memref<25x10x10xf32, #tpu.memory_space<vmem>>, vector<1x10x10xf32>
    %42 = vector.shape_cast %41 : vector<1x10x10xf32> to vector<10x10xf32>
    %43 = vector.extract_strided_slice %21 {offsets = [0, 4], sizes = [10, 464], strides = [1, 1]} : vector<10x544xf32> to vector<10x464xf32>
    %cst_36 = arith.constant dense<0.000000e+00> : vector<10x464xf32>
    %44 = tpu.matmul %42, %43, %cst_36 {dimension_numbers = #tpu.dot_dimension_numbers<[1], [0], [0], [1], [0, 0, 1, 1], [], []>} : vector<10x10xf32>, vector<10x464xf32>, vector<10x464xf32> -> vector<10x464xf32>
    %45 = arith.addf %40, %44 : vector<10x464xf32>
    %c5 = arith.constant 5 : index
    %c0_37 = arith.constant 0 : index
    %c0_38 = arith.constant 0 : index
    %46 = vector.load %arg4[%c5, %c0_37, %c0_38] : memref<25x10x10xf32, #tpu.memory_space<vmem>>, vector<1x10x10xf32>
    %47 = vector.shape_cast %46 : vector<1x10x10xf32> to vector<10x10xf32>
    %48 = vector.extract_strided_slice %21 {offsets = [0, 16], sizes = [10, 464], strides = [1, 1]} : vector<10x544xf32> to vector<10x464xf32>
    %cst_39 = arith.constant dense<0.000000e+00> : vector<10x464xf32>
    %49 = tpu.matmul %47, %48, %cst_39 {dimension_numbers = #tpu.dot_dimension_numbers<[1], [0], [0], [1], [0, 0, 1, 1], [], []>} : vector<10x10xf32>, vector<10x464xf32>, vector<10x464xf32> -> vector<10x464xf32>
    %50 = arith.addf %45, %49 : vector<10x464xf32>
    %c6 = arith.constant 6 : index
    %c0_40 = arith.constant 0 : index
    %c0_41 = arith.constant 0 : index
    %51 = vector.load %arg4[%c6, %c0_40, %c0_41] : memref<25x10x10xf32, #tpu.memory_space<vmem>>, vector<1x10x10xf32>
    %52 = vector.shape_cast %51 : vector<1x10x10xf32> to vector<10x10xf32>
    %53 = vector.extract_strided_slice %21 {offsets = [0, 17], sizes = [10, 464], strides = [1, 1]} : vector<10x544xf32> to vector<10x464xf32>
    %cst_42 = arith.constant dense<0.000000e+00> : vector<10x464xf32>
    %54 = tpu.matmul %52, %53, %cst_42 {dimension_numbers = #tpu.dot_dimension_numbers<[1], [0], [0], [1], [0, 0, 1, 1], [], []>} : vector<10x10xf32>, vector<10x464xf32>, vector<10x464xf32> -> vector<10x464xf32>
    %55 = arith.addf %50, %54 : vector<10x464xf32>
    %c7 = arith.constant 7 : index
    %c0_43 = arith.constant 0 : index
    %c0_44 = arith.constant 0 : index
    %56 = vector.load %arg4[%c7, %c0_43, %c0_44] : memref<25x10x10xf32, #tpu.memory_space<vmem>>, vector<1x10x10xf32>
    %57 = vector.shape_cast %56 : vector<1x10x10xf32> to vector<10x10xf32>
    %58 = vector.extract_strided_slice %21 {offsets = [0, 18], sizes = [10, 464], strides = [1, 1]} : vector<10x544xf32> to vector<10x464xf32>
    %cst_45 = arith.constant dense<0.000000e+00> : vector<10x464xf32>
    %59 = tpu.matmul %57, %58, %cst_45 {dimension_numbers = #tpu.dot_dimension_numbers<[1], [0], [0], [1], [0, 0, 1, 1], [], []>} : vector<10x10xf32>, vector<10x464xf32>, vector<10x464xf32> -> vector<10x464xf32>
    %60 = arith.addf %55, %59 : vector<10x464xf32>
    %c8 = arith.constant 8 : index
    %c0_46 = arith.constant 0 : index
    %c0_47 = arith.constant 0 : index
    %61 = vector.load %arg4[%c8, %c0_46, %c0_47] : memref<25x10x10xf32, #tpu.memory_space<vmem>>, vector<1x10x10xf32>
    %62 = vector.shape_cast %61 : vector<1x10x10xf32> to vector<10x10xf32>
    %63 = vector.extract_strided_slice %21 {offsets = [0, 19], sizes = [10, 464], strides = [1, 1]} : vector<10x544xf32> to vector<10x464xf32>
    %cst_48 = arith.constant dense<0.000000e+00> : vector<10x464xf32>
    %64 = tpu.matmul %62, %63, %cst_48 {dimension_numbers = #tpu.dot_dimension_numbers<[1], [0], [0], [1], [0, 0, 1, 1], [], []>} : vector<10x10xf32>, vector<10x464xf32>, vector<10x464xf32> -> vector<10x464xf32>
    %65 = arith.addf %60, %64 : vector<10x464xf32>
    %c9 = arith.constant 9 : index
    %c0_49 = arith.constant 0 : index
    %c0_50 = arith.constant 0 : index
    %66 = vector.load %arg4[%c9, %c0_49, %c0_50] : memref<25x10x10xf32, #tpu.memory_space<vmem>>, vector<1x10x10xf32>
    %67 = vector.shape_cast %66 : vector<1x10x10xf32> to vector<10x10xf32>
    %68 = vector.extract_strided_slice %21 {offsets = [0, 20], sizes = [10, 464], strides = [1, 1]} : vector<10x544xf32> to vector<10x464xf32>
    %cst_51 = arith.constant dense<0.000000e+00> : vector<10x464xf32>
    %69 = tpu.matmul %67, %68, %cst_51 {dimension_numbers = #tpu.dot_dimension_numbers<[1], [0], [0], [1], [0, 0, 1, 1], [], []>} : vector<10x10xf32>, vector<10x464xf32>, vector<10x464xf32> -> vector<10x464xf32>
    %70 = arith.addf %65, %69 : vector<10x464xf32>
    %c10 = arith.constant 10 : index
    %c0_52 = arith.constant 0 : index
    %c0_53 = arith.constant 0 : index
    %71 = vector.load %arg4[%c10, %c0_52, %c0_53] : memref<25x10x10xf32, #tpu.memory_space<vmem>>, vector<1x10x10xf32>
    %72 = vector.shape_cast %71 : vector<1x10x10xf32> to vector<10x10xf32>
    %73 = vector.extract_strided_slice %21 {offsets = [0, 32], sizes = [10, 464], strides = [1, 1]} : vector<10x544xf32> to vector<10x464xf32>
    %cst_54 = arith.constant dense<0.000000e+00> : vector<10x464xf32>
    %74 = tpu.matmul %72, %73, %cst_54 {dimension_numbers = #tpu.dot_dimension_numbers<[1], [0], [0], [1], [0, 0, 1, 1], [], []>} : vector<10x10xf32>, vector<10x464xf32>, vector<10x464xf32> -> vector<10x464xf32>
    %75 = arith.addf %70, %74 : vector<10x464xf32>
    %c11 = arith.constant 11 : index
    %c0_55 = arith.constant 0 : index
    %c0_56 = arith.constant 0 : index
    %76 = vector.load %arg4[%c11, %c0_55, %c0_56] : memref<25x10x10xf32, #tpu.memory_space<vmem>>, vector<1x10x10xf32>
    %77 = vector.shape_cast %76 : vector<1x10x10xf32> to vector<10x10xf32>
    %78 = vector.extract_strided_slice %21 {offsets = [0, 33], sizes = [10, 464], strides = [1, 1]} : vector<10x544xf32> to vector<10x464xf32>
    %cst_57 = arith.constant dense<0.000000e+00> : vector<10x464xf32>
    %79 = tpu.matmul %77, %78, %cst_57 {dimension_numbers = #tpu.dot_dimension_numbers<[1], [0], [0], [1], [0, 0, 1, 1], [], []>} : vector<10x10xf32>, vector<10x464xf32>, vector<10x464xf32> -> vector<10x464xf32>
    %80 = arith.addf %75, %79 : vector<10x464xf32>
    %c12 = arith.constant 12 : index
    %c0_58 = arith.constant 0 : index
    %c0_59 = arith.constant 0 : index
    %81 = vector.load %arg4[%c12, %c0_58, %c0_59] : memref<25x10x10xf32, #tpu.memory_space<vmem>>, vector<1x10x10xf32>
    %82 = vector.shape_cast %81 : vector<1x10x10xf32> to vector<10x10xf32>
    %83 = vector.extract_strided_slice %21 {offsets = [0, 34], sizes = [10, 464], strides = [1, 1]} : vector<10x544xf32> to vector<10x464xf32>
    %cst_60 = arith.constant dense<0.000000e+00> : vector<10x464xf32>
    %84 = tpu.matmul %82, %83, %cst_60 {dimension_numbers = #tpu.dot_dimension_numbers<[1], [0], [0], [1], [0, 0, 1, 1], [], []>} : vector<10x10xf32>, vector<10x464xf32>, vector<10x464xf32> -> vector<10x464xf32>
    %85 = arith.addf %80, %84 : vector<10x464xf32>
    %c13 = arith.constant 13 : index
    %c0_61 = arith.constant 0 : index
    %c0_62 = arith.constant 0 : index
    %86 = vector.load %arg4[%c13, %c0_61, %c0_62] : memref<25x10x10xf32, #tpu.memory_space<vmem>>, vector<1x10x10xf32>
    %87 = vector.shape_cast %86 : vector<1x10x10xf32> to vector<10x10xf32>
    %88 = vector.extract_strided_slice %21 {offsets = [0, 35], sizes = [10, 464], strides = [1, 1]} : vector<10x544xf32> to vector<10x464xf32>
    %cst_63 = arith.constant dense<0.000000e+00> : vector<10x464xf32>
    %89 = tpu.matmul %87, %88, %cst_63 {dimension_numbers = #tpu.dot_dimension_numbers<[1], [0], [0], [1], [0, 0, 1, 1], [], []>} : vector<10x10xf32>, vector<10x464xf32>, vector<10x464xf32> -> vector<10x464xf32>
    %90 = arith.addf %85, %89 : vector<10x464xf32>
    %c14 = arith.constant 14 : index
    %c0_64 = arith.constant 0 : index
    %c0_65 = arith.constant 0 : index
    %91 = vector.load %arg4[%c14, %c0_64, %c0_65] : memref<25x10x10xf32, #tpu.memory_space<vmem>>, vector<1x10x10xf32>
    %92 = vector.shape_cast %91 : vector<1x10x10xf32> to vector<10x10xf32>
    %93 = vector.extract_strided_slice %21 {offsets = [0, 36], sizes = [10, 464], strides = [1, 1]} : vector<10x544xf32> to vector<10x464xf32>
    %cst_66 = arith.constant dense<0.000000e+00> : vector<10x464xf32>
    %94 = tpu.matmul %92, %93, %cst_66 {dimension_numbers = #tpu.dot_dimension_numbers<[1], [0], [0], [1], [0, 0, 1, 1], [], []>} : vector<10x10xf32>, vector<10x464xf32>, vector<10x464xf32> -> vector<10x464xf32>
    %95 = arith.addf %90, %94 : vector<10x464xf32>
    %c15 = arith.constant 15 : index
    %c0_67 = arith.constant 0 : index
    %c0_68 = arith.constant 0 : index
    %96 = vector.load %arg4[%c15, %c0_67, %c0_68] : memref<25x10x10xf32, #tpu.memory_space<vmem>>, vector<1x10x10xf32>
    %97 = vector.shape_cast %96 : vector<1x10x10xf32> to vector<10x10xf32>
    %98 = vector.extract_strided_slice %21 {offsets = [0, 48], sizes = [10, 464], strides = [1, 1]} : vector<10x544xf32> to vector<10x464xf32>
    %cst_69 = arith.constant dense<0.000000e+00> : vector<10x464xf32>
    %99 = tpu.matmul %97, %98, %cst_69 {dimension_numbers = #tpu.dot_dimension_numbers<[1], [0], [0], [1], [0, 0, 1, 1], [], []>} : vector<10x10xf32>, vector<10x464xf32>, vector<10x464xf32> -> vector<10x464xf32>
    %100 = arith.addf %95, %99 : vector<10x464xf32>
    %c16 = arith.constant 16 : index
    %c0_70 = arith.constant 0 : index
    %c0_71 = arith.constant 0 : index
    %101 = vector.load %arg4[%c16, %c0_70, %c0_71] : memref<25x10x10xf32, #tpu.memory_space<vmem>>, vector<1x10x10xf32>
    %102 = vector.shape_cast %101 : vector<1x10x10xf32> to vector<10x10xf32>
    %103 = vector.extract_strided_slice %21 {offsets = [0, 49], sizes = [10, 464], strides = [1, 1]} : vector<10x544xf32> to vector<10x464xf32>
    %cst_72 = arith.constant dense<0.000000e+00> : vector<10x464xf32>
    %104 = tpu.matmul %102, %103, %cst_72 {dimension_numbers = #tpu.dot_dimension_numbers<[1], [0], [0], [1], [0, 0, 1, 1], [], []>} : vector<10x10xf32>, vector<10x464xf32>, vector<10x464xf32> -> vector<10x464xf32>
    %105 = arith.addf %100, %104 : vector<10x464xf32>
    %c17 = arith.constant 17 : index
    %c0_73 = arith.constant 0 : index
    %c0_74 = arith.constant 0 : index
    %106 = vector.load %arg4[%c17, %c0_73, %c0_74] : memref<25x10x10xf32, #tpu.memory_space<vmem>>, vector<1x10x10xf32>
    %107 = vector.shape_cast %106 : vector<1x10x10xf32> to vector<10x10xf32>
    %108 = vector.extract_strided_slice %21 {offsets = [0, 50], sizes = [10, 464], strides = [1, 1]} : vector<10x544xf32> to vector<10x464xf32>
    %cst_75 = arith.constant dense<0.000000e+00> : vector<10x464xf32>
    %109 = tpu.matmul %107, %108, %cst_75 {dimension_numbers = #tpu.dot_dimension_numbers<[1], [0], [0], [1], [0, 0, 1, 1], [], []>} : vector<10x10xf32>, vector<10x464xf32>, vector<10x464xf32> -> vector<10x464xf32>
    %110 = arith.addf %105, %109 : vector<10x464xf32>
    %c18 = arith.constant 18 : index
    %c0_76 = arith.constant 0 : index
    %c0_77 = arith.constant 0 : index
    %111 = vector.load %arg4[%c18, %c0_76, %c0_77] : memref<25x10x10xf32, #tpu.memory_space<vmem>>, vector<1x10x10xf32>
    %112 = vector.shape_cast %111 : vector<1x10x10xf32> to vector<10x10xf32>
    %113 = vector.extract_strided_slice %21 {offsets = [0, 51], sizes = [10, 464], strides = [1, 1]} : vector<10x544xf32> to vector<10x464xf32>
    %cst_78 = arith.constant dense<0.000000e+00> : vector<10x464xf32>
    %114 = tpu.matmul %112, %113, %cst_78 {dimension_numbers = #tpu.dot_dimension_numbers<[1], [0], [0], [1], [0, 0, 1, 1], [], []>} : vector<10x10xf32>, vector<10x464xf32>, vector<10x464xf32> -> vector<10x464xf32>
    %115 = arith.addf %110, %114 : vector<10x464xf32>
    %c19 = arith.constant 19 : index
    %c0_79 = arith.constant 0 : index
    %c0_80 = arith.constant 0 : index
    %116 = vector.load %arg4[%c19, %c0_79, %c0_80] : memref<25x10x10xf32, #tpu.memory_space<vmem>>, vector<1x10x10xf32>
    %117 = vector.shape_cast %116 : vector<1x10x10xf32> to vector<10x10xf32>
    %118 = vector.extract_strided_slice %21 {offsets = [0, 52], sizes = [10, 464], strides = [1, 1]} : vector<10x544xf32> to vector<10x464xf32>
    %cst_81 = arith.constant dense<0.000000e+00> : vector<10x464xf32>
    %119 = tpu.matmul %117, %118, %cst_81 {dimension_numbers = #tpu.dot_dimension_numbers<[1], [0], [0], [1], [0, 0, 1, 1], [], []>} : vector<10x10xf32>, vector<10x464xf32>, vector<10x464xf32> -> vector<10x464xf32>
    %120 = arith.addf %115, %119 : vector<10x464xf32>
    %c20 = arith.constant 20 : index
    %c0_82 = arith.constant 0 : index
    %c0_83 = arith.constant 0 : index
    %121 = vector.load %arg4[%c20, %c0_82, %c0_83] : memref<25x10x10xf32, #tpu.memory_space<vmem>>, vector<1x10x10xf32>
    %122 = vector.shape_cast %121 : vector<1x10x10xf32> to vector<10x10xf32>
    %123 = vector.extract_strided_slice %21 {offsets = [0, 64], sizes = [10, 464], strides = [1, 1]} : vector<10x544xf32> to vector<10x464xf32>
    %cst_84 = arith.constant dense<0.000000e+00> : vector<10x464xf32>
    %124 = tpu.matmul %122, %123, %cst_84 {dimension_numbers = #tpu.dot_dimension_numbers<[1], [0], [0], [1], [0, 0, 1, 1], [], []>} : vector<10x10xf32>, vector<10x464xf32>, vector<10x464xf32> -> vector<10x464xf32>
    %125 = arith.addf %120, %124 : vector<10x464xf32>
    %c21 = arith.constant 21 : index
    %c0_85 = arith.constant 0 : index
    %c0_86 = arith.constant 0 : index
    %126 = vector.load %arg4[%c21, %c0_85, %c0_86] : memref<25x10x10xf32, #tpu.memory_space<vmem>>, vector<1x10x10xf32>
    %127 = vector.shape_cast %126 : vector<1x10x10xf32> to vector<10x10xf32>
    %128 = vector.extract_strided_slice %21 {offsets = [0, 65], sizes = [10, 464], strides = [1, 1]} : vector<10x544xf32> to vector<10x464xf32>
    %cst_87 = arith.constant dense<0.000000e+00> : vector<10x464xf32>
    %129 = tpu.matmul %127, %128, %cst_87 {dimension_numbers = #tpu.dot_dimension_numbers<[1], [0], [0], [1], [0, 0, 1, 1], [], []>} : vector<10x10xf32>, vector<10x464xf32>, vector<10x464xf32> -> vector<10x464xf32>
    %130 = arith.addf %125, %129 : vector<10x464xf32>
    %c22 = arith.constant 22 : index
    %c0_88 = arith.constant 0 : index
    %c0_89 = arith.constant 0 : index
    %131 = vector.load %arg4[%c22, %c0_88, %c0_89] : memref<25x10x10xf32, #tpu.memory_space<vmem>>, vector<1x10x10xf32>
    %132 = vector.shape_cast %131 : vector<1x10x10xf32> to vector<10x10xf32>
    %133 = vector.extract_strided_slice %21 {offsets = [0, 66], sizes = [10, 464], strides = [1, 1]} : vector<10x544xf32> to vector<10x464xf32>
    %cst_90 = arith.constant dense<0.000000e+00> : vector<10x464xf32>
    %134 = tpu.matmul %132, %133, %cst_90 {dimension_numbers = #tpu.dot_dimension_numbers<[1], [0], [0], [1], [0, 0, 1, 1], [], []>} : vector<10x10xf32>, vector<10x464xf32>, vector<10x464xf32> -> vector<10x464xf32>
    %135 = arith.addf %130, %134 : vector<10x464xf32>
    %c23 = arith.constant 23 : index
    %c0_91 = arith.constant 0 : index
    %c0_92 = arith.constant 0 : index
    %136 = vector.load %arg4[%c23, %c0_91, %c0_92] : memref<25x10x10xf32, #tpu.memory_space<vmem>>, vector<1x10x10xf32>
    %137 = vector.shape_cast %136 : vector<1x10x10xf32> to vector<10x10xf32>
    %138 = vector.extract_strided_slice %21 {offsets = [0, 67], sizes = [10, 464], strides = [1, 1]} : vector<10x544xf32> to vector<10x464xf32>
    %cst_93 = arith.constant dense<0.000000e+00> : vector<10x464xf32>
    %139 = tpu.matmul %137, %138, %cst_93 {dimension_numbers = #tpu.dot_dimension_numbers<[1], [0], [0], [1], [0, 0, 1, 1], [], []>} : vector<10x10xf32>, vector<10x464xf32>, vector<10x464xf32> -> vector<10x464xf32>
    %140 = arith.addf %135, %139 : vector<10x464xf32>
    %c24 = arith.constant 24 : index
    %c0_94 = arith.constant 0 : index
    %c0_95 = arith.constant 0 : index
    %141 = vector.load %arg4[%c24, %c0_94, %c0_95] : memref<25x10x10xf32, #tpu.memory_space<vmem>>, vector<1x10x10xf32>
    %142 = vector.shape_cast %141 : vector<1x10x10xf32> to vector<10x10xf32>
    %143 = vector.extract_strided_slice %21 {offsets = [0, 68], sizes = [10, 464], strides = [1, 1]} : vector<10x544xf32> to vector<10x464xf32>
    %cst_96 = arith.constant dense<0.000000e+00> : vector<10x464xf32>
    %144 = tpu.matmul %142, %143, %cst_96 {dimension_numbers = #tpu.dot_dimension_numbers<[1], [0], [0], [1], [0, 0, 1, 1], [], []>} : vector<10x10xf32>, vector<10x464xf32>, vector<10x464xf32> -> vector<10x464xf32>
    %145 = arith.addf %140, %144 : vector<10x464xf32>
    %c0_97 = arith.constant 0 : index
    %c0_98 = arith.constant 0 : index
    %146 = vector.load %arg5[%c0_97, %c0_98] : memref<10x1xf32, #tpu.memory_space<vmem>>, vector<10x1xf32>
    %147 = vector.broadcast %146 : vector<10x1xf32> to vector<10x464xf32>
    %148 = arith.addf %145, %147 : vector<10x464xf32>
    %cst_99 = arith.constant 0.000000e+00 : f32
    %149 = vector.broadcast %cst_99 : f32 to vector<10x464xf32>
    %150 = arith.maximumf %148, %149 : vector<10x464xf32>
    %c0_100 = arith.constant 0 : index
    %c0_101 = arith.constant 0 : index
    %151 = vector.load %arg7[%c0_100, %c0_101] : memref<64x160xf32, #tpu.memory_space<vmem>>, vector<64x160xf32>
    %152 = vector.extract_strided_slice %150 {offsets = [0, 0], sizes = [10, 1], strides = [1, 1]} : vector<10x464xf32> to vector<10x1xf32>
    %153 = vector.extract_strided_slice %150 {offsets = [0, 1], sizes = [10, 1], strides = [1, 1]} : vector<10x464xf32> to vector<10x1xf32>
    %154 = arith.maximumf %152, %153 : vector<10x1xf32>
    %155 = vector.extract_strided_slice %150 {offsets = [0, 16], sizes = [10, 1], strides = [1, 1]} : vector<10x464xf32> to vector<10x1xf32>
    %156 = vector.extract_strided_slice %150 {offsets = [0, 17], sizes = [10, 1], strides = [1, 1]} : vector<10x464xf32> to vector<10x1xf32>
    %157 = arith.maximumf %155, %156 : vector<10x1xf32>
    %158 = arith.maximumf %154, %157 : vector<10x1xf32>
    %159 = vector.extract_strided_slice %150 {offsets = [0, 2], sizes = [10, 1], strides = [1, 1]} : vector<10x464xf32> to vector<10x1xf32>
    %160 = vector.extract_strided_slice %150 {offsets = [0, 3], sizes = [10, 1], strides = [1, 1]} : vector<10x464xf32> to vector<10x1xf32>
    %161 = arith.maximumf %159, %160 : vector<10x1xf32>
    %162 = vector.extract_strided_slice %150 {offsets = [0, 18], sizes = [10, 1], strides = [1, 1]} : vector<10x464xf32> to vector<10x1xf32>
    %163 = vector.extract_strided_slice %150 {offsets = [0, 19], sizes = [10, 1], strides = [1, 1]} : vector<10x464xf32> to vector<10x1xf32>
    %164 = arith.maximumf %162, %163 : vector<10x1xf32>
    %165 = arith.maximumf %161, %164 : vector<10x1xf32>
    %166 = vector.extract_strided_slice %150 {offsets = [0, 4], sizes = [10, 1], strides = [1, 1]} : vector<10x464xf32> to vector<10x1xf32>
    %167 = vector.extract_strided_slice %150 {offsets = [0, 5], sizes = [10, 1], strides = [1, 1]} : vector<10x464xf32> to vector<10x1xf32>
    %168 = arith.maximumf %166, %167 : vector<10x1xf32>
    %169 = vector.extract_strided_slice %150 {offsets = [0, 20], sizes = [10, 1], strides = [1, 1]} : vector<10x464xf32> to vector<10x1xf32>
    %170 = vector.extract_strided_slice %150 {offsets = [0, 21], sizes = [10, 1], strides = [1, 1]} : vector<10x464xf32> to vector<10x1xf32>
    %171 = arith.maximumf %169, %170 : vector<10x1xf32>
    %172 = arith.maximumf %168, %171 : vector<10x1xf32>
    %173 = vector.extract_strided_slice %150 {offsets = [0, 6], sizes = [10, 1], strides = [1, 1]} : vector<10x464xf32> to vector<10x1xf32>
    %174 = vector.extract_strided_slice %150 {offsets = [0, 7], sizes = [10, 1], strides = [1, 1]} : vector<10x464xf32> to vector<10x1xf32>
    %175 = arith.maximumf %173, %174 : vector<10x1xf32>
    %176 = vector.extract_strided_slice %150 {offsets = [0, 22], sizes = [10, 1], strides = [1, 1]} : vector<10x464xf32> to vector<10x1xf32>
    %177 = vector.extract_strided_slice %150 {offsets = [0, 23], sizes = [10, 1], strides = [1, 1]} : vector<10x464xf32> to vector<10x1xf32>
    %178 = arith.maximumf %176, %177 : vector<10x1xf32>
    %179 = arith.maximumf %175, %178 : vector<10x1xf32>
    %180 = vector.extract_strided_slice %150 {offsets = [0, 32], sizes = [10, 1], strides = [1, 1]} : vector<10x464xf32> to vector<10x1xf32>
    %181 = vector.extract_strided_slice %150 {offsets = [0, 33], sizes = [10, 1], strides = [1, 1]} : vector<10x464xf32> to vector<10x1xf32>
    %182 = arith.maximumf %180, %181 : vector<10x1xf32>
    %183 = vector.extract_strided_slice %150 {offsets = [0, 48], sizes = [10, 1], strides = [1, 1]} : vector<10x464xf32> to vector<10x1xf32>
    %184 = vector.extract_strided_slice %150 {offsets = [0, 49], sizes = [10, 1], strides = [1, 1]} : vector<10x464xf32> to vector<10x1xf32>
    %185 = arith.maximumf %183, %184 : vector<10x1xf32>
    %186 = arith.maximumf %182, %185 : vector<10x1xf32>
    %187 = vector.extract_strided_slice %150 {offsets = [0, 34], sizes = [10, 1], strides = [1, 1]} : vector<10x464xf32> to vector<10x1xf32>
    %188 = vector.extract_strided_slice %150 {offsets = [0, 35], sizes = [10, 1], strides = [1, 1]} : vector<10x464xf32> to vector<10x1xf32>
    %189 = arith.maximumf %187, %188 : vector<10x1xf32>
    %190 = vector.extract_strided_slice %150 {offsets = [0, 50], sizes = [10, 1], strides = [1, 1]} : vector<10x464xf32> to vector<10x1xf32>
    %191 = vector.extract_strided_slice %150 {offsets = [0, 51], sizes = [10, 1], strides = [1, 1]} : vector<10x464xf32> to vector<10x1xf32>
    %192 = arith.maximumf %190, %191 : vector<10x1xf32>
    %193 = arith.maximumf %189, %192 : vector<10x1xf32>
    %194 = vector.extract_strided_slice %150 {offsets = [0, 36], sizes = [10, 1], strides = [1, 1]} : vector<10x464xf32> to vector<10x1xf32>
    %195 = vector.extract_strided_slice %150 {offsets = [0, 37], sizes = [10, 1], strides = [1, 1]} : vector<10x464xf32> to vector<10x1xf32>
    %196 = arith.maximumf %194, %195 : vector<10x1xf32>
    %197 = vector.extract_strided_slice %150 {offsets = [0, 52], sizes = [10, 1], strides = [1, 1]} : vector<10x464xf32> to vector<10x1xf32>
    %198 = vector.extract_strided_slice %150 {offsets = [0, 53], sizes = [10, 1], strides = [1, 1]} : vector<10x464xf32> to vector<10x1xf32>
    %199 = arith.maximumf %197, %198 : vector<10x1xf32>
    %200 = arith.maximumf %196, %199 : vector<10x1xf32>
    %201 = vector.extract_strided_slice %150 {offsets = [0, 38], sizes = [10, 1], strides = [1, 1]} : vector<10x464xf32> to vector<10x1xf32>
    %202 = vector.extract_strided_slice %150 {offsets = [0, 39], sizes = [10, 1], strides = [1, 1]} : vector<10x464xf32> to vector<10x1xf32>
    %203 = arith.maximumf %201, %202 : vector<10x1xf32>
    %204 = vector.extract_strided_slice %150 {offsets = [0, 54], sizes = [10, 1], strides = [1, 1]} : vector<10x464xf32> to vector<10x1xf32>
    %205 = vector.extract_strided_slice %150 {offsets = [0, 55], sizes = [10, 1], strides = [1, 1]} : vector<10x464xf32> to vector<10x1xf32>
    %206 = arith.maximumf %204, %205 : vector<10x1xf32>
    %207 = arith.maximumf %203, %206 : vector<10x1xf32>
    %208 = vector.extract_strided_slice %150 {offsets = [0, 64], sizes = [10, 1], strides = [1, 1]} : vector<10x464xf32> to vector<10x1xf32>
    %209 = vector.extract_strided_slice %150 {offsets = [0, 65], sizes = [10, 1], strides = [1, 1]} : vector<10x464xf32> to vector<10x1xf32>
    %210 = arith.maximumf %208, %209 : vector<10x1xf32>
    %211 = vector.extract_strided_slice %150 {offsets = [0, 80], sizes = [10, 1], strides = [1, 1]} : vector<10x464xf32> to vector<10x1xf32>
    %212 = vector.extract_strided_slice %150 {offsets = [0, 81], sizes = [10, 1], strides = [1, 1]} : vector<10x464xf32> to vector<10x1xf32>
    %213 = arith.maximumf %211, %212 : vector<10x1xf32>
    %214 = arith.maximumf %210, %213 : vector<10x1xf32>
    %215 = vector.extract_strided_slice %150 {offsets = [0, 66], sizes = [10, 1], strides = [1, 1]} : vector<10x464xf32> to vector<10x1xf32>
    %216 = vector.extract_strided_slice %150 {offsets = [0, 67], sizes = [10, 1], strides = [1, 1]} : vector<10x464xf32> to vector<10x1xf32>
    %217 = arith.maximumf %215, %216 : vector<10x1xf32>
    %218 = vector.extract_strided_slice %150 {offsets = [0, 82], sizes = [10, 1], strides = [1, 1]} : vector<10x464xf32> to vector<10x1xf32>
    %219 = vector.extract_strided_slice %150 {offsets = [0, 83], sizes = [10, 1], strides = [1, 1]} : vector<10x464xf32> to vector<10x1xf32>
    %220 = arith.maximumf %218, %219 : vector<10x1xf32>
    %221 = arith.maximumf %217, %220 : vector<10x1xf32>
    %222 = vector.extract_strided_slice %150 {offsets = [0, 68], sizes = [10, 1], strides = [1, 1]} : vector<10x464xf32> to vector<10x1xf32>
    %223 = vector.extract_strided_slice %150 {offsets = [0, 69], sizes = [10, 1], strides = [1, 1]} : vector<10x464xf32> to vector<10x1xf32>
    %224 = arith.maximumf %222, %223 : vector<10x1xf32>
    %225 = vector.extract_strided_slice %150 {offsets = [0, 84], sizes = [10, 1], strides = [1, 1]} : vector<10x464xf32> to vector<10x1xf32>
    %226 = vector.extract_strided_slice %150 {offsets = [0, 85], sizes = [10, 1], strides = [1, 1]} : vector<10x464xf32> to vector<10x1xf32>
    %227 = arith.maximumf %225, %226 : vector<10x1xf32>
    %228 = arith.maximumf %224, %227 : vector<10x1xf32>
    %229 = vector.extract_strided_slice %150 {offsets = [0, 70], sizes = [10, 1], strides = [1, 1]} : vector<10x464xf32> to vector<10x1xf32>
    %230 = vector.extract_strided_slice %150 {offsets = [0, 71], sizes = [10, 1], strides = [1, 1]} : vector<10x464xf32> to vector<10x1xf32>
    %231 = arith.maximumf %229, %230 : vector<10x1xf32>
    %232 = vector.extract_strided_slice %150 {offsets = [0, 86], sizes = [10, 1], strides = [1, 1]} : vector<10x464xf32> to vector<10x1xf32>
    %233 = vector.extract_strided_slice %150 {offsets = [0, 87], sizes = [10, 1], strides = [1, 1]} : vector<10x464xf32> to vector<10x1xf32>
    %234 = arith.maximumf %232, %233 : vector<10x1xf32>
    %235 = arith.maximumf %231, %234 : vector<10x1xf32>
    %236 = vector.extract_strided_slice %150 {offsets = [0, 96], sizes = [10, 1], strides = [1, 1]} : vector<10x464xf32> to vector<10x1xf32>
    %237 = vector.extract_strided_slice %150 {offsets = [0, 97], sizes = [10, 1], strides = [1, 1]} : vector<10x464xf32> to vector<10x1xf32>
    %238 = arith.maximumf %236, %237 : vector<10x1xf32>
    %239 = vector.extract_strided_slice %150 {offsets = [0, 112], sizes = [10, 1], strides = [1, 1]} : vector<10x464xf32> to vector<10x1xf32>
    %240 = vector.extract_strided_slice %150 {offsets = [0, 113], sizes = [10, 1], strides = [1, 1]} : vector<10x464xf32> to vector<10x1xf32>
    %241 = arith.maximumf %239, %240 : vector<10x1xf32>
    %242 = arith.maximumf %238, %241 : vector<10x1xf32>
    %243 = vector.extract_strided_slice %150 {offsets = [0, 98], sizes = [10, 1], strides = [1, 1]} : vector<10x464xf32> to vector<10x1xf32>
    %244 = vector.extract_strided_slice %150 {offsets = [0, 99], sizes = [10, 1], strides = [1, 1]} : vector<10x464xf32> to vector<10x1xf32>
    %245 = arith.maximumf %243, %244 : vector<10x1xf32>
    %246 = vector.extract_strided_slice %150 {offsets = [0, 114], sizes = [10, 1], strides = [1, 1]} : vector<10x464xf32> to vector<10x1xf32>
    %247 = vector.extract_strided_slice %150 {offsets = [0, 115], sizes = [10, 1], strides = [1, 1]} : vector<10x464xf32> to vector<10x1xf32>
    %248 = arith.maximumf %246, %247 : vector<10x1xf32>
    %249 = arith.maximumf %245, %248 : vector<10x1xf32>
    %250 = vector.extract_strided_slice %150 {offsets = [0, 100], sizes = [10, 1], strides = [1, 1]} : vector<10x464xf32> to vector<10x1xf32>
    %251 = vector.extract_strided_slice %150 {offsets = [0, 101], sizes = [10, 1], strides = [1, 1]} : vector<10x464xf32> to vector<10x1xf32>
    %252 = arith.maximumf %250, %251 : vector<10x1xf32>
    %253 = vector.extract_strided_slice %150 {offsets = [0, 116], sizes = [10, 1], strides = [1, 1]} : vector<10x464xf32> to vector<10x1xf32>
    %254 = vector.extract_strided_slice %150 {offsets = [0, 117], sizes = [10, 1], strides = [1, 1]} : vector<10x464xf32> to vector<10x1xf32>
    %255 = arith.maximumf %253, %254 : vector<10x1xf32>
    %256 = arith.maximumf %252, %255 : vector<10x1xf32>
    %257 = vector.extract_strided_slice %150 {offsets = [0, 102], sizes = [10, 1], strides = [1, 1]} : vector<10x464xf32> to vector<10x1xf32>
    %258 = vector.extract_strided_slice %150 {offsets = [0, 103], sizes = [10, 1], strides = [1, 1]} : vector<10x464xf32> to vector<10x1xf32>
    %259 = arith.maximumf %257, %258 : vector<10x1xf32>
    %260 = vector.extract_strided_slice %150 {offsets = [0, 118], sizes = [10, 1], strides = [1, 1]} : vector<10x464xf32> to vector<10x1xf32>
    %261 = vector.extract_strided_slice %150 {offsets = [0, 119], sizes = [10, 1], strides = [1, 1]} : vector<10x464xf32> to vector<10x1xf32>
    %262 = arith.maximumf %260, %261 : vector<10x1xf32>
    %263 = arith.maximumf %259, %262 : vector<10x1xf32>
    %264 = tpu.concatenate %158, %165, %172, %179, %186, %193, %200, %207, %214, %221, %228, %235, %242, %249, %256, %263 in 0 : vector<10x1xf32>, vector<10x1xf32>, vector<10x1xf32>, vector<10x1xf32>, vector<10x1xf32>, vector<10x1xf32>, vector<10x1xf32>, vector<10x1xf32>, vector<10x1xf32>, vector<10x1xf32>, vector<10x1xf32>, vector<10x1xf32>, vector<10x1xf32>, vector<10x1xf32>, vector<10x1xf32>, vector<10x1xf32> -> vector<160x1xf32>
    %cst_102 = arith.constant dense<0.000000e+00> : vector<64x1xf32>
    %265 = tpu.matmul %151, %264, %cst_102 {dimension_numbers = #tpu.dot_dimension_numbers<[1], [0], [0], [1], [0, 0, 1, 1], [], []>} : vector<64x160xf32>, vector<160x1xf32>, vector<64x1xf32> -> vector<64x1xf32>
    %266 = vector.extract_strided_slice %150 {offsets = [0, 272], sizes = [10, 1], strides = [1, 1]} : vector<10x464xf32> to vector<10x1xf32>
    %267 = vector.extract_strided_slice %150 {offsets = [0, 273], sizes = [10, 1], strides = [1, 1]} : vector<10x464xf32> to vector<10x1xf32>
    %268 = arith.maximumf %266, %267 : vector<10x1xf32>
    %269 = vector.extract_strided_slice %150 {offsets = [0, 288], sizes = [10, 1], strides = [1, 1]} : vector<10x464xf32> to vector<10x1xf32>
    %270 = vector.extract_strided_slice %150 {offsets = [0, 289], sizes = [10, 1], strides = [1, 1]} : vector<10x464xf32> to vector<10x1xf32>
    %271 = arith.maximumf %269, %270 : vector<10x1xf32>
    %272 = arith.maximumf %268, %271 : vector<10x1xf32>
    %273 = vector.extract_strided_slice %150 {offsets = [0, 274], sizes = [10, 1], strides = [1, 1]} : vector<10x464xf32> to vector<10x1xf32>
    %274 = vector.extract_strided_slice %150 {offsets = [0, 275], sizes = [10, 1], strides = [1, 1]} : vector<10x464xf32> to vector<10x1xf32>
    %275 = arith.maximumf %273, %274 : vector<10x1xf32>
    %276 = vector.extract_strided_slice %150 {offsets = [0, 290], sizes = [10, 1], strides = [1, 1]} : vector<10x464xf32> to vector<10x1xf32>
    %277 = vector.extract_strided_slice %150 {offsets = [0, 291], sizes = [10, 1], strides = [1, 1]} : vector<10x464xf32> to vector<10x1xf32>
    %278 = arith.maximumf %276, %277 : vector<10x1xf32>
    %279 = arith.maximumf %275, %278 : vector<10x1xf32>
    %280 = vector.extract_strided_slice %150 {offsets = [0, 276], sizes = [10, 1], strides = [1, 1]} : vector<10x464xf32> to vector<10x1xf32>
    %281 = vector.extract_strided_slice %150 {offsets = [0, 277], sizes = [10, 1], strides = [1, 1]} : vector<10x464xf32> to vector<10x1xf32>
    %282 = arith.maximumf %280, %281 : vector<10x1xf32>
    %283 = vector.extract_strided_slice %150 {offsets = [0, 292], sizes = [10, 1], strides = [1, 1]} : vector<10x464xf32> to vector<10x1xf32>
    %284 = vector.extract_strided_slice %150 {offsets = [0, 293], sizes = [10, 1], strides = [1, 1]} : vector<10x464xf32> to vector<10x1xf32>
    %285 = arith.maximumf %283, %284 : vector<10x1xf32>
    %286 = arith.maximumf %282, %285 : vector<10x1xf32>
    %287 = vector.extract_strided_slice %150 {offsets = [0, 278], sizes = [10, 1], strides = [1, 1]} : vector<10x464xf32> to vector<10x1xf32>
    %288 = vector.extract_strided_slice %150 {offsets = [0, 279], sizes = [10, 1], strides = [1, 1]} : vector<10x464xf32> to vector<10x1xf32>
    %289 = arith.maximumf %287, %288 : vector<10x1xf32>
    %290 = vector.extract_strided_slice %150 {offsets = [0, 294], sizes = [10, 1], strides = [1, 1]} : vector<10x464xf32> to vector<10x1xf32>
    %291 = vector.extract_strided_slice %150 {offsets = [0, 295], sizes = [10, 1], strides = [1, 1]} : vector<10x464xf32> to vector<10x1xf32>
    %292 = arith.maximumf %290, %291 : vector<10x1xf32>
    %293 = arith.maximumf %289, %292 : vector<10x1xf32>
    %294 = vector.extract_strided_slice %150 {offsets = [0, 304], sizes = [10, 1], strides = [1, 1]} : vector<10x464xf32> to vector<10x1xf32>
    %295 = vector.extract_strided_slice %150 {offsets = [0, 305], sizes = [10, 1], strides = [1, 1]} : vector<10x464xf32> to vector<10x1xf32>
    %296 = arith.maximumf %294, %295 : vector<10x1xf32>
    %297 = vector.extract_strided_slice %150 {offsets = [0, 320], sizes = [10, 1], strides = [1, 1]} : vector<10x464xf32> to vector<10x1xf32>
    %298 = vector.extract_strided_slice %150 {offsets = [0, 321], sizes = [10, 1], strides = [1, 1]} : vector<10x464xf32> to vector<10x1xf32>
    %299 = arith.maximumf %297, %298 : vector<10x1xf32>
    %300 = arith.maximumf %296, %299 : vector<10x1xf32>
    %301 = vector.extract_strided_slice %150 {offsets = [0, 306], sizes = [10, 1], strides = [1, 1]} : vector<10x464xf32> to vector<10x1xf32>
    %302 = vector.extract_strided_slice %150 {offsets = [0, 307], sizes = [10, 1], strides = [1, 1]} : vector<10x464xf32> to vector<10x1xf32>
    %303 = arith.maximumf %301, %302 : vector<10x1xf32>
    %304 = vector.extract_strided_slice %150 {offsets = [0, 322], sizes = [10, 1], strides = [1, 1]} : vector<10x464xf32> to vector<10x1xf32>
    %305 = vector.extract_strided_slice %150 {offsets = [0, 323], sizes = [10, 1], strides = [1, 1]} : vector<10x464xf32> to vector<10x1xf32>
    %306 = arith.maximumf %304, %305 : vector<10x1xf32>
    %307 = arith.maximumf %303, %306 : vector<10x1xf32>
    %308 = vector.extract_strided_slice %150 {offsets = [0, 308], sizes = [10, 1], strides = [1, 1]} : vector<10x464xf32> to vector<10x1xf32>
    %309 = vector.extract_strided_slice %150 {offsets = [0, 309], sizes = [10, 1], strides = [1, 1]} : vector<10x464xf32> to vector<10x1xf32>
    %310 = arith.maximumf %308, %309 : vector<10x1xf32>
    %311 = vector.extract_strided_slice %150 {offsets = [0, 324], sizes = [10, 1], strides = [1, 1]} : vector<10x464xf32> to vector<10x1xf32>
    %312 = vector.extract_strided_slice %150 {offsets = [0, 325], sizes = [10, 1], strides = [1, 1]} : vector<10x464xf32> to vector<10x1xf32>
    %313 = arith.maximumf %311, %312 : vector<10x1xf32>
    %314 = arith.maximumf %310, %313 : vector<10x1xf32>
    %315 = vector.extract_strided_slice %150 {offsets = [0, 310], sizes = [10, 1], strides = [1, 1]} : vector<10x464xf32> to vector<10x1xf32>
    %316 = vector.extract_strided_slice %150 {offsets = [0, 311], sizes = [10, 1], strides = [1, 1]} : vector<10x464xf32> to vector<10x1xf32>
    %317 = arith.maximumf %315, %316 : vector<10x1xf32>
    %318 = vector.extract_strided_slice %150 {offsets = [0, 326], sizes = [10, 1], strides = [1, 1]} : vector<10x464xf32> to vector<10x1xf32>
    %319 = vector.extract_strided_slice %150 {offsets = [0, 327], sizes = [10, 1], strides = [1, 1]} : vector<10x464xf32> to vector<10x1xf32>
    %320 = arith.maximumf %318, %319 : vector<10x1xf32>
    %321 = arith.maximumf %317, %320 : vector<10x1xf32>
    %322 = vector.extract_strided_slice %150 {offsets = [0, 336], sizes = [10, 1], strides = [1, 1]} : vector<10x464xf32> to vector<10x1xf32>
    %323 = vector.extract_strided_slice %150 {offsets = [0, 337], sizes = [10, 1], strides = [1, 1]} : vector<10x464xf32> to vector<10x1xf32>
    %324 = arith.maximumf %322, %323 : vector<10x1xf32>
    %325 = vector.extract_strided_slice %150 {offsets = [0, 352], sizes = [10, 1], strides = [1, 1]} : vector<10x464xf32> to vector<10x1xf32>
    %326 = vector.extract_strided_slice %150 {offsets = [0, 353], sizes = [10, 1], strides = [1, 1]} : vector<10x464xf32> to vector<10x1xf32>
    %327 = arith.maximumf %325, %326 : vector<10x1xf32>
    %328 = arith.maximumf %324, %327 : vector<10x1xf32>
    %329 = vector.extract_strided_slice %150 {offsets = [0, 338], sizes = [10, 1], strides = [1, 1]} : vector<10x464xf32> to vector<10x1xf32>
    %330 = vector.extract_strided_slice %150 {offsets = [0, 339], sizes = [10, 1], strides = [1, 1]} : vector<10x464xf32> to vector<10x1xf32>
    %331 = arith.maximumf %329, %330 : vector<10x1xf32>
    %332 = vector.extract_strided_slice %150 {offsets = [0, 354], sizes = [10, 1], strides = [1, 1]} : vector<10x464xf32> to vector<10x1xf32>
    %333 = vector.extract_strided_slice %150 {offsets = [0, 355], sizes = [10, 1], strides = [1, 1]} : vector<10x464xf32> to vector<10x1xf32>
    %334 = arith.maximumf %332, %333 : vector<10x1xf32>
    %335 = arith.maximumf %331, %334 : vector<10x1xf32>
    %336 = vector.extract_strided_slice %150 {offsets = [0, 340], sizes = [10, 1], strides = [1, 1]} : vector<10x464xf32> to vector<10x1xf32>
    %337 = vector.extract_strided_slice %150 {offsets = [0, 341], sizes = [10, 1], strides = [1, 1]} : vector<10x464xf32> to vector<10x1xf32>
    %338 = arith.maximumf %336, %337 : vector<10x1xf32>
    %339 = vector.extract_strided_slice %150 {offsets = [0, 356], sizes = [10, 1], strides = [1, 1]} : vector<10x464xf32> to vector<10x1xf32>
    %340 = vector.extract_strided_slice %150 {offsets = [0, 357], sizes = [10, 1], strides = [1, 1]} : vector<10x464xf32> to vector<10x1xf32>
    %341 = arith.maximumf %339, %340 : vector<10x1xf32>
    %342 = arith.maximumf %338, %341 : vector<10x1xf32>
    %343 = vector.extract_strided_slice %150 {offsets = [0, 342], sizes = [10, 1], strides = [1, 1]} : vector<10x464xf32> to vector<10x1xf32>
    %344 = vector.extract_strided_slice %150 {offsets = [0, 343], sizes = [10, 1], strides = [1, 1]} : vector<10x464xf32> to vector<10x1xf32>
    %345 = arith.maximumf %343, %344 : vector<10x1xf32>
    %346 = vector.extract_strided_slice %150 {offsets = [0, 358], sizes = [10, 1], strides = [1, 1]} : vector<10x464xf32> to vector<10x1xf32>
    %347 = vector.extract_strided_slice %150 {offsets = [0, 359], sizes = [10, 1], strides = [1, 1]} : vector<10x464xf32> to vector<10x1xf32>
    %348 = arith.maximumf %346, %347 : vector<10x1xf32>
    %349 = arith.maximumf %345, %348 : vector<10x1xf32>
    %350 = vector.extract_strided_slice %150 {offsets = [0, 368], sizes = [10, 1], strides = [1, 1]} : vector<10x464xf32> to vector<10x1xf32>
    %351 = vector.extract_strided_slice %150 {offsets = [0, 369], sizes = [10, 1], strides = [1, 1]} : vector<10x464xf32> to vector<10x1xf32>
    %352 = arith.maximumf %350, %351 : vector<10x1xf32>
    %353 = vector.extract_strided_slice %150 {offsets = [0, 384], sizes = [10, 1], strides = [1, 1]} : vector<10x464xf32> to vector<10x1xf32>
    %354 = vector.extract_strided_slice %150 {offsets = [0, 385], sizes = [10, 1], strides = [1, 1]} : vector<10x464xf32> to vector<10x1xf32>
    %355 = arith.maximumf %353, %354 : vector<10x1xf32>
    %356 = arith.maximumf %352, %355 : vector<10x1xf32>
    %357 = vector.extract_strided_slice %150 {offsets = [0, 370], sizes = [10, 1], strides = [1, 1]} : vector<10x464xf32> to vector<10x1xf32>
    %358 = vector.extract_strided_slice %150 {offsets = [0, 371], sizes = [10, 1], strides = [1, 1]} : vector<10x464xf32> to vector<10x1xf32>
    %359 = arith.maximumf %357, %358 : vector<10x1xf32>
    %360 = vector.extract_strided_slice %150 {offsets = [0, 386], sizes = [10, 1], strides = [1, 1]} : vector<10x464xf32> to vector<10x1xf32>
    %361 = vector.extract_strided_slice %150 {offsets = [0, 387], sizes = [10, 1], strides = [1, 1]} : vector<10x464xf32> to vector<10x1xf32>
    %362 = arith.maximumf %360, %361 : vector<10x1xf32>
    %363 = arith.maximumf %359, %362 : vector<10x1xf32>
    %364 = vector.extract_strided_slice %150 {offsets = [0, 372], sizes = [10, 1], strides = [1, 1]} : vector<10x464xf32> to vector<10x1xf32>
    %365 = vector.extract_strided_slice %150 {offsets = [0, 373], sizes = [10, 1], strides = [1, 1]} : vector<10x464xf32> to vector<10x1xf32>
    %366 = arith.maximumf %364, %365 : vector<10x1xf32>
    %367 = vector.extract_strided_slice %150 {offsets = [0, 388], sizes = [10, 1], strides = [1, 1]} : vector<10x464xf32> to vector<10x1xf32>
    %368 = vector.extract_strided_slice %150 {offsets = [0, 389], sizes = [10, 1], strides = [1, 1]} : vector<10x464xf32> to vector<10x1xf32>
    %369 = arith.maximumf %367, %368 : vector<10x1xf32>
    %370 = arith.maximumf %366, %369 : vector<10x1xf32>
    %371 = vector.extract_strided_slice %150 {offsets = [0, 374], sizes = [10, 1], strides = [1, 1]} : vector<10x464xf32> to vector<10x1xf32>
    %372 = vector.extract_strided_slice %150 {offsets = [0, 375], sizes = [10, 1], strides = [1, 1]} : vector<10x464xf32> to vector<10x1xf32>
    %373 = arith.maximumf %371, %372 : vector<10x1xf32>
    %374 = vector.extract_strided_slice %150 {offsets = [0, 390], sizes = [10, 1], strides = [1, 1]} : vector<10x464xf32> to vector<10x1xf32>
    %375 = vector.extract_strided_slice %150 {offsets = [0, 391], sizes = [10, 1], strides = [1, 1]} : vector<10x464xf32> to vector<10x1xf32>
    %376 = arith.maximumf %374, %375 : vector<10x1xf32>
    %377 = arith.maximumf %373, %376 : vector<10x1xf32>
    %378 = tpu.concatenate %272, %279, %286, %293, %300, %307, %314, %321, %328, %335, %342, %349, %356, %363, %370, %377 in 0 : vector<10x1xf32>, vector<10x1xf32>, vector<10x1xf32>, vector<10x1xf32>, vector<10x1xf32>, vector<10x1xf32>, vector<10x1xf32>, vector<10x1xf32>, vector<10x1xf32>, vector<10x1xf32>, vector<10x1xf32>, vector<10x1xf32>, vector<10x1xf32>, vector<10x1xf32>, vector<10x1xf32>, vector<10x1xf32> -> vector<160x1xf32>
    %cst_103 = arith.constant dense<0.000000e+00> : vector<64x1xf32>
    %379 = tpu.matmul %151, %378, %cst_103 {dimension_numbers = #tpu.dot_dimension_numbers<[1], [0], [0], [1], [0, 0, 1, 1], [], []>} : vector<64x160xf32>, vector<160x1xf32>, vector<64x1xf32> -> vector<64x1xf32>
    %380 = tpu.concatenate %265, %379 in 1 : vector<64x1xf32>, vector<64x1xf32> -> vector<64x2xf32>
    %c0_104 = arith.constant 0 : index
    %c0_105 = arith.constant 0 : index
    %381 = vector.load %arg6[%c0_104, %c0_105] : memref<64x3xf32, #tpu.memory_space<vmem>>, vector<64x3xf32>
    %cst_106 = arith.constant dense<0.000000e+00> : vector<64x2xf32>
    %382 = tpu.matmul %381, %0, %cst_106 {dimension_numbers = #tpu.dot_dimension_numbers<[1], [0], [0], [1], [0, 0, 1, 1], [], []>} : vector<64x3xf32>, vector<3x2xf32>, vector<64x2xf32> -> vector<64x2xf32>
    %383 = arith.addf %380, %382 : vector<64x2xf32>
    %c0_107 = arith.constant 0 : index
    %c0_108 = arith.constant 0 : index
    %384 = vector.load %arg8[%c0_107, %c0_108] : memref<64x1xf32, #tpu.memory_space<vmem>>, vector<64x1xf32>
    %385 = vector.broadcast %384 : vector<64x1xf32> to vector<64x2xf32>
    %386 = arith.addf %383, %385 : vector<64x2xf32>
    %387 = math.tanh %386 : vector<64x2xf32>
    %cst_109 = arith.constant 1.000000e-01 : f32
    %388 = vector.broadcast %cst_109 : f32 to vector<64x2xf32>
    %389 = arith.mulf %387, %388 : vector<64x2xf32>
    %c0_110 = arith.constant 0 : index
    %c0_111 = arith.constant 0 : index
    %390 = vector.load %arg9[%c0_110, %c0_111] : memref<12x64xf32, #tpu.memory_space<vmem>>, vector<12x64xf32>
    %cst_112 = arith.constant dense<0.000000e+00> : vector<12x2xf32>
    %391 = tpu.matmul %390, %389, %cst_112 {dimension_numbers = #tpu.dot_dimension_numbers<[1], [0], [0], [1], [0, 0, 1, 1], [], []>} : vector<12x64xf32>, vector<64x2xf32>, vector<12x2xf32> -> vector<12x2xf32>
    %c0_113 = arith.constant 0 : index
    %c0_114 = arith.constant 0 : index
    %392 = vector.load %arg10[%c0_113, %c0_114] : memref<12x1xf32, #tpu.memory_space<vmem>>, vector<12x1xf32>
    %393 = vector.broadcast %392 : vector<12x1xf32> to vector<12x2xf32>
    %394 = arith.addf %391, %393 : vector<12x2xf32>
    %395 = vector.extract_strided_slice %394 {offsets = [8, 0], sizes = [2, 2], strides = [1, 1]} : vector<12x2xf32> to vector<2x2xf32>
    %cst_115 = arith.constant 0.000000e+00 : f32
    %396 = vector.broadcast %cst_115 : f32 to vector<2x2xf32>
    %397 = arith.subf %396, %395 : vector<2x2xf32>
    %398 = math.exp %397 : vector<2x2xf32>
    %cst_116 = arith.constant 1.000000e+00 : f32
    %399 = vector.broadcast %cst_116 : f32 to vector<2x2xf32>
    %400 = arith.addf %399, %398 : vector<2x2xf32>
    %cst_117 = arith.constant 1.000000e+00 : f32
    %401 = vector.broadcast %cst_117 : f32 to vector<2x2xf32>
    %402 = arith.divf %401, %400 : vector<2x2xf32>
    %cst_118 = arith.constant 1.000000e+00 : f32
    %403 = vector.broadcast %cst_118 : f32 to vector<2x2xf32>
    %404 = arith.mulf %402, %403 : vector<2x2xf32>
    %cst_119 = arith.constant 1.000000e-03 : f32
    %405 = vector.broadcast %cst_119 : f32 to vector<2x2xf32>
    %406 = arith.addf %404, %405 : vector<2x2xf32>
    %c0_120 = arith.constant 0 : index
    %c0_121 = arith.constant 0 : index
    %407 = vector.load %arg13[%c0_120, %c0_121] : memref<2x2xf32, #tpu.memory_space<vmem>>, vector<2x2xf32>
    tpu.vector_store %arg13[%c0_120, %c0_121], %406 {strides = array<i32>} : memref<2x2xf32, #tpu.memory_space<vmem>>, vector<2x2xf32>,
    %408 = vector.extract_strided_slice %394 {offsets = [10, 0], sizes = [2, 2], strides = [1, 1]} : vector<12x2xf32> to vector<2x2xf32>
    %409 = vector.extract_strided_slice %408 {offsets = [0, 0], sizes = [1, 2], strides = [1, 1]} : vector<2x2xf32> to vector<1x2xf32>
    %410 = vector.shape_cast %409 : vector<1x2xf32> to vector<1x2xf32>
    %411 = vector.broadcast %410 : vector<1x2xf32> to vector<5x2xf32>
    %412 = vector.extract_strided_slice %408 {offsets = [1, 0], sizes = [1, 2], strides = [1, 1]} : vector<2x2xf32> to vector<1x2xf32>
    %413 = vector.shape_cast %412 : vector<1x2xf32> to vector<1x2xf32>
    %414 = vector.broadcast %413 : vector<1x2xf32> to vector<5x2xf32>
    %415 = tpu.concatenate %411, %414 in 0 : vector<5x2xf32>, vector<5x2xf32> -> vector<10x2xf32>
    %c0_122 = arith.constant 0 : index
    %c0_123 = arith.constant 0 : index
    %416 = vector.load %arg14[%c0_122, %c0_123] : memref<10x2xf32, #tpu.memory_space<vmem>>, vector<10x2xf32>
    tpu.vector_store %arg14[%c0_122, %c0_123], %415 {strides = array<i32>} : memref<10x2xf32, #tpu.memory_space<vmem>>, vector<10x2xf32>,
    %417 = vector.extract_strided_slice %394 {offsets = [0, 0], sizes = [2, 2], strides = [1, 1]} : vector<12x2xf32> to vector<2x2xf32>
    %418 = vector.extract_strided_slice %394 {offsets = [2, 0], sizes = [6, 2], strides = [1, 1]} : vector<12x2xf32> to vector<6x2xf32>
    %419 = vector.extract_strided_slice %394 {offsets = [7, 0], sizes = [1, 2], strides = [1, 1]} : vector<12x2xf32> to vector<1x2xf32>
    %cst_124 = arith.constant 5.000000e-01 : f32
    %cst_125 = arith.constant 3.000000e+01 : f32
    %420 = vector.broadcast %cst_124 : f32 to vector<1x2xf32>
    %421 = arith.maximumf %420, %419 : vector<1x2xf32>
    %422 = vector.broadcast %cst_125 : f32 to vector<1x2xf32>
    %423 = arith.minimumf %422, %421 : vector<1x2xf32>
    %cst_126 = arith.constant 2.500000e-01 : f32
    %424 = vector.broadcast %cst_126 : f32 to vector<1x2xf32>
    %425 = arith.mulf %423, %424 : vector<1x2xf32>
    %426 = vector.extract_strided_slice %0 {offsets = [0, 0], sizes = [2, 2], strides = [1, 1]} : vector<3x2xf32> to vector<2x2xf32>
    %c0_127 = arith.constant 0 : index
    %c0_128 = arith.constant 0 : index
    %427 = vector.load %arg11[%c0_127, %c0_128] : memref<10x6xf32, #tpu.memory_space<vmem>>, vector<10x6xf32>
    %cst_129 = arith.constant dense<0.000000e+00> : vector<10x2xf32>
    %428 = tpu.matmul %427, %418, %cst_129 {dimension_numbers = #tpu.dot_dimension_numbers<[1], [0], [0], [1], [0, 0, 1, 1], [], []>} : vector<10x6xf32>, vector<6x2xf32>, vector<10x2xf32> -> vector<10x2xf32>
    %cst_130 = arith.constant 0.000000e+00 : f32
    %429 = vector.broadcast %cst_130 : f32 to vector<2x2xf32>
    %cst_131 = arith.constant 0.00999999977 : f32
    %430 = vector.broadcast %cst_131 : f32 to vector<2x2xf32>
    %431 = arith.addf %429, %430 : vector<2x2xf32>
    %432 = vector.extract_strided_slice %428 {offsets = [0, 0], sizes = [2, 2], strides = [1, 1]} : vector<10x2xf32> to vector<2x2xf32>
    %433 = arith.subf %417, %426 : vector<2x2xf32>
    %434 = arith.mulf %432, %433 : vector<2x2xf32>
    %435 = arith.subf %417, %426 : vector<2x2xf32>
    %436 = vector.broadcast %425 : vector<1x2xf32> to vector<2x2xf32>
    %437 = arith.mulf %436, %435 : vector<2x2xf32>
    %438 = arith.subf %437, %431 : vector<2x2xf32>
    %439 = vector.broadcast %423 : vector<1x2xf32> to vector<2x2xf32>
    %440 = arith.mulf %439, %438 : vector<2x2xf32>
    %441 = arith.addf %440, %434 : vector<2x2xf32>
    %cst_132 = arith.constant 1.000000e+00 : f32
    %442 = vector.broadcast %cst_132 : f32 to vector<2x2xf32>
    %443 = arith.mulf %441, %442 : vector<2x2xf32>
    %cst_133 = arith.constant 1.000000e+00 : f32
    %444 = vector.broadcast %cst_133 : f32 to vector<2x2xf32>
    %445 = arith.mulf %431, %444 : vector<2x2xf32>
    %cst_134 = arith.constant 2.000000e-01 : f32
    %446 = vector.broadcast %cst_134 : f32 to vector<2x2xf32>
    %447 = arith.mulf %445, %446 : vector<2x2xf32>
    %448 = arith.addf %426, %447 : vector<2x2xf32>
    %cst_135 = arith.constant 2.000000e-01 : f32
    %449 = vector.broadcast %cst_135 : f32 to vector<2x2xf32>
    %450 = arith.mulf %443, %449 : vector<2x2xf32>
    %451 = arith.addf %431, %450 : vector<2x2xf32>
    %452 = arith.subf %448, %426 : vector<2x2xf32>
    %453 = vector.extract_strided_slice %428 {offsets = [2, 0], sizes = [2, 2], strides = [1, 1]} : vector<10x2xf32> to vector<2x2xf32>
    %454 = arith.subf %417, %426 : vector<2x2xf32>
    %455 = arith.mulf %453, %454 : vector<2x2xf32>
    %456 = arith.subf %417, %448 : vector<2x2xf32>
    %457 = vector.broadcast %425 : vector<1x2xf32> to vector<2x2xf32>
    %458 = arith.mulf %457, %456 : vector<2x2xf32>
    %459 = arith.subf %458, %451 : vector<2x2xf32>
    %460 = vector.broadcast %423 : vector<1x2xf32> to vector<2x2xf32>
    %461 = arith.mulf %460, %459 : vector<2x2xf32>
    %462 = arith.addf %461, %455 : vector<2x2xf32>
    %cst_136 = arith.constant 1.000000e+00 : f32
    %463 = vector.broadcast %cst_136 : f32 to vector<2x2xf32>
    %464 = arith.mulf %462, %463 : vector<2x2xf32>
    %cst_137 = arith.constant 1.000000e+00 : f32
    %465 = vector.broadcast %cst_137 : f32 to vector<2x2xf32>
    %466 = arith.mulf %451, %465 : vector<2x2xf32>
    %cst_138 = arith.constant 2.000000e-01 : f32
    %467 = vector.broadcast %cst_138 : f32 to vector<2x2xf32>
    %468 = arith.mulf %466, %467 : vector<2x2xf32>
    %469 = arith.addf %448, %468 : vector<2x2xf32>
    %cst_139 = arith.constant 2.000000e-01 : f32
    %470 = vector.broadcast %cst_139 : f32 to vector<2x2xf32>
    %471 = arith.mulf %464, %470 : vector<2x2xf32>
    %472 = arith.addf %451, %471 : vector<2x2xf32>
    %473 = arith.subf %469, %448 : vector<2x2xf32>
    %474 = vector.extract_strided_slice %428 {offsets = [4, 0], sizes = [2, 2], strides = [1, 1]} : vector<10x2xf32> to vector<2x2xf32>
    %475 = arith.subf %417, %426 : vector<2x2xf32>
    %476 = arith.mulf %474, %475 : vector<2x2xf32>
    %477 = arith.subf %417, %469 : vector<2x2xf32>
    %478 = vector.broadcast %425 : vector<1x2xf32> to vector<2x2xf32>
    %479 = arith.mulf %478, %477 : vector<2x2xf32>
    %480 = arith.subf %479, %472 : vector<2x2xf32>
    %481 = vector.broadcast %423 : vector<1x2xf32> to vector<2x2xf32>
    %482 = arith.mulf %481, %480 : vector<2x2xf32>
    %483 = arith.addf %482, %476 : vector<2x2xf32>
    %cst_140 = arith.constant 1.000000e+00 : f32
    %484 = vector.broadcast %cst_140 : f32 to vector<2x2xf32>
    %485 = arith.mulf %483, %484 : vector<2x2xf32>
    %cst_141 = arith.constant 1.000000e+00 : f32
    %486 = vector.broadcast %cst_141 : f32 to vector<2x2xf32>
    %487 = arith.mulf %472, %486 : vector<2x2xf32>
    %cst_142 = arith.constant 2.000000e-01 : f32
    %488 = vector.broadcast %cst_142 : f32 to vector<2x2xf32>
    %489 = arith.mulf %487, %488 : vector<2x2xf32>
    %490 = arith.addf %469, %489 : vector<2x2xf32>
    %cst_143 = arith.constant 2.000000e-01 : f32
    %491 = vector.broadcast %cst_143 : f32 to vector<2x2xf32>
    %492 = arith.mulf %485, %491 : vector<2x2xf32>
    %493 = arith.addf %472, %492 : vector<2x2xf32>
    %494 = arith.subf %490, %469 : vector<2x2xf32>
    %495 = vector.extract_strided_slice %428 {offsets = [6, 0], sizes = [2, 2], strides = [1, 1]} : vector<10x2xf32> to vector<2x2xf32>
    %496 = arith.subf %417, %426 : vector<2x2xf32>
    %497 = arith.mulf %495, %496 : vector<2x2xf32>
    %498 = arith.subf %417, %490 : vector<2x2xf32>
    %499 = vector.broadcast %425 : vector<1x2xf32> to vector<2x2xf32>
    %500 = arith.mulf %499, %498 : vector<2x2xf32>
    %501 = arith.subf %500, %493 : vector<2x2xf32>
    %502 = vector.broadcast %423 : vector<1x2xf32> to vector<2x2xf32>
    %503 = arith.mulf %502, %501 : vector<2x2xf32>
    %504 = arith.addf %503, %497 : vector<2x2xf32>
    %cst_144 = arith.constant 1.000000e+00 : f32
    %505 = vector.broadcast %cst_144 : f32 to vector<2x2xf32>
    %506 = arith.mulf %504, %505 : vector<2x2xf32>
    %cst_145 = arith.constant 1.000000e+00 : f32
    %507 = vector.broadcast %cst_145 : f32 to vector<2x2xf32>
    %508 = arith.mulf %493, %507 : vector<2x2xf32>
    %cst_146 = arith.constant 2.000000e-01 : f32
    %509 = vector.broadcast %cst_146 : f32 to vector<2x2xf32>
    %510 = arith.mulf %508, %509 : vector<2x2xf32>
    %511 = arith.addf %490, %510 : vector<2x2xf32>
    %cst_147 = arith.constant 2.000000e-01 : f32
    %512 = vector.broadcast %cst_147 : f32 to vector<2x2xf32>
    %513 = arith.mulf %506, %512 : vector<2x2xf32>
    %514 = arith.addf %493, %513 : vector<2x2xf32>
    %515 = arith.subf %511, %490 : vector<2x2xf32>
    %cst_148 = arith.constant 1.000000e+00 : f32
    %516 = vector.broadcast %cst_148 : f32 to vector<2x2xf32>
    %517 = arith.mulf %514, %516 : vector<2x2xf32>
    %cst_149 = arith.constant 2.000000e-01 : f32
    %518 = vector.broadcast %cst_149 : f32 to vector<2x2xf32>
    %519 = arith.mulf %517, %518 : vector<2x2xf32>
    %520 = arith.addf %511, %519 : vector<2x2xf32>
    %521 = arith.subf %520, %511 : vector<2x2xf32>
    %522 = vector.extract_strided_slice %452 {offsets = [0, 0], sizes = [1, 2], strides = [1, 1]} : vector<2x2xf32> to vector<1x2xf32>
    %523 = vector.extract_strided_slice %473 {offsets = [0, 0], sizes = [1, 2], strides = [1, 1]} : vector<2x2xf32> to vector<1x2xf32>
    %524 = vector.extract_strided_slice %494 {offsets = [0, 0], sizes = [1, 2], strides = [1, 1]} : vector<2x2xf32> to vector<1x2xf32>
    %525 = vector.extract_strided_slice %515 {offsets = [0, 0], sizes = [1, 2], strides = [1, 1]} : vector<2x2xf32> to vector<1x2xf32>
    %526 = vector.extract_strided_slice %521 {offsets = [0, 0], sizes = [1, 2], strides = [1, 1]} : vector<2x2xf32> to vector<1x2xf32>
    %527 = vector.extract_strided_slice %452 {offsets = [1, 0], sizes = [1, 2], strides = [1, 1]} : vector<2x2xf32> to vector<1x2xf32>
    %528 = vector.extract_strided_slice %473 {offsets = [1, 0], sizes = [1, 2], strides = [1, 1]} : vector<2x2xf32> to vector<1x2xf32>
    %529 = vector.extract_strided_slice %494 {offsets = [1, 0], sizes = [1, 2], strides = [1, 1]} : vector<2x2xf32> to vector<1x2xf32>
    %530 = vector.extract_strided_slice %515 {offsets = [1, 0], sizes = [1, 2], strides = [1, 1]} : vector<2x2xf32> to vector<1x2xf32>
    %531 = vector.extract_strided_slice %521 {offsets = [1, 0], sizes = [1, 2], strides = [1, 1]} : vector<2x2xf32> to vector<1x2xf32>
    %532 = tpu.concatenate %522, %523, %524, %525, %526, %527, %528, %529, %530, %531 in 0 : vector<1x2xf32>, vector<1x2xf32>, vector<1x2xf32>, vector<1x2xf32>, vector<1x2xf32>, vector<1x2xf32>, vector<1x2xf32>, vector<1x2xf32>, vector<1x2xf32>, vector<1x2xf32> -> vector<10x2xf32>
    %c0_150 = arith.constant 0 : index
    %c0_151 = arith.constant 0 : index
    %533 = vector.load %arg12[%c0_150, %c0_151] : memref<10x2xf32, #tpu.memory_space<vmem>>, vector<10x2xf32>
    tpu.vector_store %arg12[%c0_150, %c0_151], %532 {strides = array<i32>} : memref<10x2xf32, #tpu.memory_space<vmem>>, vector<10x2xf32>,
    return
  }
}

</mosaic_0001>

<llo_original>
// kernel: forward.1
$region0: #{forward.1}
  #allocation0 [shape = 'u32[]', space=smem, size = 0x4, offset = 0x4, fixed_abs, tag = 'smem constant byte address 0x4 - core index']
  #allocation1 [shape = 'u32[144,128]{1,0:T(1,128)}', space=vmem, size = 0x12000, scoped, tag = 'internal scratch']
  %s0 = inlined_call_operand.vmem [shape: f32[4,25,544], index: 0, kind: input, shape index: {}]
  %s1 = inlined_call_operand.vmem [shape: f32[3,2], index: 1, kind: input, shape index: {}]
  %s2 = inlined_call_operand.vmem [shape: f32[10,25], index: 2, kind: input, shape index: {}]
  %s3 = inlined_call_operand.vmem [shape: f32[10,1], index: 3, kind: input, shape index: {}]
  %s4 = inlined_call_operand.vmem [shape: f32[25,10,10], index: 4, kind: input, shape index: {}]
  %s5 = inlined_call_operand.vmem [shape: f32[10,1], index: 5, kind: input, shape index: {}]
  %s6 = inlined_call_operand.vmem [shape: f32[64,3], index: 6, kind: input, shape index: {}]
  %s7 = inlined_call_operand.vmem [shape: f32[64,160], index: 7, kind: input, shape index: {}]
  %s8 = inlined_call_operand.vmem [shape: f32[64,1], index: 8, kind: input, shape index: {}]
  %s9 = inlined_call_operand.vmem [shape: f32[12,64], index: 9, kind: input, shape index: {}]
  %s10 = inlined_call_operand.vmem [shape: f32[12,1], index: 10, kind: input, shape index: {}]
  %s11 = inlined_call_operand.vmem [shape: f32[10,6], index: 11, kind: input, shape index: {}]
  %s12 = inlined_call_operand.vmem [shape: f32[10,2], index: 12, kind: output, shape index: {0}]
  %s13 = inlined_call_operand.vmem [shape: f32[2,2], index: 13, kind: output, shape index: {1}]
  %s14 = inlined_call_operand.vmem [shape: f32[10,2], index: 14, kind: output, shape index: {2}]
  %15 = xla_tuple %s12, %s13, %s14
  %s16 = sld [smem:[#allocation0]]
  $region74: #{forward.1} parent=0
    _
  %s18 = ssub.s32 1, %s16
  %s19 = scalar_select 0, %s18, %s16
  // Predicated region
  $region2: #{forward.1} parent=0 // pred_check
    _
  $region3: #{forward.1} parent=0 // pred_check_branch
    %21 = sbr.rel (0) target = $region5
  $region4: #{forward.1} parent=0 // pred_region
    _
  $region5: #{forward.1} parent=0 // pred_fallthru
    _
  // Predicated region
  $region6: #{forward.1} parent=0 // pred_check
    _
  $region7: #{forward.1} parent=0 // pred_check_branch
    %23 = sbr.rel (0) target = $region9
  $region8: #{forward.1} parent=0 // pred_region
    _
  $region9: #{forward.1} parent=0 // pred_fallthru
    _
  // Predicated region
  $region10: #{forward.1} parent=0 // pred_check
    _
  $region11: #{forward.1} parent=0 // pred_check_branch
    %25 = sbr.rel (0) target = $region13
  $region12: #{forward.1} parent=0 // pred_region
    _
  $region13: #{forward.1} parent=0 // pred_fallthru
    _
  // Predicated region
  $region14: #{forward.1} parent=0 // pred_check
    _
  $region15: #{forward.1} parent=0 // pred_check_branch
    %27 = sbr.rel (0) target = $region17
  $region16: #{forward.1} parent=0 // pred_region
    _
  $region17: #{forward.1} parent=0 // pred_fallthru
    _
  // Predicated region
  $region18: #{forward.1} parent=0 // pred_check
    _
  $region19: #{forward.1} parent=0 // pred_check_branch
    %29 = sbr.rel (0) target = $region21
  $region20: #{forward.1} parent=0 // pred_region
    _
  $region21: #{forward.1} parent=0 // pred_fallthru
    _
  // Predicated region
  $region22: #{forward.1} parent=0 // pred_check
    _
  $region23: #{forward.1} parent=0 // pred_check_branch
    %31 = sbr.rel (0) target = $region25
  $region24: #{forward.1} parent=0 // pred_region
    _
  $region25: #{forward.1} parent=0 // pred_fallthru
    _
  // Predicated region
  $region26: #{forward.1} parent=0 // pred_check
    _
  $region27: #{forward.1} parent=0 // pred_check_branch
    %33 = sbr.rel (0) target = $region29
  $region28: #{forward.1} parent=0 // pred_region
    _
  $region29: #{forward.1} parent=0 // pred_fallthru
    _
  // Predicated region
  $region30: #{forward.1} parent=0 // pred_check
    _
  $region31: #{forward.1} parent=0 // pred_check_branch
    %35 = sbr.rel (0) target = $region33
  $region32: #{forward.1} parent=0 // pred_region
    _
  $region33: #{forward.1} parent=0 // pred_fallthru
    _
  // Predicated region
  $region34: #{forward.1} parent=0 // pred_check
    _
  $region35: #{forward.1} parent=0 // pred_check_branch
    %37 = sbr.rel (0) target = $region37
  $region36: #{forward.1} parent=0 // pred_region
    _
  $region37: #{forward.1} parent=0 // pred_fallthru
    _
  // Predicated region
  $region38: #{forward.1} parent=0 // pred_check
    _
  $region39: #{forward.1} parent=0 // pred_check_branch
    %39 = sbr.rel (0) target = $region41
  $region40: #{forward.1} parent=0 // pred_region
    _
  $region41: #{forward.1} parent=0 // pred_fallthru
    _
  // Predicated region
  $region42: #{forward.1} parent=0 // pred_check
    _
  $region43: #{forward.1} parent=0 // pred_check_branch
    %41 = sbr.rel (0) target = $region45
  $region44: #{forward.1} parent=0 // pred_region
    _
  $region45: #{forward.1} parent=0 // pred_fallthru
    _
  // Predicated region
  $region46: #{forward.1} parent=0 // pred_check
    _
  $region47: #{forward.1} parent=0 // pred_check_branch
    %43 = sbr.rel (0) target = $region49
  $region48: #{forward.1} parent=0 // pred_region
    _
  $region49: #{forward.1} parent=0 // pred_fallthru
    _
  %v44 = vld [vmem:[%s1] sm:$0x7]
  %v45 = vld [vmem:[%s2] sm:$0xff]
  %v46 = vld [vmem:[%s2 + $0x8] sm:$0x3]
  %v47 = vld [vmem:[%s0] sm:$0xff]
  %v48 = vld [vmem:[%s0 + $0x8] sm:$0xff]
  %v49 = vld [vmem:[%s0 + $0x10] sm:$0xff]
  %v50 = vld [vmem:[%s0 + $0x18] sm:$0xff]
  %v51 = vld [vmem:[%s0 + $0x20] sm:$0xff]
  %v52 = vld [vmem:[%s0 + $0x28] sm:$0xff]
  %v53 = vld [vmem:[%s0 + $0x30] sm:$0xff]
  %v54 = vld [vmem:[%s0 + $0x38] sm:$0xff]
  %v55 = vld [vmem:[%s0 + $0x40] sm:$0xff]
  %v56 = vld [vmem:[%s0 + $0x48] sm:$0xff]
  %v57 = vld [vmem:[%s0 + $0x50] sm:$0xff]
  %v58 = vld [vmem:[%s0 + $0x58] sm:$0xff]
  %v59 = vld [vmem:[%s0 + $0x60] sm:$0xff]
  %v60 = vld [vmem:[%s0 + $0x68] sm:$0xff]
  %v61 = vld [vmem:[%s0 + $0x70] sm:$0xff]
  %v62 = vld [vmem:[%s0 + $0x78] sm:$0x1]
  %v63 = vld [vmem:[%s0 + $0x80] sm:$0x1]
  %v64 = vld [vmem:[%s0 + $0x88] sm:$0x1]
  %v65 = vld [vmem:[%s0 + $0x90] sm:$0x1]
  %v66 = vld [vmem:[%s0 + $0x98] sm:$0x1]
  %vm67 = vcmask 203776
  %v69 = vsel %vm67, %v45, 0
  %v72 = vsel %vm67, %v46, 0
  %vm74 = vcmask 1040384
  %v76 = vsel %vm74, %v62, 0
  %v79 = vsel %vm74, %v63, 0
  %v82 = vsel %vm74, %v64, 0
  %v85 = vsel %vm74, %v65, 0
  %v88 = vsel %vm74, %v66, 0
  %90 = vmatprep.subr.mxu0 0.0
  %91 = vmatpush1.msra.mxu0 0.0
  %92 = vmatprep.subr.mxu0 0.0
  %93 = vmatpush1.msra.mxu0 0.0
  %94 = vmatprep.subr.mxu0 0.0
  %95 = vmatpush1.msra.mxu0 0.0
  %96 = vmatprep.subr.mxu0 0.0
  %97 = vmatpush1.msra.mxu0 0.0
  %98 = vmatprep.subr.mxu0 0.0
  %99 = vmatpush1.msra.mxu0 0.0
  %100 = vmatprep.subr.mxu0 0.0
  %101 = vmatpush1.msra.mxu0 0.0
  %102 = vmatprep.subr.mxu0 0.0
  %103 = vmatpush1.msra.mxu0 0.0
  %104 = vmatprep.subr.mxu0 0.0
  %105 = vmatpush1.msra.mxu0 0.0
  %106 = vmatprep.subr.mxu0 0.0
  %107 = vmatpush1.msra.mxu0 0.0
  %108 = vmatprep.subr.mxu0 0.0
  %109 = vmatpush1.msra.mxu0 0.0
  %110 = vmatprep.subr.mxu0 0.0
  %111 = vmatpush1.msra.mxu0 0.0
  %112 = vmatprep.subr.mxu0 0.0
  %113 = vmatpush1.msra.mxu0 0.0
  %114 = vmatprep.subr.mxu0 %v79
  %115 = vmatpush1.msra.mxu0 %v76
  %116 = vmatprep.subr.mxu0 %v58
  %117 = vmatpush1.msra.mxu0 %v57
  %118 = vmatprep.subr.mxu0 %v53
  %119 = vmatpush1.msra.mxu0 %v52
  %120 = vmatprep.subr.mxu0 %v48
  %121 = vmatpush1.msra.mxu0 %v47
  %122 = vmatprep.subr.mxu0 0.0
  %123 = vmatpush2.msra.mxu0 0.0
  %124 = vmatprep.subr.mxu0 0.0
  %125 = vmatpush2.msra.mxu0 0.0
  %126 = vmatprep.subr.mxu0 0.0
  %127 = vmatpush2.msra.mxu0 0.0
  %128 = vmatprep.subr.mxu0 0.0
  %129 = vmatpush2.msra.mxu0 0.0
  %130 = vmatprep.subr.mxu0 0.0
  %131 = vmatpush2.msra.mxu0 0.0
  %132 = vmatprep.subr.mxu0 0.0
  %133 = vmatpush2.msra.mxu0 0.0
  %134 = vmatprep.subr.mxu0 0.0
  %135 = vmatpush2.msra.mxu0 0.0
  %136 = vmatprep.subr.mxu0 0.0
  %137 = vmatpush2.msra.mxu0 0.0
  %138 = vmatprep.subr.mxu0 0.0
  %139 = vmatpush2.msra.mxu0 0.0
  %140 = vmatprep.subr.mxu0 0.0
  %141 = vmatpush2.msra.mxu0 0.0
  %142 = vmatprep.subr.mxu0 0.0
  %143 = vmatpush2.msra.mxu0 0.0
  %144 = vmatprep.subr.mxu0 0.0
  %145 = vmatpush2.msra.mxu0 0.0
  %146 = vmatprep.subr.mxu0 0.0
  %147 = vmatpush2.msra.mxu0 0.0
  %148 = vmatprep.subr.mxu0 0.0
  %149 = vmatpush2.msra.mxu0 0.0
  %150 = vmatprep.subr.mxu0 0.0
  %151 = vmatpush2.msra.mxu0 0.0
  %152 = vmatprep.subr.mxu0 0.0
  %153 = vmatpush2.msra.mxu0 0.0
  %154 = vmatprep.mubr.f32.mxu0 0.0
  %155 = vmatmul.mubr.f32.gmra.mxu0 %v69
  %v156 = vpop.f32.mrf.mxu0
  %v157 = vadd.f32 0.0, %v156
  %v158 = vpop.f32.mrf.mxu0
  %v159 = vadd.f32 0.0, %v158
  %160 = vmatprep.mubr.f32.mxu0 0.0
  %161 = vmatmul.mubr.f32.gmra.mxu0 %v72
  %v162 = vpop.f32.mrf.mxu0
  %v163 = vadd.f32 0.0, %v162
  %v164 = vpop.f32.mrf.mxu0
  %v165 = vadd.f32 0.0, %v164
  %166 = vdwg.mxu0
  %167 = vmatprep.subr.mxu0 0.0
  %168 = vmatpush1.msra.mxu0 0.0
  %169 = vmatprep.subr.mxu0 0.0
  %170 = vmatpush1.msra.mxu0 0.0
  %171 = vmatprep.subr.mxu0 0.0
  %172 = vmatpush1.msra.mxu0 0.0
  %173 = vmatprep.subr.mxu0 0.0
  %174 = vmatpush1.msra.mxu0 0.0
  %175 = vmatprep.subr.mxu0 0.0
  %176 = vmatpush1.msra.mxu0 0.0
  %177 = vmatprep.subr.mxu0 0.0
  %178 = vmatpush1.msra.mxu0 0.0
  %179 = vmatprep.subr.mxu0 0.0
  %180 = vmatpush1.msra.mxu0 0.0
  %181 = vmatprep.subr.mxu0 0.0
  %182 = vmatpush1.msra.mxu0 0.0
  %183 = vmatprep.subr.mxu0 0.0
  %184 = vmatpush1.msra.mxu0 0.0
  %185 = vmatprep.subr.mxu0 0.0
  %186 = vmatpush1.msra.mxu0 0.0
  %187 = vmatprep.subr.mxu0 0.0
  %188 = vmatpush1.msra.mxu0 0.0
  %189 = vmatprep.subr.mxu0 0.0
  %190 = vmatpush1.msra.mxu0 0.0
  %191 = vmatprep.subr.mxu0 %v85
  %192 = vmatpush1.msra.mxu0 %v82
  %193 = vmatprep.subr.mxu0 %v60
  %194 = vmatpush1.msra.mxu0 %v59
  %195 = vmatprep.subr.mxu0 %v55
  %196 = vmatpush1.msra.mxu0 %v54
  %197 = vmatprep.subr.mxu0 %v50
  %198 = vmatpush1.msra.mxu0 %v49
  %199 = vmatprep.subr.mxu0 0.0
  %200 = vmatpush2.msra.mxu0 0.0
  %201 = vmatprep.subr.mxu0 0.0
  %202 = vmatpush2.msra.mxu0 0.0
  %203 = vmatprep.subr.mxu0 0.0
  %204 = vmatpush2.msra.mxu0 0.0
  %205 = vmatprep.subr.mxu0 0.0
  %206 = vmatpush2.msra.mxu0 0.0
  %207 = vmatprep.subr.mxu0 0.0
  %208 = vmatpush2.msra.mxu0 0.0
  %209 = vmatprep.subr.mxu0 0.0
  %210 = vmatpush2.msra.mxu0 0.0
  %211 = vmatprep.subr.mxu0 0.0
  %212 = vmatpush2.msra.mxu0 0.0
  %213 = vmatprep.subr.mxu0 0.0
  %214 = vmatpush2.msra.mxu0 0.0
  %215 = vmatprep.subr.mxu0 0.0
  %216 = vmatpush2.msra.mxu0 0.0
  %217 = vmatprep.subr.mxu0 0.0
  %218 = vmatpush2.msra.mxu0 0.0
  %219 = vmatprep.subr.mxu0 0.0
  %220 = vmatpush2.msra.mxu0 0.0
  %221 = vmatprep.subr.mxu0 0.0
  %222 = vmatpush2.msra.mxu0 0.0
  %223 = vmatprep.subr.mxu0 0.0
  %224 = vmatpush2.msra.mxu0 0.0
  %225 = vmatprep.subr.mxu0 0.0
  %226 = vmatpush2.msra.mxu0 0.0
  %227 = vmatprep.subr.mxu0 0.0
  %228 = vmatpush2.msra.mxu0 0.0
  %229 = vmatprep.subr.mxu0 0.0
  %230 = vmatpush2.msra.mxu0 0.0
  %231 = vmatprep.mubr.f32.mxu0 0.0
  %232 = vmatmul.mubr.f32.gmra.mxu0 %v69
  %v233 = vpop.f32.mrf.mxu0
  %v234 = vadd.f32 0.0, %v233
  %v235 = vpop.f32.mrf.mxu0
  %v236 = vadd.f32 0.0, %v235
  %237 = vmatprep.mubr.f32.mxu0 0.0
  %238 = vmatmul.mubr.f32.gmra.mxu0 %v72
  %v239 = vpop.f32.mrf.mxu0
  %v240 = vadd.f32 0.0, %v239
  %v241 = vpop.f32.mrf.mxu0
  %v242 = vadd.f32 0.0, %v241
  %243 = vdwg.mxu0
  %244 = vmatprep.subr.mxu0 0.0
  %245 = vmatpush1.msra.mxu0 0.0
  %246 = vmatprep.subr.mxu0 0.0
  %247 = vmatpush1.msra.mxu0 0.0
  %248 = vmatprep.subr.mxu0 0.0
  %249 = vmatpush1.msra.mxu0 0.0
  %250 = vmatprep.subr.mxu0 0.0
  %251 = vmatpush1.msra.mxu0 0.0
  %252 = vmatprep.subr.mxu0 0.0
  %253 = vmatpush1.msra.mxu0 0.0
  %254 = vmatprep.subr.mxu0 0.0
  %255 = vmatpush1.msra.mxu0 0.0
  %256 = vmatprep.subr.mxu0 0.0
  %257 = vmatpush1.msra.mxu0 0.0
  %258 = vmatprep.subr.mxu0 0.0
  %259 = vmatpush1.msra.mxu0 0.0
  %260 = vmatprep.subr.mxu0 0.0
  %261 = vmatpush1.msra.mxu0 0.0
  %262 = vmatprep.subr.mxu0 0.0
  %263 = vmatpush1.msra.mxu0 0.0
  %264 = vmatprep.subr.mxu0 0.0
  %265 = vmatpush1.msra.mxu0 0.0
  %266 = vmatprep.subr.mxu0 0.0
  %267 = vmatpush1.msra.mxu0 0.0
  %268 = vmatprep.subr.mxu0 0.0
  %269 = vmatpush1.msra.mxu0 %v88
  %270 = vmatprep.subr.mxu0 0.0
  %271 = vmatpush1.msra.mxu0 %v61
  %272 = vmatprep.subr.mxu0 0.0
  %273 = vmatpush1.msra.mxu0 %v56
  %274 = vmatprep.subr.mxu0 0.0
  %275 = vmatpush1.msra.mxu0 %v51
  %276 = vmatprep.subr.mxu0 0.0
  %277 = vmatpush2.msra.mxu0 0.0
  %278 = vmatprep.subr.mxu0 0.0
  %279 = vmatpush2.msra.mxu0 0.0
  %280 = vmatprep.subr.mxu0 0.0
  %281 = vmatpush2.msra.mxu0 0.0
  %282 = vmatprep.subr.mxu0 0.0
  %283 = vmatpush2.msra.mxu0 0.0
  %284 = vmatprep.subr.mxu0 0.0
  %285 = vmatpush2.msra.mxu0 0.0
  %286 = vmatprep.subr.mxu0 0.0
  %287 = vmatpush2.msra.mxu0 0.0
  %288 = vmatprep.subr.mxu0 0.0
  %289 = vmatpush2.msra.mxu0 0.0
  %290 = vmatprep.subr.mxu0 0.0
  %291 = vmatpush2.msra.mxu0 0.0
  %292 = vmatprep.subr.mxu0 0.0
  %293 = vmatpush2.msra.mxu0 0.0
  %294 = vmatprep.subr.mxu0 0.0
  %295 = vmatpush2.msra.mxu0 0.0
  %296 = vmatprep.subr.mxu0 0.0
  %297 = vmatpush2.msra.mxu0 0.0
  %298 = vmatprep.subr.mxu0 0.0
  %299 = vmatpush2.msra.mxu0 0.0
  %300 = vmatprep.subr.mxu0 0.0
  %301 = vmatpush2.msra.mxu0 0.0
  %302 = vmatprep.subr.mxu0 0.0
  %303 = vmatpush2.msra.mxu0 0.0
  %304 = vmatprep.subr.mxu0 0.0
  %305 = vmatpush2.msra.mxu0 0.0
  %306 = vmatprep.subr.mxu0 0.0
  %307 = vmatpush2.msra.mxu0 0.0
  %308 = vmatprep.mubr.f32.mxu0 0.0
  %309 = vmatmul.mubr.f32.gmra.mxu0 %v69
  %v310 = vpop.f32.mrf.mxu0
  %v311 = vadd.f32 0.0, %v310
  %v312 = vpop.f32.mrf.mxu0
  %313 = vmatprep.mubr.f32.mxu0 0.0
  %314 = vmatmul.mubr.f32.gmra.mxu0 %v72
  %v315 = vpop.f32.mrf.mxu0
  %v316 = vadd.f32 0.0, %v315
  %v317 = vpop.f32.mrf.mxu0
  %318 = vdwg.mxu0
  %s319 = scalar_lea.vmem %s0, 160
  %v320 = vld [vmem:[%s319] sm:$0xff]
  %v321 = vld [vmem:[%s319 + $0x8] sm:$0xff]
  %v322 = vld [vmem:[%s319 + $0x10] sm:$0xff]
  %v323 = vld [vmem:[%s319 + $0x18] sm:$0xff]
  %v324 = vld [vmem:[%s319 + $0x20] sm:$0xff]
  %v325 = vld [vmem:[%s319 + $0x28] sm:$0xff]
  %v326 = vld [vmem:[%s319 + $0x30] sm:$0xff]
  %v327 = vld [vmem:[%s319 + $0x38] sm:$0xff]
  %v328 = vld [vmem:[%s319 + $0x40] sm:$0xff]
  %v329 = vld [vmem:[%s319 + $0x48] sm:$0xff]
  %v330 = vld [vmem:[%s319 + $0x50] sm:$0xff]
  %v331 = vld [vmem:[%s319 + $0x58] sm:$0xff]
  %v332 = vld [vmem:[%s319 + $0x60] sm:$0xff]
  %v333 = vld [vmem:[%s319 + $0x68] sm:$0xff]
  %v334 = vld [vmem:[%s319 + $0x70] sm:$0xff]
  %v335 = vld [vmem:[%s319 + $0x78] sm:$0x1]
  %v336 = vld [vmem:[%s319 + $0x80] sm:$0x1]
  %v337 = vld [vmem:[%s319 + $0x88] sm:$0x1]
  %v338 = vld [vmem:[%s319 + $0x90] sm:$0x1]
  %v339 = vld [vmem:[%s319 + $0x98] sm:$0x1]
  %v341 = vsel %vm74, %v335, 0
  %v344 = vsel %vm74, %v336, 0
  %v347 = vsel %vm74, %v337, 0
  %v350 = vsel %vm74, %v338, 0
  %v353 = vsel %vm74, %v339, 0
  %355 = vmatprep.subr.mxu0 0.0
  %356 = vmatpush1.msra.mxu0 0.0
  %357 = vmatprep.subr.mxu0 0.0
  %358 = vmatpush1.msra.mxu0 0.0
  %359 = vmatprep.subr.mxu0 0.0
  %360 = vmatpush1.msra.mxu0 0.0
  %361 = vmatprep.subr.mxu0 0.0
  %362 = vmatpush1.msra.mxu0 0.0
  %363 = vmatprep.subr.mxu0 0.0
  %364 = vmatpush1.msra.mxu0 0.0
  %365 = vmatprep.subr.mxu0 0.0
  %366 = vmatpush1.msra.mxu0 0.0
  %367 = vmatprep.subr.mxu0 0.0
  %368 = vmatpush1.msra.mxu0 0.0
  %369 = vmatprep.subr.mxu0 0.0
  %370 = vmatpush1.msra.mxu0 0.0
  %371 = vmatprep.subr.mxu0 0.0
  %372 = vmatpush1.msra.mxu0 0.0
  %373 = vmatprep.subr.mxu0 0.0
  %374 = vmatpush1.msra.mxu0 0.0
  %375 = vmatprep.subr.mxu0 0.0
  %376 = vmatpush1.msra.mxu0 0.0
  %377 = vmatprep.subr.mxu0 0.0
  %378 = vmatpush1.msra.mxu0 0.0
  %379 = vmatprep.subr.mxu0 %v344
  %380 = vmatpush1.msra.mxu0 %v341
  %381 = vmatprep.subr.mxu0 %v331
  %382 = vmatpush1.msra.mxu0 %v330
  %383 = vmatprep.subr.mxu0 %v326
  %384 = vmatpush1.msra.mxu0 %v325
  %385 = vmatprep.subr.mxu0 %v321
  %386 = vmatpush1.msra.mxu0 %v320
  %387 = vmatprep.subr.mxu0 0.0
  %388 = vmatpush2.msra.mxu0 0.0
  %389 = vmatprep.subr.mxu0 0.0
  %390 = vmatpush2.msra.mxu0 0.0
  %391 = vmatprep.subr.mxu0 0.0
  %392 = vmatpush2.msra.mxu0 0.0
  %393 = vmatprep.subr.mxu0 0.0
  %394 = vmatpush2.msra.mxu0 0.0
  %395 = vmatprep.subr.mxu0 0.0
  %396 = vmatpush2.msra.mxu0 0.0
  %397 = vmatprep.subr.mxu0 0.0
  %398 = vmatpush2.msra.mxu0 0.0
  %399 = vmatprep.subr.mxu0 0.0
  %400 = vmatpush2.msra.mxu0 0.0
  %401 = vmatprep.subr.mxu0 0.0
  %402 = vmatpush2.msra.mxu0 0.0
  %403 = vmatprep.subr.mxu0 0.0
  %404 = vmatpush2.msra.mxu0 0.0
  %405 = vmatprep.subr.mxu0 0.0
  %406 = vmatpush2.msra.mxu0 0.0
  %407 = vmatprep.subr.mxu0 0.0
  %408 = vmatpush2.msra.mxu0 0.0
  %409 = vmatprep.subr.mxu0 0.0
  %410 = vmatpush2.msra.mxu0 0.0
  %411 = vmatprep.subr.mxu0 0.0
  %412 = vmatpush2.msra.mxu0 0.0
  %413 = vmatprep.subr.mxu0 0.0
  %414 = vmatpush2.msra.mxu0 0.0
  %415 = vmatprep.subr.mxu0 0.0
  %416 = vmatpush2.msra.mxu0 0.0
  %417 = vmatprep.subr.mxu0 0.0
  %418 = vmatpush2.msra.mxu0 0.0
  %419 = vmatprep.mubr.f32.mxu0 0.0
  %420 = vmatmul.mubr.f32.gmra.mxu0 %v69
  %v421 = vpop.f32.mrf.mxu0
  %v422 = vadd.f32 0.0, %v421
  %v423 = vpop.f32.mrf.mxu0
  %v424 = vadd.f32 0.0, %v423
  %425 = vmatprep.mubr.f32.mxu0 0.0
  %426 = vmatmul.mubr.f32.gmra.mxu0 %v72
  %v427 = vpop.f32.mrf.mxu0
  %v428 = vadd.f32 0.0, %v427
  %v429 = vpop.f32.mrf.mxu0
  %v430 = vadd.f32 0.0, %v429
  %431 = vdwg.mxu0
  %432 = vmatprep.subr.mxu0 0.0
  %433 = vmatpush1.msra.mxu0 0.0
  %434 = vmatprep.subr.mxu0 0.0
  %435 = vmatpush1.msra.mxu0 0.0
  %436 = vmatprep.subr.mxu0 0.0
  %437 = vmatpush1.msra.mxu0 0.0
  %438 = vmatprep.subr.mxu0 0.0
  %439 = vmatpush1.msra.mxu0 0.0
  %440 = vmatprep.subr.mxu0 0.0
  %441 = vmatpush1.msra.mxu0 0.0
  %442 = vmatprep.subr.mxu0 0.0
  %443 = vmatpush1.msra.mxu0 0.0
  %444 = vmatprep.subr.mxu0 0.0
  %445 = vmatpush1.msra.mxu0 0.0
  %446 = vmatprep.subr.mxu0 0.0
  %447 = vmatpush1.msra.mxu0 0.0
  %448 = vmatprep.subr.mxu0 0.0
  %449 = vmatpush1.msra.mxu0 0.0
  %450 = vmatprep.subr.mxu0 0.0
  %451 = vmatpush1.msra.mxu0 0.0
  %452 = vmatprep.subr.mxu0 0.0
  %453 = vmatpush1.msra.mxu0 0.0
  %454 = vmatprep.subr.mxu0 0.0
  %455 = vmatpush1.msra.mxu0 0.0
  %456 = vmatprep.subr.mxu0 %v350
  %457 = vmatpush1.msra.mxu0 %v347
  %458 = vmatprep.subr.mxu0 %v333
  %459 = vmatpush1.msra.mxu0 %v332
  %460 = vmatprep.subr.mxu0 %v328
  %461 = vmatpush1.msra.mxu0 %v327
  %462 = vmatprep.subr.mxu0 %v323
  %463 = vmatpush1.msra.mxu0 %v322
  %464 = vmatprep.subr.mxu0 0.0
  %465 = vmatpush2.msra.mxu0 0.0
  %466 = vmatprep.subr.mxu0 0.0
  %467 = vmatpush2.msra.mxu0 0.0
  %468 = vmatprep.subr.mxu0 0.0
  %469 = vmatpush2.msra.mxu0 0.0
  %470 = vmatprep.subr.mxu0 0.0
  %471 = vmatpush2.msra.mxu0 0.0
  %472 = vmatprep.subr.mxu0 0.0
  %473 = vmatpush2.msra.mxu0 0.0
  %474 = vmatprep.subr.mxu0 0.0
  %475 = vmatpush2.msra.mxu0 0.0
  %476 = vmatprep.subr.mxu0 0.0
  %477 = vmatpush2.msra.mxu0 0.0
  %478 = vmatprep.subr.mxu0 0.0
  %479 = vmatpush2.msra.mxu0 0.0
  %480 = vmatprep.subr.mxu0 0.0
  %481 = vmatpush2.msra.mxu0 0.0
  %482 = vmatprep.subr.mxu0 0.0
  %483 = vmatpush2.msra.mxu0 0.0
  %484 = vmatprep.subr.mxu0 0.0
  %485 = vmatpush2.msra.mxu0 0.0
  %486 = vmatprep.subr.mxu0 0.0
  %487 = vmatpush2.msra.mxu0 0.0
  %488 = vmatprep.subr.mxu0 0.0
  %489 = vmatpush2.msra.mxu0 0.0
  %490 = vmatprep.subr.mxu0 0.0
  %491 = vmatpush2.msra.mxu0 0.0
  %492 = vmatprep.subr.mxu0 0.0
  %493 = vmatpush2.msra.mxu0 0.0
  %494 = vmatprep.subr.mxu0 0.0
  %495 = vmatpush2.msra.mxu0 0.0
  %496 = vmatprep.mubr.f32.mxu0 0.0
  %497 = vmatmul.mubr.f32.gmra.mxu0 %v69
  %v498 = vpop.f32.mrf.mxu0
  %v499 = vadd.f32 0.0, %v498
  %v500 = vpop.f32.mrf.mxu0
  %v501 = vadd.f32 0.0, %v500
  %502 = vmatprep.mubr.f32.mxu0 0.0
  %503 = vmatmul.mubr.f32.gmra.mxu0 %v72
  %v504 = vpop.f32.mrf.mxu0
  %v505 = vadd.f32 0.0, %v504
  %v506 = vpop.f32.mrf.mxu0
  %v507 = vadd.f32 0.0, %v506
  %508 = vdwg.mxu0
  %509 = vmatprep.subr.mxu0 0.0
  %510 = vmatpush1.msra.mxu0 0.0
  %511 = vmatprep.subr.mxu0 0.0
  %512 = vmatpush1.msra.mxu0 0.0
  %513 = vmatprep.subr.mxu0 0.0
  %514 = vmatpush1.msra.mxu0 0.0
  %515 = vmatprep.subr.mxu0 0.0
  %516 = vmatpush1.msra.mxu0 0.0
  %517 = vmatprep.subr.mxu0 0.0
  %518 = vmatpush1.msra.mxu0 0.0
  %519 = vmatprep.subr.mxu0 0.0
  %520 = vmatpush1.msra.mxu0 0.0
  %521 = vmatprep.subr.mxu0 0.0
  %522 = vmatpush1.msra.mxu0 0.0
  %523 = vmatprep.subr.mxu0 0.0
  %524 = vmatpush1.msra.mxu0 0.0
  %525 = vmatprep.subr.mxu0 0.0
  %526 = vmatpush1.msra.mxu0 0.0
  %527 = vmatprep.subr.mxu0 0.0
  %528 = vmatpush1.msra.mxu0 0.0
  %529 = vmatprep.subr.mxu0 0.0
  %530 = vmatpush1.msra.mxu0 0.0
  %531 = vmatprep.subr.mxu0 0.0
  %532 = vmatpush1.msra.mxu0 0.0
  %533 = vmatprep.subr.mxu0 0.0
  %534 = vmatpush1.msra.mxu0 %v353
  %535 = vmatprep.subr.mxu0 0.0
  %536 = vmatpush1.msra.mxu0 %v334
  %537 = vmatprep.subr.mxu0 0.0
  %538 = vmatpush1.msra.mxu0 %v329
  %539 = vmatprep.subr.mxu0 0.0
  %540 = vmatpush1.msra.mxu0 %v324
  %541 = vmatprep.subr.mxu0 0.0
  %542 = vmatpush2.msra.mxu0 0.0
  %543 = vmatprep.subr.mxu0 0.0
  %544 = vmatpush2.msra.mxu0 0.0
  %545 = vmatprep.subr.mxu0 0.0
  %546 = vmatpush2.msra.mxu0 0.0
  %547 = vmatprep.subr.mxu0 0.0
  %548 = vmatpush2.msra.mxu0 0.0
  %549 = vmatprep.subr.mxu0 0.0
  %550 = vmatpush2.msra.mxu0 0.0
  %551 = vmatprep.subr.mxu0 0.0
  %552 = vmatpush2.msra.mxu0 0.0
  %553 = vmatprep.subr.mxu0 0.0
  %554 = vmatpush2.msra.mxu0 0.0
  %555 = vmatprep.subr.mxu0 0.0
  %556 = vmatpush2.msra.mxu0 0.0
  %557 = vmatprep.subr.mxu0 0.0
  %558 = vmatpush2.msra.mxu0 0.0
  %559 = vmatprep.subr.mxu0 0.0
  %560 = vmatpush2.msra.mxu0 0.0
  %561 = vmatprep.subr.mxu0 0.0
  %562 = vmatpush2.msra.mxu0 0.0
  %563 = vmatprep.subr.mxu0 0.0
  %564 = vmatpush2.msra.mxu0 0.0
  %565 = vmatprep.subr.mxu0 0.0
  %566 = vmatpush2.msra.mxu0 0.0
  %567 = vmatprep.subr.mxu0 0.0
  %568 = vmatpush2.msra.mxu0 0.0
  %569 = vmatprep.subr.mxu0 0.0
  %570 = vmatpush2.msra.mxu0 0.0
  %571 = vmatprep.subr.mxu0 0.0
  %572 = vmatpush2.msra.mxu0 0.0
  %573 = vmatprep.mubr.f32.mxu0 0.0
  %574 = vmatmul.mubr.f32.gmra.mxu0 %v69
  %v575 = vpop.f32.mrf.mxu0
  %v576 = vadd.f32 0.0, %v575
  %v577 = vpop.f32.mrf.mxu0
  %578 = vmatprep.mubr.f32.mxu0 0.0
  %579 = vmatmul.mubr.f32.gmra.mxu0 %v72
  %v580 = vpop.f32.mrf.mxu0
  %v581 = vadd.f32 0.0, %v580
  %v582 = vpop.f32.mrf.mxu0
  %583 = vdwg.mxu0
  %v584 = vmax.f32 %v157, %v422
  %v585 = vmax.f32 %v159, %v424
  %v586 = vmax.f32 %v234, %v499
  %v587 = vmax.f32 %v236, %v501
  %v588 = vmax.f32 %v311, %v576
  %v589 = vmax.f32 %v163, %v428
  %v590 = vmax.f32 %v165, %v430
  %v591 = vmax.f32 %v240, %v505
  %v592 = vmax.f32 %v242, %v507
  %v593 = vmax.f32 %v316, %v581
  %s594 = scalar_lea.vmem %s0, 320
  %v595 = vld [vmem:[%s594] sm:$0xff]
  %v596 = vld [vmem:[%s594 + $0x8] sm:$0xff]
  %v597 = vld [vmem:[%s594 + $0x10] sm:$0xff]
  %v598 = vld [vmem:[%s594 + $0x18] sm:$0xff]
  %v599 = vld [vmem:[%s594 + $0x20] sm:$0xff]
  %v600 = vld [vmem:[%s594 + $0x28] sm:$0xff]
  %v601 = vld [vmem:[%s594 + $0x30] sm:$0xff]
  %v602 = vld [vmem:[%s594 + $0x38] sm:$0xff]
  %v603 = vld [vmem:[%s594 + $0x40] sm:$0xff]
  %v604 = vld [vmem:[%s594 + $0x48] sm:$0xff]
  %v605 = vld [vmem:[%s594 + $0x50] sm:$0xff]
  %v606 = vld [vmem:[%s594 + $0x58] sm:$0xff]
  %v607 = vld [vmem:[%s594 + $0x60] sm:$0xff]
  %v608 = vld [vmem:[%s594 + $0x68] sm:$0xff]
  %v609 = vld [vmem:[%s594 + $0x70] sm:$0xff]
  %v610 = vld [vmem:[%s594 + $0x78] sm:$0x1]
  %v611 = vld [vmem:[%s594 + $0x80] sm:$0x1]
  %v612 = vld [vmem:[%s594 + $0x88] sm:$0x1]
  %v613 = vld [vmem:[%s594 + $0x90] sm:$0x1]
  %v614 = vld [vmem:[%s594 + $0x98] sm:$0x1]
  %v616 = vsel %vm74, %v610, 0
  %v619 = vsel %vm74, %v611, 0
  %v622 = vsel %vm74, %v612, 0
  %v625 = vsel %vm74, %v613, 0
  %v628 = vsel %vm74, %v614, 0
  %630 = vmatprep.subr.mxu0 0.0
  %631 = vmatpush1.msra.mxu0 0.0
  %632 = vmatprep.subr.mxu0 0.0
  %633 = vmatpush1.msra.mxu0 0.0
  %634 = vmatprep.subr.mxu0 0.0
  %635 = vmatpush1.msra.mxu0 0.0
  %636 = vmatprep.subr.mxu0 0.0
  %637 = vmatpush1.msra.mxu0 0.0
  %638 = vmatprep.subr.mxu0 0.0
  %639 = vmatpush1.msra.mxu0 0.0
  %640 = vmatprep.subr.mxu0 0.0
  %641 = vmatpush1.msra.mxu0 0.0
  %642 = vmatprep.subr.mxu0 0.0
  %643 = vmatpush1.msra.mxu0 0.0
  %644 = vmatprep.subr.mxu0 0.0
  %645 = vmatpush1.msra.mxu0 0.0
  %646 = vmatprep.subr.mxu0 0.0
  %647 = vmatpush1.msra.mxu0 0.0
  %648 = vmatprep.subr.mxu0 0.0
  %649 = vmatpush1.msra.mxu0 0.0
  %650 = vmatprep.subr.mxu0 0.0
  %651 = vmatpush1.msra.mxu0 0.0
  %652 = vmatprep.subr.mxu0 0.0
  %653 = vmatpush1.msra.mxu0 0.0
  %654 = vmatprep.subr.mxu0 %v619
  %655 = vmatpush1.msra.mxu0 %v616
  %656 = vmatprep.subr.mxu0 %v606
  %657 = vmatpush1.msra.mxu0 %v605
  %658 = vmatprep.subr.mxu0 %v601
  %659 = vmatpush1.msra.mxu0 %v600
  %660 = vmatprep.subr.mxu0 %v596
  %661 = vmatpush1.msra.mxu0 %v595
  %662 = vmatprep.subr.mxu0 0.0
  %663 = vmatpush2.msra.mxu0 0.0
  %664 = vmatprep.subr.mxu0 0.0
  %665 = vmatpush2.msra.mxu0 0.0
  %666 = vmatprep.subr.mxu0 0.0
  %667 = vmatpush2.msra.mxu0 0.0
  %668 = vmatprep.subr.mxu0 0.0
  %669 = vmatpush2.msra.mxu0 0.0
  %670 = vmatprep.subr.mxu0 0.0
  %671 = vmatpush2.msra.mxu0 0.0
  %672 = vmatprep.subr.mxu0 0.0
  %673 = vmatpush2.msra.mxu0 0.0
  %674 = vmatprep.subr.mxu0 0.0
  %675 = vmatpush2.msra.mxu0 0.0
  %676 = vmatprep.subr.mxu0 0.0
  %677 = vmatpush2.msra.mxu0 0.0
  %678 = vmatprep.subr.mxu0 0.0
  %679 = vmatpush2.msra.mxu0 0.0
  %680 = vmatprep.subr.mxu0 0.0
  %681 = vmatpush2.msra.mxu0 0.0
  %682 = vmatprep.subr.mxu0 0.0
  %683 = vmatpush2.msra.mxu0 0.0
  %684 = vmatprep.subr.mxu0 0.0
  %685 = vmatpush2.msra.mxu0 0.0
  %686 = vmatprep.subr.mxu0 0.0
  %687 = vmatpush2.msra.mxu0 0.0
  %688 = vmatprep.subr.mxu0 0.0
  %689 = vmatpush2.msra.mxu0 0.0
  %690 = vmatprep.subr.mxu0 0.0
  %691 = vmatpush2.msra.mxu0 0.0
  %692 = vmatprep.subr.mxu0 0.0
  %693 = vmatpush2.msra.mxu0 0.0
  %694 = vmatprep.mubr.f32.mxu0 0.0
  %695 = vmatmul.mubr.f32.gmra.mxu0 %v69
  %v696 = vpop.f32.mrf.mxu0
  %v697 = vadd.f32 0.0, %v696
  %v698 = vpop.f32.mrf.mxu0
  %v699 = vadd.f32 0.0, %v698
  %700 = vmatprep.mubr.f32.mxu0 0.0
  %701 = vmatmul.mubr.f32.gmra.mxu0 %v72
  %v702 = vpop.f32.mrf.mxu0
  %v703 = vadd.f32 0.0, %v702
  %v704 = vpop.f32.mrf.mxu0
  %v705 = vadd.f32 0.0, %v704
  %706 = vdwg.mxu0
  %707 = vmatprep.subr.mxu0 0.0
  %708 = vmatpush1.msra.mxu0 0.0
  %709 = vmatprep.subr.mxu0 0.0
  %710 = vmatpush1.msra.mxu0 0.0
  %711 = vmatprep.subr.mxu0 0.0
  %712 = vmatpush1.msra.mxu0 0.0
  %713 = vmatprep.subr.mxu0 0.0
  %714 = vmatpush1.msra.mxu0 0.0
  %715 = vmatprep.subr.mxu0 0.0
  %716 = vmatpush1.msra.mxu0 0.0
  %717 = vmatprep.subr.mxu0 0.0
  %718 = vmatpush1.msra.mxu0 0.0
  %719 = vmatprep.subr.mxu0 0.0
  %720 = vmatpush1.msra.mxu0 0.0
  %721 = vmatprep.subr.mxu0 0.0
  %722 = vmatpush1.msra.mxu0 0.0
  %723 = vmatprep.subr.mxu0 0.0
  %724 = vmatpush1.msra.mxu0 0.0
  %725 = vmatprep.subr.mxu0 0.0
  %726 = vmatpush1.msra.mxu0 0.0
  %727 = vmatprep.subr.mxu0 0.0
  %728 = vmatpush1.msra.mxu0 0.0
  %729 = vmatprep.subr.mxu0 0.0
  %730 = vmatpush1.msra.mxu0 0.0
  %731 = vmatprep.subr.mxu0 %v625
  %732 = vmatpush1.msra.mxu0 %v622
  %733 = vmatprep.subr.mxu0 %v608
  %734 = vmatpush1.msra.mxu0 %v607
  %735 = vmatprep.subr.mxu0 %v603
  %736 = vmatpush1.msra.mxu0 %v602
  %737 = vmatprep.subr.mxu0 %v598
  %738 = vmatpush1.msra.mxu0 %v597
  %739 = vmatprep.subr.mxu0 0.0
  %740 = vmatpush2.msra.mxu0 0.0
  %741 = vmatprep.subr.mxu0 0.0
  %742 = vmatpush2.msra.mxu0 0.0
  %743 = vmatprep.subr.mxu0 0.0
  %744 = vmatpush2.msra.mxu0 0.0
  %745 = vmatprep.subr.mxu0 0.0
  %746 = vmatpush2.msra.mxu0 0.0
  %747 = vmatprep.subr.mxu0 0.0
  %748 = vmatpush2.msra.mxu0 0.0
  %749 = vmatprep.subr.mxu0 0.0
  %750 = vmatpush2.msra.mxu0 0.0
  %751 = vmatprep.subr.mxu0 0.0
  %752 = vmatpush2.msra.mxu0 0.0
  %753 = vmatprep.subr.mxu0 0.0
  %754 = vmatpush2.msra.mxu0 0.0
  %755 = vmatprep.subr.mxu0 0.0
  %756 = vmatpush2.msra.mxu0 0.0
  %757 = vmatprep.subr.mxu0 0.0
  %758 = vmatpush2.msra.mxu0 0.0
  %759 = vmatprep.subr.mxu0 0.0
  %760 = vmatpush2.msra.mxu0 0.0
  %761 = vmatprep.subr.mxu0 0.0
  %762 = vmatpush2.msra.mxu0 0.0
  %763 = vmatprep.subr.mxu0 0.0
  %764 = vmatpush2.msra.mxu0 0.0
  %765 = vmatprep.subr.mxu0 0.0
  %766 = vmatpush2.msra.mxu0 0.0
  %767 = vmatprep.subr.mxu0 0.0
  %768 = vmatpush2.msra.mxu0 0.0
  %769 = vmatprep.subr.mxu0 0.0
  %770 = vmatpush2.msra.mxu0 0.0
  %771 = vmatprep.mubr.f32.mxu0 0.0
  %772 = vmatmul.mubr.f32.gmra.mxu0 %v69
  %v773 = vpop.f32.mrf.mxu0
  %v774 = vadd.f32 0.0, %v773
  %v775 = vpop.f32.mrf.mxu0
  %v776 = vadd.f32 0.0, %v775
  %777 = vmatprep.mubr.f32.mxu0 0.0
  %778 = vmatmul.mubr.f32.gmra.mxu0 %v72
  %v779 = vpop.f32.mrf.mxu0
  %v780 = vadd.f32 0.0, %v779
  %v781 = vpop.f32.mrf.mxu0
  %v782 = vadd.f32 0.0, %v781
  %783 = vdwg.mxu0
  %784 = vmatprep.subr.mxu0 0.0
  %785 = vmatpush1.msra.mxu0 0.0
  %786 = vmatprep.subr.mxu0 0.0
  %787 = vmatpush1.msra.mxu0 0.0
  %788 = vmatprep.subr.mxu0 0.0
  %789 = vmatpush1.msra.mxu0 0.0
  %790 = vmatprep.subr.mxu0 0.0
  %791 = vmatpush1.msra.mxu0 0.0
  %792 = vmatprep.subr.mxu0 0.0
  %793 = vmatpush1.msra.mxu0 0.0
  %794 = vmatprep.subr.mxu0 0.0
  %795 = vmatpush1.msra.mxu0 0.0
  %796 = vmatprep.subr.mxu0 0.0
  %797 = vmatpush1.msra.mxu0 0.0
  %798 = vmatprep.subr.mxu0 0.0
  %799 = vmatpush1.msra.mxu0 0.0
  %800 = vmatprep.subr.mxu0 0.0
  %801 = vmatpush1.msra.mxu0 0.0
  %802 = vmatprep.subr.mxu0 0.0
  %803 = vmatpush1.msra.mxu0 0.0
  %804 = vmatprep.subr.mxu0 0.0
  %805 = vmatpush1.msra.mxu0 0.0
  %806 = vmatprep.subr.mxu0 0.0
  %807 = vmatpush1.msra.mxu0 0.0
  %808 = vmatprep.subr.mxu0 0.0
  %809 = vmatpush1.msra.mxu0 %v628
  %810 = vmatprep.subr.mxu0 0.0
  %811 = vmatpush1.msra.mxu0 %v609
  %812 = vmatprep.subr.mxu0 0.0
  %813 = vmatpush1.msra.mxu0 %v604
  %814 = vmatprep.subr.mxu0 0.0
  %815 = vmatpush1.msra.mxu0 %v599
  %816 = vmatprep.subr.mxu0 0.0
  %817 = vmatpush2.msra.mxu0 0.0
  %818 = vmatprep.subr.mxu0 0.0
  %819 = vmatpush2.msra.mxu0 0.0
  %820 = vmatprep.subr.mxu0 0.0
  %821 = vmatpush2.msra.mxu0 0.0
  %822 = vmatprep.subr.mxu0 0.0
  %823 = vmatpush2.msra.mxu0 0.0
  %824 = vmatprep.subr.mxu0 0.0
  %825 = vmatpush2.msra.mxu0 0.0
  %826 = vmatprep.subr.mxu0 0.0
  %827 = vmatpush2.msra.mxu0 0.0
  %828 = vmatprep.subr.mxu0 0.0
  %829 = vmatpush2.msra.mxu0 0.0
  %830 = vmatprep.subr.mxu0 0.0
  %831 = vmatpush2.msra.mxu0 0.0
  %832 = vmatprep.subr.mxu0 0.0
  %833 = vmatpush2.msra.mxu0 0.0
  %834 = vmatprep.subr.mxu0 0.0
  %835 = vmatpush2.msra.mxu0 0.0
  %836 = vmatprep.subr.mxu0 0.0
  %837 = vmatpush2.msra.mxu0 0.0
  %838 = vmatprep.subr.mxu0 0.0
  %839 = vmatpush2.msra.mxu0 0.0
  %840 = vmatprep.subr.mxu0 0.0
  %841 = vmatpush2.msra.mxu0 0.0
  %842 = vmatprep.subr.mxu0 0.0
  %843 = vmatpush2.msra.mxu0 0.0
  %844 = vmatprep.subr.mxu0 0.0
  %845 = vmatpush2.msra.mxu0 0.0
  %846 = vmatprep.subr.mxu0 0.0
  %847 = vmatpush2.msra.mxu0 0.0
  %848 = vmatprep.mubr.f32.mxu0 0.0
  %849 = vmatmul.mubr.f32.gmra.mxu0 %v69
  %v850 = vpop.f32.mrf.mxu0
  %v851 = vadd.f32 0.0, %v850
  %v852 = vpop.f32.mrf.mxu0
  %853 = vmatprep.mubr.f32.mxu0 0.0
  %854 = vmatmul.mubr.f32.gmra.mxu0 %v72
  %v855 = vpop.f32.mrf.mxu0
  %v856 = vadd.f32 0.0, %v855
  %v857 = vpop.f32.mrf.mxu0
  %858 = vdwg.mxu0
  %v859 = vmax.f32 %v584, %v697
  %v860 = vmax.f32 %v585, %v699
  %v861 = vmax.f32 %v586, %v774
  %v862 = vmax.f32 %v587, %v776
  %v863 = vmax.f32 %v588, %v851
  %v864 = vmax.f32 %v589, %v703
  %v865 = vmax.f32 %v590, %v705
  %v866 = vmax.f32 %v591, %v780
  %v867 = vmax.f32 %v592, %v782
  %v868 = vmax.f32 %v593, %v856
  %s869 = scalar_lea.vmem %s0, 480
  %v870 = vld [vmem:[%s869] sm:$0xff]
  %v871 = vld [vmem:[%s869 + $0x8] sm:$0xff]
  %v872 = vld [vmem:[%s869 + $0x10] sm:$0xff]
  %v873 = vld [vmem:[%s869 + $0x18] sm:$0xff]
  %v874 = vld [vmem:[%s869 + $0x20] sm:$0xff]
  %v875 = vld [vmem:[%s869 + $0x28] sm:$0xff]
  %v876 = vld [vmem:[%s869 + $0x30] sm:$0xff]
  %v877 = vld [vmem:[%s869 + $0x38] sm:$0xff]
  %v878 = vld [vmem:[%s869 + $0x40] sm:$0xff]
  %v879 = vld [vmem:[%s869 + $0x48] sm:$0xff]
  %v880 = vld [vmem:[%s869 + $0x50] sm:$0xff]
  %v881 = vld [vmem:[%s869 + $0x58] sm:$0xff]
  %v882 = vld [vmem:[%s869 + $0x60] sm:$0xff]
  %v883 = vld [vmem:[%s869 + $0x68] sm:$0xff]
  %v884 = vld [vmem:[%s869 + $0x70] sm:$0xff]
  %v885 = vld [vmem:[%s869 + $0x78] sm:$0x1]
  %v886 = vld [vmem:[%s869 + $0x80] sm:$0x1]
  %v887 = vld [vmem:[%s869 + $0x88] sm:$0x1]
  %v888 = vld [vmem:[%s869 + $0x90] sm:$0x1]
  %v889 = vld [vmem:[%s869 + $0x98] sm:$0x1]
  %v891 = vsel %vm74, %v885, 0
  %v894 = vsel %vm74, %v886, 0
  %v897 = vsel %vm74, %v887, 0
  %v900 = vsel %vm74, %v888, 0
  %v903 = vsel %vm74, %v889, 0
  %905 = vmatprep.subr.mxu0 0.0
  %906 = vmatpush1.msra.mxu0 0.0
  %907 = vmatprep.subr.mxu0 0.0
  %908 = vmatpush1.msra.mxu0 0.0
  %909 = vmatprep.subr.mxu0 0.0
  %910 = vmatpush1.msra.mxu0 0.0
  %911 = vmatprep.subr.mxu0 0.0
  %912 = vmatpush1.msra.mxu0 0.0
  %913 = vmatprep.subr.mxu0 0.0
  %914 = vmatpush1.msra.mxu0 0.0
  %915 = vmatprep.subr.mxu0 0.0
  %916 = vmatpush1.msra.mxu0 0.0
  %917 = vmatprep.subr.mxu0 0.0
  %918 = vmatpush1.msra.mxu0 0.0
  %919 = vmatprep.subr.mxu0 0.0
  %920 = vmatpush1.msra.mxu0 0.0
  %921 = vmatprep.subr.mxu0 0.0
  %922 = vmatpush1.msra.mxu0 0.0
  %923 = vmatprep.subr.mxu0 0.0
  %924 = vmatpush1.msra.mxu0 0.0
  %925 = vmatprep.subr.mxu0 0.0
  %926 = vmatpush1.msra.mxu0 0.0
  %927 = vmatprep.subr.mxu0 0.0
  %928 = vmatpush1.msra.mxu0 0.0
  %929 = vmatprep.subr.mxu0 %v894
  %930 = vmatpush1.msra.mxu0 %v891
  %931 = vmatprep.subr.mxu0 %v881
  %932 = vmatpush1.msra.mxu0 %v880
  %933 = vmatprep.subr.mxu0 %v876
  %934 = vmatpush1.msra.mxu0 %v875
  %935 = vmatprep.subr.mxu0 %v871
  %936 = vmatpush1.msra.mxu0 %v870
  %937 = vmatprep.subr.mxu0 0.0
  %938 = vmatpush2.msra.mxu0 0.0
  %939 = vmatprep.subr.mxu0 0.0
  %940 = vmatpush2.msra.mxu0 0.0
  %941 = vmatprep.subr.mxu0 0.0
  %942 = vmatpush2.msra.mxu0 0.0
  %943 = vmatprep.subr.mxu0 0.0
  %944 = vmatpush2.msra.mxu0 0.0
  %945 = vmatprep.subr.mxu0 0.0
  %946 = vmatpush2.msra.mxu0 0.0
  %947 = vmatprep.subr.mxu0 0.0
  %948 = vmatpush2.msra.mxu0 0.0
  %949 = vmatprep.subr.mxu0 0.0
  %950 = vmatpush2.msra.mxu0 0.0
  %951 = vmatprep.subr.mxu0 0.0
  %952 = vmatpush2.msra.mxu0 0.0
  %953 = vmatprep.subr.mxu0 0.0
  %954 = vmatpush2.msra.mxu0 0.0
  %955 = vmatprep.subr.mxu0 0.0
  %956 = vmatpush2.msra.mxu0 0.0
  %957 = vmatprep.subr.mxu0 0.0
  %958 = vmatpush2.msra.mxu0 0.0
  %959 = vmatprep.subr.mxu0 0.0
  %960 = vmatpush2.msra.mxu0 0.0
  %961 = vmatprep.subr.mxu0 0.0
  %962 = vmatpush2.msra.mxu0 0.0
  %963 = vmatprep.subr.mxu0 0.0
  %964 = vmatpush2.msra.mxu0 0.0
  %965 = vmatprep.subr.mxu0 0.0
  %966 = vmatpush2.msra.mxu0 0.0
  %967 = vmatprep.subr.mxu0 0.0
  %968 = vmatpush2.msra.mxu0 0.0
  %969 = vmatprep.mubr.f32.mxu0 0.0
  %970 = vmatmul.mubr.f32.gmra.mxu0 %v69
  %v971 = vpop.f32.mrf.mxu0
  %v972 = vadd.f32 0.0, %v971
  %v973 = vpop.f32.mrf.mxu0
  %v974 = vadd.f32 0.0, %v973
  %975 = vmatprep.mubr.f32.mxu0 0.0
  %976 = vmatmul.mubr.f32.gmra.mxu0 %v72
  %v977 = vpop.f32.mrf.mxu0
  %v978 = vadd.f32 0.0, %v977
  %v979 = vpop.f32.mrf.mxu0
  %v980 = vadd.f32 0.0, %v979
  %981 = vdwg.mxu0
  %982 = vmatprep.subr.mxu0 0.0
  %983 = vmatpush1.msra.mxu0 0.0
  %984 = vmatprep.subr.mxu0 0.0
  %985 = vmatpush1.msra.mxu0 0.0
  %986 = vmatprep.subr.mxu0 0.0
  %987 = vmatpush1.msra.mxu0 0.0
  %988 = vmatprep.subr.mxu0 0.0
  %989 = vmatpush1.msra.mxu0 0.0
  %990 = vmatprep.subr.mxu0 0.0
  %991 = vmatpush1.msra.mxu0 0.0
  %992 = vmatprep.subr.mxu0 0.0
  %993 = vmatpush1.msra.mxu0 0.0
  %994 = vmatprep.subr.mxu0 0.0
  %995 = vmatpush1.msra.mxu0 0.0
  %996 = vmatprep.subr.mxu0 0.0
  %997 = vmatpush1.msra.mxu0 0.0
  %998 = vmatprep.subr.mxu0 0.0
  %999 = vmatpush1.msra.mxu0 0.0
  %1000 = vmatprep.subr.mxu0 0.0
  %1001 = vmatpush1.msra.mxu0 0.0
  %1002 = vmatprep.subr.mxu0 0.0
  %1003 = vmatpush1.msra.mxu0 0.0
  %1004 = vmatprep.subr.mxu0 0.0
  %1005 = vmatpush1.msra.mxu0 0.0
  %1006 = vmatprep.subr.mxu0 %v900
  %1007 = vmatpush1.msra.mxu0 %v897
  %1008 = vmatprep.subr.mxu0 %v883
  %1009 = vmatpush1.msra.mxu0 %v882
  %1010 = vmatprep.subr.mxu0 %v878
  %1011 = vmatpush1.msra.mxu0 %v877
  %1012 = vmatprep.subr.mxu0 %v873
  %1013 = vmatpush1.msra.mxu0 %v872
  %1014 = vmatprep.subr.mxu0 0.0
  %1015 = vmatpush2.msra.mxu0 0.0
  %1016 = vmatprep.subr.mxu0 0.0
  %1017 = vmatpush2.msra.mxu0 0.0
  %1018 = vmatprep.subr.mxu0 0.0
  %1019 = vmatpush2.msra.mxu0 0.0
  %1020 = vmatprep.subr.mxu0 0.0
  %1021 = vmatpush2.msra.mxu0 0.0
  %1022 = vmatprep.subr.mxu0 0.0
  %1023 = vmatpush2.msra.mxu0 0.0
  %1024 = vmatprep.subr.mxu0 0.0
  %1025 = vmatpush2.msra.mxu0 0.0
  %1026 = vmatprep.subr.mxu0 0.0
  %1027 = vmatpush2.msra.mxu0 0.0
  %1028 = vmatprep.subr.mxu0 0.0
  %1029 = vmatpush2.msra.mxu0 0.0
  %1030 = vmatprep.subr.mxu0 0.0
  %1031 = vmatpush2.msra.mxu0 0.0
  %1032 = vmatprep.subr.mxu0 0.0
  %1033 = vmatpush2.msra.mxu0 0.0
  %1034 = vmatprep.subr.mxu0 0.0
  %1035 = vmatpush2.msra.mxu0 0.0
  %1036 = vmatprep.subr.mxu0 0.0
  %1037 = vmatpush2.msra.mxu0 0.0
  %1038 = vmatprep.subr.mxu0 0.0
  %1039 = vmatpush2.msra.mxu0 0.0
  %1040 = vmatprep.subr.mxu0 0.0
  %1041 = vmatpush2.msra.mxu0 0.0
  %1042 = vmatprep.subr.mxu0 0.0
  %1043 = vmatpush2.msra.mxu0 0.0
  %1044 = vmatprep.subr.mxu0 0.0
  %1045 = vmatpush2.msra.mxu0 0.0
  %1046 = vmatprep.mubr.f32.mxu0 0.0
  %1047 = vmatmul.mubr.f32.gmra.mxu0 %v69
  %v1048 = vpop.f32.mrf.mxu0
  %v1049 = vadd.f32 0.0, %v1048
  %v1050 = vpop.f32.mrf.mxu0
  %v1051 = vadd.f32 0.0, %v1050
  %1052 = vmatprep.mubr.f32.mxu0 0.0
  %1053 = vmatmul.mubr.f32.gmra.mxu0 %v72
  %v1054 = vpop.f32.mrf.mxu0
  %v1055 = vadd.f32 0.0, %v1054
  %v1056 = vpop.f32.mrf.mxu0
  %v1057 = vadd.f32 0.0, %v1056
  %1058 = vdwg.mxu0
  %1059 = vmatprep.subr.mxu0 0.0
  %1060 = vmatpush1.msra.mxu0 0.0
  %1061 = vmatprep.subr.mxu0 0.0
  %1062 = vmatpush1.msra.mxu0 0.0
  %1063 = vmatprep.subr.mxu0 0.0
  %1064 = vmatpush1.msra.mxu0 0.0
  %1065 = vmatprep.subr.mxu0 0.0
  %1066 = vmatpush1.msra.mxu0 0.0
  %1067 = vmatprep.subr.mxu0 0.0
  %1068 = vmatpush1.msra.mxu0 0.0
  %1069 = vmatprep.subr.mxu0 0.0
  %1070 = vmatpush1.msra.mxu0 0.0
  %1071 = vmatprep.subr.mxu0 0.0
  %1072 = vmatpush1.msra.mxu0 0.0
  %1073 = vmatprep.subr.mxu0 0.0
  %1074 = vmatpush1.msra.mxu0 0.0
  %1075 = vmatprep.subr.mxu0 0.0
  %1076 = vmatpush1.msra.mxu0 0.0
  %1077 = vmatprep.subr.mxu0 0.0
  %1078 = vmatpush1.msra.mxu0 0.0
  %1079 = vmatprep.subr.mxu0 0.0
  %1080 = vmatpush1.msra.mxu0 0.0
  %1081 = vmatprep.subr.mxu0 0.0
  %1082 = vmatpush1.msra.mxu0 0.0
  %1083 = vmatprep.subr.mxu0 0.0
  %1084 = vmatpush1.msra.mxu0 %v903
  %1085 = vmatprep.subr.mxu0 0.0
  %1086 = vmatpush1.msra.mxu0 %v884
  %1087 = vmatprep.subr.mxu0 0.0
  %1088 = vmatpush1.msra.mxu0 %v879
  %1089 = vmatprep.subr.mxu0 0.0
  %1090 = vmatpush1.msra.mxu0 %v874
  %1091 = vmatprep.subr.mxu0 0.0
  %1092 = vmatpush2.msra.mxu0 0.0
  %1093 = vmatprep.subr.mxu0 0.0
  %1094 = vmatpush2.msra.mxu0 0.0
  %1095 = vmatprep.subr.mxu0 0.0
  %1096 = vmatpush2.msra.mxu0 0.0
  %1097 = vmatprep.subr.mxu0 0.0
  %1098 = vmatpush2.msra.mxu0 0.0
  %1099 = vmatprep.subr.mxu0 0.0
  %1100 = vmatpush2.msra.mxu0 0.0
  %1101 = vmatprep.subr.mxu0 0.0
  %1102 = vmatpush2.msra.mxu0 0.0
  %1103 = vmatprep.subr.mxu0 0.0
  %1104 = vmatpush2.msra.mxu0 0.0
  %1105 = vmatprep.subr.mxu0 0.0
  %1106 = vmatpush2.msra.mxu0 0.0
  %1107 = vmatprep.subr.mxu0 0.0
  %1108 = vmatpush2.msra.mxu0 0.0
  %1109 = vmatprep.subr.mxu0 0.0
  %1110 = vmatpush2.msra.mxu0 0.0
  %1111 = vmatprep.subr.mxu0 0.0
  %1112 = vmatpush2.msra.mxu0 0.0
  %1113 = vmatprep.subr.mxu0 0.0
  %1114 = vmatpush2.msra.mxu0 0.0
  %1115 = vmatprep.subr.mxu0 0.0
  %1116 = vmatpush2.msra.mxu0 0.0
  %1117 = vmatprep.subr.mxu0 0.0
  %1118 = vmatpush2.msra.mxu0 0.0
  %1119 = vmatprep.subr.mxu0 0.0
  %1120 = vmatpush2.msra.mxu0 0.0
  %1121 = vmatprep.subr.mxu0 0.0
  %1122 = vmatpush2.msra.mxu0 0.0
  %1123 = vmatprep.mubr.f32.mxu0 0.0
  %1124 = vmatmul.mubr.f32.gmra.mxu0 %v69
  %v1125 = vpop.f32.mrf.mxu0
  %v1126 = vadd.f32 0.0, %v1125
  %v1127 = vpop.f32.mrf.mxu0
  %1128 = vmatprep.mubr.f32.mxu0 0.0
  %1129 = vmatmul.mubr.f32.gmra.mxu0 %v72
  %v1130 = vpop.f32.mrf.mxu0
  %v1131 = vadd.f32 0.0, %v1130
  %v1132 = vpop.f32.mrf.mxu0
  %1133 = vdwg.mxu0
  %v1134 = vmax.f32 %v859, %v972
  %v1135 = vmax.f32 %v860, %v974
  %v1136 = vmax.f32 %v861, %v1049
  %v1137 = vmax.f32 %v862, %v1051
  %v1138 = vmax.f32 %v863, %v1126
  %v1139 = vmax.f32 %v864, %v978
  %v1140 = vmax.f32 %v865, %v980
  %v1141 = vmax.f32 %v866, %v1055
  %v1142 = vmax.f32 %v867, %v1057
  %v1143 = vmax.f32 %v868, %v1131
  %v1144 = vld [vmem:[%s3] sm:$0xff]
  %v1145 = vld [vmem:[%s3 + $0x8] sm:$0x3]
  %1147 = vset.pattern.permute.xlu0 0
  %1148 = vperm.xlu0 %1147, %v1144
  %v1149 = vpop.permute.xlu0 %1148
  %1152 = vset.pattern.permute.xlu0 0
  %1153 = vperm.xlu0 %1152, %v1145
  %v1154 = vpop.permute.xlu0 %1153
  %v1156 = vadd.f32 %v1134, %v1149
  %v1157 = vadd.f32 %v1135, %v1149
  %v1158 = vadd.f32 %v1136, %v1149
  %v1159 = vadd.f32 %v1137, %v1149
  %v1160 = vadd.f32 %v1138, %v1149
  %v1161 = vadd.f32 %v1139, %v1154
  %v1162 = vadd.f32 %v1140, %v1154
  %v1163 = vadd.f32 %v1141, %v1154
  %v1164 = vadd.f32 %v1142, %v1154
  %v1165 = vadd.f32 %v1143, %v1154
  %v1166 = vmax.f32 %v1156, 0.0
  %v1167 = vmax.f32 %v1157, 0.0
  %v1168 = vmax.f32 %v1158, 0.0
  %v1169 = vmax.f32 %v1159, 0.0
  %v1170 = vmax.f32 %v1160, 0.0
  %v1171 = vmax.f32 %v1161, 0.0
  %v1172 = vmax.f32 %v1162, 0.0
  %v1173 = vmax.f32 %v1163, 0.0
  %v1174 = vmax.f32 %v1164, 0.0
  %v1175 = vmax.f32 %v1165, 0.0
  %v1176 = vld [vmem:[%s4] sm:$0xff]
  %v1177 = vld [vmem:[%s4 + $0x8] sm:$0x3]
  %s1178 = scalar_lea.vmem %s4, 16
  %v1179 = vld [vmem:[%s1178] sm:$0xff]
  %v1180 = vld [vmem:[%s1178 + $0x8] sm:$0x3]
  %1189 = vrot.lane.b32.xlu0 %v1166, 127
  %v1190 = vpop.permute.xlu0 %1189
  %1191 = vrot.lane.b32.xlu0 %v1167, 127
  %v1192 = vpop.permute.xlu0 %1191
  %1193 = vrot.lane.b32.xlu0 %v1168, 127
  %v1194 = vpop.permute.xlu0 %1193
  %1195 = vrot.lane.b32.xlu0 %v1169, 127
  %v1196 = vpop.permute.xlu0 %1195
  %1197 = vrot.lane.b32.xlu0 %v1171, 127
  %v1198 = vpop.permute.xlu0 %1197
  %1199 = vrot.lane.b32.xlu0 %v1172, 127
  %v1200 = vpop.permute.xlu0 %1199
  %1201 = vrot.lane.b32.xlu0 %v1173, 127
  %v1202 = vpop.permute.xlu0 %1201
  %1203 = vrot.lane.b32.xlu0 %v1174, 127
  %v1204 = vpop.permute.xlu0 %1203
  %vm1205 = vcmask 1039360
  %v1206 = vsel %vm1205, %v1190, %v1192
  %v1207 = vsel %vm1205, %v1192, %v1194
  %v1208 = vsel %vm1205, %v1194, %v1196
  %v1209 = vsel %vm1205, %v1198, %v1200
  %v1210 = vsel %vm1205, %v1200, %v1202
  %v1211 = vsel %vm1205, %v1202, %v1204
  %vm1216 = vcmask 80896
  %v1218 = vsel %vm1216, %v1179, 0
  %v1221 = vsel %vm1216, %v1180, 0
  %vm1223 = vcmask 1041408
  %v1224 = vsel %vm1223, %v1209, 0
  %v1226 = vsel %vm1223, %v1210, 0
  %v1228 = vsel %vm1223, %v1211, 0
  %v1230 = vsel %vm1223, %v1204, 0
  %1232 = vmatprep.subr.mxu0 0.0
  %1233 = vmatpush1.msra.mxu0 0.0
  %1234 = vmatprep.subr.mxu0 0.0
  %1235 = vmatpush1.msra.mxu0 0.0
  %1236 = vmatprep.subr.mxu0 0.0
  %1237 = vmatpush1.msra.mxu0 0.0
  %1238 = vmatprep.subr.mxu0 0.0
  %1239 = vmatpush1.msra.mxu0 0.0
  %1240 = vmatprep.subr.mxu0 0.0
  %1241 = vmatpush1.msra.mxu0 0.0
  %1242 = vmatprep.subr.mxu0 0.0
  %1243 = vmatpush1.msra.mxu0 0.0
  %1244 = vmatprep.subr.mxu0 0.0
  %1245 = vmatpush1.msra.mxu0 0.0
  %1246 = vmatprep.subr.mxu0 0.0
  %1247 = vmatpush1.msra.mxu0 0.0
  %1248 = vmatprep.subr.mxu0 0.0
  %1249 = vmatpush1.msra.mxu0 0.0
  %1250 = vmatprep.subr.mxu0 0.0
  %1251 = vmatpush1.msra.mxu0 0.0
  %1252 = vmatprep.subr.mxu0 0.0
  %1253 = vmatpush1.msra.mxu0 0.0
  %1254 = vmatprep.subr.mxu0 0.0
  %1255 = vmatpush1.msra.mxu0 0.0
  %1256 = vmatprep.subr.mxu0 0.0
  %1257 = vmatpush1.msra.mxu0 0.0
  %1258 = vmatprep.subr.mxu0 0.0
  %1259 = vmatpush1.msra.mxu0 0.0
  %1260 = vmatprep.subr.mxu0 %v1226
  %1261 = vmatpush1.msra.mxu0 %v1224
  %1262 = vmatprep.subr.mxu0 %v1207
  %1263 = vmatpush1.msra.mxu0 %v1206
  %1264 = vmatprep.subr.mxu0 0.0
  %1265 = vmatpush2.msra.mxu0 0.0
  %1266 = vmatprep.subr.mxu0 0.0
  %1267 = vmatpush2.msra.mxu0 0.0
  %1268 = vmatprep.subr.mxu0 0.0
  %1269 = vmatpush2.msra.mxu0 0.0
  %1270 = vmatprep.subr.mxu0 0.0
  %1271 = vmatpush2.msra.mxu0 0.0
  %1272 = vmatprep.subr.mxu0 0.0
  %1273 = vmatpush2.msra.mxu0 0.0
  %1274 = vmatprep.subr.mxu0 0.0
  %1275 = vmatpush2.msra.mxu0 0.0
  %1276 = vmatprep.subr.mxu0 0.0
  %1277 = vmatpush2.msra.mxu0 0.0
  %1278 = vmatprep.subr.mxu0 0.0
  %1279 = vmatpush2.msra.mxu0 0.0
  %1280 = vmatprep.subr.mxu0 0.0
  %1281 = vmatpush2.msra.mxu0 0.0
  %1282 = vmatprep.subr.mxu0 0.0
  %1283 = vmatpush2.msra.mxu0 0.0
  %1284 = vmatprep.subr.mxu0 0.0
  %1285 = vmatpush2.msra.mxu0 0.0
  %1286 = vmatprep.subr.mxu0 0.0
  %1287 = vmatpush2.msra.mxu0 0.0
  %1288 = vmatprep.subr.mxu0 0.0
  %1289 = vmatpush2.msra.mxu0 0.0
  %1290 = vmatprep.subr.mxu0 0.0
  %1291 = vmatpush2.msra.mxu0 0.0
  %1292 = vmatprep.subr.mxu0 0.0
  %1293 = vmatpush2.msra.mxu0 0.0
  %1294 = vmatprep.subr.mxu0 0.0
  %1295 = vmatpush2.msra.mxu0 0.0
  %1296 = vmatprep.mubr.f32.mxu0 0.0
  %1297 = vmatmul.mubr.f32.gmra.mxu0 %v1218
  %v1298 = vpop.f32.mrf.mxu0
  %v1299 = vadd.f32 0.0, %v1298
  %v1300 = vpop.f32.mrf.mxu0
  %1301 = vmatprep.mubr.f32.mxu0 0.0
  %1302 = vmatmul.mubr.f32.gmra.mxu0 %v1221
  %v1303 = vpop.f32.mrf.mxu0
  %v1304 = vadd.f32 0.0, %v1303
  %v1305 = vpop.f32.mrf.mxu0
  %1306 = vdwg.mxu0
  %1307 = vmatprep.subr.mxu0 0.0
  %1308 = vmatpush1.msra.mxu0 0.0
  %1309 = vmatprep.subr.mxu0 0.0
  %1310 = vmatpush1.msra.mxu0 0.0
  %1311 = vmatprep.subr.mxu0 0.0
  %1312 = vmatpush1.msra.mxu0 0.0
  %1313 = vmatprep.subr.mxu0 0.0
  %1314 = vmatpush1.msra.mxu0 0.0
  %1315 = vmatprep.subr.mxu0 0.0
  %1316 = vmatpush1.msra.mxu0 0.0
  %1317 = vmatprep.subr.mxu0 0.0
  %1318 = vmatpush1.msra.mxu0 0.0
  %1319 = vmatprep.subr.mxu0 0.0
  %1320 = vmatpush1.msra.mxu0 0.0
  %1321 = vmatprep.subr.mxu0 0.0
  %1322 = vmatpush1.msra.mxu0 0.0
  %1323 = vmatprep.subr.mxu0 0.0
  %1324 = vmatpush1.msra.mxu0 0.0
  %1325 = vmatprep.subr.mxu0 0.0
  %1326 = vmatpush1.msra.mxu0 0.0
  %1327 = vmatprep.subr.mxu0 0.0
  %1328 = vmatpush1.msra.mxu0 0.0
  %1329 = vmatprep.subr.mxu0 0.0
  %1330 = vmatpush1.msra.mxu0 0.0
  %1331 = vmatprep.subr.mxu0 0.0
  %1332 = vmatpush1.msra.mxu0 0.0
  %1333 = vmatprep.subr.mxu0 0.0
  %1334 = vmatpush1.msra.mxu0 0.0
  %1335 = vmatprep.subr.mxu0 %v1230
  %1336 = vmatpush1.msra.mxu0 %v1228
  %1337 = vmatprep.subr.mxu0 %v1196
  %1338 = vmatpush1.msra.mxu0 %v1208
  %1339 = vmatprep.subr.mxu0 0.0
  %1340 = vmatpush2.msra.mxu0 0.0
  %1341 = vmatprep.subr.mxu0 0.0
  %1342 = vmatpush2.msra.mxu0 0.0
  %1343 = vmatprep.subr.mxu0 0.0
  %1344 = vmatpush2.msra.mxu0 0.0
  %1345 = vmatprep.subr.mxu0 0.0
  %1346 = vmatpush2.msra.mxu0 0.0
  %1347 = vmatprep.subr.mxu0 0.0
  %1348 = vmatpush2.msra.mxu0 0.0
  %1349 = vmatprep.subr.mxu0 0.0
  %1350 = vmatpush2.msra.mxu0 0.0
  %1351 = vmatprep.subr.mxu0 0.0
  %1352 = vmatpush2.msra.mxu0 0.0
  %1353 = vmatprep.subr.mxu0 0.0
  %1354 = vmatpush2.msra.mxu0 0.0
  %1355 = vmatprep.subr.mxu0 0.0
  %1356 = vmatpush2.msra.mxu0 0.0
  %1357 = vmatprep.subr.mxu0 0.0
  %1358 = vmatpush2.msra.mxu0 0.0
  %1359 = vmatprep.subr.mxu0 0.0
  %1360 = vmatpush2.msra.mxu0 0.0
  %1361 = vmatprep.subr.mxu0 0.0
  %1362 = vmatpush2.msra.mxu0 0.0
  %1363 = vmatprep.subr.mxu0 0.0
  %1364 = vmatpush2.msra.mxu0 0.0
  %1365 = vmatprep.subr.mxu0 0.0
  %1366 = vmatpush2.msra.mxu0 0.0
  %1367 = vmatprep.subr.mxu0 0.0
  %1368 = vmatpush2.msra.mxu0 0.0
  %1369 = vmatprep.subr.mxu0 0.0
  %1370 = vmatpush2.msra.mxu0 0.0
  %1371 = vmatprep.mubr.f32.mxu0 0.0
  %1372 = vmatmul.mubr.f32.gmra.mxu0 %v1218
  %v1373 = vpop.f32.mrf.mxu0
  %v1374 = vadd.f32 0.0, %v1373
  %v1375 = vpop.f32.mrf.mxu0
  %v1376 = vadd.f32 0.0, %v1375
  %1377 = vmatprep.mubr.f32.mxu0 0.0
  %1378 = vmatmul.mubr.f32.gmra.mxu0 %v1221
  %v1379 = vpop.f32.mrf.mxu0
  %v1380 = vadd.f32 0.0, %v1379
  %v1381 = vpop.f32.mrf.mxu0
  %v1382 = vadd.f32 0.0, %v1381
  %1383 = vdwg.mxu0
  %v1385 = vsel %vm1216, %v1176, 0
  %v1388 = vsel %vm1216, %v1177, 0
  %v1390 = vsel %vm1223, %v1171, 0
  %v1392 = vsel %vm1223, %v1172, 0
  %v1394 = vsel %vm1223, %v1173, 0
  %v1396 = vsel %vm1223, %v1174, 0
  %1398 = vmatprep.subr.mxu0 0.0
  %1399 = vmatpush1.msra.mxu0 0.0
  %1400 = vmatprep.subr.mxu0 0.0
  %1401 = vmatpush1.msra.mxu0 0.0
  %1402 = vmatprep.subr.mxu0 0.0
  %1403 = vmatpush1.msra.mxu0 0.0
  %1404 = vmatprep.subr.mxu0 0.0
  %1405 = vmatpush1.msra.mxu0 0.0
  %1406 = vmatprep.subr.mxu0 0.0
  %1407 = vmatpush1.msra.mxu0 0.0
  %1408 = vmatprep.subr.mxu0 0.0
  %1409 = vmatpush1.msra.mxu0 0.0
  %1410 = vmatprep.subr.mxu0 0.0
  %1411 = vmatpush1.msra.mxu0 0.0
  %1412 = vmatprep.subr.mxu0 0.0
  %1413 = vmatpush1.msra.mxu0 0.0
  %1414 = vmatprep.subr.mxu0 0.0
  %1415 = vmatpush1.msra.mxu0 0.0
  %1416 = vmatprep.subr.mxu0 0.0
  %1417 = vmatpush1.msra.mxu0 0.0
  %1418 = vmatprep.subr.mxu0 0.0
  %1419 = vmatpush1.msra.mxu0 0.0
  %1420 = vmatprep.subr.mxu0 0.0
  %1421 = vmatpush1.msra.mxu0 0.0
  %1422 = vmatprep.subr.mxu0 0.0
  %1423 = vmatpush1.msra.mxu0 0.0
  %1424 = vmatprep.subr.mxu0 0.0
  %1425 = vmatpush1.msra.mxu0 0.0
  %1426 = vmatprep.subr.mxu0 %v1392
  %1427 = vmatpush1.msra.mxu0 %v1390
  %1428 = vmatprep.subr.mxu0 %v1167
  %1429 = vmatpush1.msra.mxu0 %v1166
  %1430 = vmatprep.subr.mxu0 0.0
  %1431 = vmatpush2.msra.mxu0 0.0
  %1432 = vmatprep.subr.mxu0 0.0
  %1433 = vmatpush2.msra.mxu0 0.0
  %1434 = vmatprep.subr.mxu0 0.0
  %1435 = vmatpush2.msra.mxu0 0.0
  %1436 = vmatprep.subr.mxu0 0.0
  %1437 = vmatpush2.msra.mxu0 0.0
  %1438 = vmatprep.subr.mxu0 0.0
  %1439 = vmatpush2.msra.mxu0 0.0
  %1440 = vmatprep.subr.mxu0 0.0
  %1441 = vmatpush2.msra.mxu0 0.0
  %1442 = vmatprep.subr.mxu0 0.0
  %1443 = vmatpush2.msra.mxu0 0.0
  %1444 = vmatprep.subr.mxu0 0.0
  %1445 = vmatpush2.msra.mxu0 0.0
  %1446 = vmatprep.subr.mxu0 0.0
  %1447 = vmatpush2.msra.mxu0 0.0
  %1448 = vmatprep.subr.mxu0 0.0
  %1449 = vmatpush2.msra.mxu0 0.0
  %1450 = vmatprep.subr.mxu0 0.0
  %1451 = vmatpush2.msra.mxu0 0.0
  %1452 = vmatprep.subr.mxu0 0.0
  %1453 = vmatpush2.msra.mxu0 0.0
  %1454 = vmatprep.subr.mxu0 0.0
  %1455 = vmatpush2.msra.mxu0 0.0
  %1456 = vmatprep.subr.mxu0 0.0
  %1457 = vmatpush2.msra.mxu0 0.0
  %1458 = vmatprep.subr.mxu0 0.0
  %1459 = vmatpush2.msra.mxu0 0.0
  %1460 = vmatprep.subr.mxu0 0.0
  %1461 = vmatpush2.msra.mxu0 0.0
  %1462 = vmatprep.mubr.f32.mxu0 0.0
  %1463 = vmatmul.mubr.f32.gmra.mxu0 %v1385
  %v1464 = vpop.f32.mrf.mxu0
  %v1465 = vadd.f32 %v1299, %v1464
  %v1466 = vpop.f32.mrf.mxu0
  %1467 = vmatprep.mubr.f32.mxu0 0.0
  %1468 = vmatmul.mubr.f32.gmra.mxu0 %v1388
  %v1469 = vpop.f32.mrf.mxu0
  %v1470 = vadd.f32 %v1304, %v1469
  %v1471 = vpop.f32.mrf.mxu0
  %1472 = vdwg.mxu0
  %1473 = vmatprep.subr.mxu0 0.0
  %1474 = vmatpush1.msra.mxu0 0.0
  %1475 = vmatprep.subr.mxu0 0.0
  %1476 = vmatpush1.msra.mxu0 0.0
  %1477 = vmatprep.subr.mxu0 0.0
  %1478 = vmatpush1.msra.mxu0 0.0
  %1479 = vmatprep.subr.mxu0 0.0
  %1480 = vmatpush1.msra.mxu0 0.0
  %1481 = vmatprep.subr.mxu0 0.0
  %1482 = vmatpush1.msra.mxu0 0.0
  %1483 = vmatprep.subr.mxu0 0.0
  %1484 = vmatpush1.msra.mxu0 0.0
  %1485 = vmatprep.subr.mxu0 0.0
  %1486 = vmatpush1.msra.mxu0 0.0
  %1487 = vmatprep.subr.mxu0 0.0
  %1488 = vmatpush1.msra.mxu0 0.0
  %1489 = vmatprep.subr.mxu0 0.0
  %1490 = vmatpush1.msra.mxu0 0.0
  %1491 = vmatprep.subr.mxu0 0.0
  %1492 = vmatpush1.msra.mxu0 0.0
  %1493 = vmatprep.subr.mxu0 0.0
  %1494 = vmatpush1.msra.mxu0 0.0
  %1495 = vmatprep.subr.mxu0 0.0
  %1496 = vmatpush1.msra.mxu0 0.0
  %1497 = vmatprep.subr.mxu0 0.0
  %1498 = vmatpush1.msra.mxu0 0.0
  %1499 = vmatprep.subr.mxu0 0.0
  %1500 = vmatpush1.msra.mxu0 0.0
  %1501 = vmatprep.subr.mxu0 %v1396
  %1502 = vmatpush1.msra.mxu0 %v1394
  %1503 = vmatprep.subr.mxu0 %v1169
  %1504 = vmatpush1.msra.mxu0 %v1168
  %1505 = vmatprep.subr.mxu0 0.0
  %1506 = vmatpush2.msra.mxu0 0.0
  %1507 = vmatprep.subr.mxu0 0.0
  %1508 = vmatpush2.msra.mxu0 0.0
  %1509 = vmatprep.subr.mxu0 0.0
  %1510 = vmatpush2.msra.mxu0 0.0
  %1511 = vmatprep.subr.mxu0 0.0
  %1512 = vmatpush2.msra.mxu0 0.0
  %1513 = vmatprep.subr.mxu0 0.0
  %1514 = vmatpush2.msra.mxu0 0.0
  %1515 = vmatprep.subr.mxu0 0.0
  %1516 = vmatpush2.msra.mxu0 0.0
  %1517 = vmatprep.subr.mxu0 0.0
  %1518 = vmatpush2.msra.mxu0 0.0
  %1519 = vmatprep.subr.mxu0 0.0
  %1520 = vmatpush2.msra.mxu0 0.0
  %1521 = vmatprep.subr.mxu0 0.0
  %1522 = vmatpush2.msra.mxu0 0.0
  %1523 = vmatprep.subr.mxu0 0.0
  %1524 = vmatpush2.msra.mxu0 0.0
  %1525 = vmatprep.subr.mxu0 0.0
  %1526 = vmatpush2.msra.mxu0 0.0
  %1527 = vmatprep.subr.mxu0 0.0
  %1528 = vmatpush2.msra.mxu0 0.0
  %1529 = vmatprep.subr.mxu0 0.0
  %1530 = vmatpush2.msra.mxu0 0.0
  %1531 = vmatprep.subr.mxu0 0.0
  %1532 = vmatpush2.msra.mxu0 0.0
  %1533 = vmatprep.subr.mxu0 0.0
  %1534 = vmatpush2.msra.mxu0 0.0
  %1535 = vmatprep.subr.mxu0 0.0
  %1536 = vmatpush2.msra.mxu0 0.0
  %1537 = vmatprep.mubr.f32.mxu0 0.0
  %1538 = vmatmul.mubr.f32.gmra.mxu0 %v1385
  %v1539 = vpop.f32.mrf.mxu0
  %v1540 = vadd.f32 %v1374, %v1539
  %v1541 = vpop.f32.mrf.mxu0
  %v1542 = vadd.f32 %v1376, %v1541
  %1543 = vmatprep.mubr.f32.mxu0 0.0
  %1544 = vmatmul.mubr.f32.gmra.mxu0 %v1388
  %v1545 = vpop.f32.mrf.mxu0
  %v1546 = vadd.f32 %v1380, %v1545
  %v1547 = vpop.f32.mrf.mxu0
  %v1548 = vadd.f32 %v1382, %v1547
  %1549 = vdwg.mxu0
  %s1550 = scalar_lea.vmem %s4, 32
  %v1551 = vld [vmem:[%s1550] sm:$0xff]
  %v1552 = vld [vmem:[%s1550 + $0x8] sm:$0x3]
  %1553 = vrot.lane.b32.xlu0 %v1166, 126
  %v1554 = vpop.permute.xlu0 %1553
  %1555 = vrot.lane.b32.xlu0 %v1167, 126
  %v1556 = vpop.permute.xlu0 %1555
  %1557 = vrot.lane.b32.xlu0 %v1168, 126
  %v1558 = vpop.permute.xlu0 %1557
  %1559 = vrot.lane.b32.xlu0 %v1169, 126
  %v1560 = vpop.permute.xlu0 %1559
  %1561 = vrot.lane.b32.xlu0 %v1171, 126
  %v1562 = vpop.permute.xlu0 %1561
  %1563 = vrot.lane.b32.xlu0 %v1172, 126
  %v1564 = vpop.permute.xlu0 %1563
  %1565 = vrot.lane.b32.xlu0 %v1173, 126
  %v1566 = vpop.permute.xlu0 %1565
  %1567 = vrot.lane.b32.xlu0 %v1174, 126
  %v1568 = vpop.permute.xlu0 %1567
  %vm1569 = vcmask 1031168
  %v1570 = vsel %vm1569, %v1554, %v1556
  %v1571 = vsel %vm1569, %v1556, %v1558
  %v1572 = vsel %vm1569, %v1558, %v1560
  %v1573 = vsel %vm1569, %v1562, %v1564
  %v1574 = vsel %vm1569, %v1564, %v1566
  %v1575 = vsel %vm1569, %v1566, %v1568
  %v1581 = vsel %vm1216, %v1551, 0
  %v1584 = vsel %vm1216, %v1552, 0
  %v1586 = vsel %vm1223, %v1573, 0
  %v1588 = vsel %vm1223, %v1574, 0
  %v1590 = vsel %vm1223, %v1575, 0
  %v1592 = vsel %vm1223, %v1568, 0
  %1594 = vmatprep.subr.mxu0 0.0
  %1595 = vmatpush1.msra.mxu0 0.0
  %1596 = vmatprep.subr.mxu0 0.0
  %1597 = vmatpush1.msra.mxu0 0.0
  %1598 = vmatprep.subr.mxu0 0.0
  %1599 = vmatpush1.msra.mxu0 0.0
  %1600 = vmatprep.subr.mxu0 0.0
  %1601 = vmatpush1.msra.mxu0 0.0
  %1602 = vmatprep.subr.mxu0 0.0
  %1603 = vmatpush1.msra.mxu0 0.0
  %1604 = vmatprep.subr.mxu0 0.0
  %1605 = vmatpush1.msra.mxu0 0.0
  %1606 = vmatprep.subr.mxu0 0.0
  %1607 = vmatpush1.msra.mxu0 0.0
  %1608 = vmatprep.subr.mxu0 0.0
  %1609 = vmatpush1.msra.mxu0 0.0
  %1610 = vmatprep.subr.mxu0 0.0
  %1611 = vmatpush1.msra.mxu0 0.0
  %1612 = vmatprep.subr.mxu0 0.0
  %1613 = vmatpush1.msra.mxu0 0.0
  %1614 = vmatprep.subr.mxu0 0.0
  %1615 = vmatpush1.msra.mxu0 0.0
  %1616 = vmatprep.subr.mxu0 0.0
  %1617 = vmatpush1.msra.mxu0 0.0
  %1618 = vmatprep.subr.mxu0 0.0
  %1619 = vmatpush1.msra.mxu0 0.0
  %1620 = vmatprep.subr.mxu0 0.0
  %1621 = vmatpush1.msra.mxu0 0.0
  %1622 = vmatprep.subr.mxu0 %v1588
  %1623 = vmatpush1.msra.mxu0 %v1586
  %1624 = vmatprep.subr.mxu0 %v1571
  %1625 = vmatpush1.msra.mxu0 %v1570
  %1626 = vmatprep.subr.mxu0 0.0
  %1627 = vmatpush2.msra.mxu0 0.0
  %1628 = vmatprep.subr.mxu0 0.0
  %1629 = vmatpush2.msra.mxu0 0.0
  %1630 = vmatprep.subr.mxu0 0.0
  %1631 = vmatpush2.msra.mxu0 0.0
  %1632 = vmatprep.subr.mxu0 0.0
  %1633 = vmatpush2.msra.mxu0 0.0
  %1634 = vmatprep.subr.mxu0 0.0
  %1635 = vmatpush2.msra.mxu0 0.0
  %1636 = vmatprep.subr.mxu0 0.0
  %1637 = vmatpush2.msra.mxu0 0.0
  %1638 = vmatprep.subr.mxu0 0.0
  %1639 = vmatpush2.msra.mxu0 0.0
  %1640 = vmatprep.subr.mxu0 0.0
  %1641 = vmatpush2.msra.mxu0 0.0
  %1642 = vmatprep.subr.mxu0 0.0
  %1643 = vmatpush2.msra.mxu0 0.0
  %1644 = vmatprep.subr.mxu0 0.0
  %1645 = vmatpush2.msra.mxu0 0.0
  %1646 = vmatprep.subr.mxu0 0.0
  %1647 = vmatpush2.msra.mxu0 0.0
  %1648 = vmatprep.subr.mxu0 0.0
  %1649 = vmatpush2.msra.mxu0 0.0
  %1650 = vmatprep.subr.mxu0 0.0
  %1651 = vmatpush2.msra.mxu0 0.0
  %1652 = vmatprep.subr.mxu0 0.0
  %1653 = vmatpush2.msra.mxu0 0.0
  %1654 = vmatprep.subr.mxu0 0.0
  %1655 = vmatpush2.msra.mxu0 0.0
  %1656 = vmatprep.subr.mxu0 0.0
  %1657 = vmatpush2.msra.mxu0 0.0
  %1658 = vmatprep.mubr.f32.mxu0 0.0
  %1659 = vmatmul.mubr.f32.gmra.mxu0 %v1581
  %v1660 = vpop.f32.mrf.mxu0
  %v1661 = vadd.f32 0.0, %v1660
  %v1662 = vpop.f32.mrf.mxu0
  %1663 = vmatprep.mubr.f32.mxu0 0.0
  %1664 = vmatmul.mubr.f32.gmra.mxu0 %v1584
  %v1665 = vpop.f32.mrf.mxu0
  %v1666 = vadd.f32 0.0, %v1665
  %v1667 = vpop.f32.mrf.mxu0
  %1668 = vdwg.mxu0
  %1669 = vmatprep.subr.mxu0 0.0
  %1670 = vmatpush1.msra.mxu0 0.0
  %1671 = vmatprep.subr.mxu0 0.0
  %1672 = vmatpush1.msra.mxu0 0.0
  %1673 = vmatprep.subr.mxu0 0.0
  %1674 = vmatpush1.msra.mxu0 0.0
  %1675 = vmatprep.subr.mxu0 0.0
  %1676 = vmatpush1.msra.mxu0 0.0
  %1677 = vmatprep.subr.mxu0 0.0
  %1678 = vmatpush1.msra.mxu0 0.0
  %1679 = vmatprep.subr.mxu0 0.0
  %1680 = vmatpush1.msra.mxu0 0.0
  %1681 = vmatprep.subr.mxu0 0.0
  %1682 = vmatpush1.msra.mxu0 0.0
  %1683 = vmatprep.subr.mxu0 0.0
  %1684 = vmatpush1.msra.mxu0 0.0
  %1685 = vmatprep.subr.mxu0 0.0
  %1686 = vmatpush1.msra.mxu0 0.0
  %1687 = vmatprep.subr.mxu0 0.0
  %1688 = vmatpush1.msra.mxu0 0.0
  %1689 = vmatprep.subr.mxu0 0.0
  %1690 = vmatpush1.msra.mxu0 0.0
  %1691 = vmatprep.subr.mxu0 0.0
  %1692 = vmatpush1.msra.mxu0 0.0
  %1693 = vmatprep.subr.mxu0 0.0
  %1694 = vmatpush1.msra.mxu0 0.0
  %1695 = vmatprep.subr.mxu0 0.0
  %1696 = vmatpush1.msra.mxu0 0.0
  %1697 = vmatprep.subr.mxu0 %v1592
  %1698 = vmatpush1.msra.mxu0 %v1590
  %1699 = vmatprep.subr.mxu0 %v1560
  %1700 = vmatpush1.msra.mxu0 %v1572
  %1701 = vmatprep.subr.mxu0 0.0
  %1702 = vmatpush2.msra.mxu0 0.0
  %1703 = vmatprep.subr.mxu0 0.0
  %1704 = vmatpush2.msra.mxu0 0.0
  %1705 = vmatprep.subr.mxu0 0.0
  %1706 = vmatpush2.msra.mxu0 0.0
  %1707 = vmatprep.subr.mxu0 0.0
  %1708 = vmatpush2.msra.mxu0 0.0
  %1709 = vmatprep.subr.mxu0 0.0
  %1710 = vmatpush2.msra.mxu0 0.0
  %1711 = vmatprep.subr.mxu0 0.0
  %1712 = vmatpush2.msra.mxu0 0.0
  %1713 = vmatprep.subr.mxu0 0.0
  %1714 = vmatpush2.msra.mxu0 0.0
  %1715 = vmatprep.subr.mxu0 0.0
  %1716 = vmatpush2.msra.mxu0 0.0
  %1717 = vmatprep.subr.mxu0 0.0
  %1718 = vmatpush2.msra.mxu0 0.0
  %1719 = vmatprep.subr.mxu0 0.0
  %1720 = vmatpush2.msra.mxu0 0.0
  %1721 = vmatprep.subr.mxu0 0.0
  %1722 = vmatpush2.msra.mxu0 0.0
  %1723 = vmatprep.subr.mxu0 0.0
  %1724 = vmatpush2.msra.mxu0 0.0
  %1725 = vmatprep.subr.mxu0 0.0
  %1726 = vmatpush2.msra.mxu0 0.0
  %1727 = vmatprep.subr.mxu0 0.0
  %1728 = vmatpush2.msra.mxu0 0.0
  %1729 = vmatprep.subr.mxu0 0.0
  %1730 = vmatpush2.msra.mxu0 0.0
  %1731 = vmatprep.subr.mxu0 0.0
  %1732 = vmatpush2.msra.mxu0 0.0
  %1733 = vmatprep.mubr.f32.mxu0 0.0
  %1734 = vmatmul.mubr.f32.gmra.mxu0 %v1581
  %v1735 = vpop.f32.mrf.mxu0
  %v1736 = vadd.f32 0.0, %v1735
  %v1737 = vpop.f32.mrf.mxu0
  %v1738 = vadd.f32 0.0, %v1737
  %1739 = vmatprep.mubr.f32.mxu0 0.0
  %1740 = vmatmul.mubr.f32.gmra.mxu0 %v1584
  %v1741 = vpop.f32.mrf.mxu0
  %v1742 = vadd.f32 0.0, %v1741
  %v1743 = vpop.f32.mrf.mxu0
  %v1744 = vadd.f32 0.0, %v1743
  %1745 = vdwg.mxu0
  %v1746 = vadd.f32 %v1465, %v1661
  %v1747 = vadd.f32 %v1540, %v1736
  %v1748 = vadd.f32 %v1542, %v1738
  %v1749 = vadd.f32 %v1470, %v1666
  %v1750 = vadd.f32 %v1546, %v1742
  %v1751 = vadd.f32 %v1548, %v1744
  %s1752 = scalar_lea.vmem %s4, 48
  %v1753 = vld [vmem:[%s1752] sm:$0xff]
  %v1754 = vld [vmem:[%s1752 + $0x8] sm:$0x3]
  %1755 = vrot.lane.b32.xlu0 %v1166, 125
  %v1756 = vpop.permute.xlu0 %1755
  %1757 = vrot.lane.b32.xlu0 %v1167, 125
  %v1758 = vpop.permute.xlu0 %1757
  %1759 = vrot.lane.b32.xlu0 %v1168, 125
  %v1760 = vpop.permute.xlu0 %1759
  %1761 = vrot.lane.b32.xlu0 %v1169, 125
  %v1762 = vpop.permute.xlu0 %1761
  %1763 = vrot.lane.b32.xlu0 %v1171, 125
  %v1764 = vpop.permute.xlu0 %1763
  %1765 = vrot.lane.b32.xlu0 %v1172, 125
  %v1766 = vpop.permute.xlu0 %1765
  %1767 = vrot.lane.b32.xlu0 %v1173, 125
  %v1768 = vpop.permute.xlu0 %1767
  %1769 = vrot.lane.b32.xlu0 %v1174, 125
  %v1770 = vpop.permute.xlu0 %1769
  %vm1771 = vcmask 1022976
  %v1772 = vsel %vm1771, %v1756, %v1758
  %v1773 = vsel %vm1771, %v1758, %v1760
  %v1774 = vsel %vm1771, %v1760, %v1762
  %v1775 = vsel %vm1771, %v1764, %v1766
  %v1776 = vsel %vm1771, %v1766, %v1768
  %v1777 = vsel %vm1771, %v1768, %v1770
  %v1783 = vsel %vm1216, %v1753, 0
  %v1786 = vsel %vm1216, %v1754, 0
  %v1788 = vsel %vm1223, %v1775, 0
  %v1790 = vsel %vm1223, %v1776, 0
  %v1792 = vsel %vm1223, %v1777, 0
  %v1794 = vsel %vm1223, %v1770, 0
  %1796 = vmatprep.subr.mxu0 0.0
  %1797 = vmatpush1.msra.mxu0 0.0
  %1798 = vmatprep.subr.mxu0 0.0
  %1799 = vmatpush1.msra.mxu0 0.0
  %1800 = vmatprep.subr.mxu0 0.0
  %1801 = vmatpush1.msra.mxu0 0.0
  %1802 = vmatprep.subr.mxu0 0.0
  %1803 = vmatpush1.msra.mxu0 0.0
  %1804 = vmatprep.subr.mxu0 0.0
  %1805 = vmatpush1.msra.mxu0 0.0
  %1806 = vmatprep.subr.mxu0 0.0
  %1807 = vmatpush1.msra.mxu0 0.0
  %1808 = vmatprep.subr.mxu0 0.0
  %1809 = vmatpush1.msra.mxu0 0.0
  %1810 = vmatprep.subr.mxu0 0.0
  %1811 = vmatpush1.msra.mxu0 0.0
  %1812 = vmatprep.subr.mxu0 0.0
  %1813 = vmatpush1.msra.mxu0 0.0
  %1814 = vmatprep.subr.mxu0 0.0
  %1815 = vmatpush1.msra.mxu0 0.0
  %1816 = vmatprep.subr.mxu0 0.0
  %1817 = vmatpush1.msra.mxu0 0.0
  %1818 = vmatprep.subr.mxu0 0.0
  %1819 = vmatpush1.msra.mxu0 0.0
  %1820 = vmatprep.subr.mxu0 0.0
  %1821 = vmatpush1.msra.mxu0 0.0
  %1822 = vmatprep.subr.mxu0 0.0
  %1823 = vmatpush1.msra.mxu0 0.0
  %1824 = vmatprep.subr.mxu0 %v1790
  %1825 = vmatpush1.msra.mxu0 %v1788
  %1826 = vmatprep.subr.mxu0 %v1773
  %1827 = vmatpush1.msra.mxu0 %v1772
  %1828 = vmatprep.subr.mxu0 0.0
  %1829 = vmatpush2.msra.mxu0 0.0
  %1830 = vmatprep.subr.mxu0 0.0
  %1831 = vmatpush2.msra.mxu0 0.0
  %1832 = vmatprep.subr.mxu0 0.0
  %1833 = vmatpush2.msra.mxu0 0.0
  %1834 = vmatprep.subr.mxu0 0.0
  %1835 = vmatpush2.msra.mxu0 0.0
  %1836 = vmatprep.subr.mxu0 0.0
  %1837 = vmatpush2.msra.mxu0 0.0
  %1838 = vmatprep.subr.mxu0 0.0
  %1839 = vmatpush2.msra.mxu0 0.0
  %1840 = vmatprep.subr.mxu0 0.0
  %1841 = vmatpush2.msra.mxu0 0.0
  %1842 = vmatprep.subr.mxu0 0.0
  %1843 = vmatpush2.msra.mxu0 0.0
  %1844 = vmatprep.subr.mxu0 0.0
  %1845 = vmatpush2.msra.mxu0 0.0
  %1846 = vmatprep.subr.mxu0 0.0
  %1847 = vmatpush2.msra.mxu0 0.0
  %1848 = vmatprep.subr.mxu0 0.0
  %1849 = vmatpush2.msra.mxu0 0.0
  %1850 = vmatprep.subr.mxu0 0.0
  %1851 = vmatpush2.msra.mxu0 0.0
  %1852 = vmatprep.subr.mxu0 0.0
  %1853 = vmatpush2.msra.mxu0 0.0
  %1854 = vmatprep.subr.mxu0 0.0
  %1855 = vmatpush2.msra.mxu0 0.0
  %1856 = vmatprep.subr.mxu0 0.0
  %1857 = vmatpush2.msra.mxu0 0.0
  %1858 = vmatprep.subr.mxu0 0.0
  %1859 = vmatpush2.msra.mxu0 0.0
  %1860 = vmatprep.mubr.f32.mxu0 0.0
  %1861 = vmatmul.mubr.f32.gmra.mxu0 %v1783
  %v1862 = vpop.f32.mrf.mxu0
  %v1863 = vadd.f32 0.0, %v1862
  %v1864 = vpop.f32.mrf.mxu0
  %1865 = vmatprep.mubr.f32.mxu0 0.0
  %1866 = vmatmul.mubr.f32.gmra.mxu0 %v1786
  %v1867 = vpop.f32.mrf.mxu0
  %v1868 = vadd.f32 0.0, %v1867
  %v1869 = vpop.f32.mrf.mxu0
  %1870 = vdwg.mxu0
  %1871 = vmatprep.subr.mxu0 0.0
  %1872 = vmatpush1.msra.mxu0 0.0
  %1873 = vmatprep.subr.mxu0 0.0
  %1874 = vmatpush1.msra.mxu0 0.0
  %1875 = vmatprep.subr.mxu0 0.0
  %1876 = vmatpush1.msra.mxu0 0.0
  %1877 = vmatprep.subr.mxu0 0.0
  %1878 = vmatpush1.msra.mxu0 0.0
  %1879 = vmatprep.subr.mxu0 0.0
  %1880 = vmatpush1.msra.mxu0 0.0
  %1881 = vmatprep.subr.mxu0 0.0
  %1882 = vmatpush1.msra.mxu0 0.0
  %1883 = vmatprep.subr.mxu0 0.0
  %1884 = vmatpush1.msra.mxu0 0.0
  %1885 = vmatprep.subr.mxu0 0.0
  %1886 = vmatpush1.msra.mxu0 0.0
  %1887 = vmatprep.subr.mxu0 0.0
  %1888 = vmatpush1.msra.mxu0 0.0
  %1889 = vmatprep.subr.mxu0 0.0
  %1890 = vmatpush1.msra.mxu0 0.0
  %1891 = vmatprep.subr.mxu0 0.0
  %1892 = vmatpush1.msra.mxu0 0.0
  %1893 = vmatprep.subr.mxu0 0.0
  %1894 = vmatpush1.msra.mxu0 0.0
  %1895 = vmatprep.subr.mxu0 0.0
  %1896 = vmatpush1.msra.mxu0 0.0
  %1897 = vmatprep.subr.mxu0 0.0
  %1898 = vmatpush1.msra.mxu0 0.0
  %1899 = vmatprep.subr.mxu0 %v1794
  %1900 = vmatpush1.msra.mxu0 %v1792
  %1901 = vmatprep.subr.mxu0 %v1762
  %1902 = vmatpush1.msra.mxu0 %v1774
  %1903 = vmatprep.subr.mxu0 0.0
  %1904 = vmatpush2.msra.mxu0 0.0
  %1905 = vmatprep.subr.mxu0 0.0
  %1906 = vmatpush2.msra.mxu0 0.0
  %1907 = vmatprep.subr.mxu0 0.0
  %1908 = vmatpush2.msra.mxu0 0.0
  %1909 = vmatprep.subr.mxu0 0.0
  %1910 = vmatpush2.msra.mxu0 0.0
  %1911 = vmatprep.subr.mxu0 0.0
  %1912 = vmatpush2.msra.mxu0 0.0
  %1913 = vmatprep.subr.mxu0 0.0
  %1914 = vmatpush2.msra.mxu0 0.0
  %1915 = vmatprep.subr.mxu0 0.0
  %1916 = vmatpush2.msra.mxu0 0.0
  %1917 = vmatprep.subr.mxu0 0.0
  %1918 = vmatpush2.msra.mxu0 0.0
  %1919 = vmatprep.subr.mxu0 0.0
  %1920 = vmatpush2.msra.mxu0 0.0
  %1921 = vmatprep.subr.mxu0 0.0
  %1922 = vmatpush2.msra.mxu0 0.0
  %1923 = vmatprep.subr.mxu0 0.0
  %1924 = vmatpush2.msra.mxu0 0.0
  %1925 = vmatprep.subr.mxu0 0.0
  %1926 = vmatpush2.msra.mxu0 0.0
  %1927 = vmatprep.subr.mxu0 0.0
  %1928 = vmatpush2.msra.mxu0 0.0
  %1929 = vmatprep.subr.mxu0 0.0
  %1930 = vmatpush2.msra.mxu0 0.0
  %1931 = vmatprep.subr.mxu0 0.0
  %1932 = vmatpush2.msra.mxu0 0.0
  %1933 = vmatprep.subr.mxu0 0.0
  %1934 = vmatpush2.msra.mxu0 0.0
  %1935 = vmatprep.mubr.f32.mxu0 0.0
  %1936 = vmatmul.mubr.f32.gmra.mxu0 %v1783
  %v1937 = vpop.f32.mrf.mxu0
  %v1938 = vadd.f32 0.0, %v1937
  %v1939 = vpop.f32.mrf.mxu0
  %v1940 = vadd.f32 0.0, %v1939
  %1941 = vmatprep.mubr.f32.mxu0 0.0
  %1942 = vmatmul.mubr.f32.gmra.mxu0 %v1786
  %v1943 = vpop.f32.mrf.mxu0
  %v1944 = vadd.f32 0.0, %v1943
  %v1945 = vpop.f32.mrf.mxu0
  %v1946 = vadd.f32 0.0, %v1945
  %1947 = vdwg.mxu0
  %v1948 = vadd.f32 %v1746, %v1863
  %v1949 = vadd.f32 %v1747, %v1938
  %v1950 = vadd.f32 %v1748, %v1940
  %v1951 = vadd.f32 %v1749, %v1868
  %v1952 = vadd.f32 %v1750, %v1944
  %v1953 = vadd.f32 %v1751, %v1946
  %s1954 = scalar_lea.vmem %s4, 64
  %v1955 = vld [vmem:[%s1954] sm:$0xff]
  %v1956 = vld [vmem:[%s1954 + $0x8] sm:$0x3]
  %1957 = vrot.lane.b32.xlu0 %v1166, 124
  %v1958 = vpop.permute.xlu0 %1957
  %1959 = vrot.lane.b32.xlu0 %v1167, 124
  %v1960 = vpop.permute.xlu0 %1959
  %1961 = vrot.lane.b32.xlu0 %v1168, 124
  %v1962 = vpop.permute.xlu0 %1961
  %1963 = vrot.lane.b32.xlu0 %v1169, 124
  %v1964 = vpop.permute.xlu0 %1963
  %1965 = vrot.lane.b32.xlu0 %v1171, 124
  %v1966 = vpop.permute.xlu0 %1965
  %1967 = vrot.lane.b32.xlu0 %v1172, 124
  %v1968 = vpop.permute.xlu0 %1967
  %1969 = vrot.lane.b32.xlu0 %v1173, 124
  %v1970 = vpop.permute.xlu0 %1969
  %1971 = vrot.lane.b32.xlu0 %v1174, 124
  %v1972 = vpop.permute.xlu0 %1971
  %vm1973 = vcmask 1014784
  %v1974 = vsel %vm1973, %v1958, %v1960
  %v1975 = vsel %vm1973, %v1960, %v1962
  %v1976 = vsel %vm1973, %v1962, %v1964
  %v1977 = vsel %vm1973, %v1966, %v1968
  %v1978 = vsel %vm1973, %v1968, %v1970
  %v1979 = vsel %vm1973, %v1970, %v1972
  %v1985 = vsel %vm1216, %v1955, 0
  %v1988 = vsel %vm1216, %v1956, 0
  %v1990 = vsel %vm1223, %v1977, 0
  %v1992 = vsel %vm1223, %v1978, 0
  %v1994 = vsel %vm1223, %v1979, 0
  %v1996 = vsel %vm1223, %v1972, 0
  %1998 = vmatprep.subr.mxu0 0.0
  %1999 = vmatpush1.msra.mxu0 0.0
  %2000 = vmatprep.subr.mxu0 0.0
  %2001 = vmatpush1.msra.mxu0 0.0
  %2002 = vmatprep.subr.mxu0 0.0
  %2003 = vmatpush1.msra.mxu0 0.0
  %2004 = vmatprep.subr.mxu0 0.0
  %2005 = vmatpush1.msra.mxu0 0.0
  %2006 = vmatprep.subr.mxu0 0.0
  %2007 = vmatpush1.msra.mxu0 0.0
  %2008 = vmatprep.subr.mxu0 0.0
  %2009 = vmatpush1.msra.mxu0 0.0
  %2010 = vmatprep.subr.mxu0 0.0
  %2011 = vmatpush1.msra.mxu0 0.0
  %2012 = vmatprep.subr.mxu0 0.0
  %2013 = vmatpush1.msra.mxu0 0.0
  %2014 = vmatprep.subr.mxu0 0.0
  %2015 = vmatpush1.msra.mxu0 0.0
  %2016 = vmatprep.subr.mxu0 0.0
  %2017 = vmatpush1.msra.mxu0 0.0
  %2018 = vmatprep.subr.mxu0 0.0
  %2019 = vmatpush1.msra.mxu0 0.0
  %2020 = vmatprep.subr.mxu0 0.0
  %2021 = vmatpush1.msra.mxu0 0.0
  %2022 = vmatprep.subr.mxu0 0.0
  %2023 = vmatpush1.msra.mxu0 0.0
  %2024 = vmatprep.subr.mxu0 0.0
  %2025 = vmatpush1.msra.mxu0 0.0
  %2026 = vmatprep.subr.mxu0 %v1992
  %2027 = vmatpush1.msra.mxu0 %v1990
  %2028 = vmatprep.subr.mxu0 %v1975
  %2029 = vmatpush1.msra.mxu0 %v1974
  %2030 = vmatprep.subr.mxu0 0.0
  %2031 = vmatpush2.msra.mxu0 0.0
  %2032 = vmatprep.subr.mxu0 0.0
  %2033 = vmatpush2.msra.mxu0 0.0
  %2034 = vmatprep.subr.mxu0 0.0
  %2035 = vmatpush2.msra.mxu0 0.0
  %2036 = vmatprep.subr.mxu0 0.0
  %2037 = vmatpush2.msra.mxu0 0.0
  %2038 = vmatprep.subr.mxu0 0.0
  %2039 = vmatpush2.msra.mxu0 0.0
  %2040 = vmatprep.subr.mxu0 0.0
  %2041 = vmatpush2.msra.mxu0 0.0
  %2042 = vmatprep.subr.mxu0 0.0
  %2043 = vmatpush2.msra.mxu0 0.0
  %2044 = vmatprep.subr.mxu0 0.0
  %2045 = vmatpush2.msra.mxu0 0.0
  %2046 = vmatprep.subr.mxu0 0.0
  %2047 = vmatpush2.msra.mxu0 0.0
  %2048 = vmatprep.subr.mxu0 0.0
  %2049 = vmatpush2.msra.mxu0 0.0
  %2050 = vmatprep.subr.mxu0 0.0
  %2051 = vmatpush2.msra.mxu0 0.0
  %2052 = vmatprep.subr.mxu0 0.0
  %2053 = vmatpush2.msra.mxu0 0.0
  %2054 = vmatprep.subr.mxu0 0.0
  %2055 = vmatpush2.msra.mxu0 0.0
  %2056 = vmatprep.subr.mxu0 0.0
  %2057 = vmatpush2.msra.mxu0 0.0
  %2058 = vmatprep.subr.mxu0 0.0
  %2059 = vmatpush2.msra.mxu0 0.0
  %2060 = vmatprep.subr.mxu0 0.0
  %2061 = vmatpush2.msra.mxu0 0.0
  %2062 = vmatprep.mubr.f32.mxu0 0.0
  %2063 = vmatmul.mubr.f32.gmra.mxu0 %v1985
  %v2064 = vpop.f32.mrf.mxu0
  %v2065 = vadd.f32 0.0, %v2064
  %v2066 = vpop.f32.mrf.mxu0
  %2067 = vmatprep.mubr.f32.mxu0 0.0
  %2068 = vmatmul.mubr.f32.gmra.mxu0 %v1988
  %v2069 = vpop.f32.mrf.mxu0
  %v2070 = vadd.f32 0.0, %v2069
  %v2071 = vpop.f32.mrf.mxu0
  %2072 = vdwg.mxu0
  %2073 = vmatprep.subr.mxu0 0.0
  %2074 = vmatpush1.msra.mxu0 0.0
  %2075 = vmatprep.subr.mxu0 0.0
  %2076 = vmatpush1.msra.mxu0 0.0
  %2077 = vmatprep.subr.mxu0 0.0
  %2078 = vmatpush1.msra.mxu0 0.0
  %2079 = vmatprep.subr.mxu0 0.0
  %2080 = vmatpush1.msra.mxu0 0.0
  %2081 = vmatprep.subr.mxu0 0.0
  %2082 = vmatpush1.msra.mxu0 0.0
  %2083 = vmatprep.subr.mxu0 0.0
  %2084 = vmatpush1.msra.mxu0 0.0
  %2085 = vmatprep.subr.mxu0 0.0
  %2086 = vmatpush1.msra.mxu0 0.0
  %2087 = vmatprep.subr.mxu0 0.0
  %2088 = vmatpush1.msra.mxu0 0.0
  %2089 = vmatprep.subr.mxu0 0.0
  %2090 = vmatpush1.msra.mxu0 0.0
  %2091 = vmatprep.subr.mxu0 0.0
  %2092 = vmatpush1.msra.mxu0 0.0
  %2093 = vmatprep.subr.mxu0 0.0
  %2094 = vmatpush1.msra.mxu0 0.0
  %2095 = vmatprep.subr.mxu0 0.0
  %2096 = vmatpush1.msra.mxu0 0.0
  %2097 = vmatprep.subr.mxu0 0.0
  %2098 = vmatpush1.msra.mxu0 0.0
  %2099 = vmatprep.subr.mxu0 0.0
  %2100 = vmatpush1.msra.mxu0 0.0
  %2101 = vmatprep.subr.mxu0 %v1996
  %2102 = vmatpush1.msra.mxu0 %v1994
  %2103 = vmatprep.subr.mxu0 %v1964
  %2104 = vmatpush1.msra.mxu0 %v1976
  %2105 = vmatprep.subr.mxu0 0.0
  %2106 = vmatpush2.msra.mxu0 0.0
  %2107 = vmatprep.subr.mxu0 0.0
  %2108 = vmatpush2.msra.mxu0 0.0
  %2109 = vmatprep.subr.mxu0 0.0
  %2110 = vmatpush2.msra.mxu0 0.0
  %2111 = vmatprep.subr.mxu0 0.0
  %2112 = vmatpush2.msra.mxu0 0.0
  %2113 = vmatprep.subr.mxu0 0.0
  %2114 = vmatpush2.msra.mxu0 0.0
  %2115 = vmatprep.subr.mxu0 0.0
  %2116 = vmatpush2.msra.mxu0 0.0
  %2117 = vmatprep.subr.mxu0 0.0
  %2118 = vmatpush2.msra.mxu0 0.0
  %2119 = vmatprep.subr.mxu0 0.0
  %2120 = vmatpush2.msra.mxu0 0.0
  %2121 = vmatprep.subr.mxu0 0.0
  %2122 = vmatpush2.msra.mxu0 0.0
  %2123 = vmatprep.subr.mxu0 0.0
  %2124 = vmatpush2.msra.mxu0 0.0
  %2125 = vmatprep.subr.mxu0 0.0
  %2126 = vmatpush2.msra.mxu0 0.0
  %2127 = vmatprep.subr.mxu0 0.0
  %2128 = vmatpush2.msra.mxu0 0.0
  %2129 = vmatprep.subr.mxu0 0.0
  %2130 = vmatpush2.msra.mxu0 0.0
  %2131 = vmatprep.subr.mxu0 0.0
  %2132 = vmatpush2.msra.mxu0 0.0
  %2133 = vmatprep.subr.mxu0 0.0
  %2134 = vmatpush2.msra.mxu0 0.0
  %2135 = vmatprep.subr.mxu0 0.0
  %2136 = vmatpush2.msra.mxu0 0.0
  %2137 = vmatprep.mubr.f32.mxu0 0.0
  %2138 = vmatmul.mubr.f32.gmra.mxu0 %v1985
  %v2139 = vpop.f32.mrf.mxu0
  %v2140 = vadd.f32 0.0, %v2139
  %v2141 = vpop.f32.mrf.mxu0
  %v2142 = vadd.f32 0.0, %v2141
  %2143 = vmatprep.mubr.f32.mxu0 0.0
  %2144 = vmatmul.mubr.f32.gmra.mxu0 %v1988
  %v2145 = vpop.f32.mrf.mxu0
  %v2146 = vadd.f32 0.0, %v2145
  %v2147 = vpop.f32.mrf.mxu0
  %v2148 = vadd.f32 0.0, %v2147
  %2149 = vdwg.mxu0
  %v2150 = vadd.f32 %v1948, %v2065
  %v2151 = vadd.f32 %v1949, %v2140
  %v2152 = vadd.f32 %v1950, %v2142
  %v2153 = vadd.f32 %v1951, %v2070
  %v2154 = vadd.f32 %v1952, %v2146
  %v2155 = vadd.f32 %v1953, %v2148
  %s2156 = scalar_lea.vmem %s4, 80
  %v2157 = vld [vmem:[%s2156] sm:$0xff]
  %v2158 = vld [vmem:[%s2156 + $0x8] sm:$0x3]
  %2159 = vrot.lane.b32.xlu0 %v1166, 112
  %v2160 = vpop.permute.xlu0 %2159
  %2161 = vrot.lane.b32.xlu0 %v1167, 112
  %v2162 = vpop.permute.xlu0 %2161
  %2163 = vrot.lane.b32.xlu0 %v1168, 112
  %v2164 = vpop.permute.xlu0 %2163
  %2165 = vrot.lane.b32.xlu0 %v1169, 112
  %v2166 = vpop.permute.xlu0 %2165
  %2167 = vrot.lane.b32.xlu0 %v1171, 112
  %v2168 = vpop.permute.xlu0 %2167
  %2169 = vrot.lane.b32.xlu0 %v1172, 112
  %v2170 = vpop.permute.xlu0 %2169
  %2171 = vrot.lane.b32.xlu0 %v1173, 112
  %v2172 = vpop.permute.xlu0 %2171
  %2173 = vrot.lane.b32.xlu0 %v1174, 112
  %v2174 = vpop.permute.xlu0 %2173
  %vm2175 = vcmask 916480
  %v2176 = vsel %vm2175, %v2160, %v2162
  %v2177 = vsel %vm2175, %v2162, %v2164
  %v2178 = vsel %vm2175, %v2164, %v2166
  %v2179 = vsel %vm2175, %v2168, %v2170
  %v2180 = vsel %vm2175, %v2170, %v2172
  %v2181 = vsel %vm2175, %v2172, %v2174
  %v2187 = vsel %vm1216, %v2157, 0
  %v2190 = vsel %vm1216, %v2158, 0
  %v2192 = vsel %vm1223, %v2179, 0
  %v2194 = vsel %vm1223, %v2180, 0
  %v2196 = vsel %vm1223, %v2181, 0
  %v2198 = vsel %vm1223, %v2174, 0
  %2200 = vmatprep.subr.mxu0 0.0
  %2201 = vmatpush1.msra.mxu0 0.0
  %2202 = vmatprep.subr.mxu0 0.0
  %2203 = vmatpush1.msra.mxu0 0.0
  %2204 = vmatprep.subr.mxu0 0.0
  %2205 = vmatpush1.msra.mxu0 0.0
  %2206 = vmatprep.subr.mxu0 0.0
  %2207 = vmatpush1.msra.mxu0 0.0
  %2208 = vmatprep.subr.mxu0 0.0
  %2209 = vmatpush1.msra.mxu0 0.0
  %2210 = vmatprep.subr.mxu0 0.0
  %2211 = vmatpush1.msra.mxu0 0.0
  %2212 = vmatprep.subr.mxu0 0.0
  %2213 = vmatpush1.msra.mxu0 0.0
  %2214 = vmatprep.subr.mxu0 0.0
  %2215 = vmatpush1.msra.mxu0 0.0
  %2216 = vmatprep.subr.mxu0 0.0
  %2217 = vmatpush1.msra.mxu0 0.0
  %2218 = vmatprep.subr.mxu0 0.0
  %2219 = vmatpush1.msra.mxu0 0.0
  %2220 = vmatprep.subr.mxu0 0.0
  %2221 = vmatpush1.msra.mxu0 0.0
  %2222 = vmatprep.subr.mxu0 0.0
  %2223 = vmatpush1.msra.mxu0 0.0
  %2224 = vmatprep.subr.mxu0 0.0
  %2225 = vmatpush1.msra.mxu0 0.0
  %2226 = vmatprep.subr.mxu0 0.0
  %2227 = vmatpush1.msra.mxu0 0.0
  %2228 = vmatprep.subr.mxu0 %v2194
  %2229 = vmatpush1.msra.mxu0 %v2192
  %2230 = vmatprep.subr.mxu0 %v2177
  %2231 = vmatpush1.msra.mxu0 %v2176
  %2232 = vmatprep.subr.mxu0 0.0
  %2233 = vmatpush2.msra.mxu0 0.0
  %2234 = vmatprep.subr.mxu0 0.0
  %2235 = vmatpush2.msra.mxu0 0.0
  %2236 = vmatprep.subr.mxu0 0.0
  %2237 = vmatpush2.msra.mxu0 0.0
  %2238 = vmatprep.subr.mxu0 0.0
  %2239 = vmatpush2.msra.mxu0 0.0
  %2240 = vmatprep.subr.mxu0 0.0
  %2241 = vmatpush2.msra.mxu0 0.0
  %2242 = vmatprep.subr.mxu0 0.0
  %2243 = vmatpush2.msra.mxu0 0.0
  %2244 = vmatprep.subr.mxu0 0.0
  %2245 = vmatpush2.msra.mxu0 0.0
  %2246 = vmatprep.subr.mxu0 0.0
  %2247 = vmatpush2.msra.mxu0 0.0
  %2248 = vmatprep.subr.mxu0 0.0
  %2249 = vmatpush2.msra.mxu0 0.0
  %2250 = vmatprep.subr.mxu0 0.0
  %2251 = vmatpush2.msra.mxu0 0.0
  %2252 = vmatprep.subr.mxu0 0.0
  %2253 = vmatpush2.msra.mxu0 0.0
  %2254 = vmatprep.subr.mxu0 0.0
  %2255 = vmatpush2.msra.mxu0 0.0
  %2256 = vmatprep.subr.mxu0 0.0
  %2257 = vmatpush2.msra.mxu0 0.0
  %2258 = vmatprep.subr.mxu0 0.0
  %2259 = vmatpush2.msra.mxu0 0.0
  %2260 = vmatprep.subr.mxu0 0.0
  %2261 = vmatpush2.msra.mxu0 0.0
  %2262 = vmatprep.subr.mxu0 0.0
  %2263 = vmatpush2.msra.mxu0 0.0
  %2264 = vmatprep.mubr.f32.mxu0 0.0
  %2265 = vmatmul.mubr.f32.gmra.mxu0 %v2187
  %v2266 = vpop.f32.mrf.mxu0
  %v2267 = vadd.f32 0.0, %v2266
  %v2268 = vpop.f32.mrf.mxu0
  %2269 = vmatprep.mubr.f32.mxu0 0.0
  %2270 = vmatmul.mubr.f32.gmra.mxu0 %v2190
  %v2271 = vpop.f32.mrf.mxu0
  %v2272 = vadd.f32 0.0, %v2271
  %v2273 = vpop.f32.mrf.mxu0
  %2274 = vdwg.mxu0
  %2275 = vmatprep.subr.mxu0 0.0
  %2276 = vmatpush1.msra.mxu0 0.0
  %2277 = vmatprep.subr.mxu0 0.0
  %2278 = vmatpush1.msra.mxu0 0.0
  %2279 = vmatprep.subr.mxu0 0.0
  %2280 = vmatpush1.msra.mxu0 0.0
  %2281 = vmatprep.subr.mxu0 0.0
  %2282 = vmatpush1.msra.mxu0 0.0
  %2283 = vmatprep.subr.mxu0 0.0
  %2284 = vmatpush1.msra.mxu0 0.0
  %2285 = vmatprep.subr.mxu0 0.0
  %2286 = vmatpush1.msra.mxu0 0.0
  %2287 = vmatprep.subr.mxu0 0.0
  %2288 = vmatpush1.msra.mxu0 0.0
  %2289 = vmatprep.subr.mxu0 0.0
  %2290 = vmatpush1.msra.mxu0 0.0
  %2291 = vmatprep.subr.mxu0 0.0
  %2292 = vmatpush1.msra.mxu0 0.0
  %2293 = vmatprep.subr.mxu0 0.0
  %2294 = vmatpush1.msra.mxu0 0.0
  %2295 = vmatprep.subr.mxu0 0.0
  %2296 = vmatpush1.msra.mxu0 0.0
  %2297 = vmatprep.subr.mxu0 0.0
  %2298 = vmatpush1.msra.mxu0 0.0
  %2299 = vmatprep.subr.mxu0 0.0
  %2300 = vmatpush1.msra.mxu0 0.0
  %2301 = vmatprep.subr.mxu0 0.0
  %2302 = vmatpush1.msra.mxu0 0.0
  %2303 = vmatprep.subr.mxu0 %v2198
  %2304 = vmatpush1.msra.mxu0 %v2196
  %2305 = vmatprep.subr.mxu0 %v2166
  %2306 = vmatpush1.msra.mxu0 %v2178
  %2307 = vmatprep.subr.mxu0 0.0
  %2308 = vmatpush2.msra.mxu0 0.0
  %2309 = vmatprep.subr.mxu0 0.0
  %2310 = vmatpush2.msra.mxu0 0.0
  %2311 = vmatprep.subr.mxu0 0.0
  %2312 = vmatpush2.msra.mxu0 0.0
  %2313 = vmatprep.subr.mxu0 0.0
  %2314 = vmatpush2.msra.mxu0 0.0
  %2315 = vmatprep.subr.mxu0 0.0
  %2316 = vmatpush2.msra.mxu0 0.0
  %2317 = vmatprep.subr.mxu0 0.0
  %2318 = vmatpush2.msra.mxu0 0.0
  %2319 = vmatprep.subr.mxu0 0.0
  %2320 = vmatpush2.msra.mxu0 0.0
  %2321 = vmatprep.subr.mxu0 0.0
  %2322 = vmatpush2.msra.mxu0 0.0
  %2323 = vmatprep.subr.mxu0 0.0
  %2324 = vmatpush2.msra.mxu0 0.0
  %2325 = vmatprep.subr.mxu0 0.0
  %2326 = vmatpush2.msra.mxu0 0.0
  %2327 = vmatprep.subr.mxu0 0.0
  %2328 = vmatpush2.msra.mxu0 0.0
  %2329 = vmatprep.subr.mxu0 0.0
  %2330 = vmatpush2.msra.mxu0 0.0
  %2331 = vmatprep.subr.mxu0 0.0
  %2332 = vmatpush2.msra.mxu0 0.0
  %2333 = vmatprep.subr.mxu0 0.0
  %2334 = vmatpush2.msra.mxu0 0.0
  %2335 = vmatprep.subr.mxu0 0.0
  %2336 = vmatpush2.msra.mxu0 0.0
  %2337 = vmatprep.subr.mxu0 0.0
  %2338 = vmatpush2.msra.mxu0 0.0
  %2339 = vmatprep.mubr.f32.mxu0 0.0
  %2340 = vmatmul.mubr.f32.gmra.mxu0 %v2187
  %v2341 = vpop.f32.mrf.mxu0
  %v2342 = vadd.f32 0.0, %v2341
  %v2343 = vpop.f32.mrf.mxu0
  %v2344 = vadd.f32 0.0, %v2343
  %2345 = vmatprep.mubr.f32.mxu0 0.0
  %2346 = vmatmul.mubr.f32.gmra.mxu0 %v2190
  %v2347 = vpop.f32.mrf.mxu0
  %v2348 = vadd.f32 0.0, %v2347
  %v2349 = vpop.f32.mrf.mxu0
  %v2350 = vadd.f32 0.0, %v2349
  %2351 = vdwg.mxu0
  %v2352 = vadd.f32 %v2150, %v2267
  %v2353 = vadd.f32 %v2151, %v2342
  %v2354 = vadd.f32 %v2152, %v2344
  %v2355 = vadd.f32 %v2153, %v2272
  %v2356 = vadd.f32 %v2154, %v2348
  %v2357 = vadd.f32 %v2155, %v2350
  %s2358 = scalar_lea.vmem %s4, 96
  %v2359 = vld [vmem:[%s2358] sm:$0xff]
  %v2360 = vld [vmem:[%s2358 + $0x8] sm:$0x3]
  %2361 = vrot.lane.b32.xlu0 %v1166, 111
  %v2362 = vpop.permute.xlu0 %2361
  %2363 = vrot.lane.b32.xlu0 %v1167, 111
  %v2364 = vpop.permute.xlu0 %2363
  %2365 = vrot.lane.b32.xlu0 %v1168, 111
  %v2366 = vpop.permute.xlu0 %2365
  %2367 = vrot.lane.b32.xlu0 %v1169, 111
  %v2368 = vpop.permute.xlu0 %2367
  %2369 = vrot.lane.b32.xlu0 %v1171, 111
  %v2370 = vpop.permute.xlu0 %2369
  %2371 = vrot.lane.b32.xlu0 %v1172, 111
  %v2372 = vpop.permute.xlu0 %2371
  %2373 = vrot.lane.b32.xlu0 %v1173, 111
  %v2374 = vpop.permute.xlu0 %2373
  %2375 = vrot.lane.b32.xlu0 %v1174, 111
  %v2376 = vpop.permute.xlu0 %2375
  %vm2377 = vcmask 908288
  %v2378 = vsel %vm2377, %v2362, %v2364
  %v2379 = vsel %vm2377, %v2364, %v2366
  %v2380 = vsel %vm2377, %v2366, %v2368
  %v2381 = vsel %vm2377, %v2370, %v2372
  %v2382 = vsel %vm2377, %v2372, %v2374
  %v2383 = vsel %vm2377, %v2374, %v2376
  %v2389 = vsel %vm1216, %v2359, 0
  %v2392 = vsel %vm1216, %v2360, 0
  %v2394 = vsel %vm1223, %v2381, 0
  %v2396 = vsel %vm1223, %v2382, 0
  %v2398 = vsel %vm1223, %v2383, 0
  %v2400 = vsel %vm1223, %v2376, 0
  %2402 = vmatprep.subr.mxu0 0.0
  %2403 = vmatpush1.msra.mxu0 0.0
  %2404 = vmatprep.subr.mxu0 0.0
  %2405 = vmatpush1.msra.mxu0 0.0
  %2406 = vmatprep.subr.mxu0 0.0
  %2407 = vmatpush1.msra.mxu0 0.0
  %2408 = vmatprep.subr.mxu0 0.0
  %2409 = vmatpush1.msra.mxu0 0.0
  %2410 = vmatprep.subr.mxu0 0.0
  %2411 = vmatpush1.msra.mxu0 0.0
  %2412 = vmatprep.subr.mxu0 0.0
  %2413 = vmatpush1.msra.mxu0 0.0
  %2414 = vmatprep.subr.mxu0 0.0
  %2415 = vmatpush1.msra.mxu0 0.0
  %2416 = vmatprep.subr.mxu0 0.0
  %2417 = vmatpush1.msra.mxu0 0.0
  %2418 = vmatprep.subr.mxu0 0.0
  %2419 = vmatpush1.msra.mxu0 0.0
  %2420 = vmatprep.subr.mxu0 0.0
  %2421 = vmatpush1.msra.mxu0 0.0
  %2422 = vmatprep.subr.mxu0 0.0
  %2423 = vmatpush1.msra.mxu0 0.0
  %2424 = vmatprep.subr.mxu0 0.0
  %2425 = vmatpush1.msra.mxu0 0.0
  %2426 = vmatprep.subr.mxu0 0.0
  %2427 = vmatpush1.msra.mxu0 0.0
  %2428 = vmatprep.subr.mxu0 0.0
  %2429 = vmatpush1.msra.mxu0 0.0
  %2430 = vmatprep.subr.mxu0 %v2396
  %2431 = vmatpush1.msra.mxu0 %v2394
  %2432 = vmatprep.subr.mxu0 %v2379
  %2433 = vmatpush1.msra.mxu0 %v2378
  %2434 = vmatprep.subr.mxu0 0.0
  %2435 = vmatpush2.msra.mxu0 0.0
  %2436 = vmatprep.subr.mxu0 0.0
  %2437 = vmatpush2.msra.mxu0 0.0
  %2438 = vmatprep.subr.mxu0 0.0
  %2439 = vmatpush2.msra.mxu0 0.0
  %2440 = vmatprep.subr.mxu0 0.0
  %2441 = vmatpush2.msra.mxu0 0.0
  %2442 = vmatprep.subr.mxu0 0.0
  %2443 = vmatpush2.msra.mxu0 0.0
  %2444 = vmatprep.subr.mxu0 0.0
  %2445 = vmatpush2.msra.mxu0 0.0
  %2446 = vmatprep.subr.mxu0 0.0
  %2447 = vmatpush2.msra.mxu0 0.0
  %2448 = vmatprep.subr.mxu0 0.0
  %2449 = vmatpush2.msra.mxu0 0.0
  %2450 = vmatprep.subr.mxu0 0.0
  %2451 = vmatpush2.msra.mxu0 0.0
  %2452 = vmatprep.subr.mxu0 0.0
  %2453 = vmatpush2.msra.mxu0 0.0
  %2454 = vmatprep.subr.mxu0 0.0
  %2455 = vmatpush2.msra.mxu0 0.0
  %2456 = vmatprep.subr.mxu0 0.0
  %2457 = vmatpush2.msra.mxu0 0.0
  %2458 = vmatprep.subr.mxu0 0.0
  %2459 = vmatpush2.msra.mxu0 0.0
  %2460 = vmatprep.subr.mxu0 0.0
  %2461 = vmatpush2.msra.mxu0 0.0
  %2462 = vmatprep.subr.mxu0 0.0
  %2463 = vmatpush2.msra.mxu0 0.0
  %2464 = vmatprep.subr.mxu0 0.0
  %2465 = vmatpush2.msra.mxu0 0.0
  %2466 = vmatprep.mubr.f32.mxu0 0.0
  %2467 = vmatmul.mubr.f32.gmra.mxu0 %v2389
  %v2468 = vpop.f32.mrf.mxu0
  %v2469 = vadd.f32 0.0, %v2468
  %v2470 = vpop.f32.mrf.mxu0
  %2471 = vmatprep.mubr.f32.mxu0 0.0
  %2472 = vmatmul.mubr.f32.gmra.mxu0 %v2392
  %v2473 = vpop.f32.mrf.mxu0
  %v2474 = vadd.f32 0.0, %v2473
  %v2475 = vpop.f32.mrf.mxu0
  %2476 = vdwg.mxu0
  %2477 = vmatprep.subr.mxu0 0.0
  %2478 = vmatpush1.msra.mxu0 0.0
  %2479 = vmatprep.subr.mxu0 0.0
  %2480 = vmatpush1.msra.mxu0 0.0
  %2481 = vmatprep.subr.mxu0 0.0
  %2482 = vmatpush1.msra.mxu0 0.0
  %2483 = vmatprep.subr.mxu0 0.0
  %2484 = vmatpush1.msra.mxu0 0.0
  %2485 = vmatprep.subr.mxu0 0.0
  %2486 = vmatpush1.msra.mxu0 0.0
  %2487 = vmatprep.subr.mxu0 0.0
  %2488 = vmatpush1.msra.mxu0 0.0
  %2489 = vmatprep.subr.mxu0 0.0
  %2490 = vmatpush1.msra.mxu0 0.0
  %2491 = vmatprep.subr.mxu0 0.0
  %2492 = vmatpush1.msra.mxu0 0.0
  %2493 = vmatprep.subr.mxu0 0.0
  %2494 = vmatpush1.msra.mxu0 0.0
  %2495 = vmatprep.subr.mxu0 0.0
  %2496 = vmatpush1.msra.mxu0 0.0
  %2497 = vmatprep.subr.mxu0 0.0
  %2498 = vmatpush1.msra.mxu0 0.0
  %2499 = vmatprep.subr.mxu0 0.0
  %2500 = vmatpush1.msra.mxu0 0.0
  %2501 = vmatprep.subr.mxu0 0.0
  %2502 = vmatpush1.msra.mxu0 0.0
  %2503 = vmatprep.subr.mxu0 0.0
  %2504 = vmatpush1.msra.mxu0 0.0
  %2505 = vmatprep.subr.mxu0 %v2400
  %2506 = vmatpush1.msra.mxu0 %v2398
  %2507 = vmatprep.subr.mxu0 %v2368
  %2508 = vmatpush1.msra.mxu0 %v2380
  %2509 = vmatprep.subr.mxu0 0.0
  %2510 = vmatpush2.msra.mxu0 0.0
  %2511 = vmatprep.subr.mxu0 0.0
  %2512 = vmatpush2.msra.mxu0 0.0
  %2513 = vmatprep.subr.mxu0 0.0
  %2514 = vmatpush2.msra.mxu0 0.0
  %2515 = vmatprep.subr.mxu0 0.0
  %2516 = vmatpush2.msra.mxu0 0.0
  %2517 = vmatprep.subr.mxu0 0.0
  %2518 = vmatpush2.msra.mxu0 0.0
  %2519 = vmatprep.subr.mxu0 0.0
  %2520 = vmatpush2.msra.mxu0 0.0
  %2521 = vmatprep.subr.mxu0 0.0
  %2522 = vmatpush2.msra.mxu0 0.0
  %2523 = vmatprep.subr.mxu0 0.0
  %2524 = vmatpush2.msra.mxu0 0.0
  %2525 = vmatprep.subr.mxu0 0.0
  %2526 = vmatpush2.msra.mxu0 0.0
  %2527 = vmatprep.subr.mxu0 0.0
  %2528 = vmatpush2.msra.mxu0 0.0
  %2529 = vmatprep.subr.mxu0 0.0
  %2530 = vmatpush2.msra.mxu0 0.0
  %2531 = vmatprep.subr.mxu0 0.0
  %2532 = vmatpush2.msra.mxu0 0.0
  %2533 = vmatprep.subr.mxu0 0.0
  %2534 = vmatpush2.msra.mxu0 0.0
  %2535 = vmatprep.subr.mxu0 0.0
  %2536 = vmatpush2.msra.mxu0 0.0
  %2537 = vmatprep.subr.mxu0 0.0
  %2538 = vmatpush2.msra.mxu0 0.0
  %2539 = vmatprep.subr.mxu0 0.0
  %2540 = vmatpush2.msra.mxu0 0.0
  %2541 = vmatprep.mubr.f32.mxu0 0.0
  %2542 = vmatmul.mubr.f32.gmra.mxu0 %v2389
  %v2543 = vpop.f32.mrf.mxu0
  %v2544 = vadd.f32 0.0, %v2543
  %v2545 = vpop.f32.mrf.mxu0
  %v2546 = vadd.f32 0.0, %v2545
  %2547 = vmatprep.mubr.f32.mxu0 0.0
  %2548 = vmatmul.mubr.f32.gmra.mxu0 %v2392
  %v2549 = vpop.f32.mrf.mxu0
  %v2550 = vadd.f32 0.0, %v2549
  %v2551 = vpop.f32.mrf.mxu0
  %v2552 = vadd.f32 0.0, %v2551
  %2553 = vdwg.mxu0
  %v2554 = vadd.f32 %v2352, %v2469
  %v2555 = vadd.f32 %v2353, %v2544
  %v2556 = vadd.f32 %v2354, %v2546
  %v2557 = vadd.f32 %v2355, %v2474
  %v2558 = vadd.f32 %v2356, %v2550
  %v2559 = vadd.f32 %v2357, %v2552
  %s2560 = scalar_lea.vmem %s4, 112
  %v2561 = vld [vmem:[%s2560] sm:$0xff]
  %v2562 = vld [vmem:[%s2560 + $0x8] sm:$0x3]
  %2563 = vrot.lane.b32.xlu0 %v1166, 110
  %v2564 = vpop.permute.xlu0 %2563
  %2565 = vrot.lane.b32.xlu0 %v1167, 110
  %v2566 = vpop.permute.xlu0 %2565
  %2567 = vrot.lane.b32.xlu0 %v1168, 110
  %v2568 = vpop.permute.xlu0 %2567
  %2569 = vrot.lane.b32.xlu0 %v1169, 110
  %v2570 = vpop.permute.xlu0 %2569
  %2571 = vrot.lane.b32.xlu0 %v1171, 110
  %v2572 = vpop.permute.xlu0 %2571
  %2573 = vrot.lane.b32.xlu0 %v1172, 110
  %v2574 = vpop.permute.xlu0 %2573
  %2575 = vrot.lane.b32.xlu0 %v1173, 110
  %v2576 = vpop.permute.xlu0 %2575
  %2577 = vrot.lane.b32.xlu0 %v1174, 110
  %v2578 = vpop.permute.xlu0 %2577
  %vm2579 = vcmask 900096
  %v2580 = vsel %vm2579, %v2564, %v2566
  %v2581 = vsel %vm2579, %v2566, %v2568
  %v2582 = vsel %vm2579, %v2568, %v2570
  %v2583 = vsel %vm2579, %v2572, %v2574
  %v2584 = vsel %vm2579, %v2574, %v2576
  %v2585 = vsel %vm2579, %v2576, %v2578
  %v2591 = vsel %vm1216, %v2561, 0
  %v2594 = vsel %vm1216, %v2562, 0
  %v2596 = vsel %vm1223, %v2583, 0
  %v2598 = vsel %vm1223, %v2584, 0
  %v2600 = vsel %vm1223, %v2585, 0
  %v2602 = vsel %vm1223, %v2578, 0
  %2604 = vmatprep.subr.mxu0 0.0
  %2605 = vmatpush1.msra.mxu0 0.0
  %2606 = vmatprep.subr.mxu0 0.0
  %2607 = vmatpush1.msra.mxu0 0.0
  %2608 = vmatprep.subr.mxu0 0.0
  %2609 = vmatpush1.msra.mxu0 0.0
  %2610 = vmatprep.subr.mxu0 0.0
  %2611 = vmatpush1.msra.mxu0 0.0
  %2612 = vmatprep.subr.mxu0 0.0
  %2613 = vmatpush1.msra.mxu0 0.0
  %2614 = vmatprep.subr.mxu0 0.0
  %2615 = vmatpush1.msra.mxu0 0.0
  %2616 = vmatprep.subr.mxu0 0.0
  %2617 = vmatpush1.msra.mxu0 0.0
  %2618 = vmatprep.subr.mxu0 0.0
  %2619 = vmatpush1.msra.mxu0 0.0
  %2620 = vmatprep.subr.mxu0 0.0
  %2621 = vmatpush1.msra.mxu0 0.0
  %2622 = vmatprep.subr.mxu0 0.0
  %2623 = vmatpush1.msra.mxu0 0.0
  %2624 = vmatprep.subr.mxu0 0.0
  %2625 = vmatpush1.msra.mxu0 0.0
  %2626 = vmatprep.subr.mxu0 0.0
  %2627 = vmatpush1.msra.mxu0 0.0
  %2628 = vmatprep.subr.mxu0 0.0
  %2629 = vmatpush1.msra.mxu0 0.0
  %2630 = vmatprep.subr.mxu0 0.0
  %2631 = vmatpush1.msra.mxu0 0.0
  %2632 = vmatprep.subr.mxu0 %v2598
  %2633 = vmatpush1.msra.mxu0 %v2596
  %2634 = vmatprep.subr.mxu0 %v2581
  %2635 = vmatpush1.msra.mxu0 %v2580
  %2636 = vmatprep.subr.mxu0 0.0
  %2637 = vmatpush2.msra.mxu0 0.0
  %2638 = vmatprep.subr.mxu0 0.0
  %2639 = vmatpush2.msra.mxu0 0.0
  %2640 = vmatprep.subr.mxu0 0.0
  %2641 = vmatpush2.msra.mxu0 0.0
  %2642 = vmatprep.subr.mxu0 0.0
  %2643 = vmatpush2.msra.mxu0 0.0
  %2644 = vmatprep.subr.mxu0 0.0
  %2645 = vmatpush2.msra.mxu0 0.0
  %2646 = vmatprep.subr.mxu0 0.0
  %2647 = vmatpush2.msra.mxu0 0.0
  %2648 = vmatprep.subr.mxu0 0.0
  %2649 = vmatpush2.msra.mxu0 0.0
  %2650 = vmatprep.subr.mxu0 0.0
  %2651 = vmatpush2.msra.mxu0 0.0
  %2652 = vmatprep.subr.mxu0 0.0
  %2653 = vmatpush2.msra.mxu0 0.0
  %2654 = vmatprep.subr.mxu0 0.0
  %2655 = vmatpush2.msra.mxu0 0.0
  %2656 = vmatprep.subr.mxu0 0.0
  %2657 = vmatpush2.msra.mxu0 0.0
  %2658 = vmatprep.subr.mxu0 0.0
  %2659 = vmatpush2.msra.mxu0 0.0
  %2660 = vmatprep.subr.mxu0 0.0
  %2661 = vmatpush2.msra.mxu0 0.0
  %2662 = vmatprep.subr.mxu0 0.0
  %2663 = vmatpush2.msra.mxu0 0.0
  %2664 = vmatprep.subr.mxu0 0.0
  %2665 = vmatpush2.msra.mxu0 0.0
  %2666 = vmatprep.subr.mxu0 0.0
  %2667 = vmatpush2.msra.mxu0 0.0
  %2668 = vmatprep.mubr.f32.mxu0 0.0
  %2669 = vmatmul.mubr.f32.gmra.mxu0 %v2591
  %v2670 = vpop.f32.mrf.mxu0
  %v2671 = vadd.f32 0.0, %v2670
  %v2672 = vpop.f32.mrf.mxu0
  %2673 = vmatprep.mubr.f32.mxu0 0.0
  %2674 = vmatmul.mubr.f32.gmra.mxu0 %v2594
  %v2675 = vpop.f32.mrf.mxu0
  %v2676 = vadd.f32 0.0, %v2675
  %v2677 = vpop.f32.mrf.mxu0
  %2678 = vdwg.mxu0
  %2679 = vmatprep.subr.mxu0 0.0
  %2680 = vmatpush1.msra.mxu0 0.0
  %2681 = vmatprep.subr.mxu0 0.0
  %2682 = vmatpush1.msra.mxu0 0.0
  %2683 = vmatprep.subr.mxu0 0.0
  %2684 = vmatpush1.msra.mxu0 0.0
  %2685 = vmatprep.subr.mxu0 0.0
  %2686 = vmatpush1.msra.mxu0 0.0
  %2687 = vmatprep.subr.mxu0 0.0
  %2688 = vmatpush1.msra.mxu0 0.0
  %2689 = vmatprep.subr.mxu0 0.0
  %2690 = vmatpush1.msra.mxu0 0.0
  %2691 = vmatprep.subr.mxu0 0.0
  %2692 = vmatpush1.msra.mxu0 0.0
  %2693 = vmatprep.subr.mxu0 0.0
  %2694 = vmatpush1.msra.mxu0 0.0
  %2695 = vmatprep.subr.mxu0 0.0
  %2696 = vmatpush1.msra.mxu0 0.0
  %2697 = vmatprep.subr.mxu0 0.0
  %2698 = vmatpush1.msra.mxu0 0.0
  %2699 = vmatprep.subr.mxu0 0.0
  %2700 = vmatpush1.msra.mxu0 0.0
  %2701 = vmatprep.subr.mxu0 0.0
  %2702 = vmatpush1.msra.mxu0 0.0
  %2703 = vmatprep.subr.mxu0 0.0
  %2704 = vmatpush1.msra.mxu0 0.0
  %2705 = vmatprep.subr.mxu0 0.0
  %2706 = vmatpush1.msra.mxu0 0.0
  %2707 = vmatprep.subr.mxu0 %v2602
  %2708 = vmatpush1.msra.mxu0 %v2600
  %2709 = vmatprep.subr.mxu0 %v2570
  %2710 = vmatpush1.msra.mxu0 %v2582
  %2711 = vmatprep.subr.mxu0 0.0
  %2712 = vmatpush2.msra.mxu0 0.0
  %2713 = vmatprep.subr.mxu0 0.0
  %2714 = vmatpush2.msra.mxu0 0.0
  %2715 = vmatprep.subr.mxu0 0.0
  %2716 = vmatpush2.msra.mxu0 0.0
  %2717 = vmatprep.subr.mxu0 0.0
  %2718 = vmatpush2.msra.mxu0 0.0
  %2719 = vmatprep.subr.mxu0 0.0
  %2720 = vmatpush2.msra.mxu0 0.0
  %2721 = vmatprep.subr.mxu0 0.0
  %2722 = vmatpush2.msra.mxu0 0.0
  %2723 = vmatprep.subr.mxu0 0.0
  %2724 = vmatpush2.msra.mxu0 0.0
  %2725 = vmatprep.subr.mxu0 0.0
  %2726 = vmatpush2.msra.mxu0 0.0
  %2727 = vmatprep.subr.mxu0 0.0
  %2728 = vmatpush2.msra.mxu0 0.0
  %2729 = vmatprep.subr.mxu0 0.0
  %2730 = vmatpush2.msra.mxu0 0.0
  %2731 = vmatprep.subr.mxu0 0.0
  %2732 = vmatpush2.msra.mxu0 0.0
  %2733 = vmatprep.subr.mxu0 0.0
  %2734 = vmatpush2.msra.mxu0 0.0
  %2735 = vmatprep.subr.mxu0 0.0
  %2736 = vmatpush2.msra.mxu0 0.0
  %2737 = vmatprep.subr.mxu0 0.0
  %2738 = vmatpush2.msra.mxu0 0.0
  %2739 = vmatprep.subr.mxu0 0.0
  %2740 = vmatpush2.msra.mxu0 0.0
  %2741 = vmatprep.subr.mxu0 0.0
  %2742 = vmatpush2.msra.mxu0 0.0
  %2743 = vmatprep.mubr.f32.mxu0 0.0
  %2744 = vmatmul.mubr.f32.gmra.mxu0 %v2591
  %v2745 = vpop.f32.mrf.mxu0
  %v2746 = vadd.f32 0.0, %v2745
  %v2747 = vpop.f32.mrf.mxu0
  %v2748 = vadd.f32 0.0, %v2747
  %2749 = vmatprep.mubr.f32.mxu0 0.0
  %2750 = vmatmul.mubr.f32.gmra.mxu0 %v2594
  %v2751 = vpop.f32.mrf.mxu0
  %v2752 = vadd.f32 0.0, %v2751
  %v2753 = vpop.f32.mrf.mxu0
  %v2754 = vadd.f32 0.0, %v2753
  %2755 = vdwg.mxu0
  %v2756 = vadd.f32 %v2554, %v2671
  %v2757 = vadd.f32 %v2555, %v2746
  %v2758 = vadd.f32 %v2556, %v2748
  %v2759 = vadd.f32 %v2557, %v2676
  %v2760 = vadd.f32 %v2558, %v2752
  %v2761 = vadd.f32 %v2559, %v2754
  %s2762 = scalar_lea.vmem %s4, 128
  %v2763 = vld [vmem:[%s2762] sm:$0xff]
  %v2764 = vld [vmem:[%s2762 + $0x8] sm:$0x3]
  %2765 = vrot.lane.b32.xlu0 %v1166, 109
  %v2766 = vpop.permute.xlu0 %2765
  %2767 = vrot.lane.b32.xlu0 %v1167, 109
  %v2768 = vpop.permute.xlu0 %2767
  %2769 = vrot.lane.b32.xlu0 %v1168, 109
  %v2770 = vpop.permute.xlu0 %2769
  %2771 = vrot.lane.b32.xlu0 %v1169, 109
  %v2772 = vpop.permute.xlu0 %2771
  %2773 = vrot.lane.b32.xlu0 %v1171, 109
  %v2774 = vpop.permute.xlu0 %2773
  %2775 = vrot.lane.b32.xlu0 %v1172, 109
  %v2776 = vpop.permute.xlu0 %2775
  %2777 = vrot.lane.b32.xlu0 %v1173, 109
  %v2778 = vpop.permute.xlu0 %2777
  %2779 = vrot.lane.b32.xlu0 %v1174, 109
  %v2780 = vpop.permute.xlu0 %2779
  %vm2781 = vcmask 891904
  %v2782 = vsel %vm2781, %v2766, %v2768
  %v2783 = vsel %vm2781, %v2768, %v2770
  %v2784 = vsel %vm2781, %v2770, %v2772
  %v2785 = vsel %vm2781, %v2774, %v2776
  %v2786 = vsel %vm2781, %v2776, %v2778
  %v2787 = vsel %vm2781, %v2778, %v2780
  %v2793 = vsel %vm1216, %v2763, 0
  %v2796 = vsel %vm1216, %v2764, 0
  %v2798 = vsel %vm1223, %v2785, 0
  %v2800 = vsel %vm1223, %v2786, 0
  %v2802 = vsel %vm1223, %v2787, 0
  %v2804 = vsel %vm1223, %v2780, 0
  %2806 = vmatprep.subr.mxu0 0.0
  %2807 = vmatpush1.msra.mxu0 0.0
  %2808 = vmatprep.subr.mxu0 0.0
  %2809 = vmatpush1.msra.mxu0 0.0
  %2810 = vmatprep.subr.mxu0 0.0
  %2811 = vmatpush1.msra.mxu0 0.0
  %2812 = vmatprep.subr.mxu0 0.0
  %2813 = vmatpush1.msra.mxu0 0.0
  %2814 = vmatprep.subr.mxu0 0.0
  %2815 = vmatpush1.msra.mxu0 0.0
  %2816 = vmatprep.subr.mxu0 0.0
  %2817 = vmatpush1.msra.mxu0 0.0
  %2818 = vmatprep.subr.mxu0 0.0
  %2819 = vmatpush1.msra.mxu0 0.0
  %2820 = vmatprep.subr.mxu0 0.0
  %2821 = vmatpush1.msra.mxu0 0.0
  %2822 = vmatprep.subr.mxu0 0.0
  %2823 = vmatpush1.msra.mxu0 0.0
  %2824 = vmatprep.subr.mxu0 0.0
  %2825 = vmatpush1.msra.mxu0 0.0
  %2826 = vmatprep.subr.mxu0 0.0
  %2827 = vmatpush1.msra.mxu0 0.0
  %2828 = vmatprep.subr.mxu0 0.0
  %2829 = vmatpush1.msra.mxu0 0.0
  %2830 = vmatprep.subr.mxu0 0.0
  %2831 = vmatpush1.msra.mxu0 0.0
  %2832 = vmatprep.subr.mxu0 0.0
  %2833 = vmatpush1.msra.mxu0 0.0
  %2834 = vmatprep.subr.mxu0 %v2800
  %2835 = vmatpush1.msra.mxu0 %v2798
  %2836 = vmatprep.subr.mxu0 %v2783
  %2837 = vmatpush1.msra.mxu0 %v2782
  %2838 = vmatprep.subr.mxu0 0.0
  %2839 = vmatpush2.msra.mxu0 0.0
  %2840 = vmatprep.subr.mxu0 0.0
  %2841 = vmatpush2.msra.mxu0 0.0
  %2842 = vmatprep.subr.mxu0 0.0
  %2843 = vmatpush2.msra.mxu0 0.0
  %2844 = vmatprep.subr.mxu0 0.0
  %2845 = vmatpush2.msra.mxu0 0.0
  %2846 = vmatprep.subr.mxu0 0.0
  %2847 = vmatpush2.msra.mxu0 0.0
  %2848 = vmatprep.subr.mxu0 0.0
  %2849 = vmatpush2.msra.mxu0 0.0
  %2850 = vmatprep.subr.mxu0 0.0
  %2851 = vmatpush2.msra.mxu0 0.0
  %2852 = vmatprep.subr.mxu0 0.0
  %2853 = vmatpush2.msra.mxu0 0.0
  %2854 = vmatprep.subr.mxu0 0.0
  %2855 = vmatpush2.msra.mxu0 0.0
  %2856 = vmatprep.subr.mxu0 0.0
  %2857 = vmatpush2.msra.mxu0 0.0
  %2858 = vmatprep.subr.mxu0 0.0
  %2859 = vmatpush2.msra.mxu0 0.0
  %2860 = vmatprep.subr.mxu0 0.0
  %2861 = vmatpush2.msra.mxu0 0.0
  %2862 = vmatprep.subr.mxu0 0.0
  %2863 = vmatpush2.msra.mxu0 0.0
  %2864 = vmatprep.subr.mxu0 0.0
  %2865 = vmatpush2.msra.mxu0 0.0
  %2866 = vmatprep.subr.mxu0 0.0
  %2867 = vmatpush2.msra.mxu0 0.0
  %2868 = vmatprep.subr.mxu0 0.0
  %2869 = vmatpush2.msra.mxu0 0.0
  %2870 = vmatprep.mubr.f32.mxu0 0.0
  %2871 = vmatmul.mubr.f32.gmra.mxu0 %v2793
  %v2872 = vpop.f32.mrf.mxu0
  %v2873 = vadd.f32 0.0, %v2872
  %v2874 = vpop.f32.mrf.mxu0
  %2875 = vmatprep.mubr.f32.mxu0 0.0
  %2876 = vmatmul.mubr.f32.gmra.mxu0 %v2796
  %v2877 = vpop.f32.mrf.mxu0
  %v2878 = vadd.f32 0.0, %v2877
  %v2879 = vpop.f32.mrf.mxu0
  %2880 = vdwg.mxu0
  %2881 = vmatprep.subr.mxu0 0.0
  %2882 = vmatpush1.msra.mxu0 0.0
  %2883 = vmatprep.subr.mxu0 0.0
  %2884 = vmatpush1.msra.mxu0 0.0
  %2885 = vmatprep.subr.mxu0 0.0
  %2886 = vmatpush1.msra.mxu0 0.0
  %2887 = vmatprep.subr.mxu0 0.0
  %2888 = vmatpush1.msra.mxu0 0.0
  %2889 = vmatprep.subr.mxu0 0.0
  %2890 = vmatpush1.msra.mxu0 0.0
  %2891 = vmatprep.subr.mxu0 0.0
  %2892 = vmatpush1.msra.mxu0 0.0
  %2893 = vmatprep.subr.mxu0 0.0
  %2894 = vmatpush1.msra.mxu0 0.0
  %2895 = vmatprep.subr.mxu0 0.0
  %2896 = vmatpush1.msra.mxu0 0.0
  %2897 = vmatprep.subr.mxu0 0.0
  %2898 = vmatpush1.msra.mxu0 0.0
  %2899 = vmatprep.subr.mxu0 0.0
  %2900 = vmatpush1.msra.mxu0 0.0
  %2901 = vmatprep.subr.mxu0 0.0
  %2902 = vmatpush1.msra.mxu0 0.0
  %2903 = vmatprep.subr.mxu0 0.0
  %2904 = vmatpush1.msra.mxu0 0.0
  %2905 = vmatprep.subr.mxu0 0.0
  %2906 = vmatpush1.msra.mxu0 0.0
  %2907 = vmatprep.subr.mxu0 0.0
  %2908 = vmatpush1.msra.mxu0 0.0
  %2909 = vmatprep.subr.mxu0 %v2804
  %2910 = vmatpush1.msra.mxu0 %v2802
  %2911 = vmatprep.subr.mxu0 %v2772
  %2912 = vmatpush1.msra.mxu0 %v2784
  %2913 = vmatprep.subr.mxu0 0.0
  %2914 = vmatpush2.msra.mxu0 0.0
  %2915 = vmatprep.subr.mxu0 0.0
  %2916 = vmatpush2.msra.mxu0 0.0
  %2917 = vmatprep.subr.mxu0 0.0
  %2918 = vmatpush2.msra.mxu0 0.0
  %2919 = vmatprep.subr.mxu0 0.0
  %2920 = vmatpush2.msra.mxu0 0.0
  %2921 = vmatprep.subr.mxu0 0.0
  %2922 = vmatpush2.msra.mxu0 0.0
  %2923 = vmatprep.subr.mxu0 0.0
  %2924 = vmatpush2.msra.mxu0 0.0
  %2925 = vmatprep.subr.mxu0 0.0
  %2926 = vmatpush2.msra.mxu0 0.0
  %2927 = vmatprep.subr.mxu0 0.0
  %2928 = vmatpush2.msra.mxu0 0.0
  %2929 = vmatprep.subr.mxu0 0.0
  %2930 = vmatpush2.msra.mxu0 0.0
  %2931 = vmatprep.subr.mxu0 0.0
  %2932 = vmatpush2.msra.mxu0 0.0
  %2933 = vmatprep.subr.mxu0 0.0
  %2934 = vmatpush2.msra.mxu0 0.0
  %2935 = vmatprep.subr.mxu0 0.0
  %2936 = vmatpush2.msra.mxu0 0.0
  %2937 = vmatprep.subr.mxu0 0.0
  %2938 = vmatpush2.msra.mxu0 0.0
  %2939 = vmatprep.subr.mxu0 0.0
  %2940 = vmatpush2.msra.mxu0 0.0
  %2941 = vmatprep.subr.mxu0 0.0
  %2942 = vmatpush2.msra.mxu0 0.0
  %2943 = vmatprep.subr.mxu0 0.0
  %2944 = vmatpush2.msra.mxu0 0.0
  %2945 = vmatprep.mubr.f32.mxu0 0.0
  %2946 = vmatmul.mubr.f32.gmra.mxu0 %v2793
  %v2947 = vpop.f32.mrf.mxu0
  %v2948 = vadd.f32 0.0, %v2947
  %v2949 = vpop.f32.mrf.mxu0
  %v2950 = vadd.f32 0.0, %v2949
  %2951 = vmatprep.mubr.f32.mxu0 0.0
  %2952 = vmatmul.mubr.f32.gmra.mxu0 %v2796
  %v2953 = vpop.f32.mrf.mxu0
  %v2954 = vadd.f32 0.0, %v2953
  %v2955 = vpop.f32.mrf.mxu0
  %v2956 = vadd.f32 0.0, %v2955
  %2957 = vdwg.mxu0
  %v2958 = vadd.f32 %v2756, %v2873
  %v2959 = vadd.f32 %v2757, %v2948
  %v2960 = vadd.f32 %v2758, %v2950
  %v2961 = vadd.f32 %v2759, %v2878
  %v2962 = vadd.f32 %v2760, %v2954
  %v2963 = vadd.f32 %v2761, %v2956
  %s2964 = scalar_lea.vmem %s4, 144
  %v2965 = vld [vmem:[%s2964] sm:$0xff]
  %v2966 = vld [vmem:[%s2964 + $0x8] sm:$0x3]
  %2967 = vrot.lane.b32.xlu0 %v1166, 108
  %v2968 = vpop.permute.xlu0 %2967
  %2969 = vrot.lane.b32.xlu0 %v1167, 108
  %v2970 = vpop.permute.xlu0 %2969
  %2971 = vrot.lane.b32.xlu0 %v1168, 108
  %v2972 = vpop.permute.xlu0 %2971
  %2973 = vrot.lane.b32.xlu0 %v1169, 108
  %v2974 = vpop.permute.xlu0 %2973
  %2975 = vrot.lane.b32.xlu0 %v1171, 108
  %v2976 = vpop.permute.xlu0 %2975
  %2977 = vrot.lane.b32.xlu0 %v1172, 108
  %v2978 = vpop.permute.xlu0 %2977
  %2979 = vrot.lane.b32.xlu0 %v1173, 108
  %v2980 = vpop.permute.xlu0 %2979
  %2981 = vrot.lane.b32.xlu0 %v1174, 108
  %v2982 = vpop.permute.xlu0 %2981
  %vm2983 = vcmask 883712
  %v2984 = vsel %vm2983, %v2968, %v2970
  %v2985 = vsel %vm2983, %v2970, %v2972
  %v2986 = vsel %vm2983, %v2972, %v2974
  %v2987 = vsel %vm2983, %v2976, %v2978
  %v2988 = vsel %vm2983, %v2978, %v2980
  %v2989 = vsel %vm2983, %v2980, %v2982
  %v2995 = vsel %vm1216, %v2965, 0
  %v2998 = vsel %vm1216, %v2966, 0
  %v3000 = vsel %vm1223, %v2987, 0
  %v3002 = vsel %vm1223, %v2988, 0
  %v3004 = vsel %vm1223, %v2989, 0
  %v3006 = vsel %vm1223, %v2982, 0
  %3008 = vmatprep.subr.mxu0 0.0
  %3009 = vmatpush1.msra.mxu0 0.0
  %3010 = vmatprep.subr.mxu0 0.0
  %3011 = vmatpush1.msra.mxu0 0.0
  %3012 = vmatprep.subr.mxu0 0.0
  %3013 = vmatpush1.msra.mxu0 0.0
  %3014 = vmatprep.subr.mxu0 0.0
  %3015 = vmatpush1.msra.mxu0 0.0
  %3016 = vmatprep.subr.mxu0 0.0
  %3017 = vmatpush1.msra.mxu0 0.0
  %3018 = vmatprep.subr.mxu0 0.0
  %3019 = vmatpush1.msra.mxu0 0.0
  %3020 = vmatprep.subr.mxu0 0.0
  %3021 = vmatpush1.msra.mxu0 0.0
  %3022 = vmatprep.subr.mxu0 0.0
  %3023 = vmatpush1.msra.mxu0 0.0
  %3024 = vmatprep.subr.mxu0 0.0
  %3025 = vmatpush1.msra.mxu0 0.0
  %3026 = vmatprep.subr.mxu0 0.0
  %3027 = vmatpush1.msra.mxu0 0.0
  %3028 = vmatprep.subr.mxu0 0.0
  %3029 = vmatpush1.msra.mxu0 0.0
  %3030 = vmatprep.subr.mxu0 0.0
  %3031 = vmatpush1.msra.mxu0 0.0
  %3032 = vmatprep.subr.mxu0 0.0
  %3033 = vmatpush1.msra.mxu0 0.0
  %3034 = vmatprep.subr.mxu0 0.0
  %3035 = vmatpush1.msra.mxu0 0.0
  %3036 = vmatprep.subr.mxu0 %v3002
  %3037 = vmatpush1.msra.mxu0 %v3000
  %3038 = vmatprep.subr.mxu0 %v2985
  %3039 = vmatpush1.msra.mxu0 %v2984
  %3040 = vmatprep.subr.mxu0 0.0
  %3041 = vmatpush2.msra.mxu0 0.0
  %3042 = vmatprep.subr.mxu0 0.0
  %3043 = vmatpush2.msra.mxu0 0.0
  %3044 = vmatprep.subr.mxu0 0.0
  %3045 = vmatpush2.msra.mxu0 0.0
  %3046 = vmatprep.subr.mxu0 0.0
  %3047 = vmatpush2.msra.mxu0 0.0
  %3048 = vmatprep.subr.mxu0 0.0
  %3049 = vmatpush2.msra.mxu0 0.0
  %3050 = vmatprep.subr.mxu0 0.0
  %3051 = vmatpush2.msra.mxu0 0.0
  %3052 = vmatprep.subr.mxu0 0.0
  %3053 = vmatpush2.msra.mxu0 0.0
  %3054 = vmatprep.subr.mxu0 0.0
  %3055 = vmatpush2.msra.mxu0 0.0
  %3056 = vmatprep.subr.mxu0 0.0
  %3057 = vmatpush2.msra.mxu0 0.0
  %3058 = vmatprep.subr.mxu0 0.0
  %3059 = vmatpush2.msra.mxu0 0.0
  %3060 = vmatprep.subr.mxu0 0.0
  %3061 = vmatpush2.msra.mxu0 0.0
  %3062 = vmatprep.subr.mxu0 0.0
  %3063 = vmatpush2.msra.mxu0 0.0
  %3064 = vmatprep.subr.mxu0 0.0
  %3065 = vmatpush2.msra.mxu0 0.0
  %3066 = vmatprep.subr.mxu0 0.0
  %3067 = vmatpush2.msra.mxu0 0.0
  %3068 = vmatprep.subr.mxu0 0.0
  %3069 = vmatpush2.msra.mxu0 0.0
  %3070 = vmatprep.subr.mxu0 0.0
  %3071 = vmatpush2.msra.mxu0 0.0
  %3072 = vmatprep.mubr.f32.mxu0 0.0
  %3073 = vmatmul.mubr.f32.gmra.mxu0 %v2995
  %v3074 = vpop.f32.mrf.mxu0
  %v3075 = vadd.f32 0.0, %v3074
  %v3076 = vpop.f32.mrf.mxu0
  %3077 = vmatprep.mubr.f32.mxu0 0.0
  %3078 = vmatmul.mubr.f32.gmra.mxu0 %v2998
  %v3079 = vpop.f32.mrf.mxu0
  %v3080 = vadd.f32 0.0, %v3079
  %v3081 = vpop.f32.mrf.mxu0
  %3082 = vdwg.mxu0
  %3083 = vmatprep.subr.mxu0 0.0
  %3084 = vmatpush1.msra.mxu0 0.0
  %3085 = vmatprep.subr.mxu0 0.0
  %3086 = vmatpush1.msra.mxu0 0.0
  %3087 = vmatprep.subr.mxu0 0.0
  %3088 = vmatpush1.msra.mxu0 0.0
  %3089 = vmatprep.subr.mxu0 0.0
  %3090 = vmatpush1.msra.mxu0 0.0
  %3091 = vmatprep.subr.mxu0 0.0
  %3092 = vmatpush1.msra.mxu0 0.0
  %3093 = vmatprep.subr.mxu0 0.0
  %3094 = vmatpush1.msra.mxu0 0.0
  %3095 = vmatprep.subr.mxu0 0.0
  %3096 = vmatpush1.msra.mxu0 0.0
  %3097 = vmatprep.subr.mxu0 0.0
  %3098 = vmatpush1.msra.mxu0 0.0
  %3099 = vmatprep.subr.mxu0 0.0
  %3100 = vmatpush1.msra.mxu0 0.0
  %3101 = vmatprep.subr.mxu0 0.0
  %3102 = vmatpush1.msra.mxu0 0.0
  %3103 = vmatprep.subr.mxu0 0.0
  %3104 = vmatpush1.msra.mxu0 0.0
  %3105 = vmatprep.subr.mxu0 0.0
  %3106 = vmatpush1.msra.mxu0 0.0
  %3107 = vmatprep.subr.mxu0 0.0
  %3108 = vmatpush1.msra.mxu0 0.0
  %3109 = vmatprep.subr.mxu0 0.0
  %3110 = vmatpush1.msra.mxu0 0.0
  %3111 = vmatprep.subr.mxu0 %v3006
  %3112 = vmatpush1.msra.mxu0 %v3004
  %3113 = vmatprep.subr.mxu0 %v2974
  %3114 = vmatpush1.msra.mxu0 %v2986
  %3115 = vmatprep.subr.mxu0 0.0
  %3116 = vmatpush2.msra.mxu0 0.0
  %3117 = vmatprep.subr.mxu0 0.0
  %3118 = vmatpush2.msra.mxu0 0.0
  %3119 = vmatprep.subr.mxu0 0.0
  %3120 = vmatpush2.msra.mxu0 0.0
  %3121 = vmatprep.subr.mxu0 0.0
  %3122 = vmatpush2.msra.mxu0 0.0
  %3123 = vmatprep.subr.mxu0 0.0
  %3124 = vmatpush2.msra.mxu0 0.0
  %3125 = vmatprep.subr.mxu0 0.0
  %3126 = vmatpush2.msra.mxu0 0.0
  %3127 = vmatprep.subr.mxu0 0.0
  %3128 = vmatpush2.msra.mxu0 0.0
  %3129 = vmatprep.subr.mxu0 0.0
  %3130 = vmatpush2.msra.mxu0 0.0
  %3131 = vmatprep.subr.mxu0 0.0
  %3132 = vmatpush2.msra.mxu0 0.0
  %3133 = vmatprep.subr.mxu0 0.0
  %3134 = vmatpush2.msra.mxu0 0.0
  %3135 = vmatprep.subr.mxu0 0.0
  %3136 = vmatpush2.msra.mxu0 0.0
  %3137 = vmatprep.subr.mxu0 0.0
  %3138 = vmatpush2.msra.mxu0 0.0
  %3139 = vmatprep.subr.mxu0 0.0
  %3140 = vmatpush2.msra.mxu0 0.0
  %3141 = vmatprep.subr.mxu0 0.0
  %3142 = vmatpush2.msra.mxu0 0.0
  %3143 = vmatprep.subr.mxu0 0.0
  %3144 = vmatpush2.msra.mxu0 0.0
  %3145 = vmatprep.subr.mxu0 0.0
  %3146 = vmatpush2.msra.mxu0 0.0
  %3147 = vmatprep.mubr.f32.mxu0 0.0
  %3148 = vmatmul.mubr.f32.gmra.mxu0 %v2995
  %v3149 = vpop.f32.mrf.mxu0
  %v3150 = vadd.f32 0.0, %v3149
  %v3151 = vpop.f32.mrf.mxu0
  %v3152 = vadd.f32 0.0, %v3151
  %3153 = vmatprep.mubr.f32.mxu0 0.0
  %3154 = vmatmul.mubr.f32.gmra.mxu0 %v2998
  %v3155 = vpop.f32.mrf.mxu0
  %v3156 = vadd.f32 0.0, %v3155
  %v3157 = vpop.f32.mrf.mxu0
  %v3158 = vadd.f32 0.0, %v3157
  %3159 = vdwg.mxu0
  %v3160 = vadd.f32 %v2958, %v3075
  %v3161 = vadd.f32 %v2959, %v3150
  %v3162 = vadd.f32 %v2960, %v3152
  %v3163 = vadd.f32 %v2961, %v3080
  %v3164 = vadd.f32 %v2962, %v3156
  %v3165 = vadd.f32 %v2963, %v3158
  %s3166 = scalar_lea.vmem %s4, 160
  %v3167 = vld [vmem:[%s3166] sm:$0xff]
  %v3168 = vld [vmem:[%s3166 + $0x8] sm:$0x3]
  %3169 = vrot.lane.b32.xlu0 %v1166, 96
  %v3170 = vpop.permute.xlu0 %3169
  %3171 = vrot.lane.b32.xlu0 %v1167, 96
  %v3172 = vpop.permute.xlu0 %3171
  %3173 = vrot.lane.b32.xlu0 %v1168, 96
  %v3174 = vpop.permute.xlu0 %3173
  %3175 = vrot.lane.b32.xlu0 %v1169, 96
  %v3176 = vpop.permute.xlu0 %3175
  %3177 = vrot.lane.b32.xlu0 %v1171, 96
  %v3178 = vpop.permute.xlu0 %3177
  %3179 = vrot.lane.b32.xlu0 %v1172, 96
  %v3180 = vpop.permute.xlu0 %3179
  %3181 = vrot.lane.b32.xlu0 %v1173, 96
  %v3182 = vpop.permute.xlu0 %3181
  %3183 = vrot.lane.b32.xlu0 %v1174, 96
  %v3184 = vpop.permute.xlu0 %3183
  %vm3185 = vcmask 785408
  %v3186 = vsel %vm3185, %v3170, %v3172
  %v3187 = vsel %vm3185, %v3172, %v3174
  %v3188 = vsel %vm3185, %v3174, %v3176
  %v3189 = vsel %vm3185, %v3178, %v3180
  %v3190 = vsel %vm3185, %v3180, %v3182
  %v3191 = vsel %vm3185, %v3182, %v3184
  %v3197 = vsel %vm1216, %v3167, 0
  %v3200 = vsel %vm1216, %v3168, 0
  %v3202 = vsel %vm1223, %v3189, 0
  %v3204 = vsel %vm1223, %v3190, 0
  %v3206 = vsel %vm1223, %v3191, 0
  %v3208 = vsel %vm1223, %v3184, 0
  %3210 = vmatprep.subr.mxu0 0.0
  %3211 = vmatpush1.msra.mxu0 0.0
  %3212 = vmatprep.subr.mxu0 0.0
  %3213 = vmatpush1.msra.mxu0 0.0
  %3214 = vmatprep.subr.mxu0 0.0
  %3215 = vmatpush1.msra.mxu0 0.0
  %3216 = vmatprep.subr.mxu0 0.0
  %3217 = vmatpush1.msra.mxu0 0.0
  %3218 = vmatprep.subr.mxu0 0.0
  %3219 = vmatpush1.msra.mxu0 0.0
  %3220 = vmatprep.subr.mxu0 0.0
  %3221 = vmatpush1.msra.mxu0 0.0
  %3222 = vmatprep.subr.mxu0 0.0
  %3223 = vmatpush1.msra.mxu0 0.0
  %3224 = vmatprep.subr.mxu0 0.0
  %3225 = vmatpush1.msra.mxu0 0.0
  %3226 = vmatprep.subr.mxu0 0.0
  %3227 = vmatpush1.msra.mxu0 0.0
  %3228 = vmatprep.subr.mxu0 0.0
  %3229 = vmatpush1.msra.mxu0 0.0
  %3230 = vmatprep.subr.mxu0 0.0
  %3231 = vmatpush1.msra.mxu0 0.0
  %3232 = vmatprep.subr.mxu0 0.0
  %3233 = vmatpush1.msra.mxu0 0.0
  %3234 = vmatprep.subr.mxu0 0.0
  %3235 = vmatpush1.msra.mxu0 0.0
  %3236 = vmatprep.subr.mxu0 0.0
  %3237 = vmatpush1.msra.mxu0 0.0
  %3238 = vmatprep.subr.mxu0 %v3204
  %3239 = vmatpush1.msra.mxu0 %v3202
  %3240 = vmatprep.subr.mxu0 %v3187
  %3241 = vmatpush1.msra.mxu0 %v3186
  %3242 = vmatprep.subr.mxu0 0.0
  %3243 = vmatpush2.msra.mxu0 0.0
  %3244 = vmatprep.subr.mxu0 0.0
  %3245 = vmatpush2.msra.mxu0 0.0
  %3246 = vmatprep.subr.mxu0 0.0
  %3247 = vmatpush2.msra.mxu0 0.0
  %3248 = vmatprep.subr.mxu0 0.0
  %3249 = vmatpush2.msra.mxu0 0.0
  %3250 = vmatprep.subr.mxu0 0.0
  %3251 = vmatpush2.msra.mxu0 0.0
  %3252 = vmatprep.subr.mxu0 0.0
  %3253 = vmatpush2.msra.mxu0 0.0
  %3254 = vmatprep.subr.mxu0 0.0
  %3255 = vmatpush2.msra.mxu0 0.0
  %3256 = vmatprep.subr.mxu0 0.0
  %3257 = vmatpush2.msra.mxu0 0.0
  %3258 = vmatprep.subr.mxu0 0.0
  %3259 = vmatpush2.msra.mxu0 0.0
  %3260 = vmatprep.subr.mxu0 0.0
  %3261 = vmatpush2.msra.mxu0 0.0
  %3262 = vmatprep.subr.mxu0 0.0
  %3263 = vmatpush2.msra.mxu0 0.0
  %3264 = vmatprep.subr.mxu0 0.0
  %3265 = vmatpush2.msra.mxu0 0.0
  %3266 = vmatprep.subr.mxu0 0.0
  %3267 = vmatpush2.msra.mxu0 0.0
  %3268 = vmatprep.subr.mxu0 0.0
  %3269 = vmatpush2.msra.mxu0 0.0
  %3270 = vmatprep.subr.mxu0 0.0
  %3271 = vmatpush2.msra.mxu0 0.0
  %3272 = vmatprep.subr.mxu0 0.0
  %3273 = vmatpush2.msra.mxu0 0.0
  %3274 = vmatprep.mubr.f32.mxu0 0.0
  %3275 = vmatmul.mubr.f32.gmra.mxu0 %v3197
  %v3276 = vpop.f32.mrf.mxu0
  %v3277 = vadd.f32 0.0, %v3276
  %v3278 = vpop.f32.mrf.mxu0
  %3279 = vmatprep.mubr.f32.mxu0 0.0
  %3280 = vmatmul.mubr.f32.gmra.mxu0 %v3200
  %v3281 = vpop.f32.mrf.mxu0
  %v3282 = vadd.f32 0.0, %v3281
  %v3283 = vpop.f32.mrf.mxu0
  %3284 = vdwg.mxu0
  %3285 = vmatprep.subr.mxu0 0.0
  %3286 = vmatpush1.msra.mxu0 0.0
  %3287 = vmatprep.subr.mxu0 0.0
  %3288 = vmatpush1.msra.mxu0 0.0
  %3289 = vmatprep.subr.mxu0 0.0
  %3290 = vmatpush1.msra.mxu0 0.0
  %3291 = vmatprep.subr.mxu0 0.0
  %3292 = vmatpush1.msra.mxu0 0.0
  %3293 = vmatprep.subr.mxu0 0.0
  %3294 = vmatpush1.msra.mxu0 0.0
  %3295 = vmatprep.subr.mxu0 0.0
  %3296 = vmatpush1.msra.mxu0 0.0
  %3297 = vmatprep.subr.mxu0 0.0
  %3298 = vmatpush1.msra.mxu0 0.0
  %3299 = vmatprep.subr.mxu0 0.0
  %3300 = vmatpush1.msra.mxu0 0.0
  %3301 = vmatprep.subr.mxu0 0.0
  %3302 = vmatpush1.msra.mxu0 0.0
  %3303 = vmatprep.subr.mxu0 0.0
  %3304 = vmatpush1.msra.mxu0 0.0
  %3305 = vmatprep.subr.mxu0 0.0
  %3306 = vmatpush1.msra.mxu0 0.0
  %3307 = vmatprep.subr.mxu0 0.0
  %3308 = vmatpush1.msra.mxu0 0.0
  %3309 = vmatprep.subr.mxu0 0.0
  %3310 = vmatpush1.msra.mxu0 0.0
  %3311 = vmatprep.subr.mxu0 0.0
  %3312 = vmatpush1.msra.mxu0 0.0
  %3313 = vmatprep.subr.mxu0 %v3208
  %3314 = vmatpush1.msra.mxu0 %v3206
  %3315 = vmatprep.subr.mxu0 %v3176
  %3316 = vmatpush1.msra.mxu0 %v3188
  %3317 = vmatprep.subr.mxu0 0.0
  %3318 = vmatpush2.msra.mxu0 0.0
  %3319 = vmatprep.subr.mxu0 0.0
  %3320 = vmatpush2.msra.mxu0 0.0
  %3321 = vmatprep.subr.mxu0 0.0
  %3322 = vmatpush2.msra.mxu0 0.0
  %3323 = vmatprep.subr.mxu0 0.0
  %3324 = vmatpush2.msra.mxu0 0.0
  %3325 = vmatprep.subr.mxu0 0.0
  %3326 = vmatpush2.msra.mxu0 0.0
  %3327 = vmatprep.subr.mxu0 0.0
  %3328 = vmatpush2.msra.mxu0 0.0
  %3329 = vmatprep.subr.mxu0 0.0
  %3330 = vmatpush2.msra.mxu0 0.0
  %3331 = vmatprep.subr.mxu0 0.0
  %3332 = vmatpush2.msra.mxu0 0.0
  %3333 = vmatprep.subr.mxu0 0.0
  %3334 = vmatpush2.msra.mxu0 0.0
  %3335 = vmatprep.subr.mxu0 0.0
  %3336 = vmatpush2.msra.mxu0 0.0
  %3337 = vmatprep.subr.mxu0 0.0
  %3338 = vmatpush2.msra.mxu0 0.0
  %3339 = vmatprep.subr.mxu0 0.0
  %3340 = vmatpush2.msra.mxu0 0.0
  %3341 = vmatprep.subr.mxu0 0.0
  %3342 = vmatpush2.msra.mxu0 0.0
  %3343 = vmatprep.subr.mxu0 0.0
  %3344 = vmatpush2.msra.mxu0 0.0
  %3345 = vmatprep.subr.mxu0 0.0
  %3346 = vmatpush2.msra.mxu0 0.0
  %3347 = vmatprep.subr.mxu0 0.0
  %3348 = vmatpush2.msra.mxu0 0.0
  %3349 = vmatprep.mubr.f32.mxu0 0.0
  %3350 = vmatmul.mubr.f32.gmra.mxu0 %v3197
  %v3351 = vpop.f32.mrf.mxu0
  %v3352 = vadd.f32 0.0, %v3351
  %v3353 = vpop.f32.mrf.mxu0
  %v3354 = vadd.f32 0.0, %v3353
  %3355 = vmatprep.mubr.f32.mxu0 0.0
  %3356 = vmatmul.mubr.f32.gmra.mxu0 %v3200
  %v3357 = vpop.f32.mrf.mxu0
  %v3358 = vadd.f32 0.0, %v3357
  %v3359 = vpop.f32.mrf.mxu0
  %v3360 = vadd.f32 0.0, %v3359
  %3361 = vdwg.mxu0
  %v3362 = vadd.f32 %v3160, %v3277
  %v3363 = vadd.f32 %v3161, %v3352
  %v3364 = vadd.f32 %v3162, %v3354
  %v3365 = vadd.f32 %v3163, %v3282
  %v3366 = vadd.f32 %v3164, %v3358
  %v3367 = vadd.f32 %v3165, %v3360
  %s3368 = scalar_lea.vmem %s4, 176
  %v3369 = vld [vmem:[%s3368] sm:$0xff]
  %v3370 = vld [vmem:[%s3368 + $0x8] sm:$0x3]
  %3371 = vrot.lane.b32.xlu0 %v1166, 95
  %v3372 = vpop.permute.xlu0 %3371
  %3373 = vrot.lane.b32.xlu0 %v1167, 95
  %v3374 = vpop.permute.xlu0 %3373
  %3375 = vrot.lane.b32.xlu0 %v1168, 95
  %v3376 = vpop.permute.xlu0 %3375
  %3377 = vrot.lane.b32.xlu0 %v1169, 95
  %v3378 = vpop.permute.xlu0 %3377
  %3379 = vrot.lane.b32.xlu0 %v1171, 95
  %v3380 = vpop.permute.xlu0 %3379
  %3381 = vrot.lane.b32.xlu0 %v1172, 95
  %v3382 = vpop.permute.xlu0 %3381
  %3383 = vrot.lane.b32.xlu0 %v1173, 95
  %v3384 = vpop.permute.xlu0 %3383
  %3385 = vrot.lane.b32.xlu0 %v1174, 95
  %v3386 = vpop.permute.xlu0 %3385
  %vm3387 = vcmask 777216
  %v3388 = vsel %vm3387, %v3372, %v3374
  %v3389 = vsel %vm3387, %v3374, %v3376
  %v3390 = vsel %vm3387, %v3376, %v3378
  %v3391 = vsel %vm3387, %v3380, %v3382
  %v3392 = vsel %vm3387, %v3382, %v3384
  %v3393 = vsel %vm3387, %v3384, %v3386
  %v3399 = vsel %vm1216, %v3369, 0
  %v3402 = vsel %vm1216, %v3370, 0
  %v3404 = vsel %vm1223, %v3391, 0
  %v3406 = vsel %vm1223, %v3392, 0
  %v3408 = vsel %vm1223, %v3393, 0
  %v3410 = vsel %vm1223, %v3386, 0
  %3412 = vmatprep.subr.mxu0 0.0
  %3413 = vmatpush1.msra.mxu0 0.0
  %3414 = vmatprep.subr.mxu0 0.0
  %3415 = vmatpush1.msra.mxu0 0.0
  %3416 = vmatprep.subr.mxu0 0.0
  %3417 = vmatpush1.msra.mxu0 0.0
  %3418 = vmatprep.subr.mxu0 0.0
  %3419 = vmatpush1.msra.mxu0 0.0
  %3420 = vmatprep.subr.mxu0 0.0
  %3421 = vmatpush1.msra.mxu0 0.0
  %3422 = vmatprep.subr.mxu0 0.0
  %3423 = vmatpush1.msra.mxu0 0.0
  %3424 = vmatprep.subr.mxu0 0.0
  %3425 = vmatpush1.msra.mxu0 0.0
  %3426 = vmatprep.subr.mxu0 0.0
  %3427 = vmatpush1.msra.mxu0 0.0
  %3428 = vmatprep.subr.mxu0 0.0
  %3429 = vmatpush1.msra.mxu0 0.0
  %3430 = vmatprep.subr.mxu0 0.0
  %3431 = vmatpush1.msra.mxu0 0.0
  %3432 = vmatprep.subr.mxu0 0.0
  %3433 = vmatpush1.msra.mxu0 0.0
  %3434 = vmatprep.subr.mxu0 0.0
  %3435 = vmatpush1.msra.mxu0 0.0
  %3436 = vmatprep.subr.mxu0 0.0
  %3437 = vmatpush1.msra.mxu0 0.0
  %3438 = vmatprep.subr.mxu0 0.0
  %3439 = vmatpush1.msra.mxu0 0.0
  %3440 = vmatprep.subr.mxu0 %v3406
  %3441 = vmatpush1.msra.mxu0 %v3404
  %3442 = vmatprep.subr.mxu0 %v3389
  %3443 = vmatpush1.msra.mxu0 %v3388
  %3444 = vmatprep.subr.mxu0 0.0
  %3445 = vmatpush2.msra.mxu0 0.0
  %3446 = vmatprep.subr.mxu0 0.0
  %3447 = vmatpush2.msra.mxu0 0.0
  %3448 = vmatprep.subr.mxu0 0.0
  %3449 = vmatpush2.msra.mxu0 0.0
  %3450 = vmatprep.subr.mxu0 0.0
  %3451 = vmatpush2.msra.mxu0 0.0
  %3452 = vmatprep.subr.mxu0 0.0
  %3453 = vmatpush2.msra.mxu0 0.0
  %3454 = vmatprep.subr.mxu0 0.0
  %3455 = vmatpush2.msra.mxu0 0.0
  %3456 = vmatprep.subr.mxu0 0.0
  %3457 = vmatpush2.msra.mxu0 0.0
  %3458 = vmatprep.subr.mxu0 0.0
  %3459 = vmatpush2.msra.mxu0 0.0
  %3460 = vmatprep.subr.mxu0 0.0
  %3461 = vmatpush2.msra.mxu0 0.0
  %3462 = vmatprep.subr.mxu0 0.0
  %3463 = vmatpush2.msra.mxu0 0.0
  %3464 = vmatprep.subr.mxu0 0.0
  %3465 = vmatpush2.msra.mxu0 0.0
  %3466 = vmatprep.subr.mxu0 0.0
  %3467 = vmatpush2.msra.mxu0 0.0
  %3468 = vmatprep.subr.mxu0 0.0
  %3469 = vmatpush2.msra.mxu0 0.0
  %3470 = vmatprep.subr.mxu0 0.0
  %3471 = vmatpush2.msra.mxu0 0.0
  %3472 = vmatprep.subr.mxu0 0.0
  %3473 = vmatpush2.msra.mxu0 0.0
  %3474 = vmatprep.subr.mxu0 0.0
  %3475 = vmatpush2.msra.mxu0 0.0
  %3476 = vmatprep.mubr.f32.mxu0 0.0
  %3477 = vmatmul.mubr.f32.gmra.mxu0 %v3399
  %v3478 = vpop.f32.mrf.mxu0
  %v3479 = vadd.f32 0.0, %v3478
  %v3480 = vpop.f32.mrf.mxu0
  %3481 = vmatprep.mubr.f32.mxu0 0.0
  %3482 = vmatmul.mubr.f32.gmra.mxu0 %v3402
  %v3483 = vpop.f32.mrf.mxu0
  %v3484 = vadd.f32 0.0, %v3483
  %v3485 = vpop.f32.mrf.mxu0
  %3486 = vdwg.mxu0
  %3487 = vmatprep.subr.mxu0 0.0
  %3488 = vmatpush1.msra.mxu0 0.0
  %3489 = vmatprep.subr.mxu0 0.0
  %3490 = vmatpush1.msra.mxu0 0.0
  %3491 = vmatprep.subr.mxu0 0.0
  %3492 = vmatpush1.msra.mxu0 0.0
  %3493 = vmatprep.subr.mxu0 0.0
  %3494 = vmatpush1.msra.mxu0 0.0
  %3495 = vmatprep.subr.mxu0 0.0
  %3496 = vmatpush1.msra.mxu0 0.0
  %3497 = vmatprep.subr.mxu0 0.0
  %3498 = vmatpush1.msra.mxu0 0.0
  %3499 = vmatprep.subr.mxu0 0.0
  %3500 = vmatpush1.msra.mxu0 0.0
  %3501 = vmatprep.subr.mxu0 0.0
  %3502 = vmatpush1.msra.mxu0 0.0
  %3503 = vmatprep.subr.mxu0 0.0
  %3504 = vmatpush1.msra.mxu0 0.0
  %3505 = vmatprep.subr.mxu0 0.0
  %3506 = vmatpush1.msra.mxu0 0.0
  %3507 = vmatprep.subr.mxu0 0.0
  %3508 = vmatpush1.msra.mxu0 0.0
  %3509 = vmatprep.subr.mxu0 0.0
  %3510 = vmatpush1.msra.mxu0 0.0
  %3511 = vmatprep.subr.mxu0 0.0
  %3512 = vmatpush1.msra.mxu0 0.0
  %3513 = vmatprep.subr.mxu0 0.0
  %3514 = vmatpush1.msra.mxu0 0.0
  %3515 = vmatprep.subr.mxu0 %v3410
  %3516 = vmatpush1.msra.mxu0 %v3408
  %3517 = vmatprep.subr.mxu0 %v3378
  %3518 = vmatpush1.msra.mxu0 %v3390
  %3519 = vmatprep.subr.mxu0 0.0
  %3520 = vmatpush2.msra.mxu0 0.0
  %3521 = vmatprep.subr.mxu0 0.0
  %3522 = vmatpush2.msra.mxu0 0.0
  %3523 = vmatprep.subr.mxu0 0.0
  %3524 = vmatpush2.msra.mxu0 0.0
  %3525 = vmatprep.subr.mxu0 0.0
  %3526 = vmatpush2.msra.mxu0 0.0
  %3527 = vmatprep.subr.mxu0 0.0
  %3528 = vmatpush2.msra.mxu0 0.0
  %3529 = vmatprep.subr.mxu0 0.0
  %3530 = vmatpush2.msra.mxu0 0.0
  %3531 = vmatprep.subr.mxu0 0.0
  %3532 = vmatpush2.msra.mxu0 0.0
  %3533 = vmatprep.subr.mxu0 0.0
  %3534 = vmatpush2.msra.mxu0 0.0
  %3535 = vmatprep.subr.mxu0 0.0
  %3536 = vmatpush2.msra.mxu0 0.0
  %3537 = vmatprep.subr.mxu0 0.0
  %3538 = vmatpush2.msra.mxu0 0.0
  %3539 = vmatprep.subr.mxu0 0.0
  %3540 = vmatpush2.msra.mxu0 0.0
  %3541 = vmatprep.subr.mxu0 0.0
  %3542 = vmatpush2.msra.mxu0 0.0
  %3543 = vmatprep.subr.mxu0 0.0
  %3544 = vmatpush2.msra.mxu0 0.0
  %3545 = vmatprep.subr.mxu0 0.0
  %3546 = vmatpush2.msra.mxu0 0.0
  %3547 = vmatprep.subr.mxu0 0.0
  %3548 = vmatpush2.msra.mxu0 0.0
  %3549 = vmatprep.subr.mxu0 0.0
  %3550 = vmatpush2.msra.mxu0 0.0
  %3551 = vmatprep.mubr.f32.mxu0 0.0
  %3552 = vmatmul.mubr.f32.gmra.mxu0 %v3399
  %v3553 = vpop.f32.mrf.mxu0
  %v3554 = vadd.f32 0.0, %v3553
  %v3555 = vpop.f32.mrf.mxu0
  %v3556 = vadd.f32 0.0, %v3555
  %3557 = vmatprep.mubr.f32.mxu0 0.0
  %3558 = vmatmul.mubr.f32.gmra.mxu0 %v3402
  %v3559 = vpop.f32.mrf.mxu0
  %v3560 = vadd.f32 0.0, %v3559
  %v3561 = vpop.f32.mrf.mxu0
  %v3562 = vadd.f32 0.0, %v3561
  %3563 = vdwg.mxu0
  %v3564 = vadd.f32 %v3362, %v3479
  %v3565 = vadd.f32 %v3363, %v3554
  %v3566 = vadd.f32 %v3364, %v3556
  %v3567 = vadd.f32 %v3365, %v3484
  %v3568 = vadd.f32 %v3366, %v3560
  %v3569 = vadd.f32 %v3367, %v3562
  %s3570 = scalar_lea.vmem %s4, 192
  %v3571 = vld [vmem:[%s3570] sm:$0xff]
  %v3572 = vld [vmem:[%s3570 + $0x8] sm:$0x3]
  %3573 = vrot.lane.b32.xlu0 %v1166, 94
  %v3574 = vpop.permute.xlu0 %3573
  %3575 = vrot.lane.b32.xlu0 %v1167, 94
  %v3576 = vpop.permute.xlu0 %3575
  %3577 = vrot.lane.b32.xlu0 %v1168, 94
  %v3578 = vpop.permute.xlu0 %3577
  %3579 = vrot.lane.b32.xlu0 %v1169, 94
  %v3580 = vpop.permute.xlu0 %3579
  %3581 = vrot.lane.b32.xlu0 %v1171, 94
  %v3582 = vpop.permute.xlu0 %3581
  %3583 = vrot.lane.b32.xlu0 %v1172, 94
  %v3584 = vpop.permute.xlu0 %3583
  %3585 = vrot.lane.b32.xlu0 %v1173, 94
  %v3586 = vpop.permute.xlu0 %3585
  %3587 = vrot.lane.b32.xlu0 %v1174, 94
  %v3588 = vpop.permute.xlu0 %3587
  %vm3589 = vcmask 769024
  %v3590 = vsel %vm3589, %v3574, %v3576
  %v3591 = vsel %vm3589, %v3576, %v3578
  %v3592 = vsel %vm3589, %v3578, %v3580
  %v3593 = vsel %vm3589, %v3582, %v3584
  %v3594 = vsel %vm3589, %v3584, %v3586
  %v3595 = vsel %vm3589, %v3586, %v3588
  %v3601 = vsel %vm1216, %v3571, 0
  %v3604 = vsel %vm1216, %v3572, 0
  %v3606 = vsel %vm1223, %v3593, 0
  %v3608 = vsel %vm1223, %v3594, 0
  %v3610 = vsel %vm1223, %v3595, 0
  %v3612 = vsel %vm1223, %v3588, 0
  %3614 = vmatprep.subr.mxu0 0.0
  %3615 = vmatpush1.msra.mxu0 0.0
  %3616 = vmatprep.subr.mxu0 0.0
  %3617 = vmatpush1.msra.mxu0 0.0
  %3618 = vmatprep.subr.mxu0 0.0
  %3619 = vmatpush1.msra.mxu0 0.0
  %3620 = vmatprep.subr.mxu0 0.0
  %3621 = vmatpush1.msra.mxu0 0.0
  %3622 = vmatprep.subr.mxu0 0.0
  %3623 = vmatpush1.msra.mxu0 0.0
  %3624 = vmatprep.subr.mxu0 0.0
  %3625 = vmatpush1.msra.mxu0 0.0
  %3626 = vmatprep.subr.mxu0 0.0
  %3627 = vmatpush1.msra.mxu0 0.0
  %3628 = vmatprep.subr.mxu0 0.0
  %3629 = vmatpush1.msra.mxu0 0.0
  %3630 = vmatprep.subr.mxu0 0.0
  %3631 = vmatpush1.msra.mxu0 0.0
  %3632 = vmatprep.subr.mxu0 0.0
  %3633 = vmatpush1.msra.mxu0 0.0
  %3634 = vmatprep.subr.mxu0 0.0
  %3635 = vmatpush1.msra.mxu0 0.0
  %3636 = vmatprep.subr.mxu0 0.0
  %3637 = vmatpush1.msra.mxu0 0.0
  %3638 = vmatprep.subr.mxu0 0.0
  %3639 = vmatpush1.msra.mxu0 0.0
  %3640 = vmatprep.subr.mxu0 0.0
  %3641 = vmatpush1.msra.mxu0 0.0
  %3642 = vmatprep.subr.mxu0 %v3608
  %3643 = vmatpush1.msra.mxu0 %v3606
  %3644 = vmatprep.subr.mxu0 %v3591
  %3645 = vmatpush1.msra.mxu0 %v3590
  %3646 = vmatprep.subr.mxu0 0.0
  %3647 = vmatpush2.msra.mxu0 0.0
  %3648 = vmatprep.subr.mxu0 0.0
  %3649 = vmatpush2.msra.mxu0 0.0
  %3650 = vmatprep.subr.mxu0 0.0
  %3651 = vmatpush2.msra.mxu0 0.0
  %3652 = vmatprep.subr.mxu0 0.0
  %3653 = vmatpush2.msra.mxu0 0.0
  %3654 = vmatprep.subr.mxu0 0.0
  %3655 = vmatpush2.msra.mxu0 0.0
  %3656 = vmatprep.subr.mxu0 0.0
  %3657 = vmatpush2.msra.mxu0 0.0
  %3658 = vmatprep.subr.mxu0 0.0
  %3659 = vmatpush2.msra.mxu0 0.0
  %3660 = vmatprep.subr.mxu0 0.0
  %3661 = vmatpush2.msra.mxu0 0.0
  %3662 = vmatprep.subr.mxu0 0.0
  %3663 = vmatpush2.msra.mxu0 0.0
  %3664 = vmatprep.subr.mxu0 0.0
  %3665 = vmatpush2.msra.mxu0 0.0
  %3666 = vmatprep.subr.mxu0 0.0
  %3667 = vmatpush2.msra.mxu0 0.0
  %3668 = vmatprep.subr.mxu0 0.0
  %3669 = vmatpush2.msra.mxu0 0.0
  %3670 = vmatprep.subr.mxu0 0.0
  %3671 = vmatpush2.msra.mxu0 0.0
  %3672 = vmatprep.subr.mxu0 0.0
  %3673 = vmatpush2.msra.mxu0 0.0
  %3674 = vmatprep.subr.mxu0 0.0
  %3675 = vmatpush2.msra.mxu0 0.0
  %3676 = vmatprep.subr.mxu0 0.0
  %3677 = vmatpush2.msra.mxu0 0.0
  %3678 = vmatprep.mubr.f32.mxu0 0.0
  %3679 = vmatmul.mubr.f32.gmra.mxu0 %v3601
  %v3680 = vpop.f32.mrf.mxu0
  %v3681 = vadd.f32 0.0, %v3680
  %v3682 = vpop.f32.mrf.mxu0
  %3683 = vmatprep.mubr.f32.mxu0 0.0
  %3684 = vmatmul.mubr.f32.gmra.mxu0 %v3604
  %v3685 = vpop.f32.mrf.mxu0
  %v3686 = vadd.f32 0.0, %v3685
  %v3687 = vpop.f32.mrf.mxu0
  %3688 = vdwg.mxu0
  %3689 = vmatprep.subr.mxu0 0.0
  %3690 = vmatpush1.msra.mxu0 0.0
  %3691 = vmatprep.subr.mxu0 0.0
  %3692 = vmatpush1.msra.mxu0 0.0
  %3693 = vmatprep.subr.mxu0 0.0
  %3694 = vmatpush1.msra.mxu0 0.0
  %3695 = vmatprep.subr.mxu0 0.0
  %3696 = vmatpush1.msra.mxu0 0.0
  %3697 = vmatprep.subr.mxu0 0.0
  %3698 = vmatpush1.msra.mxu0 0.0
  %3699 = vmatprep.subr.mxu0 0.0
  %3700 = vmatpush1.msra.mxu0 0.0
  %3701 = vmatprep.subr.mxu0 0.0
  %3702 = vmatpush1.msra.mxu0 0.0
  %3703 = vmatprep.subr.mxu0 0.0
  %3704 = vmatpush1.msra.mxu0 0.0
  %3705 = vmatprep.subr.mxu0 0.0
  %3706 = vmatpush1.msra.mxu0 0.0
  %3707 = vmatprep.subr.mxu0 0.0
  %3708 = vmatpush1.msra.mxu0 0.0
  %3709 = vmatprep.subr.mxu0 0.0
  %3710 = vmatpush1.msra.mxu0 0.0
  %3711 = vmatprep.subr.mxu0 0.0
  %3712 = vmatpush1.msra.mxu0 0.0
  %3713 = vmatprep.subr.mxu0 0.0
  %3714 = vmatpush1.msra.mxu0 0.0
  %3715 = vmatprep.subr.mxu0 0.0
  %3716 = vmatpush1.msra.mxu0 0.0
  %3717 = vmatprep.subr.mxu0 %v3612
  %3718 = vmatpush1.msra.mxu0 %v3610
  %3719 = vmatprep.subr.mxu0 %v3580
  %3720 = vmatpush1.msra.mxu0 %v3592
  %3721 = vmatprep.subr.mxu0 0.0
  %3722 = vmatpush2.msra.mxu0 0.0
  %3723 = vmatprep.subr.mxu0 0.0
  %3724 = vmatpush2.msra.mxu0 0.0
  %3725 = vmatprep.subr.mxu0 0.0
  %3726 = vmatpush2.msra.mxu0 0.0
  %3727 = vmatprep.subr.mxu0 0.0
  %3728 = vmatpush2.msra.mxu0 0.0
  %3729 = vmatprep.subr.mxu0 0.0
  %3730 = vmatpush2.msra.mxu0 0.0
  %3731 = vmatprep.subr.mxu0 0.0
  %3732 = vmatpush2.msra.mxu0 0.0
  %3733 = vmatprep.subr.mxu0 0.0
  %3734 = vmatpush2.msra.mxu0 0.0
  %3735 = vmatprep.subr.mxu0 0.0
  %3736 = vmatpush2.msra.mxu0 0.0
  %3737 = vmatprep.subr.mxu0 0.0
  %3738 = vmatpush2.msra.mxu0 0.0
  %3739 = vmatprep.subr.mxu0 0.0
  %3740 = vmatpush2.msra.mxu0 0.0
  %3741 = vmatprep.subr.mxu0 0.0
  %3742 = vmatpush2.msra.mxu0 0.0
  %3743 = vmatprep.subr.mxu0 0.0
  %3744 = vmatpush2.msra.mxu0 0.0
  %3745 = vmatprep.subr.mxu0 0.0
  %3746 = vmatpush2.msra.mxu0 0.0
  %3747 = vmatprep.subr.mxu0 0.0
  %3748 = vmatpush2.msra.mxu0 0.0
  %3749 = vmatprep.subr.mxu0 0.0
  %3750 = vmatpush2.msra.mxu0 0.0
  %3751 = vmatprep.subr.mxu0 0.0
  %3752 = vmatpush2.msra.mxu0 0.0
  %3753 = vmatprep.mubr.f32.mxu0 0.0
  %3754 = vmatmul.mubr.f32.gmra.mxu0 %v3601
  %v3755 = vpop.f32.mrf.mxu0
  %v3756 = vadd.f32 0.0, %v3755
  %v3757 = vpop.f32.mrf.mxu0
  %v3758 = vadd.f32 0.0, %v3757
  %3759 = vmatprep.mubr.f32.mxu0 0.0
  %3760 = vmatmul.mubr.f32.gmra.mxu0 %v3604
  %v3761 = vpop.f32.mrf.mxu0
  %v3762 = vadd.f32 0.0, %v3761
  %v3763 = vpop.f32.mrf.mxu0
  %v3764 = vadd.f32 0.0, %v3763
  %3765 = vdwg.mxu0
  %v3766 = vadd.f32 %v3564, %v3681
  %v3767 = vadd.f32 %v3565, %v3756
  %v3768 = vadd.f32 %v3566, %v3758
  %v3769 = vadd.f32 %v3567, %v3686
  %v3770 = vadd.f32 %v3568, %v3762
  %v3771 = vadd.f32 %v3569, %v3764
  %s3772 = scalar_lea.vmem %s4, 208
  %v3773 = vld [vmem:[%s3772] sm:$0xff]
  %v3774 = vld [vmem:[%s3772 + $0x8] sm:$0x3]
  %3775 = vrot.lane.b32.xlu0 %v1166, 93
  %v3776 = vpop.permute.xlu0 %3775
  %3777 = vrot.lane.b32.xlu0 %v1167, 93
  %v3778 = vpop.permute.xlu0 %3777
  %3779 = vrot.lane.b32.xlu0 %v1168, 93
  %v3780 = vpop.permute.xlu0 %3779
  %3781 = vrot.lane.b32.xlu0 %v1169, 93
  %v3782 = vpop.permute.xlu0 %3781
  %3783 = vrot.lane.b32.xlu0 %v1171, 93
  %v3784 = vpop.permute.xlu0 %3783
  %3785 = vrot.lane.b32.xlu0 %v1172, 93
  %v3786 = vpop.permute.xlu0 %3785
  %3787 = vrot.lane.b32.xlu0 %v1173, 93
  %v3788 = vpop.permute.xlu0 %3787
  %3789 = vrot.lane.b32.xlu0 %v1174, 93
  %v3790 = vpop.permute.xlu0 %3789
  %vm3791 = vcmask 760832
  %v3792 = vsel %vm3791, %v3776, %v3778
  %v3793 = vsel %vm3791, %v3778, %v3780
  %v3794 = vsel %vm3791, %v3780, %v3782
  %v3795 = vsel %vm3791, %v3784, %v3786
  %v3796 = vsel %vm3791, %v3786, %v3788
  %v3797 = vsel %vm3791, %v3788, %v3790
  %v3803 = vsel %vm1216, %v3773, 0
  %v3806 = vsel %vm1216, %v3774, 0
  %v3808 = vsel %vm1223, %v3795, 0
  %v3810 = vsel %vm1223, %v3796, 0
  %v3812 = vsel %vm1223, %v3797, 0
  %v3814 = vsel %vm1223, %v3790, 0
  %3816 = vmatprep.subr.mxu0 0.0
  %3817 = vmatpush1.msra.mxu0 0.0
  %3818 = vmatprep.subr.mxu0 0.0
  %3819 = vmatpush1.msra.mxu0 0.0
  %3820 = vmatprep.subr.mxu0 0.0
  %3821 = vmatpush1.msra.mxu0 0.0
  %3822 = vmatprep.subr.mxu0 0.0
  %3823 = vmatpush1.msra.mxu0 0.0
  %3824 = vmatprep.subr.mxu0 0.0
  %3825 = vmatpush1.msra.mxu0 0.0
  %3826 = vmatprep.subr.mxu0 0.0
  %3827 = vmatpush1.msra.mxu0 0.0
  %3828 = vmatprep.subr.mxu0 0.0
  %3829 = vmatpush1.msra.mxu0 0.0
  %3830 = vmatprep.subr.mxu0 0.0
  %3831 = vmatpush1.msra.mxu0 0.0
  %3832 = vmatprep.subr.mxu0 0.0
  %3833 = vmatpush1.msra.mxu0 0.0
  %3834 = vmatprep.subr.mxu0 0.0
  %3835 = vmatpush1.msra.mxu0 0.0
  %3836 = vmatprep.subr.mxu0 0.0
  %3837 = vmatpush1.msra.mxu0 0.0
  %3838 = vmatprep.subr.mxu0 0.0
  %3839 = vmatpush1.msra.mxu0 0.0
  %3840 = vmatprep.subr.mxu0 0.0
  %3841 = vmatpush1.msra.mxu0 0.0
  %3842 = vmatprep.subr.mxu0 0.0
  %3843 = vmatpush1.msra.mxu0 0.0
  %3844 = vmatprep.subr.mxu0 %v3810
  %3845 = vmatpush1.msra.mxu0 %v3808
  %3846 = vmatprep.subr.mxu0 %v3793
  %3847 = vmatpush1.msra.mxu0 %v3792
  %3848 = vmatprep.subr.mxu0 0.0
  %3849 = vmatpush2.msra.mxu0 0.0
  %3850 = vmatprep.subr.mxu0 0.0
  %3851 = vmatpush2.msra.mxu0 0.0
  %3852 = vmatprep.subr.mxu0 0.0
  %3853 = vmatpush2.msra.mxu0 0.0
  %3854 = vmatprep.subr.mxu0 0.0
  %3855 = vmatpush2.msra.mxu0 0.0
  %3856 = vmatprep.subr.mxu0 0.0
  %3857 = vmatpush2.msra.mxu0 0.0
  %3858 = vmatprep.subr.mxu0 0.0
  %3859 = vmatpush2.msra.mxu0 0.0
  %3860 = vmatprep.subr.mxu0 0.0
  %3861 = vmatpush2.msra.mxu0 0.0
  %3862 = vmatprep.subr.mxu0 0.0
  %3863 = vmatpush2.msra.mxu0 0.0
  %3864 = vmatprep.subr.mxu0 0.0
  %3865 = vmatpush2.msra.mxu0 0.0
  %3866 = vmatprep.subr.mxu0 0.0
  %3867 = vmatpush2.msra.mxu0 0.0
  %3868 = vmatprep.subr.mxu0 0.0
  %3869 = vmatpush2.msra.mxu0 0.0
  %3870 = vmatprep.subr.mxu0 0.0
  %3871 = vmatpush2.msra.mxu0 0.0
  %3872 = vmatprep.subr.mxu0 0.0
  %3873 = vmatpush2.msra.mxu0 0.0
  %3874 = vmatprep.subr.mxu0 0.0
  %3875 = vmatpush2.msra.mxu0 0.0
  %3876 = vmatprep.subr.mxu0 0.0
  %3877 = vmatpush2.msra.mxu0 0.0
  %3878 = vmatprep.subr.mxu0 0.0
  %3879 = vmatpush2.msra.mxu0 0.0
  %3880 = vmatprep.mubr.f32.mxu0 0.0
  %3881 = vmatmul.mubr.f32.gmra.mxu0 %v3803
  %v3882 = vpop.f32.mrf.mxu0
  %v3883 = vadd.f32 0.0, %v3882
  %v3884 = vpop.f32.mrf.mxu0
  %3885 = vmatprep.mubr.f32.mxu0 0.0
  %3886 = vmatmul.mubr.f32.gmra.mxu0 %v3806
  %v3887 = vpop.f32.mrf.mxu0
  %v3888 = vadd.f32 0.0, %v3887
  %v3889 = vpop.f32.mrf.mxu0
  %3890 = vdwg.mxu0
  %3891 = vmatprep.subr.mxu0 0.0
  %3892 = vmatpush1.msra.mxu0 0.0
  %3893 = vmatprep.subr.mxu0 0.0
  %3894 = vmatpush1.msra.mxu0 0.0
  %3895 = vmatprep.subr.mxu0 0.0
  %3896 = vmatpush1.msra.mxu0 0.0
  %3897 = vmatprep.subr.mxu0 0.0
  %3898 = vmatpush1.msra.mxu0 0.0
  %3899 = vmatprep.subr.mxu0 0.0
  %3900 = vmatpush1.msra.mxu0 0.0
  %3901 = vmatprep.subr.mxu0 0.0
  %3902 = vmatpush1.msra.mxu0 0.0
  %3903 = vmatprep.subr.mxu0 0.0
  %3904 = vmatpush1.msra.mxu0 0.0
  %3905 = vmatprep.subr.mxu0 0.0
  %3906 = vmatpush1.msra.mxu0 0.0
  %3907 = vmatprep.subr.mxu0 0.0
  %3908 = vmatpush1.msra.mxu0 0.0
  %3909 = vmatprep.subr.mxu0 0.0
  %3910 = vmatpush1.msra.mxu0 0.0
  %3911 = vmatprep.subr.mxu0 0.0
  %3912 = vmatpush1.msra.mxu0 0.0
  %3913 = vmatprep.subr.mxu0 0.0
  %3914 = vmatpush1.msra.mxu0 0.0
  %3915 = vmatprep.subr.mxu0 0.0
  %3916 = vmatpush1.msra.mxu0 0.0
  %3917 = vmatprep.subr.mxu0 0.0
  %3918 = vmatpush1.msra.mxu0 0.0
  %3919 = vmatprep.subr.mxu0 %v3814
  %3920 = vmatpush1.msra.mxu0 %v3812
  %3921 = vmatprep.subr.mxu0 %v3782
  %3922 = vmatpush1.msra.mxu0 %v3794
  %3923 = vmatprep.subr.mxu0 0.0
  %3924 = vmatpush2.msra.mxu0 0.0
  %3925 = vmatprep.subr.mxu0 0.0
  %3926 = vmatpush2.msra.mxu0 0.0
  %3927 = vmatprep.subr.mxu0 0.0
  %3928 = vmatpush2.msra.mxu0 0.0
  %3929 = vmatprep.subr.mxu0 0.0
  %3930 = vmatpush2.msra.mxu0 0.0
  %3931 = vmatprep.subr.mxu0 0.0
  %3932 = vmatpush2.msra.mxu0 0.0
  %3933 = vmatprep.subr.mxu0 0.0
  %3934 = vmatpush2.msra.mxu0 0.0
  %3935 = vmatprep.subr.mxu0 0.0
  %3936 = vmatpush2.msra.mxu0 0.0
  %3937 = vmatprep.subr.mxu0 0.0
  %3938 = vmatpush2.msra.mxu0 0.0
  %3939 = vmatprep.subr.mxu0 0.0
  %3940 = vmatpush2.msra.mxu0 0.0
  %3941 = vmatprep.subr.mxu0 0.0
  %3942 = vmatpush2.msra.mxu0 0.0
  %3943 = vmatprep.subr.mxu0 0.0
  %3944 = vmatpush2.msra.mxu0 0.0
  %3945 = vmatprep.subr.mxu0 0.0
  %3946 = vmatpush2.msra.mxu0 0.0
  %3947 = vmatprep.subr.mxu0 0.0
  %3948 = vmatpush2.msra.mxu0 0.0
  %3949 = vmatprep.subr.mxu0 0.0
  %3950 = vmatpush2.msra.mxu0 0.0
  %3951 = vmatprep.subr.mxu0 0.0
  %3952 = vmatpush2.msra.mxu0 0.0
  %3953 = vmatprep.subr.mxu0 0.0
  %3954 = vmatpush2.msra.mxu0 0.0
  %3955 = vmatprep.mubr.f32.mxu0 0.0
  %3956 = vmatmul.mubr.f32.gmra.mxu0 %v3803
  %v3957 = vpop.f32.mrf.mxu0
  %v3958 = vadd.f32 0.0, %v3957
  %v3959 = vpop.f32.mrf.mxu0
  %v3960 = vadd.f32 0.0, %v3959
  %3961 = vmatprep.mubr.f32.mxu0 0.0
  %3962 = vmatmul.mubr.f32.gmra.mxu0 %v3806
  %v3963 = vpop.f32.mrf.mxu0
  %v3964 = vadd.f32 0.0, %v3963
  %v3965 = vpop.f32.mrf.mxu0
  %v3966 = vadd.f32 0.0, %v3965
  %3967 = vdwg.mxu0
  %v3968 = vadd.f32 %v3766, %v3883
  %v3969 = vadd.f32 %v3767, %v3958
  %v3970 = vadd.f32 %v3768, %v3960
  %v3971 = vadd.f32 %v3769, %v3888
  %v3972 = vadd.f32 %v3770, %v3964
  %v3973 = vadd.f32 %v3771, %v3966
  %s3974 = scalar_lea.vmem %s4, 224
  %v3975 = vld [vmem:[%s3974] sm:$0xff]
  %v3976 = vld [vmem:[%s3974 + $0x8] sm:$0x3]
  %3977 = vrot.lane.b32.xlu0 %v1166, 92
  %v3978 = vpop.permute.xlu0 %3977
  %3979 = vrot.lane.b32.xlu0 %v1167, 92
  %v3980 = vpop.permute.xlu0 %3979
  %3981 = vrot.lane.b32.xlu0 %v1168, 92
  %v3982 = vpop.permute.xlu0 %3981
  %3983 = vrot.lane.b32.xlu0 %v1169, 92
  %v3984 = vpop.permute.xlu0 %3983
  %3985 = vrot.lane.b32.xlu0 %v1171, 92
  %v3986 = vpop.permute.xlu0 %3985
  %3987 = vrot.lane.b32.xlu0 %v1172, 92
  %v3988 = vpop.permute.xlu0 %3987
  %3989 = vrot.lane.b32.xlu0 %v1173, 92
  %v3990 = vpop.permute.xlu0 %3989
  %3991 = vrot.lane.b32.xlu0 %v1174, 92
  %v3992 = vpop.permute.xlu0 %3991
  %vm3993 = vcmask 752640
  %v3994 = vsel %vm3993, %v3978, %v3980
  %v3995 = vsel %vm3993, %v3980, %v3982
  %v3996 = vsel %vm3993, %v3982, %v3984
  %v3997 = vsel %vm3993, %v3986, %v3988
  %v3998 = vsel %vm3993, %v3988, %v3990
  %v3999 = vsel %vm3993, %v3990, %v3992
  %v4005 = vsel %vm1216, %v3975, 0
  %v4008 = vsel %vm1216, %v3976, 0
  %v4010 = vsel %vm1223, %v3997, 0
  %v4012 = vsel %vm1223, %v3998, 0
  %v4014 = vsel %vm1223, %v3999, 0
  %v4016 = vsel %vm1223, %v3992, 0
  %4018 = vmatprep.subr.mxu0 0.0
  %4019 = vmatpush1.msra.mxu0 0.0
  %4020 = vmatprep.subr.mxu0 0.0
  %4021 = vmatpush1.msra.mxu0 0.0
  %4022 = vmatprep.subr.mxu0 0.0
  %4023 = vmatpush1.msra.mxu0 0.0
  %4024 = vmatprep.subr.mxu0 0.0
  %4025 = vmatpush1.msra.mxu0 0.0
  %4026 = vmatprep.subr.mxu0 0.0
  %4027 = vmatpush1.msra.mxu0 0.0
  %4028 = vmatprep.subr.mxu0 0.0
  %4029 = vmatpush1.msra.mxu0 0.0
  %4030 = vmatprep.subr.mxu0 0.0
  %4031 = vmatpush1.msra.mxu0 0.0
  %4032 = vmatprep.subr.mxu0 0.0
  %4033 = vmatpush1.msra.mxu0 0.0
  %4034 = vmatprep.subr.mxu0 0.0
  %4035 = vmatpush1.msra.mxu0 0.0
  %4036 = vmatprep.subr.mxu0 0.0
  %4037 = vmatpush1.msra.mxu0 0.0
  %4038 = vmatprep.subr.mxu0 0.0
  %4039 = vmatpush1.msra.mxu0 0.0
  %4040 = vmatprep.subr.mxu0 0.0
  %4041 = vmatpush1.msra.mxu0 0.0
  %4042 = vmatprep.subr.mxu0 0.0
  %4043 = vmatpush1.msra.mxu0 0.0
  %4044 = vmatprep.subr.mxu0 0.0
  %4045 = vmatpush1.msra.mxu0 0.0
  %4046 = vmatprep.subr.mxu0 %v4012
  %4047 = vmatpush1.msra.mxu0 %v4010
  %4048 = vmatprep.subr.mxu0 %v3995
  %4049 = vmatpush1.msra.mxu0 %v3994
  %4050 = vmatprep.subr.mxu0 0.0
  %4051 = vmatpush2.msra.mxu0 0.0
  %4052 = vmatprep.subr.mxu0 0.0
  %4053 = vmatpush2.msra.mxu0 0.0
  %4054 = vmatprep.subr.mxu0 0.0
  %4055 = vmatpush2.msra.mxu0 0.0
  %4056 = vmatprep.subr.mxu0 0.0
  %4057 = vmatpush2.msra.mxu0 0.0
  %4058 = vmatprep.subr.mxu0 0.0
  %4059 = vmatpush2.msra.mxu0 0.0
  %4060 = vmatprep.subr.mxu0 0.0
  %4061 = vmatpush2.msra.mxu0 0.0
  %4062 = vmatprep.subr.mxu0 0.0
  %4063 = vmatpush2.msra.mxu0 0.0
  %4064 = vmatprep.subr.mxu0 0.0
  %4065 = vmatpush2.msra.mxu0 0.0
  %4066 = vmatprep.subr.mxu0 0.0
  %4067 = vmatpush2.msra.mxu0 0.0
  %4068 = vmatprep.subr.mxu0 0.0
  %4069 = vmatpush2.msra.mxu0 0.0
  %4070 = vmatprep.subr.mxu0 0.0
  %4071 = vmatpush2.msra.mxu0 0.0
  %4072 = vmatprep.subr.mxu0 0.0
  %4073 = vmatpush2.msra.mxu0 0.0
  %4074 = vmatprep.subr.mxu0 0.0
  %4075 = vmatpush2.msra.mxu0 0.0
  %4076 = vmatprep.subr.mxu0 0.0
  %4077 = vmatpush2.msra.mxu0 0.0
  %4078 = vmatprep.subr.mxu0 0.0
  %4079 = vmatpush2.msra.mxu0 0.0
  %4080 = vmatprep.subr.mxu0 0.0
  %4081 = vmatpush2.msra.mxu0 0.0
  %4082 = vmatprep.mubr.f32.mxu0 0.0
  %4083 = vmatmul.mubr.f32.gmra.mxu0 %v4005
  %v4084 = vpop.f32.mrf.mxu0
  %v4085 = vadd.f32 0.0, %v4084
  %v4086 = vpop.f32.mrf.mxu0
  %4087 = vmatprep.mubr.f32.mxu0 0.0
  %4088 = vmatmul.mubr.f32.gmra.mxu0 %v4008
  %v4089 = vpop.f32.mrf.mxu0
  %v4090 = vadd.f32 0.0, %v4089
  %v4091 = vpop.f32.mrf.mxu0
  %4092 = vdwg.mxu0
  %4093 = vmatprep.subr.mxu0 0.0
  %4094 = vmatpush1.msra.mxu0 0.0
  %4095 = vmatprep.subr.mxu0 0.0
  %4096 = vmatpush1.msra.mxu0 0.0
  %4097 = vmatprep.subr.mxu0 0.0
  %4098 = vmatpush1.msra.mxu0 0.0
  %4099 = vmatprep.subr.mxu0 0.0
  %4100 = vmatpush1.msra.mxu0 0.0
  %4101 = vmatprep.subr.mxu0 0.0
  %4102 = vmatpush1.msra.mxu0 0.0
  %4103 = vmatprep.subr.mxu0 0.0
  %4104 = vmatpush1.msra.mxu0 0.0
  %4105 = vmatprep.subr.mxu0 0.0
  %4106 = vmatpush1.msra.mxu0 0.0
  %4107 = vmatprep.subr.mxu0 0.0
  %4108 = vmatpush1.msra.mxu0 0.0
  %4109 = vmatprep.subr.mxu0 0.0
  %4110 = vmatpush1.msra.mxu0 0.0
  %4111 = vmatprep.subr.mxu0 0.0
  %4112 = vmatpush1.msra.mxu0 0.0
  %4113 = vmatprep.subr.mxu0 0.0
  %4114 = vmatpush1.msra.mxu0 0.0
  %4115 = vmatprep.subr.mxu0 0.0
  %4116 = vmatpush1.msra.mxu0 0.0
  %4117 = vmatprep.subr.mxu0 0.0
  %4118 = vmatpush1.msra.mxu0 0.0
  %4119 = vmatprep.subr.mxu0 0.0
  %4120 = vmatpush1.msra.mxu0 0.0
  %4121 = vmatprep.subr.mxu0 %v4016
  %4122 = vmatpush1.msra.mxu0 %v4014
  %4123 = vmatprep.subr.mxu0 %v3984
  %4124 = vmatpush1.msra.mxu0 %v3996
  %4125 = vmatprep.subr.mxu0 0.0
  %4126 = vmatpush2.msra.mxu0 0.0
  %4127 = vmatprep.subr.mxu0 0.0
  %4128 = vmatpush2.msra.mxu0 0.0
  %4129 = vmatprep.subr.mxu0 0.0
  %4130 = vmatpush2.msra.mxu0 0.0
  %4131 = vmatprep.subr.mxu0 0.0
  %4132 = vmatpush2.msra.mxu0 0.0
  %4133 = vmatprep.subr.mxu0 0.0
  %4134 = vmatpush2.msra.mxu0 0.0
  %4135 = vmatprep.subr.mxu0 0.0
  %4136 = vmatpush2.msra.mxu0 0.0
  %4137 = vmatprep.subr.mxu0 0.0
  %4138 = vmatpush2.msra.mxu0 0.0
  %4139 = vmatprep.subr.mxu0 0.0
  %4140 = vmatpush2.msra.mxu0 0.0
  %4141 = vmatprep.subr.mxu0 0.0
  %4142 = vmatpush2.msra.mxu0 0.0
  %4143 = vmatprep.subr.mxu0 0.0
  %4144 = vmatpush2.msra.mxu0 0.0
  %4145 = vmatprep.subr.mxu0 0.0
  %4146 = vmatpush2.msra.mxu0 0.0
  %4147 = vmatprep.subr.mxu0 0.0
  %4148 = vmatpush2.msra.mxu0 0.0
  %4149 = vmatprep.subr.mxu0 0.0
  %4150 = vmatpush2.msra.mxu0 0.0
  %4151 = vmatprep.subr.mxu0 0.0
  %4152 = vmatpush2.msra.mxu0 0.0
  %4153 = vmatprep.subr.mxu0 0.0
  %4154 = vmatpush2.msra.mxu0 0.0
  %4155 = vmatprep.subr.mxu0 0.0
  %4156 = vmatpush2.msra.mxu0 0.0
  %4157 = vmatprep.mubr.f32.mxu0 0.0
  %4158 = vmatmul.mubr.f32.gmra.mxu0 %v4005
  %v4159 = vpop.f32.mrf.mxu0
  %v4160 = vadd.f32 0.0, %v4159
  %v4161 = vpop.f32.mrf.mxu0
  %v4162 = vadd.f32 0.0, %v4161
  %4163 = vmatprep.mubr.f32.mxu0 0.0
  %4164 = vmatmul.mubr.f32.gmra.mxu0 %v4008
  %v4165 = vpop.f32.mrf.mxu0
  %v4166 = vadd.f32 0.0, %v4165
  %v4167 = vpop.f32.mrf.mxu0
  %v4168 = vadd.f32 0.0, %v4167
  %4169 = vdwg.mxu0
  %v4170 = vadd.f32 %v3968, %v4085
  %v4171 = vadd.f32 %v3969, %v4160
  %v4172 = vadd.f32 %v3970, %v4162
  %v4173 = vadd.f32 %v3971, %v4090
  %v4174 = vadd.f32 %v3972, %v4166
  %v4175 = vadd.f32 %v3973, %v4168
  %s4176 = scalar_lea.vmem %s4, 240
  %v4177 = vld [vmem:[%s4176] sm:$0xff]
  %v4178 = vld [vmem:[%s4176 + $0x8] sm:$0x3]
  %4179 = vrot.lane.b32.xlu0 %v1166, 80
  %v4180 = vpop.permute.xlu0 %4179
  %4181 = vrot.lane.b32.xlu0 %v1167, 80
  %v4182 = vpop.permute.xlu0 %4181
  %4183 = vrot.lane.b32.xlu0 %v1168, 80
  %v4184 = vpop.permute.xlu0 %4183
  %4185 = vrot.lane.b32.xlu0 %v1169, 80
  %v4186 = vpop.permute.xlu0 %4185
  %4187 = vrot.lane.b32.xlu0 %v1171, 80
  %v4188 = vpop.permute.xlu0 %4187
  %4189 = vrot.lane.b32.xlu0 %v1172, 80
  %v4190 = vpop.permute.xlu0 %4189
  %4191 = vrot.lane.b32.xlu0 %v1173, 80
  %v4192 = vpop.permute.xlu0 %4191
  %4193 = vrot.lane.b32.xlu0 %v1174, 80
  %v4194 = vpop.permute.xlu0 %4193
  %vm4195 = vcmask 654336
  %v4196 = vsel %vm4195, %v4180, %v4182
  %v4197 = vsel %vm4195, %v4182, %v4184
  %v4198 = vsel %vm4195, %v4184, %v4186
  %v4199 = vsel %vm4195, %v4188, %v4190
  %v4200 = vsel %vm4195, %v4190, %v4192
  %v4201 = vsel %vm4195, %v4192, %v4194
  %v4207 = vsel %vm1216, %v4177, 0
  %v4210 = vsel %vm1216, %v4178, 0
  %v4212 = vsel %vm1223, %v4199, 0
  %v4214 = vsel %vm1223, %v4200, 0
  %v4216 = vsel %vm1223, %v4201, 0
  %v4218 = vsel %vm1223, %v4194, 0
  %4220 = vmatprep.subr.mxu0 0.0
  %4221 = vmatpush1.msra.mxu0 0.0
  %4222 = vmatprep.subr.mxu0 0.0
  %4223 = vmatpush1.msra.mxu0 0.0
  %4224 = vmatprep.subr.mxu0 0.0
  %4225 = vmatpush1.msra.mxu0 0.0
  %4226 = vmatprep.subr.mxu0 0.0
  %4227 = vmatpush1.msra.mxu0 0.0
  %4228 = vmatprep.subr.mxu0 0.0
  %4229 = vmatpush1.msra.mxu0 0.0
  %4230 = vmatprep.subr.mxu0 0.0
  %4231 = vmatpush1.msra.mxu0 0.0
  %4232 = vmatprep.subr.mxu0 0.0
  %4233 = vmatpush1.msra.mxu0 0.0
  %4234 = vmatprep.subr.mxu0 0.0
  %4235 = vmatpush1.msra.mxu0 0.0
  %4236 = vmatprep.subr.mxu0 0.0
  %4237 = vmatpush1.msra.mxu0 0.0
  %4238 = vmatprep.subr.mxu0 0.0
  %4239 = vmatpush1.msra.mxu0 0.0
  %4240 = vmatprep.subr.mxu0 0.0
  %4241 = vmatpush1.msra.mxu0 0.0
  %4242 = vmatprep.subr.mxu0 0.0
  %4243 = vmatpush1.msra.mxu0 0.0
  %4244 = vmatprep.subr.mxu0 0.0
  %4245 = vmatpush1.msra.mxu0 0.0
  %4246 = vmatprep.subr.mxu0 0.0
  %4247 = vmatpush1.msra.mxu0 0.0
  %4248 = vmatprep.subr.mxu0 %v4214
  %4249 = vmatpush1.msra.mxu0 %v4212
  %4250 = vmatprep.subr.mxu0 %v4197
  %4251 = vmatpush1.msra.mxu0 %v4196
  %4252 = vmatprep.subr.mxu0 0.0
  %4253 = vmatpush2.msra.mxu0 0.0
  %4254 = vmatprep.subr.mxu0 0.0
  %4255 = vmatpush2.msra.mxu0 0.0
  %4256 = vmatprep.subr.mxu0 0.0
  %4257 = vmatpush2.msra.mxu0 0.0
  %4258 = vmatprep.subr.mxu0 0.0
  %4259 = vmatpush2.msra.mxu0 0.0
  %4260 = vmatprep.subr.mxu0 0.0
  %4261 = vmatpush2.msra.mxu0 0.0
  %4262 = vmatprep.subr.mxu0 0.0
  %4263 = vmatpush2.msra.mxu0 0.0
  %4264 = vmatprep.subr.mxu0 0.0
  %4265 = vmatpush2.msra.mxu0 0.0
  %4266 = vmatprep.subr.mxu0 0.0
  %4267 = vmatpush2.msra.mxu0 0.0
  %4268 = vmatprep.subr.mxu0 0.0
  %4269 = vmatpush2.msra.mxu0 0.0
  %4270 = vmatprep.subr.mxu0 0.0
  %4271 = vmatpush2.msra.mxu0 0.0
  %4272 = vmatprep.subr.mxu0 0.0
  %4273 = vmatpush2.msra.mxu0 0.0
  %4274 = vmatprep.subr.mxu0 0.0
  %4275 = vmatpush2.msra.mxu0 0.0
  %4276 = vmatprep.subr.mxu0 0.0
  %4277 = vmatpush2.msra.mxu0 0.0
  %4278 = vmatprep.subr.mxu0 0.0
  %4279 = vmatpush2.msra.mxu0 0.0
  %4280 = vmatprep.subr.mxu0 0.0
  %4281 = vmatpush2.msra.mxu0 0.0
  %4282 = vmatprep.subr.mxu0 0.0
  %4283 = vmatpush2.msra.mxu0 0.0
  %4284 = vmatprep.mubr.f32.mxu0 0.0
  %4285 = vmatmul.mubr.f32.gmra.mxu0 %v4207
  %v4286 = vpop.f32.mrf.mxu0
  %v4287 = vadd.f32 0.0, %v4286
  %v4288 = vpop.f32.mrf.mxu0
  %4289 = vmatprep.mubr.f32.mxu0 0.0
  %4290 = vmatmul.mubr.f32.gmra.mxu0 %v4210
  %v4291 = vpop.f32.mrf.mxu0
  %v4292 = vadd.f32 0.0, %v4291
  %v4293 = vpop.f32.mrf.mxu0
  %4294 = vdwg.mxu0
  %4295 = vmatprep.subr.mxu0 0.0
  %4296 = vmatpush1.msra.mxu0 0.0
  %4297 = vmatprep.subr.mxu0 0.0
  %4298 = vmatpush1.msra.mxu0 0.0
  %4299 = vmatprep.subr.mxu0 0.0
  %4300 = vmatpush1.msra.mxu0 0.0
  %4301 = vmatprep.subr.mxu0 0.0
  %4302 = vmatpush1.msra.mxu0 0.0
  %4303 = vmatprep.subr.mxu0 0.0
  %4304 = vmatpush1.msra.mxu0 0.0
  %4305 = vmatprep.subr.mxu0 0.0
  %4306 = vmatpush1.msra.mxu0 0.0
  %4307 = vmatprep.subr.mxu0 0.0
  %4308 = vmatpush1.msra.mxu0 0.0
  %4309 = vmatprep.subr.mxu0 0.0
  %4310 = vmatpush1.msra.mxu0 0.0
  %4311 = vmatprep.subr.mxu0 0.0
  %4312 = vmatpush1.msra.mxu0 0.0
  %4313 = vmatprep.subr.mxu0 0.0
  %4314 = vmatpush1.msra.mxu0 0.0
  %4315 = vmatprep.subr.mxu0 0.0
  %4316 = vmatpush1.msra.mxu0 0.0
  %4317 = vmatprep.subr.mxu0 0.0
  %4318 = vmatpush1.msra.mxu0 0.0
  %4319 = vmatprep.subr.mxu0 0.0
  %4320 = vmatpush1.msra.mxu0 0.0
  %4321 = vmatprep.subr.mxu0 0.0
  %4322 = vmatpush1.msra.mxu0 0.0
  %4323 = vmatprep.subr.mxu0 %v4218
  %4324 = vmatpush1.msra.mxu0 %v4216
  %4325 = vmatprep.subr.mxu0 %v4186
  %4326 = vmatpush1.msra.mxu0 %v4198
  %4327 = vmatprep.subr.mxu0 0.0
  %4328 = vmatpush2.msra.mxu0 0.0
  %4329 = vmatprep.subr.mxu0 0.0
  %4330 = vmatpush2.msra.mxu0 0.0
  %4331 = vmatprep.subr.mxu0 0.0
  %4332 = vmatpush2.msra.mxu0 0.0
  %4333 = vmatprep.subr.mxu0 0.0
  %4334 = vmatpush2.msra.mxu0 0.0
  %4335 = vmatprep.subr.mxu0 0.0
  %4336 = vmatpush2.msra.mxu0 0.0
  %4337 = vmatprep.subr.mxu0 0.0
  %4338 = vmatpush2.msra.mxu0 0.0
  %4339 = vmatprep.subr.mxu0 0.0
  %4340 = vmatpush2.msra.mxu0 0.0
  %4341 = vmatprep.subr.mxu0 0.0
  %4342 = vmatpush2.msra.mxu0 0.0
  %4343 = vmatprep.subr.mxu0 0.0
  %4344 = vmatpush2.msra.mxu0 0.0
  %4345 = vmatprep.subr.mxu0 0.0
  %4346 = vmatpush2.msra.mxu0 0.0
  %4347 = vmatprep.subr.mxu0 0.0
  %4348 = vmatpush2.msra.mxu0 0.0
  %4349 = vmatprep.subr.mxu0 0.0
  %4350 = vmatpush2.msra.mxu0 0.0
  %4351 = vmatprep.subr.mxu0 0.0
  %4352 = vmatpush2.msra.mxu0 0.0
  %4353 = vmatprep.subr.mxu0 0.0
  %4354 = vmatpush2.msra.mxu0 0.0
  %4355 = vmatprep.subr.mxu0 0.0
  %4356 = vmatpush2.msra.mxu0 0.0
  %4357 = vmatprep.subr.mxu0 0.0
  %4358 = vmatpush2.msra.mxu0 0.0
  %4359 = vmatprep.mubr.f32.mxu0 0.0
  %4360 = vmatmul.mubr.f32.gmra.mxu0 %v4207
  %v4361 = vpop.f32.mrf.mxu0
  %v4362 = vadd.f32 0.0, %v4361
  %v4363 = vpop.f32.mrf.mxu0
  %v4364 = vadd.f32 0.0, %v4363
  %4365 = vmatprep.mubr.f32.mxu0 0.0
  %4366 = vmatmul.mubr.f32.gmra.mxu0 %v4210
  %v4367 = vpop.f32.mrf.mxu0
  %v4368 = vadd.f32 0.0, %v4367
  %v4369 = vpop.f32.mrf.mxu0
  %v4370 = vadd.f32 0.0, %v4369
  %4371 = vdwg.mxu0
  %v4372 = vadd.f32 %v4170, %v4287
  %v4373 = vadd.f32 %v4171, %v4362
  %v4374 = vadd.f32 %v4172, %v4364
  %v4375 = vadd.f32 %v4173, %v4292
  %v4376 = vadd.f32 %v4174, %v4368
  %v4377 = vadd.f32 %v4175, %v4370
  %s4378 = scalar_lea.vmem %s4, 256
  %v4379 = vld [vmem:[%s4378] sm:$0xff]
  %v4380 = vld [vmem:[%s4378 + $0x8] sm:$0x3]
  %4383 = vrot.lane.b32.xlu0 %v1166, 79
  %v4384 = vpop.permute.xlu0 %4383
  %4385 = vrot.lane.b32.xlu0 %v1167, 79
  %v4386 = vpop.permute.xlu0 %4385
  %4387 = vrot.lane.b32.xlu0 %v1168, 79
  %v4388 = vpop.permute.xlu0 %4387
  %4389 = vrot.lane.b32.xlu0 %v1169, 79
  %v4390 = vpop.permute.xlu0 %4389
  %4391 = vrot.lane.b32.xlu0 %v1170, 79
  %v4392 = vpop.permute.xlu0 %4391
  %4393 = vrot.lane.b32.xlu0 %v1171, 79
  %v4394 = vpop.permute.xlu0 %4393
  %4395 = vrot.lane.b32.xlu0 %v1172, 79
  %v4396 = vpop.permute.xlu0 %4395
  %4397 = vrot.lane.b32.xlu0 %v1173, 79
  %v4398 = vpop.permute.xlu0 %4397
  %4399 = vrot.lane.b32.xlu0 %v1174, 79
  %v4400 = vpop.permute.xlu0 %4399
  %4401 = vrot.lane.b32.xlu0 %v1175, 79
  %v4402 = vpop.permute.xlu0 %4401
  %vm4403 = vcmask 646144
  %v4404 = vsel %vm4403, %v4384, %v4386
  %v4405 = vsel %vm4403, %v4386, %v4388
  %v4406 = vsel %vm4403, %v4388, %v4390
  %v4407 = vsel %vm4403, %v4390, %v4392
  %v4408 = vsel %vm4403, %v4394, %v4396
  %v4409 = vsel %vm4403, %v4396, %v4398
  %v4410 = vsel %vm4403, %v4398, %v4400
  %v4411 = vsel %vm4403, %v4400, %v4402
  %v4417 = vsel %vm1216, %v4379, 0
  %v4420 = vsel %vm1216, %v4380, 0
  %v4422 = vsel %vm1223, %v4408, 0
  %v4424 = vsel %vm1223, %v4409, 0
  %v4426 = vsel %vm1223, %v4410, 0
  %v4428 = vsel %vm1223, %v4411, 0
  %4430 = vmatprep.subr.mxu0 0.0
  %4431 = vmatpush1.msra.mxu0 0.0
  %4432 = vmatprep.subr.mxu0 0.0
  %4433 = vmatpush1.msra.mxu0 0.0
  %4434 = vmatprep.subr.mxu0 0.0
  %4435 = vmatpush1.msra.mxu0 0.0
  %4436 = vmatprep.subr.mxu0 0.0
  %4437 = vmatpush1.msra.mxu0 0.0
  %4438 = vmatprep.subr.mxu0 0.0
  %4439 = vmatpush1.msra.mxu0 0.0
  %4440 = vmatprep.subr.mxu0 0.0
  %4441 = vmatpush1.msra.mxu0 0.0
  %4442 = vmatprep.subr.mxu0 0.0
  %4443 = vmatpush1.msra.mxu0 0.0
  %4444 = vmatprep.subr.mxu0 0.0
  %4445 = vmatpush1.msra.mxu0 0.0
  %4446 = vmatprep.subr.mxu0 0.0
  %4447 = vmatpush1.msra.mxu0 0.0
  %4448 = vmatprep.subr.mxu0 0.0
  %4449 = vmatpush1.msra.mxu0 0.0
  %4450 = vmatprep.subr.mxu0 0.0
  %4451 = vmatpush1.msra.mxu0 0.0
  %4452 = vmatprep.subr.mxu0 0.0
  %4453 = vmatpush1.msra.mxu0 0.0
  %4454 = vmatprep.subr.mxu0 0.0
  %4455 = vmatpush1.msra.mxu0 0.0
  %4456 = vmatprep.subr.mxu0 0.0
  %4457 = vmatpush1.msra.mxu0 0.0
  %4458 = vmatprep.subr.mxu0 %v4424
  %4459 = vmatpush1.msra.mxu0 %v4422
  %4460 = vmatprep.subr.mxu0 %v4405
  %4461 = vmatpush1.msra.mxu0 %v4404
  %4462 = vmatprep.subr.mxu0 0.0
  %4463 = vmatpush2.msra.mxu0 0.0
  %4464 = vmatprep.subr.mxu0 0.0
  %4465 = vmatpush2.msra.mxu0 0.0
  %4466 = vmatprep.subr.mxu0 0.0
  %4467 = vmatpush2.msra.mxu0 0.0
  %4468 = vmatprep.subr.mxu0 0.0
  %4469 = vmatpush2.msra.mxu0 0.0
  %4470 = vmatprep.subr.mxu0 0.0
  %4471 = vmatpush2.msra.mxu0 0.0
  %4472 = vmatprep.subr.mxu0 0.0
  %4473 = vmatpush2.msra.mxu0 0.0
  %4474 = vmatprep.subr.mxu0 0.0
  %4475 = vmatpush2.msra.mxu0 0.0
  %4476 = vmatprep.subr.mxu0 0.0
  %4477 = vmatpush2.msra.mxu0 0.0
  %4478 = vmatprep.subr.mxu0 0.0
  %4479 = vmatpush2.msra.mxu0 0.0
  %4480 = vmatprep.subr.mxu0 0.0
  %4481 = vmatpush2.msra.mxu0 0.0
  %4482 = vmatprep.subr.mxu0 0.0
  %4483 = vmatpush2.msra.mxu0 0.0
  %4484 = vmatprep.subr.mxu0 0.0
  %4485 = vmatpush2.msra.mxu0 0.0
  %4486 = vmatprep.subr.mxu0 0.0
  %4487 = vmatpush2.msra.mxu0 0.0
  %4488 = vmatprep.subr.mxu0 0.0
  %4489 = vmatpush2.msra.mxu0 0.0
  %4490 = vmatprep.subr.mxu0 0.0
  %4491 = vmatpush2.msra.mxu0 0.0
  %4492 = vmatprep.subr.mxu0 0.0
  %4493 = vmatpush2.msra.mxu0 0.0
  %4494 = vmatprep.mubr.f32.mxu0 0.0
  %4495 = vmatmul.mubr.f32.gmra.mxu0 %v4417
  %v4496 = vpop.f32.mrf.mxu0
  %v4497 = vadd.f32 0.0, %v4496
  %v4498 = vpop.f32.mrf.mxu0
  %4499 = vmatprep.mubr.f32.mxu0 0.0
  %4500 = vmatmul.mubr.f32.gmra.mxu0 %v4420
  %v4501 = vpop.f32.mrf.mxu0
  %v4502 = vadd.f32 0.0, %v4501
  %v4503 = vpop.f32.mrf.mxu0
  %4504 = vdwg.mxu0
  %4505 = vmatprep.subr.mxu0 0.0
  %4506 = vmatpush1.msra.mxu0 0.0
  %4507 = vmatprep.subr.mxu0 0.0
  %4508 = vmatpush1.msra.mxu0 0.0
  %4509 = vmatprep.subr.mxu0 0.0
  %4510 = vmatpush1.msra.mxu0 0.0
  %4511 = vmatprep.subr.mxu0 0.0
  %4512 = vmatpush1.msra.mxu0 0.0
  %4513 = vmatprep.subr.mxu0 0.0
  %4514 = vmatpush1.msra.mxu0 0.0
  %4515 = vmatprep.subr.mxu0 0.0
  %4516 = vmatpush1.msra.mxu0 0.0
  %4517 = vmatprep.subr.mxu0 0.0
  %4518 = vmatpush1.msra.mxu0 0.0
  %4519 = vmatprep.subr.mxu0 0.0
  %4520 = vmatpush1.msra.mxu0 0.0
  %4521 = vmatprep.subr.mxu0 0.0
  %4522 = vmatpush1.msra.mxu0 0.0
  %4523 = vmatprep.subr.mxu0 0.0
  %4524 = vmatpush1.msra.mxu0 0.0
  %4525 = vmatprep.subr.mxu0 0.0
  %4526 = vmatpush1.msra.mxu0 0.0
  %4527 = vmatprep.subr.mxu0 0.0
  %4528 = vmatpush1.msra.mxu0 0.0
  %4529 = vmatprep.subr.mxu0 0.0
  %4530 = vmatpush1.msra.mxu0 0.0
  %4531 = vmatprep.subr.mxu0 0.0
  %4532 = vmatpush1.msra.mxu0 0.0
  %4533 = vmatprep.subr.mxu0 %v4428
  %4534 = vmatpush1.msra.mxu0 %v4426
  %4535 = vmatprep.subr.mxu0 %v4407
  %4536 = vmatpush1.msra.mxu0 %v4406
  %4537 = vmatprep.subr.mxu0 0.0
  %4538 = vmatpush2.msra.mxu0 0.0
  %4539 = vmatprep.subr.mxu0 0.0
  %4540 = vmatpush2.msra.mxu0 0.0
  %4541 = vmatprep.subr.mxu0 0.0
  %4542 = vmatpush2.msra.mxu0 0.0
  %4543 = vmatprep.subr.mxu0 0.0
  %4544 = vmatpush2.msra.mxu0 0.0
  %4545 = vmatprep.subr.mxu0 0.0
  %4546 = vmatpush2.msra.mxu0 0.0
  %4547 = vmatprep.subr.mxu0 0.0
  %4548 = vmatpush2.msra.mxu0 0.0
  %4549 = vmatprep.subr.mxu0 0.0
  %4550 = vmatpush2.msra.mxu0 0.0
  %4551 = vmatprep.subr.mxu0 0.0
  %4552 = vmatpush2.msra.mxu0 0.0
  %4553 = vmatprep.subr.mxu0 0.0
  %4554 = vmatpush2.msra.mxu0 0.0
  %4555 = vmatprep.subr.mxu0 0.0
  %4556 = vmatpush2.msra.mxu0 0.0
  %4557 = vmatprep.subr.mxu0 0.0
  %4558 = vmatpush2.msra.mxu0 0.0
  %4559 = vmatprep.subr.mxu0 0.0
  %4560 = vmatpush2.msra.mxu0 0.0
  %4561 = vmatprep.subr.mxu0 0.0
  %4562 = vmatpush2.msra.mxu0 0.0
  %4563 = vmatprep.subr.mxu0 0.0
  %4564 = vmatpush2.msra.mxu0 0.0
  %4565 = vmatprep.subr.mxu0 0.0
  %4566 = vmatpush2.msra.mxu0 0.0
  %4567 = vmatprep.subr.mxu0 0.0
  %4568 = vmatpush2.msra.mxu0 0.0
  %4569 = vmatprep.mubr.f32.mxu0 0.0
  %4570 = vmatmul.mubr.f32.gmra.mxu0 %v4417
  %v4571 = vpop.f32.mrf.mxu0
  %v4572 = vadd.f32 0.0, %v4571
  %v4573 = vpop.f32.mrf.mxu0
  %v4574 = vadd.f32 0.0, %v4573
  %4575 = vmatprep.mubr.f32.mxu0 0.0
  %4576 = vmatmul.mubr.f32.gmra.mxu0 %v4420
  %v4577 = vpop.f32.mrf.mxu0
  %v4578 = vadd.f32 0.0, %v4577
  %v4579 = vpop.f32.mrf.mxu0
  %v4580 = vadd.f32 0.0, %v4579
  %4581 = vdwg.mxu0
  %v4582 = vadd.f32 %v4372, %v4497
  %v4583 = vadd.f32 %v4373, %v4572
  %v4584 = vadd.f32 %v4374, %v4574
  %v4585 = vadd.f32 %v4375, %v4502
  %v4586 = vadd.f32 %v4376, %v4578
  %v4587 = vadd.f32 %v4377, %v4580
  %s4588 = scalar_lea.vmem %s4, 272
  %v4589 = vld [vmem:[%s4588] sm:$0xff]
  %v4590 = vld [vmem:[%s4588 + $0x8] sm:$0x3]
  %4591 = vrot.lane.b32.xlu0 %v1166, 78
  %v4592 = vpop.permute.xlu0 %4591
  %4593 = vrot.lane.b32.xlu0 %v1167, 78
  %v4594 = vpop.permute.xlu0 %4593
  %4595 = vrot.lane.b32.xlu0 %v1168, 78
  %v4596 = vpop.permute.xlu0 %4595
  %4597 = vrot.lane.b32.xlu0 %v1169, 78
  %v4598 = vpop.permute.xlu0 %4597
  %4599 = vrot.lane.b32.xlu0 %v1170, 78
  %v4600 = vpop.permute.xlu0 %4599
  %4601 = vrot.lane.b32.xlu0 %v1171, 78
  %v4602 = vpop.permute.xlu0 %4601
  %4603 = vrot.lane.b32.xlu0 %v1172, 78
  %v4604 = vpop.permute.xlu0 %4603
  %4605 = vrot.lane.b32.xlu0 %v1173, 78
  %v4606 = vpop.permute.xlu0 %4605
  %4607 = vrot.lane.b32.xlu0 %v1174, 78
  %v4608 = vpop.permute.xlu0 %4607
  %4609 = vrot.lane.b32.xlu0 %v1175, 78
  %v4610 = vpop.permute.xlu0 %4609
  %vm4611 = vcmask 637952
  %v4612 = vsel %vm4611, %v4592, %v4594
  %v4613 = vsel %vm4611, %v4594, %v4596
  %v4614 = vsel %vm4611, %v4596, %v4598
  %v4615 = vsel %vm4611, %v4598, %v4600
  %v4616 = vsel %vm4611, %v4602, %v4604
  %v4617 = vsel %vm4611, %v4604, %v4606
  %v4618 = vsel %vm4611, %v4606, %v4608
  %v4619 = vsel %vm4611, %v4608, %v4610
  %v4625 = vsel %vm1216, %v4589, 0
  %v4628 = vsel %vm1216, %v4590, 0
  %v4630 = vsel %vm1223, %v4616, 0
  %v4632 = vsel %vm1223, %v4617, 0
  %v4634 = vsel %vm1223, %v4618, 0
  %v4636 = vsel %vm1223, %v4619, 0
  %4638 = vmatprep.subr.mxu0 0.0
  %4639 = vmatpush1.msra.mxu0 0.0
  %4640 = vmatprep.subr.mxu0 0.0
  %4641 = vmatpush1.msra.mxu0 0.0
  %4642 = vmatprep.subr.mxu0 0.0
  %4643 = vmatpush1.msra.mxu0 0.0
  %4644 = vmatprep.subr.mxu0 0.0
  %4645 = vmatpush1.msra.mxu0 0.0
  %4646 = vmatprep.subr.mxu0 0.0
  %4647 = vmatpush1.msra.mxu0 0.0
  %4648 = vmatprep.subr.mxu0 0.0
  %4649 = vmatpush1.msra.mxu0 0.0
  %4650 = vmatprep.subr.mxu0 0.0
  %4651 = vmatpush1.msra.mxu0 0.0
  %4652 = vmatprep.subr.mxu0 0.0
  %4653 = vmatpush1.msra.mxu0 0.0
  %4654 = vmatprep.subr.mxu0 0.0
  %4655 = vmatpush1.msra.mxu0 0.0
  %4656 = vmatprep.subr.mxu0 0.0
  %4657 = vmatpush1.msra.mxu0 0.0
  %4658 = vmatprep.subr.mxu0 0.0
  %4659 = vmatpush1.msra.mxu0 0.0
  %4660 = vmatprep.subr.mxu0 0.0
  %4661 = vmatpush1.msra.mxu0 0.0
  %4662 = vmatprep.subr.mxu0 0.0
  %4663 = vmatpush1.msra.mxu0 0.0
  %4664 = vmatprep.subr.mxu0 0.0
  %4665 = vmatpush1.msra.mxu0 0.0
  %4666 = vmatprep.subr.mxu0 %v4632
  %4667 = vmatpush1.msra.mxu0 %v4630
  %4668 = vmatprep.subr.mxu0 %v4613
  %4669 = vmatpush1.msra.mxu0 %v4612
  %4670 = vmatprep.subr.mxu0 0.0
  %4671 = vmatpush2.msra.mxu0 0.0
  %4672 = vmatprep.subr.mxu0 0.0
  %4673 = vmatpush2.msra.mxu0 0.0
  %4674 = vmatprep.subr.mxu0 0.0
  %4675 = vmatpush2.msra.mxu0 0.0
  %4676 = vmatprep.subr.mxu0 0.0
  %4677 = vmatpush2.msra.mxu0 0.0
  %4678 = vmatprep.subr.mxu0 0.0
  %4679 = vmatpush2.msra.mxu0 0.0
  %4680 = vmatprep.subr.mxu0 0.0
  %4681 = vmatpush2.msra.mxu0 0.0
  %4682 = vmatprep.subr.mxu0 0.0
  %4683 = vmatpush2.msra.mxu0 0.0
  %4684 = vmatprep.subr.mxu0 0.0
  %4685 = vmatpush2.msra.mxu0 0.0
  %4686 = vmatprep.subr.mxu0 0.0
  %4687 = vmatpush2.msra.mxu0 0.0
  %4688 = vmatprep.subr.mxu0 0.0
  %4689 = vmatpush2.msra.mxu0 0.0
  %4690 = vmatprep.subr.mxu0 0.0
  %4691 = vmatpush2.msra.mxu0 0.0
  %4692 = vmatprep.subr.mxu0 0.0
  %4693 = vmatpush2.msra.mxu0 0.0
  %4694 = vmatprep.subr.mxu0 0.0
  %4695 = vmatpush2.msra.mxu0 0.0
  %4696 = vmatprep.subr.mxu0 0.0
  %4697 = vmatpush2.msra.mxu0 0.0
  %4698 = vmatprep.subr.mxu0 0.0
  %4699 = vmatpush2.msra.mxu0 0.0
  %4700 = vmatprep.subr.mxu0 0.0
  %4701 = vmatpush2.msra.mxu0 0.0
  %4702 = vmatprep.mubr.f32.mxu0 0.0
  %4703 = vmatmul.mubr.f32.gmra.mxu0 %v4625
  %v4704 = vpop.f32.mrf.mxu0
  %v4705 = vadd.f32 0.0, %v4704
  %v4706 = vpop.f32.mrf.mxu0
  %4707 = vmatprep.mubr.f32.mxu0 0.0
  %4708 = vmatmul.mubr.f32.gmra.mxu0 %v4628
  %v4709 = vpop.f32.mrf.mxu0
  %v4710 = vadd.f32 0.0, %v4709
  %v4711 = vpop.f32.mrf.mxu0
  %4712 = vdwg.mxu0
  %4713 = vmatprep.subr.mxu0 0.0
  %4714 = vmatpush1.msra.mxu0 0.0
  %4715 = vmatprep.subr.mxu0 0.0
  %4716 = vmatpush1.msra.mxu0 0.0
  %4717 = vmatprep.subr.mxu0 0.0
  %4718 = vmatpush1.msra.mxu0 0.0
  %4719 = vmatprep.subr.mxu0 0.0
  %4720 = vmatpush1.msra.mxu0 0.0
  %4721 = vmatprep.subr.mxu0 0.0
  %4722 = vmatpush1.msra.mxu0 0.0
  %4723 = vmatprep.subr.mxu0 0.0
  %4724 = vmatpush1.msra.mxu0 0.0
  %4725 = vmatprep.subr.mxu0 0.0
  %4726 = vmatpush1.msra.mxu0 0.0
  %4727 = vmatprep.subr.mxu0 0.0
  %4728 = vmatpush1.msra.mxu0 0.0
  %4729 = vmatprep.subr.mxu0 0.0
  %4730 = vmatpush1.msra.mxu0 0.0
  %4731 = vmatprep.subr.mxu0 0.0
  %4732 = vmatpush1.msra.mxu0 0.0
  %4733 = vmatprep.subr.mxu0 0.0
  %4734 = vmatpush1.msra.mxu0 0.0
  %4735 = vmatprep.subr.mxu0 0.0
  %4736 = vmatpush1.msra.mxu0 0.0
  %4737 = vmatprep.subr.mxu0 0.0
  %4738 = vmatpush1.msra.mxu0 0.0
  %4739 = vmatprep.subr.mxu0 0.0
  %4740 = vmatpush1.msra.mxu0 0.0
  %4741 = vmatprep.subr.mxu0 %v4636
  %4742 = vmatpush1.msra.mxu0 %v4634
  %4743 = vmatprep.subr.mxu0 %v4615
  %4744 = vmatpush1.msra.mxu0 %v4614
  %4745 = vmatprep.subr.mxu0 0.0
  %4746 = vmatpush2.msra.mxu0 0.0
  %4747 = vmatprep.subr.mxu0 0.0
  %4748 = vmatpush2.msra.mxu0 0.0
  %4749 = vmatprep.subr.mxu0 0.0
  %4750 = vmatpush2.msra.mxu0 0.0
  %4751 = vmatprep.subr.mxu0 0.0
  %4752 = vmatpush2.msra.mxu0 0.0
  %4753 = vmatprep.subr.mxu0 0.0
  %4754 = vmatpush2.msra.mxu0 0.0
  %4755 = vmatprep.subr.mxu0 0.0
  %4756 = vmatpush2.msra.mxu0 0.0
  %4757 = vmatprep.subr.mxu0 0.0
  %4758 = vmatpush2.msra.mxu0 0.0
  %4759 = vmatprep.subr.mxu0 0.0
  %4760 = vmatpush2.msra.mxu0 0.0
  %4761 = vmatprep.subr.mxu0 0.0
  %4762 = vmatpush2.msra.mxu0 0.0
  %4763 = vmatprep.subr.mxu0 0.0
  %4764 = vmatpush2.msra.mxu0 0.0
  %4765 = vmatprep.subr.mxu0 0.0
  %4766 = vmatpush2.msra.mxu0 0.0
  %4767 = vmatprep.subr.mxu0 0.0
  %4768 = vmatpush2.msra.mxu0 0.0
  %4769 = vmatprep.subr.mxu0 0.0
  %4770 = vmatpush2.msra.mxu0 0.0
  %4771 = vmatprep.subr.mxu0 0.0
  %4772 = vmatpush2.msra.mxu0 0.0
  %4773 = vmatprep.subr.mxu0 0.0
  %4774 = vmatpush2.msra.mxu0 0.0
  %4775 = vmatprep.subr.mxu0 0.0
  %4776 = vmatpush2.msra.mxu0 0.0
  %4777 = vmatprep.mubr.f32.mxu0 0.0
  %4778 = vmatmul.mubr.f32.gmra.mxu0 %v4625
  %v4779 = vpop.f32.mrf.mxu0
  %v4780 = vadd.f32 0.0, %v4779
  %v4781 = vpop.f32.mrf.mxu0
  %v4782 = vadd.f32 0.0, %v4781
  %4783 = vmatprep.mubr.f32.mxu0 0.0
  %4784 = vmatmul.mubr.f32.gmra.mxu0 %v4628
  %v4785 = vpop.f32.mrf.mxu0
  %v4786 = vadd.f32 0.0, %v4785
  %v4787 = vpop.f32.mrf.mxu0
  %v4788 = vadd.f32 0.0, %v4787
  %4789 = vdwg.mxu0
  %v4790 = vadd.f32 %v4582, %v4705
  %v4791 = vadd.f32 %v4583, %v4780
  %v4792 = vadd.f32 %v4584, %v4782
  %v4793 = vadd.f32 %v4585, %v4710
  %v4794 = vadd.f32 %v4586, %v4786
  %v4795 = vadd.f32 %v4587, %v4788
  %s4796 = scalar_lea.vmem %s4, 288
  %v4797 = vld [vmem:[%s4796] sm:$0xff]
  %v4798 = vld [vmem:[%s4796 + $0x8] sm:$0x3]
  %4799 = vrot.lane.b32.xlu0 %v1166, 77
  %v4800 = vpop.permute.xlu0 %4799
  %4801 = vrot.lane.b32.xlu0 %v1167, 77
  %v4802 = vpop.permute.xlu0 %4801
  %4803 = vrot.lane.b32.xlu0 %v1168, 77
  %v4804 = vpop.permute.xlu0 %4803
  %4805 = vrot.lane.b32.xlu0 %v1169, 77
  %v4806 = vpop.permute.xlu0 %4805
  %4807 = vrot.lane.b32.xlu0 %v1170, 77
  %v4808 = vpop.permute.xlu0 %4807
  %4809 = vrot.lane.b32.xlu0 %v1171, 77
  %v4810 = vpop.permute.xlu0 %4809
  %4811 = vrot.lane.b32.xlu0 %v1172, 77
  %v4812 = vpop.permute.xlu0 %4811
  %4813 = vrot.lane.b32.xlu0 %v1173, 77
  %v4814 = vpop.permute.xlu0 %4813
  %4815 = vrot.lane.b32.xlu0 %v1174, 77
  %v4816 = vpop.permute.xlu0 %4815
  %4817 = vrot.lane.b32.xlu0 %v1175, 77
  %v4818 = vpop.permute.xlu0 %4817
  %vm4819 = vcmask 629760
  %v4820 = vsel %vm4819, %v4800, %v4802
  %v4821 = vsel %vm4819, %v4802, %v4804
  %v4822 = vsel %vm4819, %v4804, %v4806
  %v4823 = vsel %vm4819, %v4806, %v4808
  %v4824 = vsel %vm4819, %v4810, %v4812
  %v4825 = vsel %vm4819, %v4812, %v4814
  %v4826 = vsel %vm4819, %v4814, %v4816
  %v4827 = vsel %vm4819, %v4816, %v4818
  %v4833 = vsel %vm1216, %v4797, 0
  %v4836 = vsel %vm1216, %v4798, 0
  %v4838 = vsel %vm1223, %v4824, 0
  %v4840 = vsel %vm1223, %v4825, 0
  %v4842 = vsel %vm1223, %v4826, 0
  %v4844 = vsel %vm1223, %v4827, 0
  %4846 = vmatprep.subr.mxu0 0.0
  %4847 = vmatpush1.msra.mxu0 0.0
  %4848 = vmatprep.subr.mxu0 0.0
  %4849 = vmatpush1.msra.mxu0 0.0
  %4850 = vmatprep.subr.mxu0 0.0
  %4851 = vmatpush1.msra.mxu0 0.0
  %4852 = vmatprep.subr.mxu0 0.0
  %4853 = vmatpush1.msra.mxu0 0.0
  %4854 = vmatprep.subr.mxu0 0.0
  %4855 = vmatpush1.msra.mxu0 0.0
  %4856 = vmatprep.subr.mxu0 0.0
  %4857 = vmatpush1.msra.mxu0 0.0
  %4858 = vmatprep.subr.mxu0 0.0
  %4859 = vmatpush1.msra.mxu0 0.0
  %4860 = vmatprep.subr.mxu0 0.0
  %4861 = vmatpush1.msra.mxu0 0.0
  %4862 = vmatprep.subr.mxu0 0.0
  %4863 = vmatpush1.msra.mxu0 0.0
  %4864 = vmatprep.subr.mxu0 0.0
  %4865 = vmatpush1.msra.mxu0 0.0
  %4866 = vmatprep.subr.mxu0 0.0
  %4867 = vmatpush1.msra.mxu0 0.0
  %4868 = vmatprep.subr.mxu0 0.0
  %4869 = vmatpush1.msra.mxu0 0.0
  %4870 = vmatprep.subr.mxu0 0.0
  %4871 = vmatpush1.msra.mxu0 0.0
  %4872 = vmatprep.subr.mxu0 0.0
  %4873 = vmatpush1.msra.mxu0 0.0
  %4874 = vmatprep.subr.mxu0 %v4840
  %4875 = vmatpush1.msra.mxu0 %v4838
  %4876 = vmatprep.subr.mxu0 %v4821
  %4877 = vmatpush1.msra.mxu0 %v4820
  %4878 = vmatprep.subr.mxu0 0.0
  %4879 = vmatpush2.msra.mxu0 0.0
  %4880 = vmatprep.subr.mxu0 0.0
  %4881 = vmatpush2.msra.mxu0 0.0
  %4882 = vmatprep.subr.mxu0 0.0
  %4883 = vmatpush2.msra.mxu0 0.0
  %4884 = vmatprep.subr.mxu0 0.0
  %4885 = vmatpush2.msra.mxu0 0.0
  %4886 = vmatprep.subr.mxu0 0.0
  %4887 = vmatpush2.msra.mxu0 0.0
  %4888 = vmatprep.subr.mxu0 0.0
  %4889 = vmatpush2.msra.mxu0 0.0
  %4890 = vmatprep.subr.mxu0 0.0
  %4891 = vmatpush2.msra.mxu0 0.0
  %4892 = vmatprep.subr.mxu0 0.0
  %4893 = vmatpush2.msra.mxu0 0.0
  %4894 = vmatprep.subr.mxu0 0.0
  %4895 = vmatpush2.msra.mxu0 0.0
  %4896 = vmatprep.subr.mxu0 0.0
  %4897 = vmatpush2.msra.mxu0 0.0
  %4898 = vmatprep.subr.mxu0 0.0
  %4899 = vmatpush2.msra.mxu0 0.0
  %4900 = vmatprep.subr.mxu0 0.0
  %4901 = vmatpush2.msra.mxu0 0.0
  %4902 = vmatprep.subr.mxu0 0.0
  %4903 = vmatpush2.msra.mxu0 0.0
  %4904 = vmatprep.subr.mxu0 0.0
  %4905 = vmatpush2.msra.mxu0 0.0
  %4906 = vmatprep.subr.mxu0 0.0
  %4907 = vmatpush2.msra.mxu0 0.0
  %4908 = vmatprep.subr.mxu0 0.0
  %4909 = vmatpush2.msra.mxu0 0.0
  %4910 = vmatprep.mubr.f32.mxu0 0.0
  %4911 = vmatmul.mubr.f32.gmra.mxu0 %v4833
  %v4912 = vpop.f32.mrf.mxu0
  %v4913 = vadd.f32 0.0, %v4912
  %v4914 = vpop.f32.mrf.mxu0
  %4915 = vmatprep.mubr.f32.mxu0 0.0
  %4916 = vmatmul.mubr.f32.gmra.mxu0 %v4836
  %v4917 = vpop.f32.mrf.mxu0
  %v4918 = vadd.f32 0.0, %v4917
  %v4919 = vpop.f32.mrf.mxu0
  %4920 = vdwg.mxu0
  %4921 = vmatprep.subr.mxu0 0.0
  %4922 = vmatpush1.msra.mxu0 0.0
  %4923 = vmatprep.subr.mxu0 0.0
  %4924 = vmatpush1.msra.mxu0 0.0
  %4925 = vmatprep.subr.mxu0 0.0
  %4926 = vmatpush1.msra.mxu0 0.0
  %4927 = vmatprep.subr.mxu0 0.0
  %4928 = vmatpush1.msra.mxu0 0.0
  %4929 = vmatprep.subr.mxu0 0.0
  %4930 = vmatpush1.msra.mxu0 0.0
  %4931 = vmatprep.subr.mxu0 0.0
  %4932 = vmatpush1.msra.mxu0 0.0
  %4933 = vmatprep.subr.mxu0 0.0
  %4934 = vmatpush1.msra.mxu0 0.0
  %4935 = vmatprep.subr.mxu0 0.0
  %4936 = vmatpush1.msra.mxu0 0.0
  %4937 = vmatprep.subr.mxu0 0.0
  %4938 = vmatpush1.msra.mxu0 0.0
  %4939 = vmatprep.subr.mxu0 0.0
  %4940 = vmatpush1.msra.mxu0 0.0
  %4941 = vmatprep.subr.mxu0 0.0
  %4942 = vmatpush1.msra.mxu0 0.0
  %4943 = vmatprep.subr.mxu0 0.0
  %4944 = vmatpush1.msra.mxu0 0.0
  %4945 = vmatprep.subr.mxu0 0.0
  %4946 = vmatpush1.msra.mxu0 0.0
  %4947 = vmatprep.subr.mxu0 0.0
  %4948 = vmatpush1.msra.mxu0 0.0
  %4949 = vmatprep.subr.mxu0 %v4844
  %4950 = vmatpush1.msra.mxu0 %v4842
  %4951 = vmatprep.subr.mxu0 %v4823
  %4952 = vmatpush1.msra.mxu0 %v4822
  %4953 = vmatprep.subr.mxu0 0.0
  %4954 = vmatpush2.msra.mxu0 0.0
  %4955 = vmatprep.subr.mxu0 0.0
  %4956 = vmatpush2.msra.mxu0 0.0
  %4957 = vmatprep.subr.mxu0 0.0
  %4958 = vmatpush2.msra.mxu0 0.0
  %4959 = vmatprep.subr.mxu0 0.0
  %4960 = vmatpush2.msra.mxu0 0.0
  %4961 = vmatprep.subr.mxu0 0.0
  %4962 = vmatpush2.msra.mxu0 0.0
  %4963 = vmatprep.subr.mxu0 0.0
  %4964 = vmatpush2.msra.mxu0 0.0
  %4965 = vmatprep.subr.mxu0 0.0
  %4966 = vmatpush2.msra.mxu0 0.0
  %4967 = vmatprep.subr.mxu0 0.0
  %4968 = vmatpush2.msra.mxu0 0.0
  %4969 = vmatprep.subr.mxu0 0.0
  %4970 = vmatpush2.msra.mxu0 0.0
  %4971 = vmatprep.subr.mxu0 0.0
  %4972 = vmatpush2.msra.mxu0 0.0
  %4973 = vmatprep.subr.mxu0 0.0
  %4974 = vmatpush2.msra.mxu0 0.0
  %4975 = vmatprep.subr.mxu0 0.0
  %4976 = vmatpush2.msra.mxu0 0.0
  %4977 = vmatprep.subr.mxu0 0.0
  %4978 = vmatpush2.msra.mxu0 0.0
  %4979 = vmatprep.subr.mxu0 0.0
  %4980 = vmatpush2.msra.mxu0 0.0
  %4981 = vmatprep.subr.mxu0 0.0
  %4982 = vmatpush2.msra.mxu0 0.0
  %4983 = vmatprep.subr.mxu0 0.0
  %4984 = vmatpush2.msra.mxu0 0.0
  %4985 = vmatprep.mubr.f32.mxu0 0.0
  %4986 = vmatmul.mubr.f32.gmra.mxu0 %v4833
  %v4987 = vpop.f32.mrf.mxu0
  %v4988 = vadd.f32 0.0, %v4987
  %v4989 = vpop.f32.mrf.mxu0
  %v4990 = vadd.f32 0.0, %v4989
  %4991 = vmatprep.mubr.f32.mxu0 0.0
  %4992 = vmatmul.mubr.f32.gmra.mxu0 %v4836
  %v4993 = vpop.f32.mrf.mxu0
  %v4994 = vadd.f32 0.0, %v4993
  %v4995 = vpop.f32.mrf.mxu0
  %v4996 = vadd.f32 0.0, %v4995
  %4997 = vdwg.mxu0
  %v4998 = vadd.f32 %v4790, %v4913
  %v4999 = vadd.f32 %v4791, %v4988
  %v5000 = vadd.f32 %v4792, %v4990
  %v5001 = vadd.f32 %v4793, %v4918
  %v5002 = vadd.f32 %v4794, %v4994
  %v5003 = vadd.f32 %v4795, %v4996
  %s5004 = scalar_lea.vmem %s4, 304
  %v5005 = vld [vmem:[%s5004] sm:$0xff]
  %v5006 = vld [vmem:[%s5004 + $0x8] sm:$0x3]
  %5007 = vrot.lane.b32.xlu0 %v1166, 76
  %v5008 = vpop.permute.xlu0 %5007
  %5009 = vrot.lane.b32.xlu0 %v1167, 76
  %v5010 = vpop.permute.xlu0 %5009
  %5011 = vrot.lane.b32.xlu0 %v1168, 76
  %v5012 = vpop.permute.xlu0 %5011
  %5013 = vrot.lane.b32.xlu0 %v1169, 76
  %v5014 = vpop.permute.xlu0 %5013
  %5015 = vrot.lane.b32.xlu0 %v1170, 76
  %v5016 = vpop.permute.xlu0 %5015
  %5017 = vrot.lane.b32.xlu0 %v1171, 76
  %v5018 = vpop.permute.xlu0 %5017
  %5019 = vrot.lane.b32.xlu0 %v1172, 76
  %v5020 = vpop.permute.xlu0 %5019
  %5021 = vrot.lane.b32.xlu0 %v1173, 76
  %v5022 = vpop.permute.xlu0 %5021
  %5023 = vrot.lane.b32.xlu0 %v1174, 76
  %v5024 = vpop.permute.xlu0 %5023
  %5025 = vrot.lane.b32.xlu0 %v1175, 76
  %v5026 = vpop.permute.xlu0 %5025
  %vm5027 = vcmask 621568
  %v5028 = vsel %vm5027, %v5008, %v5010
  %v5029 = vsel %vm5027, %v5010, %v5012
  %v5030 = vsel %vm5027, %v5012, %v5014
  %v5031 = vsel %vm5027, %v5014, %v5016
  %v5032 = vsel %vm5027, %v5018, %v5020
  %v5033 = vsel %vm5027, %v5020, %v5022
  %v5034 = vsel %vm5027, %v5022, %v5024
  %v5035 = vsel %vm5027, %v5024, %v5026
  %v5041 = vsel %vm1216, %v5005, 0
  %v5044 = vsel %vm1216, %v5006, 0
  %v5046 = vsel %vm1223, %v5032, 0
  %v5048 = vsel %vm1223, %v5033, 0
  %v5050 = vsel %vm1223, %v5034, 0
  %v5052 = vsel %vm1223, %v5035, 0
  %5054 = vmatprep.subr.mxu0 0.0
  %5055 = vmatpush1.msra.mxu0 0.0
  %5056 = vmatprep.subr.mxu0 0.0
  %5057 = vmatpush1.msra.mxu0 0.0
  %5058 = vmatprep.subr.mxu0 0.0
  %5059 = vmatpush1.msra.mxu0 0.0
  %5060 = vmatprep.subr.mxu0 0.0
  %5061 = vmatpush1.msra.mxu0 0.0
  %5062 = vmatprep.subr.mxu0 0.0
  %5063 = vmatpush1.msra.mxu0 0.0
  %5064 = vmatprep.subr.mxu0 0.0
  %5065 = vmatpush1.msra.mxu0 0.0
  %5066 = vmatprep.subr.mxu0 0.0
  %5067 = vmatpush1.msra.mxu0 0.0
  %5068 = vmatprep.subr.mxu0 0.0
  %5069 = vmatpush1.msra.mxu0 0.0
  %5070 = vmatprep.subr.mxu0 0.0
  %5071 = vmatpush1.msra.mxu0 0.0
  %5072 = vmatprep.subr.mxu0 0.0
  %5073 = vmatpush1.msra.mxu0 0.0
  %5074 = vmatprep.subr.mxu0 0.0
  %5075 = vmatpush1.msra.mxu0 0.0
  %5076 = vmatprep.subr.mxu0 0.0
  %5077 = vmatpush1.msra.mxu0 0.0
  %5078 = vmatprep.subr.mxu0 0.0
  %5079 = vmatpush1.msra.mxu0 0.0
  %5080 = vmatprep.subr.mxu0 0.0
  %5081 = vmatpush1.msra.mxu0 0.0
  %5082 = vmatprep.subr.mxu0 %v5048
  %5083 = vmatpush1.msra.mxu0 %v5046
  %5084 = vmatprep.subr.mxu0 %v5029
  %5085 = vmatpush1.msra.mxu0 %v5028
  %5086 = vmatprep.subr.mxu0 0.0
  %5087 = vmatpush2.msra.mxu0 0.0
  %5088 = vmatprep.subr.mxu0 0.0
  %5089 = vmatpush2.msra.mxu0 0.0
  %5090 = vmatprep.subr.mxu0 0.0
  %5091 = vmatpush2.msra.mxu0 0.0
  %5092 = vmatprep.subr.mxu0 0.0
  %5093 = vmatpush2.msra.mxu0 0.0
  %5094 = vmatprep.subr.mxu0 0.0
  %5095 = vmatpush2.msra.mxu0 0.0
  %5096 = vmatprep.subr.mxu0 0.0
  %5097 = vmatpush2.msra.mxu0 0.0
  %5098 = vmatprep.subr.mxu0 0.0
  %5099 = vmatpush2.msra.mxu0 0.0
  %5100 = vmatprep.subr.mxu0 0.0
  %5101 = vmatpush2.msra.mxu0 0.0
  %5102 = vmatprep.subr.mxu0 0.0
  %5103 = vmatpush2.msra.mxu0 0.0
  %5104 = vmatprep.subr.mxu0 0.0
  %5105 = vmatpush2.msra.mxu0 0.0
  %5106 = vmatprep.subr.mxu0 0.0
  %5107 = vmatpush2.msra.mxu0 0.0
  %5108 = vmatprep.subr.mxu0 0.0
  %5109 = vmatpush2.msra.mxu0 0.0
  %5110 = vmatprep.subr.mxu0 0.0
  %5111 = vmatpush2.msra.mxu0 0.0
  %5112 = vmatprep.subr.mxu0 0.0
  %5113 = vmatpush2.msra.mxu0 0.0
  %5114 = vmatprep.subr.mxu0 0.0
  %5115 = vmatpush2.msra.mxu0 0.0
  %5116 = vmatprep.subr.mxu0 0.0
  %5117 = vmatpush2.msra.mxu0 0.0
  %5118 = vmatprep.mubr.f32.mxu0 0.0
  %5119 = vmatmul.mubr.f32.gmra.mxu0 %v5041
  %v5120 = vpop.f32.mrf.mxu0
  %v5121 = vadd.f32 0.0, %v5120
  %v5122 = vpop.f32.mrf.mxu0
  %5123 = vmatprep.mubr.f32.mxu0 0.0
  %5124 = vmatmul.mubr.f32.gmra.mxu0 %v5044
  %v5125 = vpop.f32.mrf.mxu0
  %v5126 = vadd.f32 0.0, %v5125
  %v5127 = vpop.f32.mrf.mxu0
  %5128 = vdwg.mxu0
  %5129 = vmatprep.subr.mxu0 0.0
  %5130 = vmatpush1.msra.mxu0 0.0
  %5131 = vmatprep.subr.mxu0 0.0
  %5132 = vmatpush1.msra.mxu0 0.0
  %5133 = vmatprep.subr.mxu0 0.0
  %5134 = vmatpush1.msra.mxu0 0.0
  %5135 = vmatprep.subr.mxu0 0.0
  %5136 = vmatpush1.msra.mxu0 0.0
  %5137 = vmatprep.subr.mxu0 0.0
  %5138 = vmatpush1.msra.mxu0 0.0
  %5139 = vmatprep.subr.mxu0 0.0
  %5140 = vmatpush1.msra.mxu0 0.0
  %5141 = vmatprep.subr.mxu0 0.0
  %5142 = vmatpush1.msra.mxu0 0.0
  %5143 = vmatprep.subr.mxu0 0.0
  %5144 = vmatpush1.msra.mxu0 0.0
  %5145 = vmatprep.subr.mxu0 0.0
  %5146 = vmatpush1.msra.mxu0 0.0
  %5147 = vmatprep.subr.mxu0 0.0
  %5148 = vmatpush1.msra.mxu0 0.0
  %5149 = vmatprep.subr.mxu0 0.0
  %5150 = vmatpush1.msra.mxu0 0.0
  %5151 = vmatprep.subr.mxu0 0.0
  %5152 = vmatpush1.msra.mxu0 0.0
  %5153 = vmatprep.subr.mxu0 0.0
  %5154 = vmatpush1.msra.mxu0 0.0
  %5155 = vmatprep.subr.mxu0 0.0
  %5156 = vmatpush1.msra.mxu0 0.0
  %5157 = vmatprep.subr.mxu0 %v5052
  %5158 = vmatpush1.msra.mxu0 %v5050
  %5159 = vmatprep.subr.mxu0 %v5031
  %5160 = vmatpush1.msra.mxu0 %v5030
  %5161 = vmatprep.subr.mxu0 0.0
  %5162 = vmatpush2.msra.mxu0 0.0
  %5163 = vmatprep.subr.mxu0 0.0
  %5164 = vmatpush2.msra.mxu0 0.0
  %5165 = vmatprep.subr.mxu0 0.0
  %5166 = vmatpush2.msra.mxu0 0.0
  %5167 = vmatprep.subr.mxu0 0.0
  %5168 = vmatpush2.msra.mxu0 0.0
  %5169 = vmatprep.subr.mxu0 0.0
  %5170 = vmatpush2.msra.mxu0 0.0
  %5171 = vmatprep.subr.mxu0 0.0
  %5172 = vmatpush2.msra.mxu0 0.0
  %5173 = vmatprep.subr.mxu0 0.0
  %5174 = vmatpush2.msra.mxu0 0.0
  %5175 = vmatprep.subr.mxu0 0.0
  %5176 = vmatpush2.msra.mxu0 0.0
  %5177 = vmatprep.subr.mxu0 0.0
  %5178 = vmatpush2.msra.mxu0 0.0
  %5179 = vmatprep.subr.mxu0 0.0
  %5180 = vmatpush2.msra.mxu0 0.0
  %5181 = vmatprep.subr.mxu0 0.0
  %5182 = vmatpush2.msra.mxu0 0.0
  %5183 = vmatprep.subr.mxu0 0.0
  %5184 = vmatpush2.msra.mxu0 0.0
  %5185 = vmatprep.subr.mxu0 0.0
  %5186 = vmatpush2.msra.mxu0 0.0
  %5187 = vmatprep.subr.mxu0 0.0
  %5188 = vmatpush2.msra.mxu0 0.0
  %5189 = vmatprep.subr.mxu0 0.0
  %5190 = vmatpush2.msra.mxu0 0.0
  %5191 = vmatprep.subr.mxu0 0.0
  %5192 = vmatpush2.msra.mxu0 0.0
  %5193 = vmatprep.mubr.f32.mxu0 0.0
  %5194 = vmatmul.mubr.f32.gmra.mxu0 %v5041
  %v5195 = vpop.f32.mrf.mxu0
  %v5196 = vadd.f32 0.0, %v5195
  %v5197 = vpop.f32.mrf.mxu0
  %v5198 = vadd.f32 0.0, %v5197
  %5199 = vmatprep.mubr.f32.mxu0 0.0
  %5200 = vmatmul.mubr.f32.gmra.mxu0 %v5044
  %v5201 = vpop.f32.mrf.mxu0
  %v5202 = vadd.f32 0.0, %v5201
  %v5203 = vpop.f32.mrf.mxu0
  %v5204 = vadd.f32 0.0, %v5203
  %5205 = vdwg.mxu0
  %v5206 = vadd.f32 %v4998, %v5121
  %v5207 = vadd.f32 %v4999, %v5196
  %v5208 = vadd.f32 %v5000, %v5198
  %v5209 = vadd.f32 %v5001, %v5126
  %v5210 = vadd.f32 %v5002, %v5202
  %v5211 = vadd.f32 %v5003, %v5204
  %s5212 = scalar_lea.vmem %s4, 320
  %v5213 = vld [vmem:[%s5212] sm:$0xff]
  %v5214 = vld [vmem:[%s5212 + $0x8] sm:$0x3]
  %5215 = vrot.lane.b32.xlu0 %v1166, 64
  %v5216 = vpop.permute.xlu0 %5215
  %5217 = vrot.lane.b32.xlu0 %v1167, 64
  %v5218 = vpop.permute.xlu0 %5217
  %5219 = vrot.lane.b32.xlu0 %v1168, 64
  %v5220 = vpop.permute.xlu0 %5219
  %5221 = vrot.lane.b32.xlu0 %v1169, 64
  %v5222 = vpop.permute.xlu0 %5221
  %5223 = vrot.lane.b32.xlu0 %v1170, 64
  %v5224 = vpop.permute.xlu0 %5223
  %5225 = vrot.lane.b32.xlu0 %v1171, 64
  %v5226 = vpop.permute.xlu0 %5225
  %5227 = vrot.lane.b32.xlu0 %v1172, 64
  %v5228 = vpop.permute.xlu0 %5227
  %5229 = vrot.lane.b32.xlu0 %v1173, 64
  %v5230 = vpop.permute.xlu0 %5229
  %5231 = vrot.lane.b32.xlu0 %v1174, 64
  %v5232 = vpop.permute.xlu0 %5231
  %5233 = vrot.lane.b32.xlu0 %v1175, 64
  %v5234 = vpop.permute.xlu0 %5233
  %vm5235 = vcmask 523264
  %v5236 = vsel %vm5235, %v5216, %v5218
  %v5237 = vsel %vm5235, %v5218, %v5220
  %v5238 = vsel %vm5235, %v5220, %v5222
  %v5239 = vsel %vm5235, %v5222, %v5224
  %v5240 = vsel %vm5235, %v5226, %v5228
  %v5241 = vsel %vm5235, %v5228, %v5230
  %v5242 = vsel %vm5235, %v5230, %v5232
  %v5243 = vsel %vm5235, %v5232, %v5234
  %v5249 = vsel %vm1216, %v5213, 0
  %v5252 = vsel %vm1216, %v5214, 0
  %v5254 = vsel %vm1223, %v5240, 0
  %v5256 = vsel %vm1223, %v5241, 0
  %v5258 = vsel %vm1223, %v5242, 0
  %v5260 = vsel %vm1223, %v5243, 0
  %5262 = vmatprep.subr.mxu0 0.0
  %5263 = vmatpush1.msra.mxu0 0.0
  %5264 = vmatprep.subr.mxu0 0.0
  %5265 = vmatpush1.msra.mxu0 0.0
  %5266 = vmatprep.subr.mxu0 0.0
  %5267 = vmatpush1.msra.mxu0 0.0
  %5268 = vmatprep.subr.mxu0 0.0
  %5269 = vmatpush1.msra.mxu0 0.0
  %5270 = vmatprep.subr.mxu0 0.0
  %5271 = vmatpush1.msra.mxu0 0.0
  %5272 = vmatprep.subr.mxu0 0.0
  %5273 = vmatpush1.msra.mxu0 0.0
  %5274 = vmatprep.subr.mxu0 0.0
  %5275 = vmatpush1.msra.mxu0 0.0
  %5276 = vmatprep.subr.mxu0 0.0
  %5277 = vmatpush1.msra.mxu0 0.0
  %5278 = vmatprep.subr.mxu0 0.0
  %5279 = vmatpush1.msra.mxu0 0.0
  %5280 = vmatprep.subr.mxu0 0.0
  %5281 = vmatpush1.msra.mxu0 0.0
  %5282 = vmatprep.subr.mxu0 0.0
  %5283 = vmatpush1.msra.mxu0 0.0
  %5284 = vmatprep.subr.mxu0 0.0
  %5285 = vmatpush1.msra.mxu0 0.0
  %5286 = vmatprep.subr.mxu0 0.0
  %5287 = vmatpush1.msra.mxu0 0.0
  %5288 = vmatprep.subr.mxu0 0.0
  %5289 = vmatpush1.msra.mxu0 0.0
  %5290 = vmatprep.subr.mxu0 %v5256
  %5291 = vmatpush1.msra.mxu0 %v5254
  %5292 = vmatprep.subr.mxu0 %v5237
  %5293 = vmatpush1.msra.mxu0 %v5236
  %5294 = vmatprep.subr.mxu0 0.0
  %5295 = vmatpush2.msra.mxu0 0.0
  %5296 = vmatprep.subr.mxu0 0.0
  %5297 = vmatpush2.msra.mxu0 0.0
  %5298 = vmatprep.subr.mxu0 0.0
  %5299 = vmatpush2.msra.mxu0 0.0
  %5300 = vmatprep.subr.mxu0 0.0
  %5301 = vmatpush2.msra.mxu0 0.0
  %5302 = vmatprep.subr.mxu0 0.0
  %5303 = vmatpush2.msra.mxu0 0.0
  %5304 = vmatprep.subr.mxu0 0.0
  %5305 = vmatpush2.msra.mxu0 0.0
  %5306 = vmatprep.subr.mxu0 0.0
  %5307 = vmatpush2.msra.mxu0 0.0
  %5308 = vmatprep.subr.mxu0 0.0
  %5309 = vmatpush2.msra.mxu0 0.0
  %5310 = vmatprep.subr.mxu0 0.0
  %5311 = vmatpush2.msra.mxu0 0.0
  %5312 = vmatprep.subr.mxu0 0.0
  %5313 = vmatpush2.msra.mxu0 0.0
  %5314 = vmatprep.subr.mxu0 0.0
  %5315 = vmatpush2.msra.mxu0 0.0
  %5316 = vmatprep.subr.mxu0 0.0
  %5317 = vmatpush2.msra.mxu0 0.0
  %5318 = vmatprep.subr.mxu0 0.0
  %5319 = vmatpush2.msra.mxu0 0.0
  %5320 = vmatprep.subr.mxu0 0.0
  %5321 = vmatpush2.msra.mxu0 0.0
  %5322 = vmatprep.subr.mxu0 0.0
  %5323 = vmatpush2.msra.mxu0 0.0
  %5324 = vmatprep.subr.mxu0 0.0
  %5325 = vmatpush2.msra.mxu0 0.0
  %5326 = vmatprep.mubr.f32.mxu0 0.0
  %5327 = vmatmul.mubr.f32.gmra.mxu0 %v5249
  %v5328 = vpop.f32.mrf.mxu0
  %v5329 = vadd.f32 0.0, %v5328
  %v5330 = vpop.f32.mrf.mxu0
  %5331 = vmatprep.mubr.f32.mxu0 0.0
  %5332 = vmatmul.mubr.f32.gmra.mxu0 %v5252
  %v5333 = vpop.f32.mrf.mxu0
  %v5334 = vadd.f32 0.0, %v5333
  %v5335 = vpop.f32.mrf.mxu0
  %5336 = vdwg.mxu0
  %5337 = vmatprep.subr.mxu0 0.0
  %5338 = vmatpush1.msra.mxu0 0.0
  %5339 = vmatprep.subr.mxu0 0.0
  %5340 = vmatpush1.msra.mxu0 0.0
  %5341 = vmatprep.subr.mxu0 0.0
  %5342 = vmatpush1.msra.mxu0 0.0
  %5343 = vmatprep.subr.mxu0 0.0
  %5344 = vmatpush1.msra.mxu0 0.0
  %5345 = vmatprep.subr.mxu0 0.0
  %5346 = vmatpush1.msra.mxu0 0.0
  %5347 = vmatprep.subr.mxu0 0.0
  %5348 = vmatpush1.msra.mxu0 0.0
  %5349 = vmatprep.subr.mxu0 0.0
  %5350 = vmatpush1.msra.mxu0 0.0
  %5351 = vmatprep.subr.mxu0 0.0
  %5352 = vmatpush1.msra.mxu0 0.0
  %5353 = vmatprep.subr.mxu0 0.0
  %5354 = vmatpush1.msra.mxu0 0.0
  %5355 = vmatprep.subr.mxu0 0.0
  %5356 = vmatpush1.msra.mxu0 0.0
  %5357 = vmatprep.subr.mxu0 0.0
  %5358 = vmatpush1.msra.mxu0 0.0
  %5359 = vmatprep.subr.mxu0 0.0
  %5360 = vmatpush1.msra.mxu0 0.0
  %5361 = vmatprep.subr.mxu0 0.0
  %5362 = vmatpush1.msra.mxu0 0.0
  %5363 = vmatprep.subr.mxu0 0.0
  %5364 = vmatpush1.msra.mxu0 0.0
  %5365 = vmatprep.subr.mxu0 %v5260
  %5366 = vmatpush1.msra.mxu0 %v5258
  %5367 = vmatprep.subr.mxu0 %v5239
  %5368 = vmatpush1.msra.mxu0 %v5238
  %5369 = vmatprep.subr.mxu0 0.0
  %5370 = vmatpush2.msra.mxu0 0.0
  %5371 = vmatprep.subr.mxu0 0.0
  %5372 = vmatpush2.msra.mxu0 0.0
  %5373 = vmatprep.subr.mxu0 0.0
  %5374 = vmatpush2.msra.mxu0 0.0
  %5375 = vmatprep.subr.mxu0 0.0
  %5376 = vmatpush2.msra.mxu0 0.0
  %5377 = vmatprep.subr.mxu0 0.0
  %5378 = vmatpush2.msra.mxu0 0.0
  %5379 = vmatprep.subr.mxu0 0.0
  %5380 = vmatpush2.msra.mxu0 0.0
  %5381 = vmatprep.subr.mxu0 0.0
  %5382 = vmatpush2.msra.mxu0 0.0
  %5383 = vmatprep.subr.mxu0 0.0
  %5384 = vmatpush2.msra.mxu0 0.0
  %5385 = vmatprep.subr.mxu0 0.0
  %5386 = vmatpush2.msra.mxu0 0.0
  %5387 = vmatprep.subr.mxu0 0.0
  %5388 = vmatpush2.msra.mxu0 0.0
  %5389 = vmatprep.subr.mxu0 0.0
  %5390 = vmatpush2.msra.mxu0 0.0
  %5391 = vmatprep.subr.mxu0 0.0
  %5392 = vmatpush2.msra.mxu0 0.0
  %5393 = vmatprep.subr.mxu0 0.0
  %5394 = vmatpush2.msra.mxu0 0.0
  %5395 = vmatprep.subr.mxu0 0.0
  %5396 = vmatpush2.msra.mxu0 0.0
  %5397 = vmatprep.subr.mxu0 0.0
  %5398 = vmatpush2.msra.mxu0 0.0
  %5399 = vmatprep.subr.mxu0 0.0
  %5400 = vmatpush2.msra.mxu0 0.0
  %5401 = vmatprep.mubr.f32.mxu0 0.0
  %5402 = vmatmul.mubr.f32.gmra.mxu0 %v5249
  %v5403 = vpop.f32.mrf.mxu0
  %v5404 = vadd.f32 0.0, %v5403
  %v5405 = vpop.f32.mrf.mxu0
  %v5406 = vadd.f32 0.0, %v5405
  %5407 = vmatprep.mubr.f32.mxu0 0.0
  %5408 = vmatmul.mubr.f32.gmra.mxu0 %v5252
  %v5409 = vpop.f32.mrf.mxu0
  %v5410 = vadd.f32 0.0, %v5409
  %v5411 = vpop.f32.mrf.mxu0
  %v5412 = vadd.f32 0.0, %v5411
  %5413 = vdwg.mxu0
  %v5414 = vadd.f32 %v5206, %v5329
  %v5415 = vadd.f32 %v5207, %v5404
  %v5416 = vadd.f32 %v5208, %v5406
  %v5417 = vadd.f32 %v5209, %v5334
  %v5418 = vadd.f32 %v5210, %v5410
  %v5419 = vadd.f32 %v5211, %v5412
  %s5420 = scalar_lea.vmem %s4, 336
  %v5421 = vld [vmem:[%s5420] sm:$0xff]
  %v5422 = vld [vmem:[%s5420 + $0x8] sm:$0x3]
  %5423 = vrot.lane.b32.xlu0 %v1166, 63
  %v5424 = vpop.permute.xlu0 %5423
  %5425 = vrot.lane.b32.xlu0 %v1167, 63
  %v5426 = vpop.permute.xlu0 %5425
  %5427 = vrot.lane.b32.xlu0 %v1168, 63
  %v5428 = vpop.permute.xlu0 %5427
  %5429 = vrot.lane.b32.xlu0 %v1169, 63
  %v5430 = vpop.permute.xlu0 %5429
  %5431 = vrot.lane.b32.xlu0 %v1170, 63
  %v5432 = vpop.permute.xlu0 %5431
  %5433 = vrot.lane.b32.xlu0 %v1171, 63
  %v5434 = vpop.permute.xlu0 %5433
  %5435 = vrot.lane.b32.xlu0 %v1172, 63
  %v5436 = vpop.permute.xlu0 %5435
  %5437 = vrot.lane.b32.xlu0 %v1173, 63
  %v5438 = vpop.permute.xlu0 %5437
  %5439 = vrot.lane.b32.xlu0 %v1174, 63
  %v5440 = vpop.permute.xlu0 %5439
  %5441 = vrot.lane.b32.xlu0 %v1175, 63
  %v5442 = vpop.permute.xlu0 %5441
  %vm5443 = vcmask 515072
  %v5444 = vsel %vm5443, %v5424, %v5426
  %v5445 = vsel %vm5443, %v5426, %v5428
  %v5446 = vsel %vm5443, %v5428, %v5430
  %v5447 = vsel %vm5443, %v5430, %v5432
  %v5448 = vsel %vm5443, %v5434, %v5436
  %v5449 = vsel %vm5443, %v5436, %v5438
  %v5450 = vsel %vm5443, %v5438, %v5440
  %v5451 = vsel %vm5443, %v5440, %v5442
  %v5457 = vsel %vm1216, %v5421, 0
  %v5460 = vsel %vm1216, %v5422, 0
  %v5462 = vsel %vm1223, %v5448, 0
  %v5464 = vsel %vm1223, %v5449, 0
  %v5466 = vsel %vm1223, %v5450, 0
  %v5468 = vsel %vm1223, %v5451, 0
  %5470 = vmatprep.subr.mxu0 0.0
  %5471 = vmatpush1.msra.mxu0 0.0
  %5472 = vmatprep.subr.mxu0 0.0
  %5473 = vmatpush1.msra.mxu0 0.0
  %5474 = vmatprep.subr.mxu0 0.0
  %5475 = vmatpush1.msra.mxu0 0.0
  %5476 = vmatprep.subr.mxu0 0.0
  %5477 = vmatpush1.msra.mxu0 0.0
  %5478 = vmatprep.subr.mxu0 0.0
  %5479 = vmatpush1.msra.mxu0 0.0
  %5480 = vmatprep.subr.mxu0 0.0
  %5481 = vmatpush1.msra.mxu0 0.0
  %5482 = vmatprep.subr.mxu0 0.0
  %5483 = vmatpush1.msra.mxu0 0.0
  %5484 = vmatprep.subr.mxu0 0.0
  %5485 = vmatpush1.msra.mxu0 0.0
  %5486 = vmatprep.subr.mxu0 0.0
  %5487 = vmatpush1.msra.mxu0 0.0
  %5488 = vmatprep.subr.mxu0 0.0
  %5489 = vmatpush1.msra.mxu0 0.0
  %5490 = vmatprep.subr.mxu0 0.0
  %5491 = vmatpush1.msra.mxu0 0.0
  %5492 = vmatprep.subr.mxu0 0.0
  %5493 = vmatpush1.msra.mxu0 0.0
  %5494 = vmatprep.subr.mxu0 0.0
  %5495 = vmatpush1.msra.mxu0 0.0
  %5496 = vmatprep.subr.mxu0 0.0
  %5497 = vmatpush1.msra.mxu0 0.0
  %5498 = vmatprep.subr.mxu0 %v5464
  %5499 = vmatpush1.msra.mxu0 %v5462
  %5500 = vmatprep.subr.mxu0 %v5445
  %5501 = vmatpush1.msra.mxu0 %v5444
  %5502 = vmatprep.subr.mxu0 0.0
  %5503 = vmatpush2.msra.mxu0 0.0
  %5504 = vmatprep.subr.mxu0 0.0
  %5505 = vmatpush2.msra.mxu0 0.0
  %5506 = vmatprep.subr.mxu0 0.0
  %5507 = vmatpush2.msra.mxu0 0.0
  %5508 = vmatprep.subr.mxu0 0.0
  %5509 = vmatpush2.msra.mxu0 0.0
  %5510 = vmatprep.subr.mxu0 0.0
  %5511 = vmatpush2.msra.mxu0 0.0
  %5512 = vmatprep.subr.mxu0 0.0
  %5513 = vmatpush2.msra.mxu0 0.0
  %5514 = vmatprep.subr.mxu0 0.0
  %5515 = vmatpush2.msra.mxu0 0.0
  %5516 = vmatprep.subr.mxu0 0.0
  %5517 = vmatpush2.msra.mxu0 0.0
  %5518 = vmatprep.subr.mxu0 0.0
  %5519 = vmatpush2.msra.mxu0 0.0
  %5520 = vmatprep.subr.mxu0 0.0
  %5521 = vmatpush2.msra.mxu0 0.0
  %5522 = vmatprep.subr.mxu0 0.0
  %5523 = vmatpush2.msra.mxu0 0.0
  %5524 = vmatprep.subr.mxu0 0.0
  %5525 = vmatpush2.msra.mxu0 0.0
  %5526 = vmatprep.subr.mxu0 0.0
  %5527 = vmatpush2.msra.mxu0 0.0
  %5528 = vmatprep.subr.mxu0 0.0
  %5529 = vmatpush2.msra.mxu0 0.0
  %5530 = vmatprep.subr.mxu0 0.0
  %5531 = vmatpush2.msra.mxu0 0.0
  %5532 = vmatprep.subr.mxu0 0.0
  %5533 = vmatpush2.msra.mxu0 0.0
  %5534 = vmatprep.mubr.f32.mxu0 0.0
  %5535 = vmatmul.mubr.f32.gmra.mxu0 %v5457
  %v5536 = vpop.f32.mrf.mxu0
  %v5537 = vadd.f32 0.0, %v5536
  %v5538 = vpop.f32.mrf.mxu0
  %5539 = vmatprep.mubr.f32.mxu0 0.0
  %5540 = vmatmul.mubr.f32.gmra.mxu0 %v5460
  %v5541 = vpop.f32.mrf.mxu0
  %v5542 = vadd.f32 0.0, %v5541
  %v5543 = vpop.f32.mrf.mxu0
  %5544 = vdwg.mxu0
  %5545 = vmatprep.subr.mxu0 0.0
  %5546 = vmatpush1.msra.mxu0 0.0
  %5547 = vmatprep.subr.mxu0 0.0
  %5548 = vmatpush1.msra.mxu0 0.0
  %5549 = vmatprep.subr.mxu0 0.0
  %5550 = vmatpush1.msra.mxu0 0.0
  %5551 = vmatprep.subr.mxu0 0.0
  %5552 = vmatpush1.msra.mxu0 0.0
  %5553 = vmatprep.subr.mxu0 0.0
  %5554 = vmatpush1.msra.mxu0 0.0
  %5555 = vmatprep.subr.mxu0 0.0
  %5556 = vmatpush1.msra.mxu0 0.0
  %5557 = vmatprep.subr.mxu0 0.0
  %5558 = vmatpush1.msra.mxu0 0.0
  %5559 = vmatprep.subr.mxu0 0.0
  %5560 = vmatpush1.msra.mxu0 0.0
  %5561 = vmatprep.subr.mxu0 0.0
  %5562 = vmatpush1.msra.mxu0 0.0
  %5563 = vmatprep.subr.mxu0 0.0
  %5564 = vmatpush1.msra.mxu0 0.0
  %5565 = vmatprep.subr.mxu0 0.0
  %5566 = vmatpush1.msra.mxu0 0.0
  %5567 = vmatprep.subr.mxu0 0.0
  %5568 = vmatpush1.msra.mxu0 0.0
  %5569 = vmatprep.subr.mxu0 0.0
  %5570 = vmatpush1.msra.mxu0 0.0
  %5571 = vmatprep.subr.mxu0 0.0
  %5572 = vmatpush1.msra.mxu0 0.0
  %5573 = vmatprep.subr.mxu0 %v5468
  %5574 = vmatpush1.msra.mxu0 %v5466
  %5575 = vmatprep.subr.mxu0 %v5447
  %5576 = vmatpush1.msra.mxu0 %v5446
  %5577 = vmatprep.subr.mxu0 0.0
  %5578 = vmatpush2.msra.mxu0 0.0
  %5579 = vmatprep.subr.mxu0 0.0
  %5580 = vmatpush2.msra.mxu0 0.0
  %5581 = vmatprep.subr.mxu0 0.0
  %5582 = vmatpush2.msra.mxu0 0.0
  %5583 = vmatprep.subr.mxu0 0.0
  %5584 = vmatpush2.msra.mxu0 0.0
  %5585 = vmatprep.subr.mxu0 0.0
  %5586 = vmatpush2.msra.mxu0 0.0
  %5587 = vmatprep.subr.mxu0 0.0
  %5588 = vmatpush2.msra.mxu0 0.0
  %5589 = vmatprep.subr.mxu0 0.0
  %5590 = vmatpush2.msra.mxu0 0.0
  %5591 = vmatprep.subr.mxu0 0.0
  %5592 = vmatpush2.msra.mxu0 0.0
  %5593 = vmatprep.subr.mxu0 0.0
  %5594 = vmatpush2.msra.mxu0 0.0
  %5595 = vmatprep.subr.mxu0 0.0
  %5596 = vmatpush2.msra.mxu0 0.0
  %5597 = vmatprep.subr.mxu0 0.0
  %5598 = vmatpush2.msra.mxu0 0.0
  %5599 = vmatprep.subr.mxu0 0.0
  %5600 = vmatpush2.msra.mxu0 0.0
  %5601 = vmatprep.subr.mxu0 0.0
  %5602 = vmatpush2.msra.mxu0 0.0
  %5603 = vmatprep.subr.mxu0 0.0
  %5604 = vmatpush2.msra.mxu0 0.0
  %5605 = vmatprep.subr.mxu0 0.0
  %5606 = vmatpush2.msra.mxu0 0.0
  %5607 = vmatprep.subr.mxu0 0.0
  %5608 = vmatpush2.msra.mxu0 0.0
  %5609 = vmatprep.mubr.f32.mxu0 0.0
  %5610 = vmatmul.mubr.f32.gmra.mxu0 %v5457
  %v5611 = vpop.f32.mrf.mxu0
  %v5612 = vadd.f32 0.0, %v5611
  %v5613 = vpop.f32.mrf.mxu0
  %v5614 = vadd.f32 0.0, %v5613
  %5615 = vmatprep.mubr.f32.mxu0 0.0
  %5616 = vmatmul.mubr.f32.gmra.mxu0 %v5460
  %v5617 = vpop.f32.mrf.mxu0
  %v5618 = vadd.f32 0.0, %v5617
  %v5619 = vpop.f32.mrf.mxu0
  %v5620 = vadd.f32 0.0, %v5619
  %5621 = vdwg.mxu0
  %v5622 = vadd.f32 %v5414, %v5537
  %v5623 = vadd.f32 %v5415, %v5612
  %v5624 = vadd.f32 %v5416, %v5614
  %v5625 = vadd.f32 %v5417, %v5542
  %v5626 = vadd.f32 %v5418, %v5618
  %v5627 = vadd.f32 %v5419, %v5620
  %s5628 = scalar_lea.vmem %s4, 352
  %v5629 = vld [vmem:[%s5628] sm:$0xff]
  %v5630 = vld [vmem:[%s5628 + $0x8] sm:$0x3]
  %5631 = vrot.lane.b32.xlu0 %v1166, 62
  %v5632 = vpop.permute.xlu0 %5631
  %5633 = vrot.lane.b32.xlu0 %v1167, 62
  %v5634 = vpop.permute.xlu0 %5633
  %5635 = vrot.lane.b32.xlu0 %v1168, 62
  %v5636 = vpop.permute.xlu0 %5635
  %5637 = vrot.lane.b32.xlu0 %v1169, 62
  %v5638 = vpop.permute.xlu0 %5637
  %5639 = vrot.lane.b32.xlu0 %v1170, 62
  %v5640 = vpop.permute.xlu0 %5639
  %5641 = vrot.lane.b32.xlu0 %v1171, 62
  %v5642 = vpop.permute.xlu0 %5641
  %5643 = vrot.lane.b32.xlu0 %v1172, 62
  %v5644 = vpop.permute.xlu0 %5643
  %5645 = vrot.lane.b32.xlu0 %v1173, 62
  %v5646 = vpop.permute.xlu0 %5645
  %5647 = vrot.lane.b32.xlu0 %v1174, 62
  %v5648 = vpop.permute.xlu0 %5647
  %5649 = vrot.lane.b32.xlu0 %v1175, 62
  %v5650 = vpop.permute.xlu0 %5649
  %vm5651 = vcmask 506880
  %v5652 = vsel %vm5651, %v5632, %v5634
  %v5653 = vsel %vm5651, %v5634, %v5636
  %v5654 = vsel %vm5651, %v5636, %v5638
  %v5655 = vsel %vm5651, %v5638, %v5640
  %v5656 = vsel %vm5651, %v5642, %v5644
  %v5657 = vsel %vm5651, %v5644, %v5646
  %v5658 = vsel %vm5651, %v5646, %v5648
  %v5659 = vsel %vm5651, %v5648, %v5650
  %v5665 = vsel %vm1216, %v5629, 0
  %v5668 = vsel %vm1216, %v5630, 0
  %v5670 = vsel %vm1223, %v5656, 0
  %v5672 = vsel %vm1223, %v5657, 0
  %v5674 = vsel %vm1223, %v5658, 0
  %v5676 = vsel %vm1223, %v5659, 0
  %5678 = vmatprep.subr.mxu0 0.0
  %5679 = vmatpush1.msra.mxu0 0.0
  %5680 = vmatprep.subr.mxu0 0.0
  %5681 = vmatpush1.msra.mxu0 0.0
  %5682 = vmatprep.subr.mxu0 0.0
  %5683 = vmatpush1.msra.mxu0 0.0
  %5684 = vmatprep.subr.mxu0 0.0
  %5685 = vmatpush1.msra.mxu0 0.0
  %5686 = vmatprep.subr.mxu0 0.0
  %5687 = vmatpush1.msra.mxu0 0.0
  %5688 = vmatprep.subr.mxu0 0.0
  %5689 = vmatpush1.msra.mxu0 0.0
  %5690 = vmatprep.subr.mxu0 0.0
  %5691 = vmatpush1.msra.mxu0 0.0
  %5692 = vmatprep.subr.mxu0 0.0
  %5693 = vmatpush1.msra.mxu0 0.0
  %5694 = vmatprep.subr.mxu0 0.0
  %5695 = vmatpush1.msra.mxu0 0.0
  %5696 = vmatprep.subr.mxu0 0.0
  %5697 = vmatpush1.msra.mxu0 0.0
  %5698 = vmatprep.subr.mxu0 0.0
  %5699 = vmatpush1.msra.mxu0 0.0
  %5700 = vmatprep.subr.mxu0 0.0
  %5701 = vmatpush1.msra.mxu0 0.0
  %5702 = vmatprep.subr.mxu0 0.0
  %5703 = vmatpush1.msra.mxu0 0.0
  %5704 = vmatprep.subr.mxu0 0.0
  %5705 = vmatpush1.msra.mxu0 0.0
  %5706 = vmatprep.subr.mxu0 %v5672
  %5707 = vmatpush1.msra.mxu0 %v5670
  %5708 = vmatprep.subr.mxu0 %v5653
  %5709 = vmatpush1.msra.mxu0 %v5652
  %5710 = vmatprep.subr.mxu0 0.0
  %5711 = vmatpush2.msra.mxu0 0.0
  %5712 = vmatprep.subr.mxu0 0.0
  %5713 = vmatpush2.msra.mxu0 0.0
  %5714 = vmatprep.subr.mxu0 0.0
  %5715 = vmatpush2.msra.mxu0 0.0
  %5716 = vmatprep.subr.mxu0 0.0
  %5717 = vmatpush2.msra.mxu0 0.0
  %5718 = vmatprep.subr.mxu0 0.0
  %5719 = vmatpush2.msra.mxu0 0.0
  %5720 = vmatprep.subr.mxu0 0.0
  %5721 = vmatpush2.msra.mxu0 0.0
  %5722 = vmatprep.subr.mxu0 0.0
  %5723 = vmatpush2.msra.mxu0 0.0
  %5724 = vmatprep.subr.mxu0 0.0
  %5725 = vmatpush2.msra.mxu0 0.0
  %5726 = vmatprep.subr.mxu0 0.0
  %5727 = vmatpush2.msra.mxu0 0.0
  %5728 = vmatprep.subr.mxu0 0.0
  %5729 = vmatpush2.msra.mxu0 0.0
  %5730 = vmatprep.subr.mxu0 0.0
  %5731 = vmatpush2.msra.mxu0 0.0
  %5732 = vmatprep.subr.mxu0 0.0
  %5733 = vmatpush2.msra.mxu0 0.0
  %5734 = vmatprep.subr.mxu0 0.0
  %5735 = vmatpush2.msra.mxu0 0.0
  %5736 = vmatprep.subr.mxu0 0.0
  %5737 = vmatpush2.msra.mxu0 0.0
  %5738 = vmatprep.subr.mxu0 0.0
  %5739 = vmatpush2.msra.mxu0 0.0
  %5740 = vmatprep.subr.mxu0 0.0
  %5741 = vmatpush2.msra.mxu0 0.0
  %5742 = vmatprep.mubr.f32.mxu0 0.0
  %5743 = vmatmul.mubr.f32.gmra.mxu0 %v5665
  %v5744 = vpop.f32.mrf.mxu0
  %v5745 = vadd.f32 0.0, %v5744
  %v5746 = vpop.f32.mrf.mxu0
  %5747 = vmatprep.mubr.f32.mxu0 0.0
  %5748 = vmatmul.mubr.f32.gmra.mxu0 %v5668
  %v5749 = vpop.f32.mrf.mxu0
  %v5750 = vadd.f32 0.0, %v5749
  %v5751 = vpop.f32.mrf.mxu0
  %5752 = vdwg.mxu0
  %5753 = vmatprep.subr.mxu0 0.0
  %5754 = vmatpush1.msra.mxu0 0.0
  %5755 = vmatprep.subr.mxu0 0.0
  %5756 = vmatpush1.msra.mxu0 0.0
  %5757 = vmatprep.subr.mxu0 0.0
  %5758 = vmatpush1.msra.mxu0 0.0
  %5759 = vmatprep.subr.mxu0 0.0
  %5760 = vmatpush1.msra.mxu0 0.0
  %5761 = vmatprep.subr.mxu0 0.0
  %5762 = vmatpush1.msra.mxu0 0.0
  %5763 = vmatprep.subr.mxu0 0.0
  %5764 = vmatpush1.msra.mxu0 0.0
  %5765 = vmatprep.subr.mxu0 0.0
  %5766 = vmatpush1.msra.mxu0 0.0
  %5767 = vmatprep.subr.mxu0 0.0
  %5768 = vmatpush1.msra.mxu0 0.0
  %5769 = vmatprep.subr.mxu0 0.0
  %5770 = vmatpush1.msra.mxu0 0.0
  %5771 = vmatprep.subr.mxu0 0.0
  %5772 = vmatpush1.msra.mxu0 0.0
  %5773 = vmatprep.subr.mxu0 0.0
  %5774 = vmatpush1.msra.mxu0 0.0
  %5775 = vmatprep.subr.mxu0 0.0
  %5776 = vmatpush1.msra.mxu0 0.0
  %5777 = vmatprep.subr.mxu0 0.0
  %5778 = vmatpush1.msra.mxu0 0.0
  %5779 = vmatprep.subr.mxu0 0.0
  %5780 = vmatpush1.msra.mxu0 0.0
  %5781 = vmatprep.subr.mxu0 %v5676
  %5782 = vmatpush1.msra.mxu0 %v5674
  %5783 = vmatprep.subr.mxu0 %v5655
  %5784 = vmatpush1.msra.mxu0 %v5654
  %5785 = vmatprep.subr.mxu0 0.0
  %5786 = vmatpush2.msra.mxu0 0.0
  %5787 = vmatprep.subr.mxu0 0.0
  %5788 = vmatpush2.msra.mxu0 0.0
  %5789 = vmatprep.subr.mxu0 0.0
  %5790 = vmatpush2.msra.mxu0 0.0
  %5791 = vmatprep.subr.mxu0 0.0
  %5792 = vmatpush2.msra.mxu0 0.0
  %5793 = vmatprep.subr.mxu0 0.0
  %5794 = vmatpush2.msra.mxu0 0.0
  %5795 = vmatprep.subr.mxu0 0.0
  %5796 = vmatpush2.msra.mxu0 0.0
  %5797 = vmatprep.subr.mxu0 0.0
  %5798 = vmatpush2.msra.mxu0 0.0
  %5799 = vmatprep.subr.mxu0 0.0
  %5800 = vmatpush2.msra.mxu0 0.0
  %5801 = vmatprep.subr.mxu0 0.0
  %5802 = vmatpush2.msra.mxu0 0.0
  %5803 = vmatprep.subr.mxu0 0.0
  %5804 = vmatpush2.msra.mxu0 0.0
  %5805 = vmatprep.subr.mxu0 0.0
  %5806 = vmatpush2.msra.mxu0 0.0
  %5807 = vmatprep.subr.mxu0 0.0
  %5808 = vmatpush2.msra.mxu0 0.0
  %5809 = vmatprep.subr.mxu0 0.0
  %5810 = vmatpush2.msra.mxu0 0.0
  %5811 = vmatprep.subr.mxu0 0.0
  %5812 = vmatpush2.msra.mxu0 0.0
  %5813 = vmatprep.subr.mxu0 0.0
  %5814 = vmatpush2.msra.mxu0 0.0
  %5815 = vmatprep.subr.mxu0 0.0
  %5816 = vmatpush2.msra.mxu0 0.0
  %5817 = vmatprep.mubr.f32.mxu0 0.0
  %5818 = vmatmul.mubr.f32.gmra.mxu0 %v5665
  %v5819 = vpop.f32.mrf.mxu0
  %v5820 = vadd.f32 0.0, %v5819
  %v5821 = vpop.f32.mrf.mxu0
  %v5822 = vadd.f32 0.0, %v5821
  %5823 = vmatprep.mubr.f32.mxu0 0.0
  %5824 = vmatmul.mubr.f32.gmra.mxu0 %v5668
  %v5825 = vpop.f32.mrf.mxu0
  %v5826 = vadd.f32 0.0, %v5825
  %v5827 = vpop.f32.mrf.mxu0
  %v5828 = vadd.f32 0.0, %v5827
  %5829 = vdwg.mxu0
  %v5830 = vadd.f32 %v5622, %v5745
  %v5831 = vadd.f32 %v5623, %v5820
  %v5832 = vadd.f32 %v5624, %v5822
  %v5833 = vadd.f32 %v5625, %v5750
  %v5834 = vadd.f32 %v5626, %v5826
  %v5835 = vadd.f32 %v5627, %v5828
  %s5836 = scalar_lea.vmem %s4, 368
  %v5837 = vld [vmem:[%s5836] sm:$0xff]
  %v5838 = vld [vmem:[%s5836 + $0x8] sm:$0x3]
  %5839 = vrot.lane.b32.xlu0 %v1166, 61
  %v5840 = vpop.permute.xlu0 %5839
  %5841 = vrot.lane.b32.xlu0 %v1167, 61
  %v5842 = vpop.permute.xlu0 %5841
  %5843 = vrot.lane.b32.xlu0 %v1168, 61
  %v5844 = vpop.permute.xlu0 %5843
  %5845 = vrot.lane.b32.xlu0 %v1169, 61
  %v5846 = vpop.permute.xlu0 %5845
  %5847 = vrot.lane.b32.xlu0 %v1170, 61
  %v5848 = vpop.permute.xlu0 %5847
  %5849 = vrot.lane.b32.xlu0 %v1171, 61
  %v5850 = vpop.permute.xlu0 %5849
  %5851 = vrot.lane.b32.xlu0 %v1172, 61
  %v5852 = vpop.permute.xlu0 %5851
  %5853 = vrot.lane.b32.xlu0 %v1173, 61
  %v5854 = vpop.permute.xlu0 %5853
  %5855 = vrot.lane.b32.xlu0 %v1174, 61
  %v5856 = vpop.permute.xlu0 %5855
  %5857 = vrot.lane.b32.xlu0 %v1175, 61
  %v5858 = vpop.permute.xlu0 %5857
  %vm5859 = vcmask 498688
  %v5860 = vsel %vm5859, %v5840, %v5842
  %v5861 = vsel %vm5859, %v5842, %v5844
  %v5862 = vsel %vm5859, %v5844, %v5846
  %v5863 = vsel %vm5859, %v5846, %v5848
  %v5864 = vsel %vm5859, %v5850, %v5852
  %v5865 = vsel %vm5859, %v5852, %v5854
  %v5866 = vsel %vm5859, %v5854, %v5856
  %v5867 = vsel %vm5859, %v5856, %v5858
  %v5873 = vsel %vm1216, %v5837, 0
  %v5876 = vsel %vm1216, %v5838, 0
  %v5878 = vsel %vm1223, %v5864, 0
  %v5880 = vsel %vm1223, %v5865, 0
  %v5882 = vsel %vm1223, %v5866, 0
  %v5884 = vsel %vm1223, %v5867, 0
  %5886 = vmatprep.subr.mxu0 0.0
  %5887 = vmatpush1.msra.mxu0 0.0
  %5888 = vmatprep.subr.mxu0 0.0
  %5889 = vmatpush1.msra.mxu0 0.0
  %5890 = vmatprep.subr.mxu0 0.0
  %5891 = vmatpush1.msra.mxu0 0.0
  %5892 = vmatprep.subr.mxu0 0.0
  %5893 = vmatpush1.msra.mxu0 0.0
  %5894 = vmatprep.subr.mxu0 0.0
  %5895 = vmatpush1.msra.mxu0 0.0
  %5896 = vmatprep.subr.mxu0 0.0
  %5897 = vmatpush1.msra.mxu0 0.0
  %5898 = vmatprep.subr.mxu0 0.0
  %5899 = vmatpush1.msra.mxu0 0.0
  %5900 = vmatprep.subr.mxu0 0.0
  %5901 = vmatpush1.msra.mxu0 0.0
  %5902 = vmatprep.subr.mxu0 0.0
  %5903 = vmatpush1.msra.mxu0 0.0
  %5904 = vmatprep.subr.mxu0 0.0
  %5905 = vmatpush1.msra.mxu0 0.0
  %5906 = vmatprep.subr.mxu0 0.0
  %5907 = vmatpush1.msra.mxu0 0.0
  %5908 = vmatprep.subr.mxu0 0.0
  %5909 = vmatpush1.msra.mxu0 0.0
  %5910 = vmatprep.subr.mxu0 0.0
  %5911 = vmatpush1.msra.mxu0 0.0
  %5912 = vmatprep.subr.mxu0 0.0
  %5913 = vmatpush1.msra.mxu0 0.0
  %5914 = vmatprep.subr.mxu0 %v5880
  %5915 = vmatpush1.msra.mxu0 %v5878
  %5916 = vmatprep.subr.mxu0 %v5861
  %5917 = vmatpush1.msra.mxu0 %v5860
  %5918 = vmatprep.subr.mxu0 0.0
  %5919 = vmatpush2.msra.mxu0 0.0
  %5920 = vmatprep.subr.mxu0 0.0
  %5921 = vmatpush2.msra.mxu0 0.0
  %5922 = vmatprep.subr.mxu0 0.0
  %5923 = vmatpush2.msra.mxu0 0.0
  %5924 = vmatprep.subr.mxu0 0.0
  %5925 = vmatpush2.msra.mxu0 0.0
  %5926 = vmatprep.subr.mxu0 0.0
  %5927 = vmatpush2.msra.mxu0 0.0
  %5928 = vmatprep.subr.mxu0 0.0
  %5929 = vmatpush2.msra.mxu0 0.0
  %5930 = vmatprep.subr.mxu0 0.0
  %5931 = vmatpush2.msra.mxu0 0.0
  %5932 = vmatprep.subr.mxu0 0.0
  %5933 = vmatpush2.msra.mxu0 0.0
  %5934 = vmatprep.subr.mxu0 0.0
  %5935 = vmatpush2.msra.mxu0 0.0
  %5936 = vmatprep.subr.mxu0 0.0
  %5937 = vmatpush2.msra.mxu0 0.0
  %5938 = vmatprep.subr.mxu0 0.0
  %5939 = vmatpush2.msra.mxu0 0.0
  %5940 = vmatprep.subr.mxu0 0.0
  %5941 = vmatpush2.msra.mxu0 0.0
  %5942 = vmatprep.subr.mxu0 0.0
  %5943 = vmatpush2.msra.mxu0 0.0
  %5944 = vmatprep.subr.mxu0 0.0
  %5945 = vmatpush2.msra.mxu0 0.0
  %5946 = vmatprep.subr.mxu0 0.0
  %5947 = vmatpush2.msra.mxu0 0.0
  %5948 = vmatprep.subr.mxu0 0.0
  %5949 = vmatpush2.msra.mxu0 0.0
  %5950 = vmatprep.mubr.f32.mxu0 0.0
  %5951 = vmatmul.mubr.f32.gmra.mxu0 %v5873
  %v5952 = vpop.f32.mrf.mxu0
  %v5953 = vadd.f32 0.0, %v5952
  %v5954 = vpop.f32.mrf.mxu0
  %5955 = vmatprep.mubr.f32.mxu0 0.0
  %5956 = vmatmul.mubr.f32.gmra.mxu0 %v5876
  %v5957 = vpop.f32.mrf.mxu0
  %v5958 = vadd.f32 0.0, %v5957
  %v5959 = vpop.f32.mrf.mxu0
  %5960 = vdwg.mxu0
  %5961 = vmatprep.subr.mxu0 0.0
  %5962 = vmatpush1.msra.mxu0 0.0
  %5963 = vmatprep.subr.mxu0 0.0
  %5964 = vmatpush1.msra.mxu0 0.0
  %5965 = vmatprep.subr.mxu0 0.0
  %5966 = vmatpush1.msra.mxu0 0.0
  %5967 = vmatprep.subr.mxu0 0.0
  %5968 = vmatpush1.msra.mxu0 0.0
  %5969 = vmatprep.subr.mxu0 0.0
  %5970 = vmatpush1.msra.mxu0 0.0
  %5971 = vmatprep.subr.mxu0 0.0
  %5972 = vmatpush1.msra.mxu0 0.0
  %5973 = vmatprep.subr.mxu0 0.0
  %5974 = vmatpush1.msra.mxu0 0.0
  %5975 = vmatprep.subr.mxu0 0.0
  %5976 = vmatpush1.msra.mxu0 0.0
  %5977 = vmatprep.subr.mxu0 0.0
  %5978 = vmatpush1.msra.mxu0 0.0
  %5979 = vmatprep.subr.mxu0 0.0
  %5980 = vmatpush1.msra.mxu0 0.0
  %5981 = vmatprep.subr.mxu0 0.0
  %5982 = vmatpush1.msra.mxu0 0.0
  %5983 = vmatprep.subr.mxu0 0.0
  %5984 = vmatpush1.msra.mxu0 0.0
  %5985 = vmatprep.subr.mxu0 0.0
  %5986 = vmatpush1.msra.mxu0 0.0
  %5987 = vmatprep.subr.mxu0 0.0
  %5988 = vmatpush1.msra.mxu0 0.0
  %5989 = vmatprep.subr.mxu0 %v5884
  %5990 = vmatpush1.msra.mxu0 %v5882
  %5991 = vmatprep.subr.mxu0 %v5863
  %5992 = vmatpush1.msra.mxu0 %v5862
  %5993 = vmatprep.subr.mxu0 0.0
  %5994 = vmatpush2.msra.mxu0 0.0
  %5995 = vmatprep.subr.mxu0 0.0
  %5996 = vmatpush2.msra.mxu0 0.0
  %5997 = vmatprep.subr.mxu0 0.0
  %5998 = vmatpush2.msra.mxu0 0.0
  %5999 = vmatprep.subr.mxu0 0.0
  %6000 = vmatpush2.msra.mxu0 0.0
  %6001 = vmatprep.subr.mxu0 0.0
  %6002 = vmatpush2.msra.mxu0 0.0
  %6003 = vmatprep.subr.mxu0 0.0
  %6004 = vmatpush2.msra.mxu0 0.0
  %6005 = vmatprep.subr.mxu0 0.0
  %6006 = vmatpush2.msra.mxu0 0.0
  %6007 = vmatprep.subr.mxu0 0.0
  %6008 = vmatpush2.msra.mxu0 0.0
  %6009 = vmatprep.subr.mxu0 0.0
  %6010 = vmatpush2.msra.mxu0 0.0
  %6011 = vmatprep.subr.mxu0 0.0
  %6012 = vmatpush2.msra.mxu0 0.0
  %6013 = vmatprep.subr.mxu0 0.0
  %6014 = vmatpush2.msra.mxu0 0.0
  %6015 = vmatprep.subr.mxu0 0.0
  %6016 = vmatpush2.msra.mxu0 0.0
  %6017 = vmatprep.subr.mxu0 0.0
  %6018 = vmatpush2.msra.mxu0 0.0
  %6019 = vmatprep.subr.mxu0 0.0
  %6020 = vmatpush2.msra.mxu0 0.0
  %6021 = vmatprep.subr.mxu0 0.0
  %6022 = vmatpush2.msra.mxu0 0.0
  %6023 = vmatprep.subr.mxu0 0.0
  %6024 = vmatpush2.msra.mxu0 0.0
  %6025 = vmatprep.mubr.f32.mxu0 0.0
  %6026 = vmatmul.mubr.f32.gmra.mxu0 %v5873
  %v6027 = vpop.f32.mrf.mxu0
  %v6028 = vadd.f32 0.0, %v6027
  %v6029 = vpop.f32.mrf.mxu0
  %v6030 = vadd.f32 0.0, %v6029
  %6031 = vmatprep.mubr.f32.mxu0 0.0
  %6032 = vmatmul.mubr.f32.gmra.mxu0 %v5876
  %v6033 = vpop.f32.mrf.mxu0
  %v6034 = vadd.f32 0.0, %v6033
  %v6035 = vpop.f32.mrf.mxu0
  %v6036 = vadd.f32 0.0, %v6035
  %6037 = vdwg.mxu0
  %v6038 = vadd.f32 %v5830, %v5953
  %v6039 = vadd.f32 %v5831, %v6028
  %v6040 = vadd.f32 %v5832, %v6030
  %v6041 = vadd.f32 %v5833, %v5958
  %v6042 = vadd.f32 %v5834, %v6034
  %v6043 = vadd.f32 %v5835, %v6036
  %s6044 = scalar_lea.vmem %s4, 384
  %v6045 = vld [vmem:[%s6044] sm:$0xff]
  %v6046 = vld [vmem:[%s6044 + $0x8] sm:$0x3]
  %6047 = vrot.lane.b32.xlu0 %v1166, 60
  %v6048 = vpop.permute.xlu0 %6047
  %6049 = vrot.lane.b32.xlu0 %v1167, 60
  %v6050 = vpop.permute.xlu0 %6049
  %6051 = vrot.lane.b32.xlu0 %v1168, 60
  %v6052 = vpop.permute.xlu0 %6051
  %6053 = vrot.lane.b32.xlu0 %v1169, 60
  %v6054 = vpop.permute.xlu0 %6053
  %6055 = vrot.lane.b32.xlu0 %v1170, 60
  %v6056 = vpop.permute.xlu0 %6055
  %6057 = vrot.lane.b32.xlu0 %v1171, 60
  %v6058 = vpop.permute.xlu0 %6057
  %6059 = vrot.lane.b32.xlu0 %v1172, 60
  %v6060 = vpop.permute.xlu0 %6059
  %6061 = vrot.lane.b32.xlu0 %v1173, 60
  %v6062 = vpop.permute.xlu0 %6061
  %6063 = vrot.lane.b32.xlu0 %v1174, 60
  %v6064 = vpop.permute.xlu0 %6063
  %6065 = vrot.lane.b32.xlu0 %v1175, 60
  %v6066 = vpop.permute.xlu0 %6065
  %vm6067 = vcmask 490496
  %v6068 = vsel %vm6067, %v6048, %v6050
  %v6069 = vsel %vm6067, %v6050, %v6052
  %v6070 = vsel %vm6067, %v6052, %v6054
  %v6071 = vsel %vm6067, %v6054, %v6056
  %v6072 = vsel %vm6067, %v6058, %v6060
  %v6073 = vsel %vm6067, %v6060, %v6062
  %v6074 = vsel %vm6067, %v6062, %v6064
  %v6075 = vsel %vm6067, %v6064, %v6066
  %v6081 = vsel %vm1216, %v6045, 0
  %v6084 = vsel %vm1216, %v6046, 0
  %v6086 = vsel %vm1223, %v6072, 0
  %v6088 = vsel %vm1223, %v6073, 0
  %v6090 = vsel %vm1223, %v6074, 0
  %v6092 = vsel %vm1223, %v6075, 0
  %6094 = vmatprep.subr.mxu0 0.0
  %6095 = vmatpush1.msra.mxu0 0.0
  %6096 = vmatprep.subr.mxu0 0.0
  %6097 = vmatpush1.msra.mxu0 0.0
  %6098 = vmatprep.subr.mxu0 0.0
  %6099 = vmatpush1.msra.mxu0 0.0
  %6100 = vmatprep.subr.mxu0 0.0
  %6101 = vmatpush1.msra.mxu0 0.0
  %6102 = vmatprep.subr.mxu0 0.0
  %6103 = vmatpush1.msra.mxu0 0.0
  %6104 = vmatprep.subr.mxu0 0.0
  %6105 = vmatpush1.msra.mxu0 0.0
  %6106 = vmatprep.subr.mxu0 0.0
  %6107 = vmatpush1.msra.mxu0 0.0
  %6108 = vmatprep.subr.mxu0 0.0
  %6109 = vmatpush1.msra.mxu0 0.0
  %6110 = vmatprep.subr.mxu0 0.0
  %6111 = vmatpush1.msra.mxu0 0.0
  %6112 = vmatprep.subr.mxu0 0.0
  %6113 = vmatpush1.msra.mxu0 0.0
  %6114 = vmatprep.subr.mxu0 0.0
  %6115 = vmatpush1.msra.mxu0 0.0
  %6116 = vmatprep.subr.mxu0 0.0
  %6117 = vmatpush1.msra.mxu0 0.0
  %6118 = vmatprep.subr.mxu0 0.0
  %6119 = vmatpush1.msra.mxu0 0.0
  %6120 = vmatprep.subr.mxu0 0.0
  %6121 = vmatpush1.msra.mxu0 0.0
  %6122 = vmatprep.subr.mxu0 %v6088
  %6123 = vmatpush1.msra.mxu0 %v6086
  %6124 = vmatprep.subr.mxu0 %v6069
  %6125 = vmatpush1.msra.mxu0 %v6068
  %6126 = vmatprep.subr.mxu0 0.0
  %6127 = vmatpush2.msra.mxu0 0.0
  %6128 = vmatprep.subr.mxu0 0.0
  %6129 = vmatpush2.msra.mxu0 0.0
  %6130 = vmatprep.subr.mxu0 0.0
  %6131 = vmatpush2.msra.mxu0 0.0
  %6132 = vmatprep.subr.mxu0 0.0
  %6133 = vmatpush2.msra.mxu0 0.0
  %6134 = vmatprep.subr.mxu0 0.0
  %6135 = vmatpush2.msra.mxu0 0.0
  %6136 = vmatprep.subr.mxu0 0.0
  %6137 = vmatpush2.msra.mxu0 0.0
  %6138 = vmatprep.subr.mxu0 0.0
  %6139 = vmatpush2.msra.mxu0 0.0
  %6140 = vmatprep.subr.mxu0 0.0
  %6141 = vmatpush2.msra.mxu0 0.0
  %6142 = vmatprep.subr.mxu0 0.0
  %6143 = vmatpush2.msra.mxu0 0.0
  %6144 = vmatprep.subr.mxu0 0.0
  %6145 = vmatpush2.msra.mxu0 0.0
  %6146 = vmatprep.subr.mxu0 0.0
  %6147 = vmatpush2.msra.mxu0 0.0
  %6148 = vmatprep.subr.mxu0 0.0
  %6149 = vmatpush2.msra.mxu0 0.0
  %6150 = vmatprep.subr.mxu0 0.0
  %6151 = vmatpush2.msra.mxu0 0.0
  %6152 = vmatprep.subr.mxu0 0.0
  %6153 = vmatpush2.msra.mxu0 0.0
  %6154 = vmatprep.subr.mxu0 0.0
  %6155 = vmatpush2.msra.mxu0 0.0
  %6156 = vmatprep.subr.mxu0 0.0
  %6157 = vmatpush2.msra.mxu0 0.0
  %6158 = vmatprep.mubr.f32.mxu0 0.0
  %6159 = vmatmul.mubr.f32.gmra.mxu0 %v6081
  %v6160 = vpop.f32.mrf.mxu0
  %v6161 = vadd.f32 0.0, %v6160
  %v6162 = vpop.f32.mrf.mxu0
  %6163 = vmatprep.mubr.f32.mxu0 0.0
  %6164 = vmatmul.mubr.f32.gmra.mxu0 %v6084
  %v6165 = vpop.f32.mrf.mxu0
  %v6166 = vadd.f32 0.0, %v6165
  %v6167 = vpop.f32.mrf.mxu0
  %6168 = vdwg.mxu0
  %6169 = vmatprep.subr.mxu0 0.0
  %6170 = vmatpush1.msra.mxu0 0.0
  %6171 = vmatprep.subr.mxu0 0.0
  %6172 = vmatpush1.msra.mxu0 0.0
  %6173 = vmatprep.subr.mxu0 0.0
  %6174 = vmatpush1.msra.mxu0 0.0
  %6175 = vmatprep.subr.mxu0 0.0
  %6176 = vmatpush1.msra.mxu0 0.0
  %6177 = vmatprep.subr.mxu0 0.0
  %6178 = vmatpush1.msra.mxu0 0.0
  %6179 = vmatprep.subr.mxu0 0.0
  %6180 = vmatpush1.msra.mxu0 0.0
  %6181 = vmatprep.subr.mxu0 0.0
  %6182 = vmatpush1.msra.mxu0 0.0
  %6183 = vmatprep.subr.mxu0 0.0
  %6184 = vmatpush1.msra.mxu0 0.0
  %6185 = vmatprep.subr.mxu0 0.0
  %6186 = vmatpush1.msra.mxu0 0.0
  %6187 = vmatprep.subr.mxu0 0.0
  %6188 = vmatpush1.msra.mxu0 0.0
  %6189 = vmatprep.subr.mxu0 0.0
  %6190 = vmatpush1.msra.mxu0 0.0
  %6191 = vmatprep.subr.mxu0 0.0
  %6192 = vmatpush1.msra.mxu0 0.0
  %6193 = vmatprep.subr.mxu0 0.0
  %6194 = vmatpush1.msra.mxu0 0.0
  %6195 = vmatprep.subr.mxu0 0.0
  %6196 = vmatpush1.msra.mxu0 0.0
  %6197 = vmatprep.subr.mxu0 %v6092
  %6198 = vmatpush1.msra.mxu0 %v6090
  %6199 = vmatprep.subr.mxu0 %v6071
  %6200 = vmatpush1.msra.mxu0 %v6070
  %6201 = vmatprep.subr.mxu0 0.0
  %6202 = vmatpush2.msra.mxu0 0.0
  %6203 = vmatprep.subr.mxu0 0.0
  %6204 = vmatpush2.msra.mxu0 0.0
  %6205 = vmatprep.subr.mxu0 0.0
  %6206 = vmatpush2.msra.mxu0 0.0
  %6207 = vmatprep.subr.mxu0 0.0
  %6208 = vmatpush2.msra.mxu0 0.0
  %6209 = vmatprep.subr.mxu0 0.0
  %6210 = vmatpush2.msra.mxu0 0.0
  %6211 = vmatprep.subr.mxu0 0.0
  %6212 = vmatpush2.msra.mxu0 0.0
  %6213 = vmatprep.subr.mxu0 0.0
  %6214 = vmatpush2.msra.mxu0 0.0
  %6215 = vmatprep.subr.mxu0 0.0
  %6216 = vmatpush2.msra.mxu0 0.0
  %6217 = vmatprep.subr.mxu0 0.0
  %6218 = vmatpush2.msra.mxu0 0.0
  %6219 = vmatprep.subr.mxu0 0.0
  %6220 = vmatpush2.msra.mxu0 0.0
  %6221 = vmatprep.subr.mxu0 0.0
  %6222 = vmatpush2.msra.mxu0 0.0
  %6223 = vmatprep.subr.mxu0 0.0
  %6224 = vmatpush2.msra.mxu0 0.0
  %6225 = vmatprep.subr.mxu0 0.0
  %6226 = vmatpush2.msra.mxu0 0.0
  %6227 = vmatprep.subr.mxu0 0.0
  %6228 = vmatpush2.msra.mxu0 0.0
  %6229 = vmatprep.subr.mxu0 0.0
  %6230 = vmatpush2.msra.mxu0 0.0
  %6231 = vmatprep.subr.mxu0 0.0
  %6232 = vmatpush2.msra.mxu0 0.0
  %6233 = vmatprep.mubr.f32.mxu0 0.0
  %6234 = vmatmul.mubr.f32.gmra.mxu0 %v6081
  %v6235 = vpop.f32.mrf.mxu0
  %v6236 = vadd.f32 0.0, %v6235
  %v6237 = vpop.f32.mrf.mxu0
  %v6238 = vadd.f32 0.0, %v6237
  %6239 = vmatprep.mubr.f32.mxu0 0.0
  %6240 = vmatmul.mubr.f32.gmra.mxu0 %v6084
  %v6241 = vpop.f32.mrf.mxu0
  %v6242 = vadd.f32 0.0, %v6241
  %v6243 = vpop.f32.mrf.mxu0
  %v6244 = vadd.f32 0.0, %v6243
  %6245 = vdwg.mxu0
  %v6246 = vadd.f32 %v6038, %v6161
  %v6247 = vadd.f32 %v6039, %v6236
  %v6248 = vadd.f32 %v6040, %v6238
  %v6249 = vadd.f32 %v6041, %v6166
  %v6250 = vadd.f32 %v6042, %v6242
  %v6251 = vadd.f32 %v6043, %v6244
  %v6252 = vld [vmem:[%s5] sm:$0xff]
  %v6253 = vld [vmem:[%s5 + $0x8] sm:$0x3]
  %6255 = vset.pattern.permute.xlu0 0
  %6256 = vperm.xlu0 %6255, %v6252
  %v6257 = vpop.permute.xlu0 %6256
  %6260 = vset.pattern.permute.xlu0 0
  %6261 = vperm.xlu0 %6260, %v6253
  %v6262 = vpop.permute.xlu0 %6261
  %v6264 = vadd.f32 %v6246, %v6257
  %v6265 = vadd.f32 %v6247, %v6257
  %v6266 = vadd.f32 %v6248, %v6257
  %v6267 = vadd.f32 %v6249, %v6262
  %v6268 = vadd.f32 %v6250, %v6262
  %v6269 = vadd.f32 %v6251, %v6262
  %v6270 = vmax.f32 %v6264, 0.0
  %v6271 = vmax.f32 %v6265, 0.0
  %v6272 = vmax.f32 %v6266, 0.0
  %v6273 = vmax.f32 %v6267, 0.0
  %v6274 = vmax.f32 %v6268, 0.0
  %v6275 = vmax.f32 %v6269, 0.0
  %v6276 = vld [vmem:[%s7] sm:$0xff]
  %v6277 = vld [vmem:[%s7 + $0x8] sm:$0xff]
  %v6278 = vld [vmem:[%s7 + $0x10] sm:$0xff]
  %v6279 = vld [vmem:[%s7 + $0x18] sm:$0xff]
  %v6280 = vld [vmem:[%s7 + $0x20] sm:$0xff]
  %v6281 = vld [vmem:[%s7 + $0x28] sm:$0xff]
  %v6282 = vld [vmem:[%s7 + $0x30] sm:$0xff]
  %v6283 = vld [vmem:[%s7 + $0x38] sm:$0xff]
  %v6284 = vld [vmem:[%s7 + $0x40] sm:$0xff]
  %v6285 = vld [vmem:[%s7 + $0x48] sm:$0xff]
  %v6286 = vld [vmem:[%s7 + $0x50] sm:$0xff]
  %v6287 = vld [vmem:[%s7 + $0x58] sm:$0xff]
  %v6288 = vld [vmem:[%s7 + $0x60] sm:$0xff]
  %v6289 = vld [vmem:[%s7 + $0x68] sm:$0xff]
  %v6290 = vld [vmem:[%s7 + $0x70] sm:$0xff]
  %v6291 = vld [vmem:[%s7 + $0x78] sm:$0xff]
  %6294 = vrot.lane.b32.xlu0 %v6270, 127
  %v6295 = vpop.permute.xlu0 %6294
  %6296 = vrot.lane.b32.xlu0 %v6273, 127
  %v6297 = vpop.permute.xlu0 %6296
  %v6300 = vmax.f32 %v6270, %v6295
  %v6301 = vmax.f32 %v6273, %v6297
  %6304 = vrot.lane.b32.xlu0 %v6300, 112
  %v6305 = vpop.permute.xlu0 %6304
  %6306 = vrot.lane.b32.xlu0 %v6301, 112
  %v6307 = vpop.permute.xlu0 %6306
  %v6310 = vmax.f32 %v6300, %v6305
  %v6311 = vmax.f32 %v6301, %v6307
  %v6314 = vrot.slane %v6310, 6
  %v6315 = vrot.slane %v6311, 6
  %v6316 = vsel %vm1223, %v6314, %v6315
  %6317 = vrot.lane.b32.xlu0 %v6314, 126
  %v6318 = vpop.permute.xlu0 %6317
  %6319 = vrot.lane.b32.xlu0 %v6316, 126
  %v6320 = vpop.permute.xlu0 %6319
  %vm6323 = vcmask 1043456
  %v6324 = vrot.slane %v6310, 4
  %v6325 = vrot.slane %v6311, 4
  %v6326 = vsel %vm6323, %v6324, %v6325
  %6327 = vrot.lane.b32.xlu0 %v6324, 124
  %v6328 = vpop.permute.xlu0 %6327
  %6329 = vrot.lane.b32.xlu0 %v6326, 124
  %v6330 = vpop.permute.xlu0 %6329
  %vm6333 = vcmask 1045504
  %v6334 = vrot.slane %v6310, 2
  %v6335 = vrot.slane %v6311, 2
  %v6336 = vsel %vm6333, %v6334, %v6335
  %6337 = vrot.lane.b32.xlu0 %v6334, 122
  %v6338 = vpop.permute.xlu0 %6337
  %6339 = vrot.lane.b32.xlu0 %v6336, 122
  %v6340 = vpop.permute.xlu0 %6339
  %6343 = vrot.lane.b32.xlu0 %v6310, 96
  %v6344 = vpop.permute.xlu0 %6343
  %6345 = vrot.lane.b32.xlu0 %v6311, 96
  %v6346 = vpop.permute.xlu0 %6345
  %6349 = vrot.lane.b32.xlu0 %v6314, 94
  %v6350 = vpop.permute.xlu0 %6349
  %6351 = vrot.lane.b32.xlu0 %v6316, 94
  %v6352 = vpop.permute.xlu0 %6351
  %6355 = vrot.lane.b32.xlu0 %v6324, 92
  %v6356 = vpop.permute.xlu0 %6355
  %6357 = vrot.lane.b32.xlu0 %v6326, 92
  %v6358 = vpop.permute.xlu0 %6357
  %6361 = vrot.lane.b32.xlu0 %v6334, 90
  %v6362 = vpop.permute.xlu0 %6361
  %6363 = vrot.lane.b32.xlu0 %v6336, 90
  %v6364 = vpop.permute.xlu0 %6363
  %6367 = vrot.lane.b32.xlu0 %v6310, 64
  %v6368 = vpop.permute.xlu0 %6367
  %6369 = vrot.lane.b32.xlu0 %v6311, 64
  %v6370 = vpop.permute.xlu0 %6369
  %6373 = vrot.lane.b32.xlu0 %v6314, 62
  %v6374 = vpop.permute.xlu0 %6373
  %6375 = vrot.lane.b32.xlu0 %v6316, 62
  %v6376 = vpop.permute.xlu0 %6375
  %6379 = vrot.lane.b32.xlu0 %v6324, 60
  %v6380 = vpop.permute.xlu0 %6379
  %6381 = vrot.lane.b32.xlu0 %v6326, 60
  %v6382 = vpop.permute.xlu0 %6381
  %6385 = vrot.lane.b32.xlu0 %v6334, 58
  %v6386 = vpop.permute.xlu0 %6385
  %6387 = vrot.lane.b32.xlu0 %v6336, 58
  %v6388 = vpop.permute.xlu0 %6387
  %6391 = vrot.lane.b32.xlu0 %v6310, 32
  %v6392 = vpop.permute.xlu0 %6391
  %6393 = vrot.lane.b32.xlu0 %v6311, 32
  %v6394 = vpop.permute.xlu0 %6393
  %6397 = vrot.lane.b32.xlu0 %v6314, 30
  %v6398 = vpop.permute.xlu0 %6397
  %6399 = vrot.lane.b32.xlu0 %v6316, 30
  %v6400 = vpop.permute.xlu0 %6399
  %6403 = vrot.lane.b32.xlu0 %v6324, 28
  %v6404 = vpop.permute.xlu0 %6403
  %6405 = vrot.lane.b32.xlu0 %v6326, 28
  %v6406 = vpop.permute.xlu0 %6405
  %6409 = vrot.lane.b32.xlu0 %v6334, 26
  %v6410 = vpop.permute.xlu0 %6409
  %6411 = vrot.lane.b32.xlu0 %v6336, 26
  %v6412 = vpop.permute.xlu0 %6411
  %v6415 = vsel %vm1223, %v6311, %v6318
  %v6416 = vsel %vm6323, %v6320, %v6328
  %v6417 = vsel %vm6333, %v6330, %v6338
  %v6418 = vsel %vm1223, %v6346, %v6350
  %v6419 = vsel %vm6323, %v6352, %v6356
  %v6420 = vsel %vm6333, %v6358, %v6362
  %v6421 = vsel %vm1223, %v6370, %v6374
  %v6422 = vsel %vm6323, %v6376, %v6380
  %v6423 = vsel %vm6333, %v6382, %v6386
  %v6424 = vsel %vm1223, %v6394, %v6398
  %v6425 = vsel %vm6323, %v6400, %v6404
  %v6426 = vsel %vm6333, %v6406, %v6410
  %vm6427 = vcmask 261120
  %v6429 = vsel %vm6427, %v6277, 0
  %v6432 = vsel %vm6427, %v6279, 0
  %v6435 = vsel %vm6427, %v6281, 0
  %v6438 = vsel %vm6427, %v6283, 0
  %v6441 = vsel %vm6427, %v6285, 0
  %v6444 = vsel %vm6427, %v6287, 0
  %v6447 = vsel %vm6427, %v6289, 0
  %v6450 = vsel %vm6427, %v6291, 0
  %6452 = vmatprep.subr.mxu0 0.0
  %6453 = vmatpush1.msra.mxu0 %v6392
  %6454 = vmatprep.subr.mxu0 0.0
  %6455 = vmatpush1.msra.mxu0 %v6388
  %6456 = vmatprep.subr.mxu0 0.0
  %6457 = vmatpush1.msra.mxu0 %v6423
  %6458 = vmatprep.subr.mxu0 0.0
  %6459 = vmatpush1.msra.mxu0 %v6422
  %6460 = vmatprep.subr.mxu0 0.0
  %6461 = vmatpush1.msra.mxu0 %v6421
  %6462 = vmatprep.subr.mxu0 0.0
  %6463 = vmatpush1.msra.mxu0 %v6368
  %6464 = vmatprep.subr.mxu0 0.0
  %6465 = vmatpush1.msra.mxu0 %v6364
  %6466 = vmatprep.subr.mxu0 0.0
  %6467 = vmatpush1.msra.mxu0 %v6420
  %6468 = vmatprep.subr.mxu0 0.0
  %6469 = vmatpush1.msra.mxu0 %v6419
  %6470 = vmatprep.subr.mxu0 0.0
  %6471 = vmatpush1.msra.mxu0 %v6418
  %6472 = vmatprep.subr.mxu0 0.0
  %6473 = vmatpush1.msra.mxu0 %v6344
  %6474 = vmatprep.subr.mxu0 0.0
  %6475 = vmatpush1.msra.mxu0 %v6340
  %6476 = vmatprep.subr.mxu0 0.0
  %6477 = vmatpush1.msra.mxu0 %v6417
  %6478 = vmatprep.subr.mxu0 0.0
  %6479 = vmatpush1.msra.mxu0 %v6416
  %6480 = vmatprep.subr.mxu0 0.0
  %6481 = vmatpush1.msra.mxu0 %v6415
  %6482 = vmatprep.subr.mxu0 0.0
  %6483 = vmatpush1.msra.mxu0 %v6310
  %6484 = vmatprep.subr.mxu0 0.0
  %6485 = vmatpush2.msra.mxu0 0.0
  %6486 = vmatprep.subr.mxu0 0.0
  %6487 = vmatpush2.msra.mxu0 0.0
  %6488 = vmatprep.subr.mxu0 0.0
  %6489 = vmatpush2.msra.mxu0 0.0
  %6490 = vmatprep.subr.mxu0 0.0
  %6491 = vmatpush2.msra.mxu0 0.0
  %6492 = vmatprep.subr.mxu0 0.0
  %6493 = vmatpush2.msra.mxu0 0.0
  %6494 = vmatprep.subr.mxu0 0.0
  %6495 = vmatpush2.msra.mxu0 0.0
  %6496 = vmatprep.subr.mxu0 0.0
  %6497 = vmatpush2.msra.mxu0 0.0
  %6498 = vmatprep.subr.mxu0 0.0
  %6499 = vmatpush2.msra.mxu0 0.0
  %6500 = vmatprep.subr.mxu0 0.0
  %6501 = vmatpush2.msra.mxu0 0.0
  %6502 = vmatprep.subr.mxu0 0.0
  %6503 = vmatpush2.msra.mxu0 0.0
  %6504 = vmatprep.subr.mxu0 0.0
  %6505 = vmatpush2.msra.mxu0 0.0
  %6506 = vmatprep.subr.mxu0 0.0
  %6507 = vmatpush2.msra.mxu0 0.0
  %6508 = vmatprep.subr.mxu0 0.0
  %6509 = vmatpush2.msra.mxu0 %v6412
  %6510 = vmatprep.subr.mxu0 0.0
  %6511 = vmatpush2.msra.mxu0 %v6426
  %6512 = vmatprep.subr.mxu0 0.0
  %6513 = vmatpush2.msra.mxu0 %v6425
  %6514 = vmatprep.subr.mxu0 0.0
  %6515 = vmatpush2.msra.mxu0 %v6424
  %6516 = vmatprep.mubr.f32.mxu0 %v6429
  %6517 = vmatmul.mubr.f32.gmra.mxu0 %v6276
  %v6518 = vpop.f32.mrf.mxu0
  %v6519 = vadd.f32 0.0, %v6518
  %v6520 = vpop.f32.mrf.mxu0
  %6521 = vmatprep.mubr.f32.mxu0 %v6432
  %6522 = vmatmul.mubr.f32.gmra.mxu0 %v6278
  %v6523 = vpop.f32.mrf.mxu0
  %v6524 = vadd.f32 0.0, %v6523
  %v6525 = vpop.f32.mrf.mxu0
  %6526 = vmatprep.mubr.f32.mxu0 %v6435
  %6527 = vmatmul.mubr.f32.gmra.mxu0 %v6280
  %v6528 = vpop.f32.mrf.mxu0
  %v6529 = vadd.f32 0.0, %v6528
  %v6530 = vpop.f32.mrf.mxu0
  %6531 = vmatprep.mubr.f32.mxu0 %v6438
  %6532 = vmatmul.mubr.f32.gmra.mxu0 %v6282
  %v6533 = vpop.f32.mrf.mxu0
  %v6534 = vadd.f32 0.0, %v6533
  %v6535 = vpop.f32.mrf.mxu0
  %6536 = vmatprep.mubr.f32.mxu0 %v6441
  %6537 = vmatmul.mubr.f32.gmra.mxu0 %v6284
  %v6538 = vpop.f32.mrf.mxu0
  %v6539 = vadd.f32 0.0, %v6538
  %v6540 = vpop.f32.mrf.mxu0
  %6541 = vmatprep.mubr.f32.mxu0 %v6444
  %6542 = vmatmul.mubr.f32.gmra.mxu0 %v6286
  %v6543 = vpop.f32.mrf.mxu0
  %v6544 = vadd.f32 0.0, %v6543
  %v6545 = vpop.f32.mrf.mxu0
  %6546 = vmatprep.mubr.f32.mxu0 %v6447
  %6547 = vmatmul.mubr.f32.gmra.mxu0 %v6288
  %v6548 = vpop.f32.mrf.mxu0
  %v6549 = vadd.f32 0.0, %v6548
  %v6550 = vpop.f32.mrf.mxu0
  %6551 = vmatprep.mubr.f32.mxu0 %v6450
  %6552 = vmatmul.mubr.f32.gmra.mxu0 %v6290
  %v6553 = vpop.f32.mrf.mxu0
  %v6554 = vadd.f32 0.0, %v6553
  %v6555 = vpop.f32.mrf.mxu0
  %6556 = vdwg.mxu0
  %6559 = vrot.lane.b32.xlu0 %v6271, 127
  %v6560 = vpop.permute.xlu0 %6559
  %6561 = vrot.lane.b32.xlu0 %v6274, 127
  %v6562 = vpop.permute.xlu0 %6561
  %v6565 = vmax.f32 %v6271, %v6560
  %v6566 = vmax.f32 %v6274, %v6562
  %6569 = vrot.lane.b32.xlu0 %v6565, 112
  %v6570 = vpop.permute.xlu0 %6569
  %6571 = vrot.lane.b32.xlu0 %v6566, 112
  %v6572 = vpop.permute.xlu0 %6571
  %v6575 = vmax.f32 %v6565, %v6570
  %v6576 = vmax.f32 %v6566, %v6572
  %6579 = vrot.lane.b32.xlu0 %v6272, 127
  %v6580 = vpop.permute.xlu0 %6579
  %6581 = vrot.lane.b32.xlu0 %v6275, 127
  %v6582 = vpop.permute.xlu0 %6581
  %v6585 = vmax.f32 %v6272, %v6580
  %v6586 = vmax.f32 %v6275, %v6582
  %6589 = vrot.lane.b32.xlu0 %v6585, 112
  %v6590 = vpop.permute.xlu0 %6589
  %6591 = vrot.lane.b32.xlu0 %v6586, 112
  %v6592 = vpop.permute.xlu0 %6591
  %v6595 = vmax.f32 %v6565, %v6590
  %v6596 = vmax.f32 %v6566, %v6592
  %v6599 = vrot.slane %v6575, 6
  %v6600 = vrot.slane %v6576, 6
  %v6601 = vsel %vm1223, %v6599, %v6600
  %6602 = vrot.lane.b32.xlu0 %v6599, 126
  %v6603 = vpop.permute.xlu0 %6602
  %6604 = vrot.lane.b32.xlu0 %v6601, 126
  %v6605 = vpop.permute.xlu0 %6604
  %v6608 = vrot.slane %v6575, 4
  %v6609 = vrot.slane %v6576, 4
  %v6610 = vsel %vm6323, %v6608, %v6609
  %6611 = vrot.lane.b32.xlu0 %v6608, 124
  %v6612 = vpop.permute.xlu0 %6611
  %6613 = vrot.lane.b32.xlu0 %v6610, 124
  %v6614 = vpop.permute.xlu0 %6613
  %v6617 = vrot.slane %v6575, 2
  %v6618 = vrot.slane %v6576, 2
  %v6619 = vsel %vm6333, %v6617, %v6618
  %6620 = vrot.lane.b32.xlu0 %v6617, 122
  %v6621 = vpop.permute.xlu0 %6620
  %6622 = vrot.lane.b32.xlu0 %v6619, 122
  %v6623 = vpop.permute.xlu0 %6622
  %6625 = vrot.lane.b32.xlu0 %v6575, 96
  %v6626 = vpop.permute.xlu0 %6625
  %6627 = vrot.lane.b32.xlu0 %v6576, 96
  %v6628 = vpop.permute.xlu0 %6627
  %6630 = vrot.lane.b32.xlu0 %v6599, 94
  %v6631 = vpop.permute.xlu0 %6630
  %6632 = vrot.lane.b32.xlu0 %v6601, 94
  %v6633 = vpop.permute.xlu0 %6632
  %6636 = vrot.lane.b32.xlu0 %v6608, 92
  %v6637 = vpop.permute.xlu0 %6636
  %6638 = vrot.lane.b32.xlu0 %v6610, 92
  %v6639 = vpop.permute.xlu0 %6638
  %6642 = vrot.lane.b32.xlu0 %v6617, 90
  %v6643 = vpop.permute.xlu0 %6642
  %6644 = vrot.lane.b32.xlu0 %v6619, 90
  %v6645 = vpop.permute.xlu0 %6644
  %6647 = vrot.lane.b32.xlu0 %v6575, 64
  %v6648 = vpop.permute.xlu0 %6647
  %6649 = vrot.lane.b32.xlu0 %v6576, 64
  %v6650 = vpop.permute.xlu0 %6649
  %6652 = vrot.lane.b32.xlu0 %v6599, 62
  %v6653 = vpop.permute.xlu0 %6652
  %6654 = vrot.lane.b32.xlu0 %v6601, 62
  %v6655 = vpop.permute.xlu0 %6654
  %6658 = vrot.lane.b32.xlu0 %v6608, 60
  %v6659 = vpop.permute.xlu0 %6658
  %6660 = vrot.lane.b32.xlu0 %v6610, 60
  %v6661 = vpop.permute.xlu0 %6660
  %6664 = vrot.lane.b32.xlu0 %v6617, 58
  %v6665 = vpop.permute.xlu0 %6664
  %6666 = vrot.lane.b32.xlu0 %v6619, 58
  %v6667 = vpop.permute.xlu0 %6666
  %6671 = vrot.lane.b32.xlu0 %v6595, 32
  %v6672 = vpop.permute.xlu0 %6671
  %6673 = vrot.lane.b32.xlu0 %v6596, 32
  %v6674 = vpop.permute.xlu0 %6673
  %v6676 = vrot.slane %v6595, 6
  %v6677 = vrot.slane %v6596, 6
  %v6678 = vsel %vm1223, %v6676, %v6677
  %6679 = vrot.lane.b32.xlu0 %v6676, 30
  %v6680 = vpop.permute.xlu0 %6679
  %6681 = vrot.lane.b32.xlu0 %v6678, 30
  %v6682 = vpop.permute.xlu0 %6681
  %v6685 = vrot.slane %v6595, 4
  %v6686 = vrot.slane %v6596, 4
  %v6687 = vsel %vm6323, %v6685, %v6686
  %6688 = vrot.lane.b32.xlu0 %v6685, 28
  %v6689 = vpop.permute.xlu0 %6688
  %6690 = vrot.lane.b32.xlu0 %v6687, 28
  %v6691 = vpop.permute.xlu0 %6690
  %v6694 = vrot.slane %v6595, 2
  %v6695 = vrot.slane %v6596, 2
  %v6696 = vsel %vm6333, %v6694, %v6695
  %6697 = vrot.lane.b32.xlu0 %v6694, 26
  %v6698 = vpop.permute.xlu0 %6697
  %6699 = vrot.lane.b32.xlu0 %v6696, 26
  %v6700 = vpop.permute.xlu0 %6699
  %v6702 = vsel %vm1223, %v6576, %v6603
  %v6703 = vsel %vm6323, %v6605, %v6612
  %v6704 = vsel %vm6333, %v6614, %v6621
  %v6705 = vsel %vm1223, %v6628, %v6631
  %v6706 = vsel %vm6323, %v6633, %v6637
  %v6707 = vsel %vm6333, %v6639, %v6643
  %v6708 = vsel %vm1223, %v6650, %v6653
  %v6709 = vsel %vm6323, %v6655, %v6659
  %v6710 = vsel %vm6333, %v6661, %v6665
  %v6711 = vsel %vm1223, %v6674, %v6680
  %v6712 = vsel %vm6323, %v6682, %v6689
  %v6713 = vsel %vm6333, %v6691, %v6698
  %6726 = vrot.lane.b32.xlu0 %v6575, 112
  %v6727 = vpop.permute.xlu0 %6726
  %6728 = vrot.lane.b32.xlu0 %v6702, 112
  %v6729 = vpop.permute.xlu0 %6728
  %6730 = vrot.lane.b32.xlu0 %v6703, 112
  %v6731 = vpop.permute.xlu0 %6730
  %6732 = vrot.lane.b32.xlu0 %v6704, 112
  %v6733 = vpop.permute.xlu0 %6732
  %6734 = vrot.lane.b32.xlu0 %v6623, 112
  %v6735 = vpop.permute.xlu0 %6734
  %6736 = vrot.lane.b32.xlu0 %v6626, 112
  %v6737 = vpop.permute.xlu0 %6736
  %6738 = vrot.lane.b32.xlu0 %v6705, 112
  %v6739 = vpop.permute.xlu0 %6738
  %6740 = vrot.lane.b32.xlu0 %v6706, 112
  %v6741 = vpop.permute.xlu0 %6740
  %6742 = vrot.lane.b32.xlu0 %v6707, 112
  %v6743 = vpop.permute.xlu0 %6742
  %6744 = vrot.lane.b32.xlu0 %v6645, 112
  %v6745 = vpop.permute.xlu0 %6744
  %6746 = vrot.lane.b32.xlu0 %v6648, 112
  %v6747 = vpop.permute.xlu0 %6746
  %6748 = vrot.lane.b32.xlu0 %v6708, 112
  %v6749 = vpop.permute.xlu0 %6748
  %6750 = vrot.lane.b32.xlu0 %v6709, 112
  %v6751 = vpop.permute.xlu0 %6750
  %6752 = vrot.lane.b32.xlu0 %v6710, 112
  %v6753 = vpop.permute.xlu0 %6752
  %6754 = vrot.lane.b32.xlu0 %v6667, 112
  %v6755 = vpop.permute.xlu0 %6754
  %6756 = vrot.lane.b32.xlu0 %v6672, 112
  %v6757 = vpop.permute.xlu0 %6756
  %6758 = vrot.lane.b32.xlu0 %v6711, 112
  %v6759 = vpop.permute.xlu0 %6758
  %6760 = vrot.lane.b32.xlu0 %v6712, 112
  %v6761 = vpop.permute.xlu0 %6760
  %6762 = vrot.lane.b32.xlu0 %v6713, 112
  %v6763 = vpop.permute.xlu0 %6762
  %6764 = vrot.lane.b32.xlu0 %v6700, 112
  %v6765 = vpop.permute.xlu0 %6764
  %6786 = vmatprep.subr.mxu0 0.0
  %6787 = vmatpush1.msra.mxu0 %v6757
  %6788 = vmatprep.subr.mxu0 0.0
  %6789 = vmatpush1.msra.mxu0 %v6755
  %6790 = vmatprep.subr.mxu0 0.0
  %6791 = vmatpush1.msra.mxu0 %v6753
  %6792 = vmatprep.subr.mxu0 0.0
  %6793 = vmatpush1.msra.mxu0 %v6751
  %6794 = vmatprep.subr.mxu0 0.0
  %6795 = vmatpush1.msra.mxu0 %v6749
  %6796 = vmatprep.subr.mxu0 0.0
  %6797 = vmatpush1.msra.mxu0 %v6747
  %6798 = vmatprep.subr.mxu0 0.0
  %6799 = vmatpush1.msra.mxu0 %v6745
  %6800 = vmatprep.subr.mxu0 0.0
  %6801 = vmatpush1.msra.mxu0 %v6743
  %6802 = vmatprep.subr.mxu0 0.0
  %6803 = vmatpush1.msra.mxu0 %v6741
  %6804 = vmatprep.subr.mxu0 0.0
  %6805 = vmatpush1.msra.mxu0 %v6739
  %6806 = vmatprep.subr.mxu0 0.0
  %6807 = vmatpush1.msra.mxu0 %v6737
  %6808 = vmatprep.subr.mxu0 0.0
  %6809 = vmatpush1.msra.mxu0 %v6735
  %6810 = vmatprep.subr.mxu0 0.0
  %6811 = vmatpush1.msra.mxu0 %v6733
  %6812 = vmatprep.subr.mxu0 0.0
  %6813 = vmatpush1.msra.mxu0 %v6731
  %6814 = vmatprep.subr.mxu0 0.0
  %6815 = vmatpush1.msra.mxu0 %v6729
  %6816 = vmatprep.subr.mxu0 0.0
  %6817 = vmatpush1.msra.mxu0 %v6727
  %6818 = vmatprep.subr.mxu0 0.0
  %6819 = vmatpush2.msra.mxu0 0.0
  %6820 = vmatprep.subr.mxu0 0.0
  %6821 = vmatpush2.msra.mxu0 0.0
  %6822 = vmatprep.subr.mxu0 0.0
  %6823 = vmatpush2.msra.mxu0 0.0
  %6824 = vmatprep.subr.mxu0 0.0
  %6825 = vmatpush2.msra.mxu0 0.0
  %6826 = vmatprep.subr.mxu0 0.0
  %6827 = vmatpush2.msra.mxu0 0.0
  %6828 = vmatprep.subr.mxu0 0.0
  %6829 = vmatpush2.msra.mxu0 0.0
  %6830 = vmatprep.subr.mxu0 0.0
  %6831 = vmatpush2.msra.mxu0 0.0
  %6832 = vmatprep.subr.mxu0 0.0
  %6833 = vmatpush2.msra.mxu0 0.0
  %6834 = vmatprep.subr.mxu0 0.0
  %6835 = vmatpush2.msra.mxu0 0.0
  %6836 = vmatprep.subr.mxu0 0.0
  %6837 = vmatpush2.msra.mxu0 0.0
  %6838 = vmatprep.subr.mxu0 0.0
  %6839 = vmatpush2.msra.mxu0 0.0
  %6840 = vmatprep.subr.mxu0 0.0
  %6841 = vmatpush2.msra.mxu0 0.0
  %6842 = vmatprep.subr.mxu0 0.0
  %6843 = vmatpush2.msra.mxu0 %v6765
  %6844 = vmatprep.subr.mxu0 0.0
  %6845 = vmatpush2.msra.mxu0 %v6763
  %6846 = vmatprep.subr.mxu0 0.0
  %6847 = vmatpush2.msra.mxu0 %v6761
  %6848 = vmatprep.subr.mxu0 0.0
  %6849 = vmatpush2.msra.mxu0 %v6759
  %6850 = vmatprep.mubr.f32.mxu0 %v6429
  %6851 = vmatmul.mubr.f32.gmra.mxu0 %v6276
  %v6852 = vpop.f32.mrf.mxu0
  %v6853 = vadd.f32 0.0, %v6852
  %v6854 = vpop.f32.mrf.mxu0
  %6855 = vmatprep.mubr.f32.mxu0 %v6432
  %6856 = vmatmul.mubr.f32.gmra.mxu0 %v6278
  %v6857 = vpop.f32.mrf.mxu0
  %v6858 = vadd.f32 0.0, %v6857
  %v6859 = vpop.f32.mrf.mxu0
  %6860 = vmatprep.mubr.f32.mxu0 %v6435
  %6861 = vmatmul.mubr.f32.gmra.mxu0 %v6280
  %v6862 = vpop.f32.mrf.mxu0
  %v6863 = vadd.f32 0.0, %v6862
  %v6864 = vpop.f32.mrf.mxu0
  %6865 = vmatprep.mubr.f32.mxu0 %v6438
  %6866 = vmatmul.mubr.f32.gmra.mxu0 %v6282
  %v6867 = vpop.f32.mrf.mxu0
  %v6868 = vadd.f32 0.0, %v6867
  %v6869 = vpop.f32.mrf.mxu0
  %6870 = vmatprep.mubr.f32.mxu0 %v6441
  %6871 = vmatmul.mubr.f32.gmra.mxu0 %v6284
  %v6872 = vpop.f32.mrf.mxu0
  %v6873 = vadd.f32 0.0, %v6872
  %v6874 = vpop.f32.mrf.mxu0
  %6875 = vmatprep.mubr.f32.mxu0 %v6444
  %6876 = vmatmul.mubr.f32.gmra.mxu0 %v6286
  %v6877 = vpop.f32.mrf.mxu0
  %v6878 = vadd.f32 0.0, %v6877
  %v6879 = vpop.f32.mrf.mxu0
  %6880 = vmatprep.mubr.f32.mxu0 %v6447
  %6881 = vmatmul.mubr.f32.gmra.mxu0 %v6288
  %v6882 = vpop.f32.mrf.mxu0
  %v6883 = vadd.f32 0.0, %v6882
  %v6884 = vpop.f32.mrf.mxu0
  %6885 = vmatprep.mubr.f32.mxu0 %v6450
  %6886 = vmatmul.mubr.f32.gmra.mxu0 %v6290
  %v6887 = vpop.f32.mrf.mxu0
  %v6888 = vadd.f32 0.0, %v6887
  %v6889 = vpop.f32.mrf.mxu0
  %6890 = vdwg.mxu0
  %6899 = vrot.lane.b32.xlu0 %v6853, 1
  %v6900 = vpop.permute.xlu0 %6899
  %6901 = vrot.lane.b32.xlu0 %v6858, 1
  %v6902 = vpop.permute.xlu0 %6901
  %6903 = vrot.lane.b32.xlu0 %v6863, 1
  %v6904 = vpop.permute.xlu0 %6903
  %6905 = vrot.lane.b32.xlu0 %v6868, 1
  %v6906 = vpop.permute.xlu0 %6905
  %6907 = vrot.lane.b32.xlu0 %v6873, 1
  %v6908 = vpop.permute.xlu0 %6907
  %6909 = vrot.lane.b32.xlu0 %v6878, 1
  %v6910 = vpop.permute.xlu0 %6909
  %6911 = vrot.lane.b32.xlu0 %v6883, 1
  %v6912 = vpop.permute.xlu0 %6911
  %6913 = vrot.lane.b32.xlu0 %v6888, 1
  %v6914 = vpop.permute.xlu0 %6913
  %vm6923 = vcmask 7168
  %v6924 = vsel %vm6923, %v6519, %v6900
  %v6925 = vsel %vm6923, %v6524, %v6902
  %v6926 = vsel %vm6923, %v6529, %v6904
  %v6927 = vsel %vm6923, %v6534, %v6906
  %v6928 = vsel %vm6923, %v6539, %v6908
  %v6929 = vsel %vm6923, %v6544, %v6910
  %v6930 = vsel %vm6923, %v6549, %v6912
  %v6931 = vsel %vm6923, %v6554, %v6914
  %v6932 = vld [vmem:[%s6] sm:$0xff]
  %v6933 = vld [vmem:[%s6 + $0x8] sm:$0xff]
  %v6934 = vld [vmem:[%s6 + $0x10] sm:$0xff]
  %v6935 = vld [vmem:[%s6 + $0x18] sm:$0xff]
  %v6936 = vld [vmem:[%s6 + $0x20] sm:$0xff]
  %v6937 = vld [vmem:[%s6 + $0x28] sm:$0xff]
  %v6938 = vld [vmem:[%s6 + $0x30] sm:$0xff]
  %v6939 = vld [vmem:[%s6 + $0x38] sm:$0xff]
  %vm6940 = vcmask 23552
  %v6942 = vsel %vm6940, %v6932, 0
  %v6945 = vsel %vm6940, %v6933, 0
  %v6948 = vsel %vm6940, %v6934, 0
  %v6951 = vsel %vm6940, %v6935, 0
  %v6954 = vsel %vm6940, %v6936, 0
  %v6957 = vsel %vm6940, %v6937, 0
  %v6960 = vsel %vm6940, %v6938, 0
  %v6963 = vsel %vm6940, %v6939, 0
  %vm6965 = vcmask 1042432
  %v6967 = vsel %vm6965, %v44, 0
  %6969 = vmatprep.subr.mxu0 0.0
  %6970 = vmatpush1.msra.mxu0 0.0
  %6971 = vmatprep.subr.mxu0 0.0
  %6972 = vmatpush1.msra.mxu0 0.0
  %6973 = vmatprep.subr.mxu0 0.0
  %6974 = vmatpush1.msra.mxu0 0.0
  %6975 = vmatprep.subr.mxu0 0.0
  %6976 = vmatpush1.msra.mxu0 0.0
  %6977 = vmatprep.subr.mxu0 0.0
  %6978 = vmatpush1.msra.mxu0 0.0
  %6979 = vmatprep.subr.mxu0 0.0
  %6980 = vmatpush1.msra.mxu0 0.0
  %6981 = vmatprep.subr.mxu0 0.0
  %6982 = vmatpush1.msra.mxu0 0.0
  %6983 = vmatprep.subr.mxu0 0.0
  %6984 = vmatpush1.msra.mxu0 0.0
  %6985 = vmatprep.subr.mxu0 0.0
  %6986 = vmatpush1.msra.mxu0 0.0
  %6987 = vmatprep.subr.mxu0 0.0
  %6988 = vmatpush1.msra.mxu0 0.0
  %6989 = vmatprep.subr.mxu0 0.0
  %6990 = vmatpush1.msra.mxu0 0.0
  %6991 = vmatprep.subr.mxu0 0.0
  %6992 = vmatpush1.msra.mxu0 0.0
  %6993 = vmatprep.subr.mxu0 0.0
  %6994 = vmatpush1.msra.mxu0 0.0
  %6995 = vmatprep.subr.mxu0 0.0
  %6996 = vmatpush1.msra.mxu0 0.0
  %6997 = vmatprep.subr.mxu0 0.0
  %6998 = vmatpush1.msra.mxu0 0.0
  %6999 = vmatprep.subr.mxu0 0.0
  %7000 = vmatpush1.msra.mxu0 %v6967
  %7001 = vmatprep.subr.mxu0 0.0
  %7002 = vmatpush2.msra.mxu0 0.0
  %7003 = vmatprep.subr.mxu0 0.0
  %7004 = vmatpush2.msra.mxu0 0.0
  %7005 = vmatprep.subr.mxu0 0.0
  %7006 = vmatpush2.msra.mxu0 0.0
  %7007 = vmatprep.subr.mxu0 0.0
  %7008 = vmatpush2.msra.mxu0 0.0
  %7009 = vmatprep.subr.mxu0 0.0
  %7010 = vmatpush2.msra.mxu0 0.0
  %7011 = vmatprep.subr.mxu0 0.0
  %7012 = vmatpush2.msra.mxu0 0.0
  %7013 = vmatprep.subr.mxu0 0.0
  %7014 = vmatpush2.msra.mxu0 0.0
  %7015 = vmatprep.subr.mxu0 0.0
  %7016 = vmatpush2.msra.mxu0 0.0
  %7017 = vmatprep.subr.mxu0 0.0
  %7018 = vmatpush2.msra.mxu0 0.0
  %7019 = vmatprep.subr.mxu0 0.0
  %7020 = vmatpush2.msra.mxu0 0.0
  %7021 = vmatprep.subr.mxu0 0.0
  %7022 = vmatpush2.msra.mxu0 0.0
  %7023 = vmatprep.subr.mxu0 0.0
  %7024 = vmatpush2.msra.mxu0 0.0
  %7025 = vmatprep.subr.mxu0 0.0
  %7026 = vmatpush2.msra.mxu0 0.0
  %7027 = vmatprep.subr.mxu0 0.0
  %7028 = vmatpush2.msra.mxu0 0.0
  %7029 = vmatprep.subr.mxu0 0.0
  %7030 = vmatpush2.msra.mxu0 0.0
  %7031 = vmatprep.subr.mxu0 0.0
  %7032 = vmatpush2.msra.mxu0 0.0
  %7033 = vmatprep.mubr.f32.mxu0 0.0
  %7034 = vmatmul.mubr.f32.gmra.mxu0 %v6942
  %v7035 = vpop.f32.mrf.mxu0
  %v7036 = vadd.f32 0.0, %v7035
  %v7037 = vpop.f32.mrf.mxu0
  %7038 = vmatprep.mubr.f32.mxu0 0.0
  %7039 = vmatmul.mubr.f32.gmra.mxu0 %v6945
  %v7040 = vpop.f32.mrf.mxu0
  %v7041 = vadd.f32 0.0, %v7040
  %v7042 = vpop.f32.mrf.mxu0
  %7043 = vmatprep.mubr.f32.mxu0 0.0
  %7044 = vmatmul.mubr.f32.gmra.mxu0 %v6948
  %v7045 = vpop.f32.mrf.mxu0
  %v7046 = vadd.f32 0.0, %v7045
  %v7047 = vpop.f32.mrf.mxu0
  %7048 = vmatprep.mubr.f32.mxu0 0.0
  %7049 = vmatmul.mubr.f32.gmra.mxu0 %v6951
  %v7050 = vpop.f32.mrf.mxu0
  %v7051 = vadd.f32 0.0, %v7050
  %v7052 = vpop.f32.mrf.mxu0
  %7053 = vmatprep.mubr.f32.mxu0 0.0
  %7054 = vmatmul.mubr.f32.gmra.mxu0 %v6954
  %v7055 = vpop.f32.mrf.mxu0
  %v7056 = vadd.f32 0.0, %v7055
  %v7057 = vpop.f32.mrf.mxu0
  %7058 = vmatprep.mubr.f32.mxu0 0.0
  %7059 = vmatmul.mubr.f32.gmra.mxu0 %v6957
  %v7060 = vpop.f32.mrf.mxu0
  %v7061 = vadd.f32 0.0, %v7060
  %v7062 = vpop.f32.mrf.mxu0
  %7063 = vmatprep.mubr.f32.mxu0 0.0
  %7064 = vmatmul.mubr.f32.gmra.mxu0 %v6960
  %v7065 = vpop.f32.mrf.mxu0
  %v7066 = vadd.f32 0.0, %v7065
  %v7067 = vpop.f32.mrf.mxu0
  %7068 = vmatprep.mubr.f32.mxu0 0.0
  %7069 = vmatmul.mubr.f32.gmra.mxu0 %v6963
  %v7070 = vpop.f32.mrf.mxu0
  %v7071 = vadd.f32 0.0, %v7070
  %v7072 = vpop.f32.mrf.mxu0
  %7073 = vdwg.mxu0
  %v7074 = vadd.f32 %v6924, %v7036
  %v7075 = vadd.f32 %v6925, %v7041
  %v7076 = vadd.f32 %v6926, %v7046
  %v7077 = vadd.f32 %v6927, %v7051
  %v7078 = vadd.f32 %v6928, %v7056
  %v7079 = vadd.f32 %v6929, %v7061
  %v7080 = vadd.f32 %v6930, %v7066
  %v7081 = vadd.f32 %v6931, %v7071
  %v7082 = vld [vmem:[%s8] sm:$0xff]
  %v7083 = vld [vmem:[%s8 + $0x8] sm:$0xff]
  %v7084 = vld [vmem:[%s8 + $0x10] sm:$0xff]
  %v7085 = vld [vmem:[%s8 + $0x18] sm:$0xff]
  %v7086 = vld [vmem:[%s8 + $0x20] sm:$0xff]
  %v7087 = vld [vmem:[%s8 + $0x28] sm:$0xff]
  %v7088 = vld [vmem:[%s8 + $0x30] sm:$0xff]
  %v7089 = vld [vmem:[%s8 + $0x38] sm:$0xff]
  %7091 = vset.pattern.permute.xlu0 0
  %7092 = vperm.xlu0 %7091, %v7082
  %v7093 = vpop.permute.xlu0 %7092
  %7096 = vset.pattern.permute.xlu0 0
  %7097 = vperm.xlu0 %7096, %v7083
  %v7098 = vpop.permute.xlu0 %7097
  %7101 = vset.pattern.permute.xlu0 0
  %7102 = vperm.xlu0 %7101, %v7084
  %v7103 = vpop.permute.xlu0 %7102
  %7106 = vset.pattern.permute.xlu0 0
  %7107 = vperm.xlu0 %7106, %v7085
  %v7108 = vpop.permute.xlu0 %7107
  %7111 = vset.pattern.permute.xlu0 0
  %7112 = vperm.xlu0 %7111, %v7086
  %v7113 = vpop.permute.xlu0 %7112
  %7116 = vset.pattern.permute.xlu0 0
  %7117 = vperm.xlu0 %7116, %v7087
  %v7118 = vpop.permute.xlu0 %7117
  %7121 = vset.pattern.permute.xlu0 0
  %7122 = vperm.xlu0 %7121, %v7088
  %v7123 = vpop.permute.xlu0 %7122
  %7126 = vset.pattern.permute.xlu0 0
  %7127 = vperm.xlu0 %7126, %v7089
  %v7128 = vpop.permute.xlu0 %7127
  %v7130 = vadd.f32 %v7074, %v7093
  %v7131 = vadd.f32 %v7075, %v7098
  %v7132 = vadd.f32 %v7076, %v7103
  %v7133 = vadd.f32 %v7077, %v7108
  %v7134 = vadd.f32 %v7078, %v7113
  %v7135 = vadd.f32 %v7079, %v7118
  %v7136 = vadd.f32 %v7080, %v7123
  %v7137 = vadd.f32 %v7081, %v7128
  %v7138 = vtanh.pop %v7130
  %v7139 = vtanh.pop %v7131
  %v7140 = vtanh.pop %v7132
  %v7141 = vtanh.pop %v7133
  %v7142 = vtanh.pop %v7134
  %v7143 = vtanh.pop %v7135
  %v7144 = vtanh.pop %v7136
  %v7145 = vtanh.pop %v7137
  %v7146 = vmul.f32 %v7138, 0.1
  %v7147 = vmul.f32 %v7139, 0.1
  %v7148 = vmul.f32 %v7140, 0.1
  %v7149 = vmul.f32 %v7141, 0.1
  %v7150 = vmul.f32 %v7142, 0.1
  %v7151 = vmul.f32 %v7143, 0.1
  %v7152 = vmul.f32 %v7144, 0.1
  %v7153 = vmul.f32 %v7145, 0.1
  %v7154 = vld [vmem:[%s9] sm:$0xff]
  %v7155 = vld [vmem:[%s9 + $0x8] sm:$0xf]
  %v7156 = vld [vmem:[%s10] sm:$0xff]
  %v7157 = vld [vmem:[%s10 + $0x8] sm:$0xf]
  %7159 = vset.pattern.permute.xlu0 0
  %7160 = vperm.xlu0 %7159, %v7156
  %v7161 = vpop.permute.xlu0 %7160
  %7164 = vset.pattern.permute.xlu0 0
  %7165 = vperm.xlu0 %7164, %v7157
  %v7166 = vpop.permute.xlu0 %7165
  %v7169 = vsel %vm5235, %v7154, 0
  %v7172 = vsel %vm5235, %v7155, 0
  %7174 = vmatprep.subr.mxu0 0.0
  %7175 = vmatpush1.msra.mxu0 0.0
  %7176 = vmatprep.subr.mxu0 0.0
  %7177 = vmatpush1.msra.mxu0 0.0
  %7178 = vmatprep.subr.mxu0 0.0
  %7179 = vmatpush1.msra.mxu0 0.0
  %7180 = vmatprep.subr.mxu0 0.0
  %7181 = vmatpush1.msra.mxu0 0.0
  %7182 = vmatprep.subr.mxu0 0.0
  %7183 = vmatpush1.msra.mxu0 0.0
  %7184 = vmatprep.subr.mxu0 0.0
  %7185 = vmatpush1.msra.mxu0 0.0
  %7186 = vmatprep.subr.mxu0 0.0
  %7187 = vmatpush1.msra.mxu0 0.0
  %7188 = vmatprep.subr.mxu0 0.0
  %7189 = vmatpush1.msra.mxu0 0.0
  %7190 = vmatprep.subr.mxu0 0.0
  %7191 = vmatpush1.msra.mxu0 %v7153
  %7192 = vmatprep.subr.mxu0 0.0
  %7193 = vmatpush1.msra.mxu0 %v7152
  %7194 = vmatprep.subr.mxu0 0.0
  %7195 = vmatpush1.msra.mxu0 %v7151
  %7196 = vmatprep.subr.mxu0 0.0
  %7197 = vmatpush1.msra.mxu0 %v7150
  %7198 = vmatprep.subr.mxu0 0.0
  %7199 = vmatpush1.msra.mxu0 %v7149
  %7200 = vmatprep.subr.mxu0 0.0
  %7201 = vmatpush1.msra.mxu0 %v7148
  %7202 = vmatprep.subr.mxu0 0.0
  %7203 = vmatpush1.msra.mxu0 %v7147
  %7204 = vmatprep.subr.mxu0 0.0
  %7205 = vmatpush1.msra.mxu0 %v7146
  %7206 = vmatprep.subr.mxu0 0.0
  %7207 = vmatpush2.msra.mxu0 0.0
  %7208 = vmatprep.subr.mxu0 0.0
  %7209 = vmatpush2.msra.mxu0 0.0
  %7210 = vmatprep.subr.mxu0 0.0
  %7211 = vmatpush2.msra.mxu0 0.0
  %7212 = vmatprep.subr.mxu0 0.0
  %7213 = vmatpush2.msra.mxu0 0.0
  %7214 = vmatprep.subr.mxu0 0.0
  %7215 = vmatpush2.msra.mxu0 0.0
  %7216 = vmatprep.subr.mxu0 0.0
  %7217 = vmatpush2.msra.mxu0 0.0
  %7218 = vmatprep.subr.mxu0 0.0
  %7219 = vmatpush2.msra.mxu0 0.0
  %7220 = vmatprep.subr.mxu0 0.0
  %7221 = vmatpush2.msra.mxu0 0.0
  %7222 = vmatprep.subr.mxu0 0.0
  %7223 = vmatpush2.msra.mxu0 0.0
  %7224 = vmatprep.subr.mxu0 0.0
  %7225 = vmatpush2.msra.mxu0 0.0
  %7226 = vmatprep.subr.mxu0 0.0
  %7227 = vmatpush2.msra.mxu0 0.0
  %7228 = vmatprep.subr.mxu0 0.0
  %7229 = vmatpush2.msra.mxu0 0.0
  %7230 = vmatprep.subr.mxu0 0.0
  %7231 = vmatpush2.msra.mxu0 0.0
  %7232 = vmatprep.subr.mxu0 0.0
  %7233 = vmatpush2.msra.mxu0 0.0
  %7234 = vmatprep.subr.mxu0 0.0
  %7235 = vmatpush2.msra.mxu0 0.0
  %7236 = vmatprep.subr.mxu0 0.0
  %7237 = vmatpush2.msra.mxu0 0.0
  %7238 = vmatprep.mubr.f32.mxu0 0.0
  %7239 = vmatmul.mubr.f32.gmra.mxu0 %v7169
  %v7240 = vpop.f32.mrf.mxu0
  %v7241 = vadd.f32 %v7161, %v7240
  %v7242 = vpop.f32.mrf.mxu0
  %7243 = vmatprep.mubr.f32.mxu0 0.0
  %7244 = vmatmul.mubr.f32.gmra.mxu0 %v7172
  %v7245 = vpop.f32.mrf.mxu0
  %v7246 = vadd.f32 %v7166, %v7245
  %v7247 = vpop.f32.mrf.mxu0
  %7248 = vdwg.mxu0
  %v7249 = vsub.f32 0.0, %v7246
  %v7250 = vmul.f32 %v7249, 1.442695
  %v7251 = vpow.pop %v7250
  %v7252 = vadd.f32 %v7251, 1.0
  %v7253 = vrcp.pop %v7252
  %v7254 = vmul.f32 1.0, %v7253
  %v7255 = vadd.f32 %v7254, 0.001
  %vm7256 = vcmask 9216
  %7257 = vst.msk [vmem:[%s13] sm:$0x3] %vm7256, %v7255
  %v7258 = vlaneseq
  %v7259 = vshrl.u32 %v7258, 7
  %v7260 = vsub.s32 2, %v7259
  %v7261 = vrot.slane %v7246, %v7260
  %v7262 = vlaneseq
  %v7263 = vshrl.u32 %v7262, 7
  %v7264 = vsub.s32 3, %v7263
  %v7265 = vrot.slane %v7246, %v7264
  %vm7266 = vcmask 1044480
  %v7267 = vsel %vm7266, %v7261, %v7265
  %vm7268 = vcmask 15360
  %7269 = vst.msk [vmem:[%s14] sm:$0xff] %vm7268, %v7267
  %7270 = vst.msk [vmem:[%s14 + $0x8] sm:$0x3] %vm7256, %v7265
  %v7271 = vmax.f32 %v7241, 0.5
  %v7272 = vmin.f32 %v7271, 30.0
  %v7273 = vmul.f32 %v7272, 0.25
  %v7274 = vld [vmem:[%s11] sm:$0xff]
  %v7275 = vld [vmem:[%s11 + $0x8] sm:$0x3]
  %v7277 = vrot.slane %v7241, 2
  %vm7278 = vcmask 48128
  %v7280 = vsel %vm7278, %v7274, 0
  %v7283 = vsel %vm7278, %v7275, 0
  %v7285 = vsel %vm6333, %v7277, 0
  %7287 = vmatprep.subr.mxu0 0.0
  %7288 = vmatpush1.msra.mxu0 0.0
  %7289 = vmatprep.subr.mxu0 0.0
  %7290 = vmatpush1.msra.mxu0 0.0
  %7291 = vmatprep.subr.mxu0 0.0
  %7292 = vmatpush1.msra.mxu0 0.0
  %7293 = vmatprep.subr.mxu0 0.0
  %7294 = vmatpush1.msra.mxu0 0.0
  %7295 = vmatprep.subr.mxu0 0.0
  %7296 = vmatpush1.msra.mxu0 0.0
  %7297 = vmatprep.subr.mxu0 0.0
  %7298 = vmatpush1.msra.mxu0 0.0
  %7299 = vmatprep.subr.mxu0 0.0
  %7300 = vmatpush1.msra.mxu0 0.0
  %7301 = vmatprep.subr.mxu0 0.0
  %7302 = vmatpush1.msra.mxu0 0.0
  %7303 = vmatprep.subr.mxu0 0.0
  %7304 = vmatpush1.msra.mxu0 0.0
  %7305 = vmatprep.subr.mxu0 0.0
  %7306 = vmatpush1.msra.mxu0 0.0
  %7307 = vmatprep.subr.mxu0 0.0
  %7308 = vmatpush1.msra.mxu0 0.0
  %7309 = vmatprep.subr.mxu0 0.0
  %7310 = vmatpush1.msra.mxu0 0.0
  %7311 = vmatprep.subr.mxu0 0.0
  %7312 = vmatpush1.msra.mxu0 0.0
  %7313 = vmatprep.subr.mxu0 0.0
  %7314 = vmatpush1.msra.mxu0 0.0
  %7315 = vmatprep.subr.mxu0 0.0
  %7316 = vmatpush1.msra.mxu0 0.0
  %7317 = vmatprep.subr.mxu0 0.0
  %7318 = vmatpush1.msra.mxu0 %v7285
  %7319 = vmatprep.subr.mxu0 0.0
  %7320 = vmatpush2.msra.mxu0 0.0
  %7321 = vmatprep.subr.mxu0 0.0
  %7322 = vmatpush2.msra.mxu0 0.0
  %7323 = vmatprep.subr.mxu0 0.0
  %7324 = vmatpush2.msra.mxu0 0.0
  %7325 = vmatprep.subr.mxu0 0.0
  %7326 = vmatpush2.msra.mxu0 0.0
  %7327 = vmatprep.subr.mxu0 0.0
  %7328 = vmatpush2.msra.mxu0 0.0
  %7329 = vmatprep.subr.mxu0 0.0
  %7330 = vmatpush2.msra.mxu0 0.0
  %7331 = vmatprep.subr.mxu0 0.0
  %7332 = vmatpush2.msra.mxu0 0.0
  %7333 = vmatprep.subr.mxu0 0.0
  %7334 = vmatpush2.msra.mxu0 0.0
  %7335 = vmatprep.subr.mxu0 0.0
  %7336 = vmatpush2.msra.mxu0 0.0
  %7337 = vmatprep.subr.mxu0 0.0
  %7338 = vmatpush2.msra.mxu0 0.0
  %7339 = vmatprep.subr.mxu0 0.0
  %7340 = vmatpush2.msra.mxu0 0.0
  %7341 = vmatprep.subr.mxu0 0.0
  %7342 = vmatpush2.msra.mxu0 0.0
  %7343 = vmatprep.subr.mxu0 0.0
  %7344 = vmatpush2.msra.mxu0 0.0
  %7345 = vmatprep.subr.mxu0 0.0
  %7346 = vmatpush2.msra.mxu0 0.0
  %7347 = vmatprep.subr.mxu0 0.0
  %7348 = vmatpush2.msra.mxu0 0.0
  %7349 = vmatprep.subr.mxu0 0.0
  %7350 = vmatpush2.msra.mxu0 0.0
  %7351 = vmatprep.mubr.f32.mxu0 0.0
  %7352 = vmatmul.mubr.f32.gmra.mxu0 %v7280
  %v7353 = vpop.f32.mrf.mxu0
  %v7354 = vadd.f32 0.0, %v7353
  %v7355 = vpop.f32.mrf.mxu0
  %7356 = vmatprep.mubr.f32.mxu0 0.0
  %7357 = vmatmul.mubr.f32.gmra.mxu0 %v7283
  %v7358 = vpop.f32.mrf.mxu0
  %v7359 = vpop.f32.mrf.mxu0
  %7360 = vdwg.mxu0
  %v7361 = vsub.f32 %v7241, %v44
  %v7362 = vmul.f32 %v7354, %v7361
  %v7363 = vlaneseq
  %v7364 = vshrl.u32 %v7363, 7
  %v7365 = vsub.s32 7, %v7364
  %v7366 = vrot.slane %v7273, %v7365
  %v7367 = vmul.f32 %v7366, %v7361
  %v7368 = vsub.f32 %v7367, 0.01
  %v7369 = vlaneseq
  %v7370 = vshrl.u32 %v7369, 7
  %v7371 = vsub.s32 7, %v7370
  %v7372 = vrot.slane %v7272, %v7371
  %v7373 = vmul.f32 %v7372, %v7368
  %v7374 = vadd.f32 %v7373, %v7362
  %v7375 = vadd.f32 %v44, 0.002
  %v7376 = vmul.f32 %v7374, 0.2
  %v7377 = vadd.f32 %v7376, 0.01
  %v7378 = vsub.f32 %v7375, %v44
  %v7380 = vrot.slane %v7361, 6
  %v7382 = vmul.f32 %v7354, %v7380
  %v7383 = vsub.f32 %v7241, %v7375
  %v7384 = vmul.f32 %v7366, %v7383
  %v7385 = vsub.f32 %v7384, %v7377
  %v7386 = vmul.f32 %v7372, %v7385
  %v7388 = vrot.slane %v7382, 2
  %v7390 = vadd.f32 %v7386, %v7388
  %v7391 = vmul.f32 %v7377, 0.2
  %v7392 = vadd.f32 %v7375, %v7391
  %v7393 = vmul.f32 %v7390, 0.2
  %v7394 = vadd.f32 %v7377, %v7393
  %v7395 = vsub.f32 %v7392, %v7375
  %v7396 = vrot.slane %v7361, 4
  %v7398 = vmul.f32 %v7354, %v7396
  %v7399 = vsub.f32 %v7241, %v7392
  %v7400 = vmul.f32 %v7366, %v7399
  %v7401 = vsub.f32 %v7400, %v7394
  %v7402 = vmul.f32 %v7372, %v7401
  %v7404 = vrot.slane %v7398, 4
  %v7406 = vadd.f32 %v7402, %v7404
  %v7407 = vmul.f32 %v7394, 0.2
  %v7408 = vadd.f32 %v7392, %v7407
  %v7409 = vmul.f32 %v7406, 0.2
  %v7410 = vadd.f32 %v7394, %v7409
  %v7411 = vsub.f32 %v7408, %v7392
  %v7412 = vrot.slane %v7361, 2
  %v7414 = vmul.f32 %v7354, %v7412
  %v7415 = vsub.f32 %v7241, %v7408
  %v7416 = vmul.f32 %v7366, %v7415
  %v7417 = vsub.f32 %v7416, %v7410
  %v7418 = vmul.f32 %v7372, %v7417
  %v7420 = vrot.slane %v7414, 6
  %v7422 = vadd.f32 %v7418, %v7420
  %v7423 = vmul.f32 %v7410, 0.2
  %v7424 = vadd.f32 %v7408, %v7423
  %v7425 = vmul.f32 %v7422, 0.2
  %v7426 = vadd.f32 %v7410, %v7425
  %v7427 = vsub.f32 %v7424, %v7408
  %v7428 = vmul.f32 %v7426, 0.2
  %v7429 = vadd.f32 %v7424, %v7428
  %v7430 = vsub.f32 %v7429, %v7424
  %v7432 = vrot.slane %v7395, 7
  %v7435 = vrot.slane %v7411, 6
  %v7438 = vrot.slane %v7427, 5
  %v7441 = vrot.slane %v7430, 4
  %v7444 = vrot.slane %v7378, 4
  %v7446 = vrot.slane %v7395, 3
  %v7448 = vrot.slane %v7411, 2
  %v7450 = vrot.slane %v7427, 1
  %v7452 = vsel %vm74, %v7378, %v7432
  %v7453 = vsel %vm1223, %v7452, %v7435
  %v7454 = vsel %vm6965, %v7453, %v7438
  %v7455 = vsel %vm6323, %v7454, %v7441
  %v7456 = vsel %vm7266, %v7455, %v7444
  %v7457 = vsel %vm6333, %v7456, %v7446
  %vm7458 = vcmask 1046528
  %v7459 = vsel %vm7458, %v7457, %v7448
  %v7460 = vsel %vm74, %v7450, %v7430
  %7461 = vst.msk [vmem:[%s12] sm:$0xff] %vm7268, %v7459
  %7462 = vst.msk [vmem:[%s12 + $0x8] sm:$0x3] %vm7256, %v7460
  // Predicated region
  $region50: #{forward.1} parent=0 // pred_check
    _
  $region51: #{forward.1} parent=0 // pred_check_branch
    %7464 = sbr.rel (0) target = $region53
  $region52: #{forward.1} parent=0 // pred_region
    _
  $region53: #{forward.1} parent=0 // pred_fallthru
    _
  // Predicated region
  $region54: #{forward.1} parent=0 // pred_check
    _
  $region55: #{forward.1} parent=0 // pred_check_branch
    %7466 = sbr.rel (0) target = $region57
  $region56: #{forward.1} parent=0 // pred_region
    _
  $region57: #{forward.1} parent=0 // pred_fallthru
    _
  // Predicated region
  $region58: #{forward.1} parent=0 // pred_check
    _
  $region59: #{forward.1} parent=0 // pred_check_branch
    %7468 = sbr.rel (0) target = $region61
  $region60: #{forward.1} parent=0 // pred_region
    _
  $region61: #{forward.1} parent=0 // pred_fallthru
    _
  // Predicated region
  $region62: #{forward.1} parent=0 // pred_check
    _
  $region63: #{forward.1} parent=0 // pred_check_branch
    %7470 = sbr.rel (0) target = $region65
  $region64: #{forward.1} parent=0 // pred_region
    _
  $region65: #{forward.1} parent=0 // pred_fallthru
    _
  // Predicated region
  $region66: #{forward.1} parent=0 // pred_check
    _
  $region67: #{forward.1} parent=0 // pred_check_branch
    %7472 = sbr.rel (0) target = $region69
  $region68: #{forward.1} parent=0 // pred_region
    _
  $region69: #{forward.1} parent=0 // pred_fallthru
    _
  // Predicated region
  $region70: #{forward.1} parent=0 // pred_check
    _
  $region71: #{forward.1} parent=0 // pred_check_branch
    %7474 = sbr.rel (0) target = $region73
  $region72: #{forward.1} parent=0 // pred_region
    _
  $region73: #{forward.1} parent=0 // pred_fallthru
    _

</llo_original>
